<compile_context>
chip_gen: v5e
topology: v5e:2x2
jax: 0.10.0
libtpu: 0.0.40
codegen_flags: <defaults>
</compile_context>

<pallas_src>
import jax
import jax.numpy as jnp
from jax.experimental import pallas as pl
from jax.experimental.pallas import tpu as pltpu


# ------------------------------------------------------------------ kernel ---

def fused_forward_kernel(xp_ref, mask_ref, weff_ref, beff_ref, b2_ref,
                         g_ref, bt_ref, o_ref):
    """Collapsed conv1∘conv2 -> BatchNorm (batch stats) -> Sigmoid.

    xp_ref   : (Cin, M)      x zero-padded by 2, channel-major
    mask_ref : (1, M)        0 on the outer ring of the 68x68 grid, 1 elsewhere
    weff_ref : (Cchunk, Cin) this program's slice of W_eff = w2^T @ w1^T
    beff_ref : (Cchunk, 1)   slice of b_eff = w2^T @ b1
    b2_ref   : (Cchunk, 1)   conv2 bias slice
    g_ref    : (Cchunk, 1)   BN gamma slice
    bt_ref   : (Cchunk, 1)   BN beta slice
    o_ref    : (Cchunk, M)   output block (channel-major == NCHW for N=1)
    """
    cin = xp_ref.shape[0]

    # z = b2 + mask*b_eff + sum_c W_eff[:,c] * xp[c,:]
    #   - xp is zero on the outer ring, so masking only the b_eff term exactly
    #     reproduces conv2's zero-padded border (where z == b2).
    #   - built as a single expression: one store, no scratch RMW sweeps.
    z = b2_ref[...] + beff_ref[...] * mask_ref[...]
    for c in range(cin):                                   # static unroll (3 FMAs)
        z = z + weff_ref[:, c:c + 1] * xp_ref[c:c + 1, :]

    # BatchNorm2d (training-mode batch statistics, two-pass variance) + Sigmoid.
    # Channels are independent, so per-chunk stats are exact.
    inv_m = 1.0 / z.shape[1]
    mean = jnp.sum(z, axis=1, keepdims=True) * inv_m
    centered = z - mean
    var = jnp.sum(centered * centered, axis=1, keepdims=True) * inv_m
    scale = g_ref[...] * jax.lax.rsqrt(var + 1e-5)
    o_ref[...] = jax.nn.sigmoid(centered * scale + bt_ref[...])


# ----------------------------------------------------------------- wrapper ---

def model_forward(x, params, n_chunks=2):
    """x: NCHW float32 (N, 3, H, W). Returns NCHW (N, 128, H+4, W+4)."""
    w1, b1, w2, b2, gamma, beta = params          # w1:(Cin,Cout)  w2:(Cout,Cout)
    N, Cin, H, W = x.shape
    Cout = w1.shape[1]
    Hp, Wp = H + 4, W + 4                          # two 1x1 convs, each padding=1
    M = N * Hp * Wp

    # --- tiny host-side prep (tens of KB) -----------------------------------
    # Pad x by 2, flatten channel-major; build the outer-ring mask.
    xp = jnp.pad(x, ((0, 0), (0, 0), (2, 2), (2, 2)))            # (N, Cin, Hp, Wp)
    xp_flat = jnp.transpose(xp, (1, 0, 2, 3)).reshape(Cin, M)    # (Cin, M)

    rows = jnp.arange(Hp)
    cols = jnp.arange(Wp)
    inner = (((rows > 0) & (rows < Hp - 1))[:, None]
             & ((cols > 0) & (cols < Wp - 1))[None, :]).astype(jnp.float32)
    mask = jnp.broadcast_to(inner[None], (N, Hp, Wp)).reshape(1, M)

    # Collapse the two 1x1 convs (trivial host-side matmuls on tiny weights).
    w_eff = w2.T @ w1.T                             # (Cout, Cin)
    b_eff = w2.T @ b1                               # (Cout,)

    if Cout % n_chunks or (Cout // n_chunks) % 8:
        n_chunks = 1
    cchunk = Cout // n_chunks

    out_flat = pl.pallas_call(
        fused_forward_kernel,
        out_shape=jax.ShapeDtypeStruct((Cout, M), jnp.float32),
        grid_spec=pltpu.PrefetchScalarGridSpec(
            num_scalar_prefetch=0,
            grid=(n_chunks,),
            in_specs=[
                pl.BlockSpec((Cin, M), lambda i: (0, 0)),         # xp (full)
                pl.BlockSpec((1, M), lambda i: (0, 0)),           # ring mask
                pl.BlockSpec((cchunk, Cin), lambda i: (i, 0)),    # W_eff chunk
                pl.BlockSpec((cchunk, 1), lambda i: (i, 0)),      # b_eff chunk
                pl.BlockSpec((cchunk, 1), lambda i: (i, 0)),      # b2 chunk
                pl.BlockSpec((cchunk, 1), lambda i: (i, 0)),      # gamma chunk
                pl.BlockSpec((cchunk, 1), lambda i: (i, 0)),      # beta chunk
            ],
            out_specs=pl.BlockSpec((cchunk, M), lambda i: (i, 0)),
        ),
        compiler_params=pltpu.CompilerParams(
            dimension_semantics=("parallel",),
        ),
    )(xp_flat, mask, w_eff,
      b_eff.reshape(Cout, 1), b2.reshape(Cout, 1),
      gamma.reshape(Cout, 1), beta.reshape(Cout, 1))

    # (Cout, M) is already channel-major; for N == 1 this is a free relabeling.
    out = out_flat.reshape(Cout, N, Hp, Wp)
    return jnp.transpose(out, (1, 0, 2, 3))


def ref_forward(x, params):
    """Pure-JAX reference (two separate convs) for sanity checking."""
    w1, b1, w2, b2, gamma, beta = params
    xp = jnp.pad(x, ((0, 0), (0, 0), (1, 1), (1, 1)))
    v1 = jnp.einsum('nchw,cd->ndhw', xp, w1) + b1[None, :, None, None]
    v1p = jnp.pad(v1, ((0, 0), (0, 0), (1, 1), (1, 1)))
    z = jnp.einsum('nchw,cd->ndhw', v1p, w2) + b2[None, :, None, None]
    mean = jnp.mean(z, axis=(0, 2, 3), keepdims=True)
    var = jnp.var(z, axis=(0, 2, 3), keepdims=True)
    y = (z - mean) / jnp.sqrt(var + 1e-5)
    y = y * gamma[None, :, None, None] + beta[None, :, None, None]
    return jax.nn.sigmoid(y)


if __name__ == "__main__":
    key = jax.random.PRNGKey(0)
    k_x, k_w1, k_b1, k_w2, k_b2, k_g, k_bt = jax.random.split(key, 7)

    in_channels, out_channels = 3, 128
    N, H, W = 1, 64, 64

    x = jax.random.normal(k_x, (N, in_channels, H, W), dtype=jnp.float32)

    # Deterministic synthetic parameters (shapes follow the module).
    w1 = jax.random.normal(k_w1, (in_channels, out_channels), jnp.float32) * (1.0 / jnp.sqrt(in_channels))
    b1 = jax.random.normal(k_b1, (out_channels,), jnp.float32) * 0.1
    w2 = jax.random.normal(k_w2, (out_channels, out_channels), jnp.float32) * (1.0 / jnp.sqrt(out_channels))
    b2 = jax.random.normal(k_b2, (out_channels,), jnp.float32) * 0.1
    gamma = 1.0 + 0.1 * jax.random.normal(k_g, (out_channels,), jnp.float32)
    beta = 0.1 * jax.random.normal(k_bt, (out_channels,), jnp.float32)
    params = (w1, b1, w2, b2, gamma, beta)

    fwd = jax.jit(model_forward)
    out = jax.block_until_ready(fwd(x, params))
    assert out.shape == (N, out_channels, H + 4, W + 4), out.shape

    ref = jax.block_until_ready(ref_forward(x, params))
    err = float(jnp.max(jnp.abs(out - ref)))
    assert jnp.allclose(out, ref, atol=1e-4, rtol=1e-4), err

    print("KERNEL_OK")
</pallas_src>

<mosaic_0001>
module attributes {stable_mosaic.version = 11 : i64} {
  func.func @fused_forward_kernel(%arg0: i32, %arg1: memref<3x4624xf32, #tpu.memory_space<vmem>>, %arg2: memref<1x4624xf32, #tpu.memory_space<vmem>>, %arg3: memref<64x3xf32, #tpu.memory_space<vmem>>, %arg4: memref<64x1xf32, #tpu.memory_space<vmem>>, %arg5: memref<64x1xf32, #tpu.memory_space<vmem>>, %arg6: memref<64x1xf32, #tpu.memory_space<vmem>>, %arg7: memref<64x1xf32, #tpu.memory_space<vmem>>, %arg8: memref<64x4624xf32, #tpu.memory_space<vmem>>) attributes {dimension_semantics = [#tpu.dimension_semantics<parallel>], iteration_bounds = array<i64: 2>, scalar_prefetch = 0 : i64, scratch_operands = 0 : i64, tpu.core_type = #tpu.core_type<tc>, window_params = [{pipeline_mode = #tpu.pipeline_mode<synchronous>, transform_indices = @transform_0, window_bounds = array<i64: 3, 4624>}, {pipeline_mode = #tpu.pipeline_mode<synchronous>, transform_indices = @transform_1, window_bounds = array<i64: 1, 4624>}, {transform_indices = @transform_2, window_bounds = array<i64: 64, 3>}, {transform_indices = @transform_3, window_bounds = array<i64: 64, 1>}, {transform_indices = @transform_4, window_bounds = array<i64: 64, 1>}, {transform_indices = @transform_5, window_bounds = array<i64: 64, 1>}, {transform_indices = @transform_6, window_bounds = array<i64: 64, 1>}, {transform_indices = @transform_7, window_bounds = array<i64: 64, 4624>}]} {
    %c0 = arith.constant 0 : index
    %c0_0 = arith.constant 0 : index
    %0 = vector.load %arg5[%c0, %c0_0] : memref<64x1xf32, #tpu.memory_space<vmem>>, vector<64x1xf32>
    %c0_1 = arith.constant 0 : index
    %c0_2 = arith.constant 0 : index
    %1 = vector.load %arg4[%c0_1, %c0_2] : memref<64x1xf32, #tpu.memory_space<vmem>>, vector<64x1xf32>
    %c0_3 = arith.constant 0 : index
    %c0_4 = arith.constant 0 : index
    %2 = vector.load %arg2[%c0_3, %c0_4] : memref<1x4624xf32, #tpu.memory_space<vmem>>, vector<1x4624xf32>
    %3 = vector.broadcast %1 : vector<64x1xf32> to vector<64x4624xf32>
    %4 = vector.broadcast %2 : vector<1x4624xf32> to vector<64x4624xf32>
    %5 = arith.mulf %3, %4 : vector<64x4624xf32>
    %6 = vector.broadcast %0 : vector<64x1xf32> to vector<64x4624xf32>
    %7 = arith.addf %6, %5 : vector<64x4624xf32>
    %c0_5 = arith.constant 0 : index
    %c0_6 = arith.constant 0 : index
    %8 = vector.load %arg3[%c0_5, %c0_6] : memref<64x3xf32, #tpu.memory_space<vmem>>, vector<64x1xf32>
    %c0_7 = arith.constant 0 : index
    %c0_8 = arith.constant 0 : index
    %9 = vector.load %arg1[%c0_7, %c0_8] : memref<3x4624xf32, #tpu.memory_space<vmem>>, vector<1x4624xf32>
    %10 = vector.broadcast %8 : vector<64x1xf32> to vector<64x4624xf32>
    %11 = vector.broadcast %9 : vector<1x4624xf32> to vector<64x4624xf32>
    %12 = arith.mulf %10, %11 : vector<64x4624xf32>
    %13 = arith.addf %7, %12 : vector<64x4624xf32>
    %c0_9 = arith.constant 0 : index
    %c1 = arith.constant 1 : index
    %14 = vector.load %arg3[%c0_9, %c1] : memref<64x3xf32, #tpu.memory_space<vmem>>, vector<64x1xf32>
    %c1_10 = arith.constant 1 : index
    %c0_11 = arith.constant 0 : index
    %15 = vector.load %arg1[%c1_10, %c0_11] : memref<3x4624xf32, #tpu.memory_space<vmem>>, vector<1x4624xf32>
    %16 = vector.broadcast %14 : vector<64x1xf32> to vector<64x4624xf32>
    %17 = vector.broadcast %15 : vector<1x4624xf32> to vector<64x4624xf32>
    %18 = arith.mulf %16, %17 : vector<64x4624xf32>
    %19 = arith.addf %13, %18 : vector<64x4624xf32>
    %c0_12 = arith.constant 0 : index
    %c2 = arith.constant 2 : index
    %20 = vector.load %arg3[%c0_12, %c2] : memref<64x3xf32, #tpu.memory_space<vmem>>, vector<64x1xf32>
    %c2_13 = arith.constant 2 : index
    %c0_14 = arith.constant 0 : index
    %21 = vector.load %arg1[%c2_13, %c0_14] : memref<3x4624xf32, #tpu.memory_space<vmem>>, vector<1x4624xf32>
    %22 = vector.broadcast %20 : vector<64x1xf32> to vector<64x4624xf32>
    %23 = vector.broadcast %21 : vector<1x4624xf32> to vector<64x4624xf32>
    %24 = arith.mulf %22, %23 : vector<64x4624xf32>
    %25 = arith.addf %19, %24 : vector<64x4624xf32>
    %cst = arith.constant dense<0.000000e+00> : vector<64xf32>
    %26 = vector.multi_reduction <add>, %25, %cst [1] : vector<64x4624xf32> to vector<64xf32>
    %27 = vector.shape_cast %26 : vector<64xf32> to vector<64x1xf32>
    %cst_15 = arith.constant 2.16262983E-4 : f32
    %28 = vector.broadcast %cst_15 : f32 to vector<64x1xf32>
    %29 = arith.mulf %27, %28 : vector<64x1xf32>
    %30 = vector.broadcast %29 : vector<64x1xf32> to vector<64x4624xf32>
    %31 = arith.subf %25, %30 : vector<64x4624xf32>
    %32 = arith.mulf %31, %31 : vector<64x4624xf32>
    %cst_16 = arith.constant dense<0.000000e+00> : vector<64xf32>
    %33 = vector.multi_reduction <add>, %32, %cst_16 [1] : vector<64x4624xf32> to vector<64xf32>
    %34 = vector.shape_cast %33 : vector<64xf32> to vector<64x1xf32>
    %cst_17 = arith.constant 2.16262983E-4 : f32
    %35 = vector.broadcast %cst_17 : f32 to vector<64x1xf32>
    %36 = arith.mulf %34, %35 : vector<64x1xf32>
    %c0_18 = arith.constant 0 : index
    %c0_19 = arith.constant 0 : index
    %37 = vector.load %arg6[%c0_18, %c0_19] : memref<64x1xf32, #tpu.memory_space<vmem>>, vector<64x1xf32>
    %cst_20 = arith.constant 9.99999974E-6 : f32
    %38 = vector.broadcast %cst_20 : f32 to vector<64x1xf32>
    %39 = arith.addf %36, %38 : vector<64x1xf32>
    %40 = math.rsqrt %39 : vector<64x1xf32>
    %41 = arith.mulf %37, %40 : vector<64x1xf32>
    %42 = vector.broadcast %41 : vector<64x1xf32> to vector<64x4624xf32>
    %43 = arith.mulf %31, %42 : vector<64x4624xf32>
    %c0_21 = arith.constant 0 : index
    %c0_22 = arith.constant 0 : index
    %44 = vector.load %arg7[%c0_21, %c0_22] : memref<64x1xf32, #tpu.memory_space<vmem>>, vector<64x1xf32>
    %45 = vector.broadcast %44 : vector<64x1xf32> to vector<64x4624xf32>
    %46 = arith.addf %43, %45 : vector<64x4624xf32>
    %47 = arith.negf %46 : vector<64x4624xf32>
    %48 = math.exp %47 : vector<64x4624xf32>
    %cst_23 = arith.constant 1.000000e+00 : f32
    %49 = vector.broadcast %cst_23 : f32 to vector<64x4624xf32>
    %50 = arith.addf %49, %48 : vector<64x4624xf32>
    %51 = arith.divf %49, %50 : vector<64x4624xf32>
    %c0_24 = arith.constant 0 : index
    %c0_25 = arith.constant 0 : index
    %52 = vector.load %arg8[%c0_24, %c0_25] : memref<64x4624xf32, #tpu.memory_space<vmem>>, vector<64x4624xf32>
    tpu.vector_store %arg8[%c0_24, %c0_25], %51 {strides = array<i32>} : memref<64x4624xf32, #tpu.memory_space<vmem>>, vector<64x4624xf32>,
    return
  }
  func.func @transform_0(%arg0: i32) -> (i32, i32) {
    %c0_i32 = arith.constant 0 : i32
    %c0_i32_0 = arith.constant 0 : i32
    %c0_i32_1 = arith.constant 0 : i32
    return %c0_i32, %c0_i32_0 : i32, i32
  }
  func.func @transform_1(%arg0: i32) -> (i32, i32) {
    %c0_i32 = arith.constant 0 : i32
    %c0_i32_0 = arith.constant 0 : i32
    %c0_i32_1 = arith.constant 0 : i32
    return %c0_i32, %c0_i32_0 : i32, i32
  }
  func.func @transform_2(%arg0: i32) -> (i32, i32) {
    %c0_i32 = arith.constant 0 : i32
    %c0_i32_0 = arith.constant 0 : i32
    return %arg0, %c0_i32 : i32, i32
  }
  func.func @transform_3(%arg0: i32) -> (i32, i32) {
    %c0_i32 = arith.constant 0 : i32
    %c0_i32_0 = arith.constant 0 : i32
    return %arg0, %c0_i32 : i32, i32
  }
  func.func @transform_4(%arg0: i32) -> (i32, i32) {
    %c0_i32 = arith.constant 0 : i32
    %c0_i32_0 = arith.constant 0 : i32
    return %arg0, %c0_i32 : i32, i32
  }
  func.func @transform_5(%arg0: i32) -> (i32, i32) {
    %c0_i32 = arith.constant 0 : i32
    %c0_i32_0 = arith.constant 0 : i32
    return %arg0, %c0_i32 : i32, i32
  }
  func.func @transform_6(%arg0: i32) -> (i32, i32) {
    %c0_i32 = arith.constant 0 : i32
    %c0_i32_0 = arith.constant 0 : i32
    return %arg0, %c0_i32 : i32, i32
  }
  func.func @transform_7(%arg0: i32) -> (i32, i32) {
    %c0_i32 = arith.constant 0 : i32
    %c0_i32_0 = arith.constant 0 : i32
    return %arg0, %c0_i32 : i32, i32
  }
}

</mosaic_0001>

<llo_original>
// kernel: model_forward.1
$region0: #{model_forward.1}
  #allocation0 [shape = 'u32[]', space=smem, size = 0x4, offset = 0x4, fixed_abs, tag = 'smem constant byte address 0x4 - core index']
  #allocation1 [shape = 'u32[72,128]{1,0:T(1,128)}', space=vmem, size = 0x9000, scoped, tag = 'internal scratch']
  %s0 = inlined_call_operand.vmem [shape: f32[3,4624], index: 0, kind: input, shape index: {}]
  %s1 = inlined_call_operand.vmem [shape: f32[1,4624], index: 1, kind: input, shape index: {}]
  %s2 = inlined_call_operand.vmem [shape: f32[128,3], index: 2, kind: input, shape index: {}]
  %s3 = inlined_call_operand.vmem [shape: f32[128,1], index: 3, kind: input, shape index: {}]
  %s4 = inlined_call_operand.vmem [shape: f32[128,1], index: 4, kind: input, shape index: {}]
  %s5 = inlined_call_operand.vmem [shape: f32[128,1], index: 5, kind: input, shape index: {}]
  %s6 = inlined_call_operand.vmem [shape: f32[128,1], index: 6, kind: input, shape index: {}]
  %s7 = inlined_call_operand.vmem [shape: f32[128,4624], index: 7, kind: output, shape index: {}]
  %s8 = sld [smem:[#allocation0]]
  $region61: #{model_forward.1} parent=0
    _
  %s10 = ssub.s32 1, %s8
  %s11 = scalar_select 0, %s10, %s8
  loop: start=0, step=1, limit=4
  $region2: #{model_forward.1} parent=0 // loop_pre_header
    _
  $region3: #{model_forward.1} parent=0 // loop_header
    %s13 = sphi 0, %s17
    %p14 = scmp.ge.s32.totalorder %s13, 4
    %s21 = sphi 0, %s21
    %s23 = sphi 0, %s21
    %s24 = sphi 0, %s23
    %s38 = sphi 0, %s24
    %s42 = sphi 0, %s42
    %s44 = sphi 0, %s42
    %s45 = sphi 0, %s44
    %s59 = sphi 0, %s45
    %s65 = sphi 0, %s67
    %s68 = sphi 0, %s65
    %s69 = sphi 0, %s68
    %s85 = sphi 0, %s69
    %s91 = sphi 0, %s93
    %s94 = sphi 0, %s91
    %s95 = sphi 0, %s94
    %s111 = sphi 0, %s95
    %s117 = sphi 0, %s119
    %s120 = sphi 0, %s117
    %s121 = sphi 0, %s120
    %s137 = sphi 0, %s121
    %s143 = sphi 0, %s145
    %s146 = sphi 0, %s143
    %s147 = sphi 0, %s146
    %s163 = sphi 0, %s147
    %s169 = sphi 0, %s171
    %s172 = sphi 0, %s169
    %s173 = sphi 0, %s172
    %s189 = sphi 0, %s173
    %s195 = sphi 0, %s197
    %s198 = sphi 0, %s195
    %s199 = sphi 0, %s198
    %s215 = sphi 0, %s199
  $region4: #{model_forward.1} parent=0 // loop_header_branch
    %16 = sbr.rel (%p14) target = $region8
  $region5: #{model_forward.1} parent=0 // loop_body
    %s18 = ssub.s32 %s13, 1
    %s19 = ssub.s32 %s13, 2
    %s20 = sadd.s32 %s13, 1
    %s22 = sadd.s32 %s21, 1
    %p25 = scmp.eq.s32.totalorder %s13, 1
    %p26 = scmp.ne.s32.totalorder %s21, %s23
    %p27 = scmp.eq.s32.totalorder %s13, 0
    %p28 = por %p26, %p27
    %p29 = scmp.ne.s32.totalorder %s21, %s23
    %p30 = scmp.eq.s32.totalorder %s18, 1
    %p31 = por %p29, %p30
    %p32 = scmp.ne.s32.totalorder %s23, %s24
    %p33 = scmp.eq.s32.totalorder %s18, 0
    %p34 = por %p32, %p33
    %p35 = scmp.ne.s32.totalorder %s23, %s24
    %p36 = scmp.eq.s32.totalorder %s19, 1
    %p37 = por %p35, %p36
    %p39 = scmp.ne.s32.totalorder %s24, %s38
    %p40 = scmp.eq.s32.totalorder %s19, 0
    %p41 = por %p39, %p40
    %s43 = sadd.s32 %s42, 1
    %p46 = scmp.eq.s32.totalorder %s13, 1
    %p47 = scmp.ne.s32.totalorder %s42, %s44
    %p48 = scmp.eq.s32.totalorder %s13, 0
    %p49 = por %p47, %p48
    %p50 = scmp.ne.s32.totalorder %s42, %s44
    %p51 = scmp.eq.s32.totalorder %s18, 1
    %p52 = por %p50, %p51
    %p53 = scmp.ne.s32.totalorder %s44, %s45
    %p54 = scmp.eq.s32.totalorder %s18, 0
    %p55 = por %p53, %p54
    %p56 = scmp.ne.s32.totalorder %s44, %s45
    %p57 = scmp.eq.s32.totalorder %s19, 1
    %p58 = por %p56, %p57
    %p60 = scmp.ne.s32.totalorder %s45, %s59
    %p61 = scmp.eq.s32.totalorder %s19, 0
    %p62 = por %p60, %p61
    %s63 = ssub.s32 %s13, %s20
    %p64 = scmp.eq.s32.totalorder %s63, 0
    %s66 = sadd.s32 %s65, 1
    %s67 = scalar_select %p64, %s65, %s66
    %p70 = pneg %p64
    %p71 = scmp.eq.s32.totalorder %s13, 1
    %p72 = por %p70, %p71
    %p73 = scmp.ne.s32.totalorder %s65, %s68
    %p74 = scmp.eq.s32.totalorder %s13, 0
    %p75 = por %p73, %p74
    %p76 = scmp.ne.s32.totalorder %s65, %s68
    %p77 = scmp.eq.s32.totalorder %s18, 1
    %p78 = por %p76, %p77
    %p79 = scmp.ne.s32.totalorder %s68, %s69
    %p80 = scmp.eq.s32.totalorder %s18, 0
    %p81 = por %p79, %p80
    %p82 = scmp.ne.s32.totalorder %s68, %s69
    %p83 = scmp.eq.s32.totalorder %s19, 1
    %p84 = por %p82, %p83
    %p86 = scmp.ne.s32.totalorder %s69, %s85
    %p87 = scmp.eq.s32.totalorder %s19, 0
    %p88 = por %p86, %p87
    %s89 = ssub.s32 %s13, %s20
    %p90 = scmp.eq.s32.totalorder %s89, 0
    %s92 = sadd.s32 %s91, 1
    %s93 = scalar_select %p90, %s91, %s92
    %p96 = pneg %p90
    %p97 = scmp.eq.s32.totalorder %s13, 1
    %p98 = por %p96, %p97
    %p99 = scmp.ne.s32.totalorder %s91, %s94
    %p100 = scmp.eq.s32.totalorder %s13, 0
    %p101 = por %p99, %p100
    %p102 = scmp.ne.s32.totalorder %s91, %s94
    %p103 = scmp.eq.s32.totalorder %s18, 1
    %p104 = por %p102, %p103
    %p105 = scmp.ne.s32.totalorder %s94, %s95
    %p106 = scmp.eq.s32.totalorder %s18, 0
    %p107 = por %p105, %p106
    %p108 = scmp.ne.s32.totalorder %s94, %s95
    %p109 = scmp.eq.s32.totalorder %s19, 1
    %p110 = por %p108, %p109
    %p112 = scmp.ne.s32.totalorder %s95, %s111
    %p113 = scmp.eq.s32.totalorder %s19, 0
    %p114 = por %p112, %p113
    %s115 = ssub.s32 %s13, %s20
    %p116 = scmp.eq.s32.totalorder %s115, 0
    %s118 = sadd.s32 %s117, 1
    %s119 = scalar_select %p116, %s117, %s118
    %p122 = pneg %p116
    %p123 = scmp.eq.s32.totalorder %s13, 1
    %p124 = por %p122, %p123
    %p125 = scmp.ne.s32.totalorder %s117, %s120
    %p126 = scmp.eq.s32.totalorder %s13, 0
    %p127 = por %p125, %p126
    %p128 = scmp.ne.s32.totalorder %s117, %s120
    %p129 = scmp.eq.s32.totalorder %s18, 1
    %p130 = por %p128, %p129
    %p131 = scmp.ne.s32.totalorder %s120, %s121
    %p132 = scmp.eq.s32.totalorder %s18, 0
    %p133 = por %p131, %p132
    %p134 = scmp.ne.s32.totalorder %s120, %s121
    %p135 = scmp.eq.s32.totalorder %s19, 1
    %p136 = por %p134, %p135
    %p138 = scmp.ne.s32.totalorder %s121, %s137
    %p139 = scmp.eq.s32.totalorder %s19, 0
    %p140 = por %p138, %p139
    %s141 = ssub.s32 %s13, %s20
    %p142 = scmp.eq.s32.totalorder %s141, 0
    %s144 = sadd.s32 %s143, 1
    %s145 = scalar_select %p142, %s143, %s144
    %p148 = pneg %p142
    %p149 = scmp.eq.s32.totalorder %s13, 1
    %p150 = por %p148, %p149
    %p151 = scmp.ne.s32.totalorder %s143, %s146
    %p152 = scmp.eq.s32.totalorder %s13, 0
    %p153 = por %p151, %p152
    %p154 = scmp.ne.s32.totalorder %s143, %s146
    %p155 = scmp.eq.s32.totalorder %s18, 1
    %p156 = por %p154, %p155
    %p157 = scmp.ne.s32.totalorder %s146, %s147
    %p158 = scmp.eq.s32.totalorder %s18, 0
    %p159 = por %p157, %p158
    %p160 = scmp.ne.s32.totalorder %s146, %s147
    %p161 = scmp.eq.s32.totalorder %s19, 1
    %p162 = por %p160, %p161
    %p164 = scmp.ne.s32.totalorder %s147, %s163
    %p165 = scmp.eq.s32.totalorder %s19, 0
    %p166 = por %p164, %p165
    %s167 = ssub.s32 %s13, %s20
    %p168 = scmp.eq.s32.totalorder %s167, 0
    %s170 = sadd.s32 %s169, 1
    %s171 = scalar_select %p168, %s169, %s170
    %p174 = pneg %p168
    %p175 = scmp.eq.s32.totalorder %s13, 1
    %p176 = por %p174, %p175
    %p177 = scmp.ne.s32.totalorder %s169, %s172
    %p178 = scmp.eq.s32.totalorder %s13, 0
    %p179 = por %p177, %p178
    %p180 = scmp.ne.s32.totalorder %s169, %s172
    %p181 = scmp.eq.s32.totalorder %s18, 1
    %p182 = por %p180, %p181
    %p183 = scmp.ne.s32.totalorder %s172, %s173
    %p184 = scmp.eq.s32.totalorder %s18, 0
    %p185 = por %p183, %p184
    %p186 = scmp.ne.s32.totalorder %s172, %s173
    %p187 = scmp.eq.s32.totalorder %s19, 1
    %p188 = por %p186, %p187
    %p190 = scmp.ne.s32.totalorder %s173, %s189
    %p191 = scmp.eq.s32.totalorder %s19, 0
    %p192 = por %p190, %p191
    %s193 = ssub.s32 %s13, %s20
    %p194 = scmp.eq.s32.totalorder %s193, 0
    %s196 = sadd.s32 %s195, 1
    %s197 = scalar_select %p194, %s195, %s196
    %p200 = pneg %p194
    %p201 = scmp.eq.s32.totalorder %s13, 1
    %p202 = por %p200, %p201
    %p203 = scmp.ne.s32.totalorder %s195, %s198
    %p204 = scmp.eq.s32.totalorder %s13, 0
    %p205 = por %p203, %p204
    %p206 = scmp.ne.s32.totalorder %s195, %s198
    %p207 = scmp.eq.s32.totalorder %s18, 1
    %p208 = por %p206, %p207
    %p209 = scmp.ne.s32.totalorder %s198, %s199
    %p210 = scmp.eq.s32.totalorder %s18, 0
    %p211 = por %p209, %p210
    %p212 = scmp.ne.s32.totalorder %s198, %s199
    %p213 = scmp.eq.s32.totalorder %s19, 1
    %p214 = por %p212, %p213
    %p216 = scmp.ne.s32.totalorder %s199, %s215
    %p217 = scmp.eq.s32.totalorder %s19, 0
    %p218 = por %p216, %p217
    %p219 = scmp.le.s32.totalorder 1, %s13
    %p220 = scmp.lt.s32.totalorder %s13, 3
    %p221 = pnand %p219, %p220
    %p222 = pneg %p221
    // Predicated region
    $region9: #{model_forward.1} parent=5 // pred_check
      _
    $region10: #{model_forward.1} parent=5 // pred_check_branch
      %224 = sbr.rel (%p221) target = $region12
    $region11: #{model_forward.1} parent=5 // pred_region
      %s225 = ssub.s32 %s13, 1
      // Predicated region
      $region13: #{model_forward.1} parent=11 // pred_check
        %p226 = pneg %p34
      $region14: #{model_forward.1} parent=11 // pred_check_branch
        %228 = sbr.rel (%p226) target = $region16
      $region15: #{model_forward.1} parent=11 // pred_region
        _
      $region16: #{model_forward.1} parent=11 // pred_fallthru
        _
      // Predicated region
      $region17: #{model_forward.1} parent=11 // pred_check
        %p229 = pneg %p55
      $region18: #{model_forward.1} parent=11 // pred_check_branch
        %231 = sbr.rel (%p229) target = $region20
      $region19: #{model_forward.1} parent=11 // pred_region
        _
      $region20: #{model_forward.1} parent=11 // pred_fallthru
        _
    $region12: #{model_forward.1} parent=5 // pred_fallthru
      _
    %p232 = scmp.lt.s32.totalorder %s13, 2
    // Predicated region
    $region21: #{model_forward.1} parent=5 // pred_check
      %p233 = pneg %p232
    $region22: #{model_forward.1} parent=5 // pred_check_branch
      %235 = sbr.rel (%p233) target = $region24
    $region23: #{model_forward.1} parent=5 // pred_region
      // Predicated region
      $region25: #{model_forward.1} parent=23 // pred_check
        %p236 = pneg %p75
      $region26: #{model_forward.1} parent=23 // pred_check_branch
        %238 = sbr.rel (%p236) target = $region28
      $region27: #{model_forward.1} parent=23 // pred_region
        %s239 = smul.u32 8, %s13
        %p240 = scmp.lt.s32.totalorder %s239, 15
        %s241 = scalar_select %p240, %s239, 15
        %s242 = smul.addr %s241, 8
        %s243 = scalar_lea.vmem %s2, %s242
        %s244 = smul.u32 8, %s13
      $region28: #{model_forward.1} parent=23 // pred_fallthru
        _
      // Predicated region
      $region29: #{model_forward.1} parent=23 // pred_check
        %p245 = pneg %p101
      $region30: #{model_forward.1} parent=23 // pred_check_branch
        %247 = sbr.rel (%p245) target = $region32
      $region31: #{model_forward.1} parent=23 // pred_region
        %s248 = smul.u32 8, %s13
        %p249 = scmp.lt.s32.totalorder %s248, 15
        %s250 = scalar_select %p249, %s248, 15
        %s251 = smul.addr %s250, 8
        %s252 = scalar_lea.vmem %s3, %s251
        %s253 = smul.u32 8, %s13
      $region32: #{model_forward.1} parent=23 // pred_fallthru
        _
      // Predicated region
      $region33: #{model_forward.1} parent=23 // pred_check
        %p254 = pneg %p127
      $region34: #{model_forward.1} parent=23 // pred_check_branch
        %256 = sbr.rel (%p254) target = $region36
      $region35: #{model_forward.1} parent=23 // pred_region
        %s257 = smul.u32 8, %s13
        %p258 = scmp.lt.s32.totalorder %s257, 15
        %s259 = scalar_select %p258, %s257, 15
        %s260 = smul.addr %s259, 8
        %s261 = scalar_lea.vmem %s4, %s260
        %s262 = smul.u32 8, %s13
      $region36: #{model_forward.1} parent=23 // pred_fallthru
        _
      // Predicated region
      $region37: #{model_forward.1} parent=23 // pred_check
        %p263 = pneg %p153
      $region38: #{model_forward.1} parent=23 // pred_check_branch
        %265 = sbr.rel (%p263) target = $region40
      $region39: #{model_forward.1} parent=23 // pred_region
        %s266 = smul.u32 8, %s13
        %p267 = scmp.lt.s32.totalorder %s266, 15
        %s268 = scalar_select %p267, %s266, 15
        %s269 = smul.addr %s268, 8
        %s270 = scalar_lea.vmem %s5, %s269
        %s271 = smul.u32 8, %s13
      $region40: #{model_forward.1} parent=23 // pred_fallthru
        _
      // Predicated region
      $region41: #{model_forward.1} parent=23 // pred_check
        %p272 = pneg %p179
      $region42: #{model_forward.1} parent=23 // pred_check_branch
        %274 = sbr.rel (%p272) target = $region44
      $region43: #{model_forward.1} parent=23 // pred_region
        %s275 = smul.u32 8, %s13
        %p276 = scmp.lt.s32.totalorder %s275, 15
        %s277 = scalar_select %p276, %s275, 15
        %s278 = smul.addr %s277, 8
        %s279 = scalar_lea.vmem %s6, %s278
        %s280 = smul.u32 8, %s13
      $region44: #{model_forward.1} parent=23 // pred_fallthru
        _
    $region24: #{model_forward.1} parent=5 // pred_fallthru
      _
    %p281 = scmp.le.s32.totalorder 1, %s13
    %p282 = scmp.lt.s32.totalorder %s13, 3
    %p283 = pnand %p281, %p282
    %p284 = pneg %p283
    // Predicated region
    $region45: #{model_forward.1} parent=5 // pred_check
      _
    $region46: #{model_forward.1} parent=5 // pred_check_branch
      %286 = sbr.rel (%p283) target = $region48
    $region47: #{model_forward.1} parent=5 // pred_region
      %s287 = ssub.s32 %s13, 1
      %p288 = pneg %p34
      %p289 = pneg %p31
      %p290 = pneg %p55
      %p291 = pneg %p52
      %s292 = smul.u32 8, %s18
      %p293 = scmp.lt.s32.totalorder %s292, 15
      %s294 = scalar_select %p293, %s292, 15
      %s295 = smul.addr %s294, 8
      %s296 = scalar_lea.vmem %s2, %s295
      %p297 = pneg %p81
      %p298 = pneg %p78
      %s299 = smul.u32 8, %s18
      %p300 = scmp.lt.s32.totalorder %s299, 15
      %s301 = scalar_select %p300, %s299, 15
      %s302 = smul.addr %s301, 8
      %s303 = scalar_lea.vmem %s3, %s302
      %p304 = pneg %p107
      %p305 = pneg %p104
      %s306 = smul.u32 8, %s18
      %p307 = scmp.lt.s32.totalorder %s306, 15
      %s308 = scalar_select %p307, %s306, 15
      %s309 = smul.addr %s308, 8
      %s310 = scalar_lea.vmem %s4, %s309
      %p311 = pneg %p133
      %p312 = pneg %p130
      %s313 = smul.u32 8, %s18
      %p314 = scmp.lt.s32.totalorder %s313, 15
      %s315 = scalar_select %p314, %s313, 15
      %s316 = smul.addr %s315, 8
      %s317 = scalar_lea.vmem %s5, %s316
      %p318 = pneg %p159
      %p319 = pneg %p156
      %s320 = smul.u32 8, %s18
      %p321 = scmp.lt.s32.totalorder %s320, 15
      %s322 = scalar_select %p321, %s320, 15
      %s323 = smul.addr %s322, 8
      %s324 = scalar_lea.vmem %s6, %s323
      %p325 = pneg %p185
      %p326 = pneg %p182
      %p327 = pneg %p211
      %p328 = pneg %p208
      %s329 = smul.u32 8, %s18
      %p330 = scmp.lt.s32.totalorder %s329, 15
      %s331 = scalar_select %p330, %s329, 15
      %s332 = smul.addr %s331, 37
      %s333 = smul.addr %s332, 8
      %s334 = scalar_lea.vmem %s7, %s333
      %s335 = smul.u32 8, %s18
      %p336 = scmp.lt.s32.totalorder %s335, 15
      %s337 = scalar_select %p336, %s335, 15
      %s338 = smul.addr %s337, 8
      %s339 = scalar_lea.vmem %s2, %s338
      %s340 = smul.u32 8, %s18
      %s341 = smul.u32 8, %s18
      %p342 = scmp.lt.s32.totalorder %s341, 15
      %s343 = scalar_select %p342, %s341, 15
      %s344 = smul.addr %s343, 8
      %s345 = scalar_lea.vmem %s3, %s344
      %s346 = smul.u32 8, %s18
      %s347 = smul.u32 8, %s18
      %p348 = scmp.lt.s32.totalorder %s347, 15
      %s349 = scalar_select %p348, %s347, 15
      %s350 = smul.addr %s349, 8
      %s351 = scalar_lea.vmem %s4, %s350
      %s352 = smul.u32 8, %s18
      %s353 = smul.u32 8, %s18
      %p354 = scmp.lt.s32.totalorder %s353, 15
      %s355 = scalar_select %p354, %s353, 15
      %s356 = smul.addr %s355, 8
      %s357 = scalar_lea.vmem %s5, %s356
      %s358 = smul.u32 8, %s18
      %s359 = smul.u32 8, %s18
      %p360 = scmp.lt.s32.totalorder %s359, 15
      %s361 = scalar_select %p360, %s359, 15
      %s362 = smul.addr %s361, 8
      %s363 = scalar_lea.vmem %s6, %s362
      %s364 = smul.u32 8, %s18
      %s365 = smul.u32 8, %s18
      %p366 = scmp.lt.s32.totalorder %s365, 15
      %s367 = scalar_select %p366, %s365, 15
      %s368 = smul.addr %s367, 37
      %s369 = smul.addr %s368, 8
      %s370 = scalar_lea.vmem %s7, %s369
      %s371 = smul.u32 8, %s18
      %v372 = vld [vmem:[%s351] sm:$0xff]
      %v373 = vld [vmem:[%s351 + $0x8] sm:$0xff]
      %v374 = vld [vmem:[%s351 + $0x10] sm:$0xff]
      %v375 = vld [vmem:[%s351 + $0x18] sm:$0xff]
      %v376 = vld [vmem:[%s351 + $0x20] sm:$0xff]
      %v377 = vld [vmem:[%s351 + $0x28] sm:$0xff]
      %v378 = vld [vmem:[%s351 + $0x30] sm:$0xff]
      %v379 = vld [vmem:[%s351 + $0x38] sm:$0xff]
      %v380 = vld [vmem:[%s345] sm:$0xff]
      %v381 = vld [vmem:[%s345 + $0x8] sm:$0xff]
      %v382 = vld [vmem:[%s345 + $0x10] sm:$0xff]
      %v383 = vld [vmem:[%s345 + $0x18] sm:$0xff]
      %v384 = vld [vmem:[%s345 + $0x20] sm:$0xff]
      %v385 = vld [vmem:[%s345 + $0x28] sm:$0xff]
      %v386 = vld [vmem:[%s345 + $0x30] sm:$0xff]
      %v387 = vld [vmem:[%s345 + $0x38] sm:$0xff]
      %v388 = vld [vmem:[%s1] sm:$0xff]
      %v389 = vld [vmem:[%s1 + $0x8] sm:$0xff]
      %v390 = vld [vmem:[%s1 + $0x10] sm:$0xff]
      %v391 = vld [vmem:[%s1 + $0x18] sm:$0xff]
      %v392 = vld [vmem:[%s1 + $0x20] sm:$0x1f]
      %394 = vset.pattern.permute.xlu0 0
      %395 = vperm.xlu0 %394, %v380
      %v396 = vpop.permute.xlu0 %395
      %399 = vset.pattern.permute.xlu0 0
      %400 = vperm.xlu0 %399, %v381
      %v401 = vpop.permute.xlu0 %400
      %404 = vset.pattern.permute.xlu0 0
      %405 = vperm.xlu0 %404, %v382
      %v406 = vpop.permute.xlu0 %405
      %409 = vset.pattern.permute.xlu0 0
      %410 = vperm.xlu0 %409, %v383
      %v411 = vpop.permute.xlu0 %410
      %414 = vset.pattern.permute.xlu0 0
      %415 = vperm.xlu0 %414, %v384
      %v416 = vpop.permute.xlu0 %415
      %419 = vset.pattern.permute.xlu0 0
      %420 = vperm.xlu0 %419, %v385
      %v421 = vpop.permute.xlu0 %420
      %424 = vset.pattern.permute.xlu0 0
      %425 = vperm.xlu0 %424, %v386
      %v426 = vpop.permute.xlu0 %425
      %429 = vset.pattern.permute.xlu0 0
      %430 = vperm.xlu0 %429, %v387
      %v431 = vpop.permute.xlu0 %430
      %v438 = vperm.slane %v388, 0
      %v439 = vperm.slane %v388, 1
      %v440 = vperm.slane %v388, 2
      %v441 = vperm.slane %v388, 3
      %v442 = vperm.slane %v388, 4
      %v443 = vperm.slane %v388, 5
      %v444 = vperm.slane %v388, 6
      %v445 = vperm.slane %v388, 7
      %v446 = vperm.slane %v389, 0
      %v447 = vperm.slane %v389, 1
      %v448 = vperm.slane %v389, 2
      %v449 = vperm.slane %v389, 3
      %v450 = vperm.slane %v389, 4
      %v451 = vperm.slane %v389, 5
      %v452 = vperm.slane %v389, 6
      %v453 = vperm.slane %v389, 7
      %v454 = vperm.slane %v390, 0
      %v455 = vperm.slane %v390, 1
      %v456 = vperm.slane %v390, 2
      %v457 = vperm.slane %v390, 3
      %v458 = vperm.slane %v390, 4
      %v459 = vperm.slane %v390, 5
      %v460 = vperm.slane %v390, 6
      %v461 = vperm.slane %v390, 7
      %v462 = vperm.slane %v391, 0
      %v463 = vperm.slane %v391, 1
      %v464 = vperm.slane %v391, 2
      %v465 = vperm.slane %v391, 3
      %v466 = vperm.slane %v391, 4
      %v467 = vperm.slane %v391, 5
      %v468 = vperm.slane %v391, 6
      %v469 = vperm.slane %v391, 7
      %v470 = vperm.slane %v392, 0
      %v471 = vperm.slane %v392, 1
      %v472 = vperm.slane %v392, 2
      %v473 = vperm.slane %v392, 3
      %v474 = vperm.slane %v392, 4
      %v512 = vmul.f32 %v396, %v438
      %v513 = vmul.f32 %v396, %v439
      %v514 = vmul.f32 %v396, %v440
      %v515 = vmul.f32 %v396, %v441
      %v516 = vmul.f32 %v396, %v442
      %v517 = vmul.f32 %v396, %v443
      %v518 = vmul.f32 %v396, %v444
      %v519 = vmul.f32 %v396, %v445
      %v520 = vmul.f32 %v396, %v446
      %v521 = vmul.f32 %v396, %v447
      %v522 = vmul.f32 %v396, %v448
      %v523 = vmul.f32 %v396, %v449
      %v524 = vmul.f32 %v396, %v450
      %v525 = vmul.f32 %v396, %v451
      %v526 = vmul.f32 %v396, %v452
      %v527 = vmul.f32 %v396, %v453
      %v528 = vmul.f32 %v396, %v454
      %v529 = vmul.f32 %v396, %v455
      %v530 = vmul.f32 %v396, %v456
      %v531 = vmul.f32 %v396, %v457
      %v532 = vmul.f32 %v396, %v458
      %v533 = vmul.f32 %v396, %v459
      %v534 = vmul.f32 %v396, %v460
      %v535 = vmul.f32 %v396, %v461
      %v536 = vmul.f32 %v396, %v462
      %v537 = vmul.f32 %v396, %v463
      %v538 = vmul.f32 %v396, %v464
      %v539 = vmul.f32 %v396, %v465
      %v540 = vmul.f32 %v396, %v466
      %v541 = vmul.f32 %v396, %v467
      %v542 = vmul.f32 %v396, %v468
      %v543 = vmul.f32 %v396, %v469
      %v544 = vmul.f32 %v396, %v470
      %v545 = vmul.f32 %v396, %v471
      %v546 = vmul.f32 %v396, %v472
      %v547 = vmul.f32 %v396, %v473
      %v548 = vmul.f32 %v396, %v474
      %v549 = vmul.f32 %v401, %v438
      %v550 = vmul.f32 %v401, %v439
      %v551 = vmul.f32 %v401, %v440
      %v552 = vmul.f32 %v401, %v441
      %v553 = vmul.f32 %v401, %v442
      %v554 = vmul.f32 %v401, %v443
      %v555 = vmul.f32 %v401, %v444
      %v556 = vmul.f32 %v401, %v445
      %v557 = vmul.f32 %v401, %v446
      %v558 = vmul.f32 %v401, %v447
      %v559 = vmul.f32 %v401, %v448
      %v560 = vmul.f32 %v401, %v449
      %v561 = vmul.f32 %v401, %v450
      %v562 = vmul.f32 %v401, %v451
      %v563 = vmul.f32 %v401, %v452
      %v564 = vmul.f32 %v401, %v453
      %v565 = vmul.f32 %v401, %v454
      %v566 = vmul.f32 %v401, %v455
      %v567 = vmul.f32 %v401, %v456
      %v568 = vmul.f32 %v401, %v457
      %v569 = vmul.f32 %v401, %v458
      %v570 = vmul.f32 %v401, %v459
      %v571 = vmul.f32 %v401, %v460
      %v572 = vmul.f32 %v401, %v461
      %v573 = vmul.f32 %v401, %v462
      %v574 = vmul.f32 %v401, %v463
      %v575 = vmul.f32 %v401, %v464
      %v576 = vmul.f32 %v401, %v465
      %v577 = vmul.f32 %v401, %v466
      %v578 = vmul.f32 %v401, %v467
      %v579 = vmul.f32 %v401, %v468
      %v580 = vmul.f32 %v401, %v469
      %v581 = vmul.f32 %v401, %v470
      %v582 = vmul.f32 %v401, %v471
      %v583 = vmul.f32 %v401, %v472
      %v584 = vmul.f32 %v401, %v473
      %v585 = vmul.f32 %v401, %v474
      %v586 = vmul.f32 %v406, %v438
      %v587 = vmul.f32 %v406, %v439
      %v588 = vmul.f32 %v406, %v440
      %v589 = vmul.f32 %v406, %v441
      %v590 = vmul.f32 %v406, %v442
      %v591 = vmul.f32 %v406, %v443
      %v592 = vmul.f32 %v406, %v444
      %v593 = vmul.f32 %v406, %v445
      %v594 = vmul.f32 %v406, %v446
      %v595 = vmul.f32 %v406, %v447
      %v596 = vmul.f32 %v406, %v448
      %v597 = vmul.f32 %v406, %v449
      %v598 = vmul.f32 %v406, %v450
      %v599 = vmul.f32 %v406, %v451
      %v600 = vmul.f32 %v406, %v452
      %v601 = vmul.f32 %v406, %v453
      %v602 = vmul.f32 %v406, %v454
      %v603 = vmul.f32 %v406, %v455
      %v604 = vmul.f32 %v406, %v456
      %v605 = vmul.f32 %v406, %v457
      %v606 = vmul.f32 %v406, %v458
      %v607 = vmul.f32 %v406, %v459
      %v608 = vmul.f32 %v406, %v460
      %v609 = vmul.f32 %v406, %v461
      %v610 = vmul.f32 %v406, %v462
      %v611 = vmul.f32 %v406, %v463
      %v612 = vmul.f32 %v406, %v464
      %v613 = vmul.f32 %v406, %v465
      %v614 = vmul.f32 %v406, %v466
      %v615 = vmul.f32 %v406, %v467
      %v616 = vmul.f32 %v406, %v468
      %v617 = vmul.f32 %v406, %v469
      %v618 = vmul.f32 %v406, %v470
      %v619 = vmul.f32 %v406, %v471
      %v620 = vmul.f32 %v406, %v472
      %v621 = vmul.f32 %v406, %v473
      %v622 = vmul.f32 %v406, %v474
      %v623 = vmul.f32 %v411, %v438
      %v624 = vmul.f32 %v411, %v439
      %v625 = vmul.f32 %v411, %v440
      %v626 = vmul.f32 %v411, %v441
      %v627 = vmul.f32 %v411, %v442
      %v628 = vmul.f32 %v411, %v443
      %v629 = vmul.f32 %v411, %v444
      %v630 = vmul.f32 %v411, %v445
      %v631 = vmul.f32 %v411, %v446
      %v632 = vmul.f32 %v411, %v447
      %v633 = vmul.f32 %v411, %v448
      %v634 = vmul.f32 %v411, %v449
      %v635 = vmul.f32 %v411, %v450
      %v636 = vmul.f32 %v411, %v451
      %v637 = vmul.f32 %v411, %v452
      %v638 = vmul.f32 %v411, %v453
      %v639 = vmul.f32 %v411, %v454
      %v640 = vmul.f32 %v411, %v455
      %v641 = vmul.f32 %v411, %v456
      %v642 = vmul.f32 %v411, %v457
      %v643 = vmul.f32 %v411, %v458
      %v644 = vmul.f32 %v411, %v459
      %v645 = vmul.f32 %v411, %v460
      %v646 = vmul.f32 %v411, %v461
      %v647 = vmul.f32 %v411, %v462
      %v648 = vmul.f32 %v411, %v463
      %v649 = vmul.f32 %v411, %v464
      %v650 = vmul.f32 %v411, %v465
      %v651 = vmul.f32 %v411, %v466
      %v652 = vmul.f32 %v411, %v467
      %v653 = vmul.f32 %v411, %v468
      %v654 = vmul.f32 %v411, %v469
      %v655 = vmul.f32 %v411, %v470
      %v656 = vmul.f32 %v411, %v471
      %v657 = vmul.f32 %v411, %v472
      %v658 = vmul.f32 %v411, %v473
      %v659 = vmul.f32 %v411, %v474
      %v660 = vmul.f32 %v416, %v438
      %v661 = vmul.f32 %v416, %v439
      %v662 = vmul.f32 %v416, %v440
      %v663 = vmul.f32 %v416, %v441
      %v664 = vmul.f32 %v416, %v442
      %v665 = vmul.f32 %v416, %v443
      %v666 = vmul.f32 %v416, %v444
      %v667 = vmul.f32 %v416, %v445
      %v668 = vmul.f32 %v416, %v446
      %v669 = vmul.f32 %v416, %v447
      %v670 = vmul.f32 %v416, %v448
      %v671 = vmul.f32 %v416, %v449
      %v672 = vmul.f32 %v416, %v450
      %v673 = vmul.f32 %v416, %v451
      %v674 = vmul.f32 %v416, %v452
      %v675 = vmul.f32 %v416, %v453
      %v676 = vmul.f32 %v416, %v454
      %v677 = vmul.f32 %v416, %v455
      %v678 = vmul.f32 %v416, %v456
      %v679 = vmul.f32 %v416, %v457
      %v680 = vmul.f32 %v416, %v458
      %v681 = vmul.f32 %v416, %v459
      %v682 = vmul.f32 %v416, %v460
      %v683 = vmul.f32 %v416, %v461
      %v684 = vmul.f32 %v416, %v462
      %v685 = vmul.f32 %v416, %v463
      %v686 = vmul.f32 %v416, %v464
      %v687 = vmul.f32 %v416, %v465
      %v688 = vmul.f32 %v416, %v466
      %v689 = vmul.f32 %v416, %v467
      %v690 = vmul.f32 %v416, %v468
      %v691 = vmul.f32 %v416, %v469
      %v692 = vmul.f32 %v416, %v470
      %v693 = vmul.f32 %v416, %v471
      %v694 = vmul.f32 %v416, %v472
      %v695 = vmul.f32 %v416, %v473
      %v696 = vmul.f32 %v416, %v474
      %v697 = vmul.f32 %v421, %v438
      %v698 = vmul.f32 %v421, %v439
      %v699 = vmul.f32 %v421, %v440
      %v700 = vmul.f32 %v421, %v441
      %v701 = vmul.f32 %v421, %v442
      %v702 = vmul.f32 %v421, %v443
      %v703 = vmul.f32 %v421, %v444
      %v704 = vmul.f32 %v421, %v445
      %v705 = vmul.f32 %v421, %v446
      %v706 = vmul.f32 %v421, %v447
      %v707 = vmul.f32 %v421, %v448
      %v708 = vmul.f32 %v421, %v449
      %v709 = vmul.f32 %v421, %v450
      %v710 = vmul.f32 %v421, %v451
      %v711 = vmul.f32 %v421, %v452
      %v712 = vmul.f32 %v421, %v453
      %v713 = vmul.f32 %v421, %v454
      %v714 = vmul.f32 %v421, %v455
      %v715 = vmul.f32 %v421, %v456
      %v716 = vmul.f32 %v421, %v457
      %v717 = vmul.f32 %v421, %v458
      %v718 = vmul.f32 %v421, %v459
      %v719 = vmul.f32 %v421, %v460
      %v720 = vmul.f32 %v421, %v461
      %v721 = vmul.f32 %v421, %v462
      %v722 = vmul.f32 %v421, %v463
      %v723 = vmul.f32 %v421, %v464
      %v724 = vmul.f32 %v421, %v465
      %v725 = vmul.f32 %v421, %v466
      %v726 = vmul.f32 %v421, %v467
      %v727 = vmul.f32 %v421, %v468
      %v728 = vmul.f32 %v421, %v469
      %v729 = vmul.f32 %v421, %v470
      %v730 = vmul.f32 %v421, %v471
      %v731 = vmul.f32 %v421, %v472
      %v732 = vmul.f32 %v421, %v473
      %v733 = vmul.f32 %v421, %v474
      %v734 = vmul.f32 %v426, %v438
      %v735 = vmul.f32 %v426, %v439
      %v736 = vmul.f32 %v426, %v440
      %v737 = vmul.f32 %v426, %v441
      %v738 = vmul.f32 %v426, %v442
      %v739 = vmul.f32 %v426, %v443
      %v740 = vmul.f32 %v426, %v444
      %v741 = vmul.f32 %v426, %v445
      %v742 = vmul.f32 %v426, %v446
      %v743 = vmul.f32 %v426, %v447
      %v744 = vmul.f32 %v426, %v448
      %v745 = vmul.f32 %v426, %v449
      %v746 = vmul.f32 %v426, %v450
      %v747 = vmul.f32 %v426, %v451
      %v748 = vmul.f32 %v426, %v452
      %v749 = vmul.f32 %v426, %v453
      %v750 = vmul.f32 %v426, %v454
      %v751 = vmul.f32 %v426, %v455
      %v752 = vmul.f32 %v426, %v456
      %v753 = vmul.f32 %v426, %v457
      %v754 = vmul.f32 %v426, %v458
      %v755 = vmul.f32 %v426, %v459
      %v756 = vmul.f32 %v426, %v460
      %v757 = vmul.f32 %v426, %v461
      %v758 = vmul.f32 %v426, %v462
      %v759 = vmul.f32 %v426, %v463
      %v760 = vmul.f32 %v426, %v464
      %v761 = vmul.f32 %v426, %v465
      %v762 = vmul.f32 %v426, %v466
      %v763 = vmul.f32 %v426, %v467
      %v764 = vmul.f32 %v426, %v468
      %v765 = vmul.f32 %v426, %v469
      %v766 = vmul.f32 %v426, %v470
      %v767 = vmul.f32 %v426, %v471
      %v768 = vmul.f32 %v426, %v472
      %v769 = vmul.f32 %v426, %v473
      %v770 = vmul.f32 %v426, %v474
      %v771 = vmul.f32 %v431, %v438
      %v772 = vmul.f32 %v431, %v439
      %v773 = vmul.f32 %v431, %v440
      %v774 = vmul.f32 %v431, %v441
      %v775 = vmul.f32 %v431, %v442
      %v776 = vmul.f32 %v431, %v443
      %v777 = vmul.f32 %v431, %v444
      %v778 = vmul.f32 %v431, %v445
      %v779 = vmul.f32 %v431, %v446
      %v780 = vmul.f32 %v431, %v447
      %v781 = vmul.f32 %v431, %v448
      %v782 = vmul.f32 %v431, %v449
      %v783 = vmul.f32 %v431, %v450
      %v784 = vmul.f32 %v431, %v451
      %v785 = vmul.f32 %v431, %v452
      %v786 = vmul.f32 %v431, %v453
      %v787 = vmul.f32 %v431, %v454
      %v788 = vmul.f32 %v431, %v455
      %v789 = vmul.f32 %v431, %v456
      %v790 = vmul.f32 %v431, %v457
      %v791 = vmul.f32 %v431, %v458
      %v792 = vmul.f32 %v431, %v459
      %v793 = vmul.f32 %v431, %v460
      %v794 = vmul.f32 %v431, %v461
      %v795 = vmul.f32 %v431, %v462
      %v796 = vmul.f32 %v431, %v463
      %v797 = vmul.f32 %v431, %v464
      %v798 = vmul.f32 %v431, %v465
      %v799 = vmul.f32 %v431, %v466
      %v800 = vmul.f32 %v431, %v467
      %v801 = vmul.f32 %v431, %v468
      %v802 = vmul.f32 %v431, %v469
      %v803 = vmul.f32 %v431, %v470
      %v804 = vmul.f32 %v431, %v471
      %v805 = vmul.f32 %v431, %v472
      %v806 = vmul.f32 %v431, %v473
      %v807 = vmul.f32 %v431, %v474
      %809 = vset.pattern.permute.xlu0 0
      %810 = vperm.xlu0 %809, %v372
      %v811 = vpop.permute.xlu0 %810
      %814 = vset.pattern.permute.xlu0 0
      %815 = vperm.xlu0 %814, %v373
      %v816 = vpop.permute.xlu0 %815
      %819 = vset.pattern.permute.xlu0 0
      %820 = vperm.xlu0 %819, %v374
      %v821 = vpop.permute.xlu0 %820
      %824 = vset.pattern.permute.xlu0 0
      %825 = vperm.xlu0 %824, %v375
      %v826 = vpop.permute.xlu0 %825
      %829 = vset.pattern.permute.xlu0 0
      %830 = vperm.xlu0 %829, %v376
      %v831 = vpop.permute.xlu0 %830
      %834 = vset.pattern.permute.xlu0 0
      %835 = vperm.xlu0 %834, %v377
      %v836 = vpop.permute.xlu0 %835
      %839 = vset.pattern.permute.xlu0 0
      %840 = vperm.xlu0 %839, %v378
      %v841 = vpop.permute.xlu0 %840
      %844 = vset.pattern.permute.xlu0 0
      %845 = vperm.xlu0 %844, %v379
      %v846 = vpop.permute.xlu0 %845
      %v848 = vadd.f32 %v811, %v512
      %v849 = vadd.f32 %v811, %v513
      %v850 = vadd.f32 %v811, %v514
      %v851 = vadd.f32 %v811, %v515
      %v852 = vadd.f32 %v811, %v516
      %v853 = vadd.f32 %v811, %v517
      %v854 = vadd.f32 %v811, %v518
      %v855 = vadd.f32 %v811, %v519
      %v856 = vadd.f32 %v811, %v520
      %v857 = vadd.f32 %v811, %v521
      %v858 = vadd.f32 %v811, %v522
      %v859 = vadd.f32 %v811, %v523
      %v860 = vadd.f32 %v811, %v524
      %v861 = vadd.f32 %v811, %v525
      %v862 = vadd.f32 %v811, %v526
      %v863 = vadd.f32 %v811, %v527
      %v864 = vadd.f32 %v811, %v528
      %v865 = vadd.f32 %v811, %v529
      %v866 = vadd.f32 %v811, %v530
      %v867 = vadd.f32 %v811, %v531
      %v868 = vadd.f32 %v811, %v532
      %v869 = vadd.f32 %v811, %v533
      %v870 = vadd.f32 %v811, %v534
      %v871 = vadd.f32 %v811, %v535
      %v872 = vadd.f32 %v811, %v536
      %v873 = vadd.f32 %v811, %v537
      %v874 = vadd.f32 %v811, %v538
      %v875 = vadd.f32 %v811, %v539
      %v876 = vadd.f32 %v811, %v540
      %v877 = vadd.f32 %v811, %v541
      %v878 = vadd.f32 %v811, %v542
      %v879 = vadd.f32 %v811, %v543
      %v880 = vadd.f32 %v811, %v544
      %v881 = vadd.f32 %v811, %v545
      %v882 = vadd.f32 %v811, %v546
      %v883 = vadd.f32 %v811, %v547
      %v884 = vadd.f32 %v811, %v548
      %v885 = vadd.f32 %v816, %v549
      %v886 = vadd.f32 %v816, %v550
      %v887 = vadd.f32 %v816, %v551
      %v888 = vadd.f32 %v816, %v552
      %v889 = vadd.f32 %v816, %v553
      %v890 = vadd.f32 %v816, %v554
      %v891 = vadd.f32 %v816, %v555
      %v892 = vadd.f32 %v816, %v556
      %v893 = vadd.f32 %v816, %v557
      %v894 = vadd.f32 %v816, %v558
      %v895 = vadd.f32 %v816, %v559
      %v896 = vadd.f32 %v816, %v560
      %v897 = vadd.f32 %v816, %v561
      %v898 = vadd.f32 %v816, %v562
      %v899 = vadd.f32 %v816, %v563
      %v900 = vadd.f32 %v816, %v564
      %v901 = vadd.f32 %v816, %v565
      %v902 = vadd.f32 %v816, %v566
      %v903 = vadd.f32 %v816, %v567
      %v904 = vadd.f32 %v816, %v568
      %v905 = vadd.f32 %v816, %v569
      %v906 = vadd.f32 %v816, %v570
      %v907 = vadd.f32 %v816, %v571
      %v908 = vadd.f32 %v816, %v572
      %v909 = vadd.f32 %v816, %v573
      %v910 = vadd.f32 %v816, %v574
      %v911 = vadd.f32 %v816, %v575
      %v912 = vadd.f32 %v816, %v576
      %v913 = vadd.f32 %v816, %v577
      %v914 = vadd.f32 %v816, %v578
      %v915 = vadd.f32 %v816, %v579
      %v916 = vadd.f32 %v816, %v580
      %v917 = vadd.f32 %v816, %v581
      %v918 = vadd.f32 %v816, %v582
      %v919 = vadd.f32 %v816, %v583
      %v920 = vadd.f32 %v816, %v584
      %v921 = vadd.f32 %v816, %v585
      %v922 = vadd.f32 %v821, %v586
      %v923 = vadd.f32 %v821, %v587
      %v924 = vadd.f32 %v821, %v588
      %v925 = vadd.f32 %v821, %v589
      %v926 = vadd.f32 %v821, %v590
      %v927 = vadd.f32 %v821, %v591
      %v928 = vadd.f32 %v821, %v592
      %v929 = vadd.f32 %v821, %v593
      %v930 = vadd.f32 %v821, %v594
      %v931 = vadd.f32 %v821, %v595
      %v932 = vadd.f32 %v821, %v596
      %v933 = vadd.f32 %v821, %v597
      %v934 = vadd.f32 %v821, %v598
      %v935 = vadd.f32 %v821, %v599
      %v936 = vadd.f32 %v821, %v600
      %v937 = vadd.f32 %v821, %v601
      %v938 = vadd.f32 %v821, %v602
      %v939 = vadd.f32 %v821, %v603
      %v940 = vadd.f32 %v821, %v604
      %v941 = vadd.f32 %v821, %v605
      %v942 = vadd.f32 %v821, %v606
      %v943 = vadd.f32 %v821, %v607
      %v944 = vadd.f32 %v821, %v608
      %v945 = vadd.f32 %v821, %v609
      %v946 = vadd.f32 %v821, %v610
      %v947 = vadd.f32 %v821, %v611
      %v948 = vadd.f32 %v821, %v612
      %v949 = vadd.f32 %v821, %v613
      %v950 = vadd.f32 %v821, %v614
      %v951 = vadd.f32 %v821, %v615
      %v952 = vadd.f32 %v821, %v616
      %v953 = vadd.f32 %v821, %v617
      %v954 = vadd.f32 %v821, %v618
      %v955 = vadd.f32 %v821, %v619
      %v956 = vadd.f32 %v821, %v620
      %v957 = vadd.f32 %v821, %v621
      %v958 = vadd.f32 %v821, %v622
      %v959 = vadd.f32 %v826, %v623
      %v960 = vadd.f32 %v826, %v624
      %v961 = vadd.f32 %v826, %v625
      %v962 = vadd.f32 %v826, %v626
      %v963 = vadd.f32 %v826, %v627
      %v964 = vadd.f32 %v826, %v628
      %v965 = vadd.f32 %v826, %v629
      %v966 = vadd.f32 %v826, %v630
      %v967 = vadd.f32 %v826, %v631
      %v968 = vadd.f32 %v826, %v632
      %v969 = vadd.f32 %v826, %v633
      %v970 = vadd.f32 %v826, %v634
      %v971 = vadd.f32 %v826, %v635
      %v972 = vadd.f32 %v826, %v636
      %v973 = vadd.f32 %v826, %v637
      %v974 = vadd.f32 %v826, %v638
      %v975 = vadd.f32 %v826, %v639
      %v976 = vadd.f32 %v826, %v640
      %v977 = vadd.f32 %v826, %v641
      %v978 = vadd.f32 %v826, %v642
      %v979 = vadd.f32 %v826, %v643
      %v980 = vadd.f32 %v826, %v644
      %v981 = vadd.f32 %v826, %v645
      %v982 = vadd.f32 %v826, %v646
      %v983 = vadd.f32 %v826, %v647
      %v984 = vadd.f32 %v826, %v648
      %v985 = vadd.f32 %v826, %v649
      %v986 = vadd.f32 %v826, %v650
      %v987 = vadd.f32 %v826, %v651
      %v988 = vadd.f32 %v826, %v652
      %v989 = vadd.f32 %v826, %v653
      %v990 = vadd.f32 %v826, %v654
      %v991 = vadd.f32 %v826, %v655
      %v992 = vadd.f32 %v826, %v656
      %v993 = vadd.f32 %v826, %v657
      %v994 = vadd.f32 %v826, %v658
      %v995 = vadd.f32 %v826, %v659
      %v996 = vadd.f32 %v831, %v660
      %v997 = vadd.f32 %v831, %v661
      %v998 = vadd.f32 %v831, %v662
      %v999 = vadd.f32 %v831, %v663
      %v1000 = vadd.f32 %v831, %v664
      %v1001 = vadd.f32 %v831, %v665
      %v1002 = vadd.f32 %v831, %v666
      %v1003 = vadd.f32 %v831, %v667
      %v1004 = vadd.f32 %v831, %v668
      %v1005 = vadd.f32 %v831, %v669
      %v1006 = vadd.f32 %v831, %v670
      %v1007 = vadd.f32 %v831, %v671
      %v1008 = vadd.f32 %v831, %v672
      %v1009 = vadd.f32 %v831, %v673
      %v1010 = vadd.f32 %v831, %v674
      %v1011 = vadd.f32 %v831, %v675
      %v1012 = vadd.f32 %v831, %v676
      %v1013 = vadd.f32 %v831, %v677
      %v1014 = vadd.f32 %v831, %v678
      %v1015 = vadd.f32 %v831, %v679
      %v1016 = vadd.f32 %v831, %v680
      %v1017 = vadd.f32 %v831, %v681
      %v1018 = vadd.f32 %v831, %v682
      %v1019 = vadd.f32 %v831, %v683
      %v1020 = vadd.f32 %v831, %v684
      %v1021 = vadd.f32 %v831, %v685
      %v1022 = vadd.f32 %v831, %v686
      %v1023 = vadd.f32 %v831, %v687
      %v1024 = vadd.f32 %v831, %v688
      %v1025 = vadd.f32 %v831, %v689
      %v1026 = vadd.f32 %v831, %v690
      %v1027 = vadd.f32 %v831, %v691
      %v1028 = vadd.f32 %v831, %v692
      %v1029 = vadd.f32 %v831, %v693
      %v1030 = vadd.f32 %v831, %v694
      %v1031 = vadd.f32 %v831, %v695
      %v1032 = vadd.f32 %v831, %v696
      %v1033 = vadd.f32 %v836, %v697
      %v1034 = vadd.f32 %v836, %v698
      %v1035 = vadd.f32 %v836, %v699
      %v1036 = vadd.f32 %v836, %v700
      %v1037 = vadd.f32 %v836, %v701
      %v1038 = vadd.f32 %v836, %v702
      %v1039 = vadd.f32 %v836, %v703
      %v1040 = vadd.f32 %v836, %v704
      %v1041 = vadd.f32 %v836, %v705
      %v1042 = vadd.f32 %v836, %v706
      %v1043 = vadd.f32 %v836, %v707
      %v1044 = vadd.f32 %v836, %v708
      %v1045 = vadd.f32 %v836, %v709
      %v1046 = vadd.f32 %v836, %v710
      %v1047 = vadd.f32 %v836, %v711
      %v1048 = vadd.f32 %v836, %v712
      %v1049 = vadd.f32 %v836, %v713
      %v1050 = vadd.f32 %v836, %v714
      %v1051 = vadd.f32 %v836, %v715
      %v1052 = vadd.f32 %v836, %v716
      %v1053 = vadd.f32 %v836, %v717
      %v1054 = vadd.f32 %v836, %v718
      %v1055 = vadd.f32 %v836, %v719
      %v1056 = vadd.f32 %v836, %v720
      %v1057 = vadd.f32 %v836, %v721
      %v1058 = vadd.f32 %v836, %v722
      %v1059 = vadd.f32 %v836, %v723
      %v1060 = vadd.f32 %v836, %v724
      %v1061 = vadd.f32 %v836, %v725
      %v1062 = vadd.f32 %v836, %v726
      %v1063 = vadd.f32 %v836, %v727
      %v1064 = vadd.f32 %v836, %v728
      %v1065 = vadd.f32 %v836, %v729
      %v1066 = vadd.f32 %v836, %v730
      %v1067 = vadd.f32 %v836, %v731
      %v1068 = vadd.f32 %v836, %v732
      %v1069 = vadd.f32 %v836, %v733
      %v1070 = vadd.f32 %v841, %v734
      %v1071 = vadd.f32 %v841, %v735
      %v1072 = vadd.f32 %v841, %v736
      %v1073 = vadd.f32 %v841, %v737
      %v1074 = vadd.f32 %v841, %v738
      %v1075 = vadd.f32 %v841, %v739
      %v1076 = vadd.f32 %v841, %v740
      %v1077 = vadd.f32 %v841, %v741
      %v1078 = vadd.f32 %v841, %v742
      %v1079 = vadd.f32 %v841, %v743
      %v1080 = vadd.f32 %v841, %v744
      %v1081 = vadd.f32 %v841, %v745
      %v1082 = vadd.f32 %v841, %v746
      %v1083 = vadd.f32 %v841, %v747
      %v1084 = vadd.f32 %v841, %v748
      %v1085 = vadd.f32 %v841, %v749
      %v1086 = vadd.f32 %v841, %v750
      %v1087 = vadd.f32 %v841, %v751
      %v1088 = vadd.f32 %v841, %v752
      %v1089 = vadd.f32 %v841, %v753
      %v1090 = vadd.f32 %v841, %v754
      %v1091 = vadd.f32 %v841, %v755
      %v1092 = vadd.f32 %v841, %v756
      %v1093 = vadd.f32 %v841, %v757
      %v1094 = vadd.f32 %v841, %v758
      %v1095 = vadd.f32 %v841, %v759
      %v1096 = vadd.f32 %v841, %v760
      %v1097 = vadd.f32 %v841, %v761
      %v1098 = vadd.f32 %v841, %v762
      %v1099 = vadd.f32 %v841, %v763
      %v1100 = vadd.f32 %v841, %v764
      %v1101 = vadd.f32 %v841, %v765
      %v1102 = vadd.f32 %v841, %v766
      %v1103 = vadd.f32 %v841, %v767
      %v1104 = vadd.f32 %v841, %v768
      %v1105 = vadd.f32 %v841, %v769
      %v1106 = vadd.f32 %v841, %v770
      %v1107 = vadd.f32 %v846, %v771
      %v1108 = vadd.f32 %v846, %v772
      %v1109 = vadd.f32 %v846, %v773
      %v1110 = vadd.f32 %v846, %v774
      %v1111 = vadd.f32 %v846, %v775
      %v1112 = vadd.f32 %v846, %v776
      %v1113 = vadd.f32 %v846, %v777
      %v1114 = vadd.f32 %v846, %v778
      %v1115 = vadd.f32 %v846, %v779
      %v1116 = vadd.f32 %v846, %v780
      %v1117 = vadd.f32 %v846, %v781
      %v1118 = vadd.f32 %v846, %v782
      %v1119 = vadd.f32 %v846, %v783
      %v1120 = vadd.f32 %v846, %v784
      %v1121 = vadd.f32 %v846, %v785
      %v1122 = vadd.f32 %v846, %v786
      %v1123 = vadd.f32 %v846, %v787
      %v1124 = vadd.f32 %v846, %v788
      %v1125 = vadd.f32 %v846, %v789
      %v1126 = vadd.f32 %v846, %v790
      %v1127 = vadd.f32 %v846, %v791
      %v1128 = vadd.f32 %v846, %v792
      %v1129 = vadd.f32 %v846, %v793
      %v1130 = vadd.f32 %v846, %v794
      %v1131 = vadd.f32 %v846, %v795
      %v1132 = vadd.f32 %v846, %v796
      %v1133 = vadd.f32 %v846, %v797
      %v1134 = vadd.f32 %v846, %v798
      %v1135 = vadd.f32 %v846, %v799
      %v1136 = vadd.f32 %v846, %v800
      %v1137 = vadd.f32 %v846, %v801
      %v1138 = vadd.f32 %v846, %v802
      %v1139 = vadd.f32 %v846, %v803
      %v1140 = vadd.f32 %v846, %v804
      %v1141 = vadd.f32 %v846, %v805
      %v1142 = vadd.f32 %v846, %v806
      %v1143 = vadd.f32 %v846, %v807
      %v1144 = vld [vmem:[%s339] sm:$0xff]
      %v1145 = vld [vmem:[%s339 + $0x8] sm:$0xff]
      %v1146 = vld [vmem:[%s339 + $0x10] sm:$0xff]
      %v1147 = vld [vmem:[%s339 + $0x18] sm:$0xff]
      %v1148 = vld [vmem:[%s339 + $0x20] sm:$0xff]
      %v1149 = vld [vmem:[%s339 + $0x28] sm:$0xff]
      %v1150 = vld [vmem:[%s339 + $0x30] sm:$0xff]
      %v1151 = vld [vmem:[%s339 + $0x38] sm:$0xff]
      %v1152 = vld [vmem:[%s0] ss:$4 sm:$0xff]
      %s1153 = scalar_lea.vmem %s0, 32
      %v1154 = vld [vmem:[%s1153] ss:$4 sm:$0xff]
      %s1155 = scalar_lea.vmem %s0, 64
      %v1156 = vld [vmem:[%s1155] ss:$4 sm:$0xff]
      %s1157 = scalar_lea.vmem %s0, 96
      %v1158 = vld [vmem:[%s1157] ss:$4 sm:$0xff]
      %s1159 = scalar_lea.vmem %s0, 128
      %v1160 = vld [vmem:[%s1159] ss:$4 sm:$0x1f]
      %1162 = vset.pattern.permute.xlu0 0
      %1163 = vperm.xlu0 %1162, %v1144
      %v1164 = vpop.permute.xlu0 %1163
      %1167 = vset.pattern.permute.xlu0 0
      %1168 = vperm.xlu0 %1167, %v1145
      %v1169 = vpop.permute.xlu0 %1168
      %1172 = vset.pattern.permute.xlu0 0
      %1173 = vperm.xlu0 %1172, %v1146
      %v1174 = vpop.permute.xlu0 %1173
      %1177 = vset.pattern.permute.xlu0 0
      %1178 = vperm.xlu0 %1177, %v1147
      %v1179 = vpop.permute.xlu0 %1178
      %1182 = vset.pattern.permute.xlu0 0
      %1183 = vperm.xlu0 %1182, %v1148
      %v1184 = vpop.permute.xlu0 %1183
      %1187 = vset.pattern.permute.xlu0 0
      %1188 = vperm.xlu0 %1187, %v1149
      %v1189 = vpop.permute.xlu0 %1188
      %1192 = vset.pattern.permute.xlu0 0
      %1193 = vperm.xlu0 %1192, %v1150
      %v1194 = vpop.permute.xlu0 %1193
      %1197 = vset.pattern.permute.xlu0 0
      %1198 = vperm.xlu0 %1197, %v1151
      %v1199 = vpop.permute.xlu0 %1198
      %v1206 = vperm.slane %v1152, 0
      %v1207 = vperm.slane %v1152, 1
      %v1208 = vperm.slane %v1152, 2
      %v1209 = vperm.slane %v1152, 3
      %v1210 = vperm.slane %v1152, 4
      %v1211 = vperm.slane %v1152, 5
      %v1212 = vperm.slane %v1152, 6
      %v1213 = vperm.slane %v1152, 7
      %v1214 = vperm.slane %v1154, 0
      %v1215 = vperm.slane %v1154, 1
      %v1216 = vperm.slane %v1154, 2
      %v1217 = vperm.slane %v1154, 3
      %v1218 = vperm.slane %v1154, 4
      %v1219 = vperm.slane %v1154, 5
      %v1220 = vperm.slane %v1154, 6
      %v1221 = vperm.slane %v1154, 7
      %v1222 = vperm.slane %v1156, 0
      %v1223 = vperm.slane %v1156, 1
      %v1224 = vperm.slane %v1156, 2
      %v1225 = vperm.slane %v1156, 3
      %v1226 = vperm.slane %v1156, 4
      %v1227 = vperm.slane %v1156, 5
      %v1228 = vperm.slane %v1156, 6
      %v1229 = vperm.slane %v1156, 7
      %v1230 = vperm.slane %v1158, 0
      %v1231 = vperm.slane %v1158, 1
      %v1232 = vperm.slane %v1158, 2
      %v1233 = vperm.slane %v1158, 3
      %v1234 = vperm.slane %v1158, 4
      %v1235 = vperm.slane %v1158, 5
      %v1236 = vperm.slane %v1158, 6
      %v1237 = vperm.slane %v1158, 7
      %v1238 = vperm.slane %v1160, 0
      %v1239 = vperm.slane %v1160, 1
      %v1240 = vperm.slane %v1160, 2
      %v1241 = vperm.slane %v1160, 3
      %v1242 = vperm.slane %v1160, 4
      %v1280 = vmul.f32 %v1164, %v1206
      %v1281 = vmul.f32 %v1164, %v1207
      %v1282 = vmul.f32 %v1164, %v1208
      %v1283 = vmul.f32 %v1164, %v1209
      %v1284 = vmul.f32 %v1164, %v1210
      %v1285 = vmul.f32 %v1164, %v1211
      %v1286 = vmul.f32 %v1164, %v1212
      %v1287 = vmul.f32 %v1164, %v1213
      %v1288 = vmul.f32 %v1164, %v1214
      %v1289 = vmul.f32 %v1164, %v1215
      %v1290 = vmul.f32 %v1164, %v1216
      %v1291 = vmul.f32 %v1164, %v1217
      %v1292 = vmul.f32 %v1164, %v1218
      %v1293 = vmul.f32 %v1164, %v1219
      %v1294 = vmul.f32 %v1164, %v1220
      %v1295 = vmul.f32 %v1164, %v1221
      %v1296 = vmul.f32 %v1164, %v1222
      %v1297 = vmul.f32 %v1164, %v1223
      %v1298 = vmul.f32 %v1164, %v1224
      %v1299 = vmul.f32 %v1164, %v1225
      %v1300 = vmul.f32 %v1164, %v1226
      %v1301 = vmul.f32 %v1164, %v1227
      %v1302 = vmul.f32 %v1164, %v1228
      %v1303 = vmul.f32 %v1164, %v1229
      %v1304 = vmul.f32 %v1164, %v1230
      %v1305 = vmul.f32 %v1164, %v1231
      %v1306 = vmul.f32 %v1164, %v1232
      %v1307 = vmul.f32 %v1164, %v1233
      %v1308 = vmul.f32 %v1164, %v1234
      %v1309 = vmul.f32 %v1164, %v1235
      %v1310 = vmul.f32 %v1164, %v1236
      %v1311 = vmul.f32 %v1164, %v1237
      %v1312 = vmul.f32 %v1164, %v1238
      %v1313 = vmul.f32 %v1164, %v1239
      %v1314 = vmul.f32 %v1164, %v1240
      %v1315 = vmul.f32 %v1164, %v1241
      %v1316 = vmul.f32 %v1164, %v1242
      %v1317 = vmul.f32 %v1169, %v1206
      %v1318 = vmul.f32 %v1169, %v1207
      %v1319 = vmul.f32 %v1169, %v1208
      %v1320 = vmul.f32 %v1169, %v1209
      %v1321 = vmul.f32 %v1169, %v1210
      %v1322 = vmul.f32 %v1169, %v1211
      %v1323 = vmul.f32 %v1169, %v1212
      %v1324 = vmul.f32 %v1169, %v1213
      %v1325 = vmul.f32 %v1169, %v1214
      %v1326 = vmul.f32 %v1169, %v1215
      %v1327 = vmul.f32 %v1169, %v1216
      %v1328 = vmul.f32 %v1169, %v1217
      %v1329 = vmul.f32 %v1169, %v1218
      %v1330 = vmul.f32 %v1169, %v1219
      %v1331 = vmul.f32 %v1169, %v1220
      %v1332 = vmul.f32 %v1169, %v1221
      %v1333 = vmul.f32 %v1169, %v1222
      %v1334 = vmul.f32 %v1169, %v1223
      %v1335 = vmul.f32 %v1169, %v1224
      %v1336 = vmul.f32 %v1169, %v1225
      %v1337 = vmul.f32 %v1169, %v1226
      %v1338 = vmul.f32 %v1169, %v1227
      %v1339 = vmul.f32 %v1169, %v1228
      %v1340 = vmul.f32 %v1169, %v1229
      %v1341 = vmul.f32 %v1169, %v1230
      %v1342 = vmul.f32 %v1169, %v1231
      %v1343 = vmul.f32 %v1169, %v1232
      %v1344 = vmul.f32 %v1169, %v1233
      %v1345 = vmul.f32 %v1169, %v1234
      %v1346 = vmul.f32 %v1169, %v1235
      %v1347 = vmul.f32 %v1169, %v1236
      %v1348 = vmul.f32 %v1169, %v1237
      %v1349 = vmul.f32 %v1169, %v1238
      %v1350 = vmul.f32 %v1169, %v1239
      %v1351 = vmul.f32 %v1169, %v1240
      %v1352 = vmul.f32 %v1169, %v1241
      %v1353 = vmul.f32 %v1169, %v1242
      %v1354 = vmul.f32 %v1174, %v1206
      %v1355 = vmul.f32 %v1174, %v1207
      %v1356 = vmul.f32 %v1174, %v1208
      %v1357 = vmul.f32 %v1174, %v1209
      %v1358 = vmul.f32 %v1174, %v1210
      %v1359 = vmul.f32 %v1174, %v1211
      %v1360 = vmul.f32 %v1174, %v1212
      %v1361 = vmul.f32 %v1174, %v1213
      %v1362 = vmul.f32 %v1174, %v1214
      %v1363 = vmul.f32 %v1174, %v1215
      %v1364 = vmul.f32 %v1174, %v1216
      %v1365 = vmul.f32 %v1174, %v1217
      %v1366 = vmul.f32 %v1174, %v1218
      %v1367 = vmul.f32 %v1174, %v1219
      %v1368 = vmul.f32 %v1174, %v1220
      %v1369 = vmul.f32 %v1174, %v1221
      %v1370 = vmul.f32 %v1174, %v1222
      %v1371 = vmul.f32 %v1174, %v1223
      %v1372 = vmul.f32 %v1174, %v1224
      %v1373 = vmul.f32 %v1174, %v1225
      %v1374 = vmul.f32 %v1174, %v1226
      %v1375 = vmul.f32 %v1174, %v1227
      %v1376 = vmul.f32 %v1174, %v1228
      %v1377 = vmul.f32 %v1174, %v1229
      %v1378 = vmul.f32 %v1174, %v1230
      %v1379 = vmul.f32 %v1174, %v1231
      %v1380 = vmul.f32 %v1174, %v1232
      %v1381 = vmul.f32 %v1174, %v1233
      %v1382 = vmul.f32 %v1174, %v1234
      %v1383 = vmul.f32 %v1174, %v1235
      %v1384 = vmul.f32 %v1174, %v1236
      %v1385 = vmul.f32 %v1174, %v1237
      %v1386 = vmul.f32 %v1174, %v1238
      %v1387 = vmul.f32 %v1174, %v1239
      %v1388 = vmul.f32 %v1174, %v1240
      %v1389 = vmul.f32 %v1174, %v1241
      %v1390 = vmul.f32 %v1174, %v1242
      %v1391 = vmul.f32 %v1179, %v1206
      %v1392 = vmul.f32 %v1179, %v1207
      %v1393 = vmul.f32 %v1179, %v1208
      %v1394 = vmul.f32 %v1179, %v1209
      %v1395 = vmul.f32 %v1179, %v1210
      %v1396 = vmul.f32 %v1179, %v1211
      %v1397 = vmul.f32 %v1179, %v1212
      %v1398 = vmul.f32 %v1179, %v1213
      %v1399 = vmul.f32 %v1179, %v1214
      %v1400 = vmul.f32 %v1179, %v1215
      %v1401 = vmul.f32 %v1179, %v1216
      %v1402 = vmul.f32 %v1179, %v1217
      %v1403 = vmul.f32 %v1179, %v1218
      %v1404 = vmul.f32 %v1179, %v1219
      %v1405 = vmul.f32 %v1179, %v1220
      %v1406 = vmul.f32 %v1179, %v1221
      %v1407 = vmul.f32 %v1179, %v1222
      %v1408 = vmul.f32 %v1179, %v1223
      %v1409 = vmul.f32 %v1179, %v1224
      %v1410 = vmul.f32 %v1179, %v1225
      %v1411 = vmul.f32 %v1179, %v1226
      %v1412 = vmul.f32 %v1179, %v1227
      %v1413 = vmul.f32 %v1179, %v1228
      %v1414 = vmul.f32 %v1179, %v1229
      %v1415 = vmul.f32 %v1179, %v1230
      %v1416 = vmul.f32 %v1179, %v1231
      %v1417 = vmul.f32 %v1179, %v1232
      %v1418 = vmul.f32 %v1179, %v1233
      %v1419 = vmul.f32 %v1179, %v1234
      %v1420 = vmul.f32 %v1179, %v1235
      %v1421 = vmul.f32 %v1179, %v1236
      %v1422 = vmul.f32 %v1179, %v1237
      %v1423 = vmul.f32 %v1179, %v1238
      %v1424 = vmul.f32 %v1179, %v1239
      %v1425 = vmul.f32 %v1179, %v1240
      %v1426 = vmul.f32 %v1179, %v1241
      %v1427 = vmul.f32 %v1179, %v1242
      %v1428 = vmul.f32 %v1184, %v1206
      %v1429 = vmul.f32 %v1184, %v1207
      %v1430 = vmul.f32 %v1184, %v1208
      %v1431 = vmul.f32 %v1184, %v1209
      %v1432 = vmul.f32 %v1184, %v1210
      %v1433 = vmul.f32 %v1184, %v1211
      %v1434 = vmul.f32 %v1184, %v1212
      %v1435 = vmul.f32 %v1184, %v1213
      %v1436 = vmul.f32 %v1184, %v1214
      %v1437 = vmul.f32 %v1184, %v1215
      %v1438 = vmul.f32 %v1184, %v1216
      %v1439 = vmul.f32 %v1184, %v1217
      %v1440 = vmul.f32 %v1184, %v1218
      %v1441 = vmul.f32 %v1184, %v1219
      %v1442 = vmul.f32 %v1184, %v1220
      %v1443 = vmul.f32 %v1184, %v1221
      %v1444 = vmul.f32 %v1184, %v1222
      %v1445 = vmul.f32 %v1184, %v1223
      %v1446 = vmul.f32 %v1184, %v1224
      %v1447 = vmul.f32 %v1184, %v1225
      %v1448 = vmul.f32 %v1184, %v1226
      %v1449 = vmul.f32 %v1184, %v1227
      %v1450 = vmul.f32 %v1184, %v1228
      %v1451 = vmul.f32 %v1184, %v1229
      %v1452 = vmul.f32 %v1184, %v1230
      %v1453 = vmul.f32 %v1184, %v1231
      %v1454 = vmul.f32 %v1184, %v1232
      %v1455 = vmul.f32 %v1184, %v1233
      %v1456 = vmul.f32 %v1184, %v1234
      %v1457 = vmul.f32 %v1184, %v1235
      %v1458 = vmul.f32 %v1184, %v1236
      %v1459 = vmul.f32 %v1184, %v1237
      %v1460 = vmul.f32 %v1184, %v1238
      %v1461 = vmul.f32 %v1184, %v1239
      %v1462 = vmul.f32 %v1184, %v1240
      %v1463 = vmul.f32 %v1184, %v1241
      %v1464 = vmul.f32 %v1184, %v1242
      %v1465 = vmul.f32 %v1189, %v1206
      %v1466 = vmul.f32 %v1189, %v1207
      %v1467 = vmul.f32 %v1189, %v1208
      %v1468 = vmul.f32 %v1189, %v1209
      %v1469 = vmul.f32 %v1189, %v1210
      %v1470 = vmul.f32 %v1189, %v1211
      %v1471 = vmul.f32 %v1189, %v1212
      %v1472 = vmul.f32 %v1189, %v1213
      %v1473 = vmul.f32 %v1189, %v1214
      %v1474 = vmul.f32 %v1189, %v1215
      %v1475 = vmul.f32 %v1189, %v1216
      %v1476 = vmul.f32 %v1189, %v1217
      %v1477 = vmul.f32 %v1189, %v1218
      %v1478 = vmul.f32 %v1189, %v1219
      %v1479 = vmul.f32 %v1189, %v1220
      %v1480 = vmul.f32 %v1189, %v1221
      %v1481 = vmul.f32 %v1189, %v1222
      %v1482 = vmul.f32 %v1189, %v1223
      %v1483 = vmul.f32 %v1189, %v1224
      %v1484 = vmul.f32 %v1189, %v1225
      %v1485 = vmul.f32 %v1189, %v1226
      %v1486 = vmul.f32 %v1189, %v1227
      %v1487 = vmul.f32 %v1189, %v1228
      %v1488 = vmul.f32 %v1189, %v1229
      %v1489 = vmul.f32 %v1189, %v1230
      %v1490 = vmul.f32 %v1189, %v1231
      %v1491 = vmul.f32 %v1189, %v1232
      %v1492 = vmul.f32 %v1189, %v1233
      %v1493 = vmul.f32 %v1189, %v1234
      %v1494 = vmul.f32 %v1189, %v1235
      %v1495 = vmul.f32 %v1189, %v1236
      %v1496 = vmul.f32 %v1189, %v1237
      %v1497 = vmul.f32 %v1189, %v1238
      %v1498 = vmul.f32 %v1189, %v1239
      %v1499 = vmul.f32 %v1189, %v1240
      %v1500 = vmul.f32 %v1189, %v1241
      %v1501 = vmul.f32 %v1189, %v1242
      %v1502 = vmul.f32 %v1194, %v1206
      %v1503 = vmul.f32 %v1194, %v1207
      %v1504 = vmul.f32 %v1194, %v1208
      %v1505 = vmul.f32 %v1194, %v1209
      %v1506 = vmul.f32 %v1194, %v1210
      %v1507 = vmul.f32 %v1194, %v1211
      %v1508 = vmul.f32 %v1194, %v1212
      %v1509 = vmul.f32 %v1194, %v1213
      %v1510 = vmul.f32 %v1194, %v1214
      %v1511 = vmul.f32 %v1194, %v1215
      %v1512 = vmul.f32 %v1194, %v1216
      %v1513 = vmul.f32 %v1194, %v1217
      %v1514 = vmul.f32 %v1194, %v1218
      %v1515 = vmul.f32 %v1194, %v1219
      %v1516 = vmul.f32 %v1194, %v1220
      %v1517 = vmul.f32 %v1194, %v1221
      %v1518 = vmul.f32 %v1194, %v1222
      %v1519 = vmul.f32 %v1194, %v1223
      %v1520 = vmul.f32 %v1194, %v1224
      %v1521 = vmul.f32 %v1194, %v1225
      %v1522 = vmul.f32 %v1194, %v1226
      %v1523 = vmul.f32 %v1194, %v1227
      %v1524 = vmul.f32 %v1194, %v1228
      %v1525 = vmul.f32 %v1194, %v1229
      %v1526 = vmul.f32 %v1194, %v1230
      %v1527 = vmul.f32 %v1194, %v1231
      %v1528 = vmul.f32 %v1194, %v1232
      %v1529 = vmul.f32 %v1194, %v1233
      %v1530 = vmul.f32 %v1194, %v1234
      %v1531 = vmul.f32 %v1194, %v1235
      %v1532 = vmul.f32 %v1194, %v1236
      %v1533 = vmul.f32 %v1194, %v1237
      %v1534 = vmul.f32 %v1194, %v1238
      %v1535 = vmul.f32 %v1194, %v1239
      %v1536 = vmul.f32 %v1194, %v1240
      %v1537 = vmul.f32 %v1194, %v1241
      %v1538 = vmul.f32 %v1194, %v1242
      %v1539 = vmul.f32 %v1199, %v1206
      %v1540 = vmul.f32 %v1199, %v1207
      %v1541 = vmul.f32 %v1199, %v1208
      %v1542 = vmul.f32 %v1199, %v1209
      %v1543 = vmul.f32 %v1199, %v1210
      %v1544 = vmul.f32 %v1199, %v1211
      %v1545 = vmul.f32 %v1199, %v1212
      %v1546 = vmul.f32 %v1199, %v1213
      %v1547 = vmul.f32 %v1199, %v1214
      %v1548 = vmul.f32 %v1199, %v1215
      %v1549 = vmul.f32 %v1199, %v1216
      %v1550 = vmul.f32 %v1199, %v1217
      %v1551 = vmul.f32 %v1199, %v1218
      %v1552 = vmul.f32 %v1199, %v1219
      %v1553 = vmul.f32 %v1199, %v1220
      %v1554 = vmul.f32 %v1199, %v1221
      %v1555 = vmul.f32 %v1199, %v1222
      %v1556 = vmul.f32 %v1199, %v1223
      %v1557 = vmul.f32 %v1199, %v1224
      %v1558 = vmul.f32 %v1199, %v1225
      %v1559 = vmul.f32 %v1199, %v1226
      %v1560 = vmul.f32 %v1199, %v1227
      %v1561 = vmul.f32 %v1199, %v1228
      %v1562 = vmul.f32 %v1199, %v1229
      %v1563 = vmul.f32 %v1199, %v1230
      %v1564 = vmul.f32 %v1199, %v1231
      %v1565 = vmul.f32 %v1199, %v1232
      %v1566 = vmul.f32 %v1199, %v1233
      %v1567 = vmul.f32 %v1199, %v1234
      %v1568 = vmul.f32 %v1199, %v1235
      %v1569 = vmul.f32 %v1199, %v1236
      %v1570 = vmul.f32 %v1199, %v1237
      %v1571 = vmul.f32 %v1199, %v1238
      %v1572 = vmul.f32 %v1199, %v1239
      %v1573 = vmul.f32 %v1199, %v1240
      %v1574 = vmul.f32 %v1199, %v1241
      %v1575 = vmul.f32 %v1199, %v1242
      %v1576 = vadd.f32 %v848, %v1280
      %v1577 = vadd.f32 %v849, %v1281
      %v1578 = vadd.f32 %v850, %v1282
      %v1579 = vadd.f32 %v851, %v1283
      %v1580 = vadd.f32 %v852, %v1284
      %v1581 = vadd.f32 %v853, %v1285
      %v1582 = vadd.f32 %v854, %v1286
      %v1583 = vadd.f32 %v855, %v1287
      %v1584 = vadd.f32 %v856, %v1288
      %v1585 = vadd.f32 %v857, %v1289
      %v1586 = vadd.f32 %v858, %v1290
      %v1587 = vadd.f32 %v859, %v1291
      %v1588 = vadd.f32 %v860, %v1292
      %v1589 = vadd.f32 %v861, %v1293
      %v1590 = vadd.f32 %v862, %v1294
      %v1591 = vadd.f32 %v863, %v1295
      %v1592 = vadd.f32 %v864, %v1296
      %v1593 = vadd.f32 %v865, %v1297
      %v1594 = vadd.f32 %v866, %v1298
      %v1595 = vadd.f32 %v867, %v1299
      %v1596 = vadd.f32 %v868, %v1300
      %v1597 = vadd.f32 %v869, %v1301
      %v1598 = vadd.f32 %v870, %v1302
      %v1599 = vadd.f32 %v871, %v1303
      %v1600 = vadd.f32 %v872, %v1304
      %v1601 = vadd.f32 %v873, %v1305
      %v1602 = vadd.f32 %v874, %v1306
      %v1603 = vadd.f32 %v875, %v1307
      %v1604 = vadd.f32 %v876, %v1308
      %v1605 = vadd.f32 %v877, %v1309
      %v1606 = vadd.f32 %v878, %v1310
      %v1607 = vadd.f32 %v879, %v1311
      %v1608 = vadd.f32 %v880, %v1312
      %v1609 = vadd.f32 %v881, %v1313
      %v1610 = vadd.f32 %v882, %v1314
      %v1611 = vadd.f32 %v883, %v1315
      %v1612 = vadd.f32 %v884, %v1316
      %v1613 = vadd.f32 %v885, %v1317
      %v1614 = vadd.f32 %v886, %v1318
      %v1615 = vadd.f32 %v887, %v1319
      %v1616 = vadd.f32 %v888, %v1320
      %v1617 = vadd.f32 %v889, %v1321
      %v1618 = vadd.f32 %v890, %v1322
      %v1619 = vadd.f32 %v891, %v1323
      %v1620 = vadd.f32 %v892, %v1324
      %v1621 = vadd.f32 %v893, %v1325
      %v1622 = vadd.f32 %v894, %v1326
      %v1623 = vadd.f32 %v895, %v1327
      %v1624 = vadd.f32 %v896, %v1328
      %v1625 = vadd.f32 %v897, %v1329
      %v1626 = vadd.f32 %v898, %v1330
      %v1627 = vadd.f32 %v899, %v1331
      %v1628 = vadd.f32 %v900, %v1332
      %v1629 = vadd.f32 %v901, %v1333
      %v1630 = vadd.f32 %v902, %v1334
      %v1631 = vadd.f32 %v903, %v1335
      %v1632 = vadd.f32 %v904, %v1336
      %v1633 = vadd.f32 %v905, %v1337
      %v1634 = vadd.f32 %v906, %v1338
      %v1635 = vadd.f32 %v907, %v1339
      %v1636 = vadd.f32 %v908, %v1340
      %v1637 = vadd.f32 %v909, %v1341
      %v1638 = vadd.f32 %v910, %v1342
      %v1639 = vadd.f32 %v911, %v1343
      %v1640 = vadd.f32 %v912, %v1344
      %v1641 = vadd.f32 %v913, %v1345
      %v1642 = vadd.f32 %v914, %v1346
      %v1643 = vadd.f32 %v915, %v1347
      %v1644 = vadd.f32 %v916, %v1348
      %v1645 = vadd.f32 %v917, %v1349
      %v1646 = vadd.f32 %v918, %v1350
      %v1647 = vadd.f32 %v919, %v1351
      %v1648 = vadd.f32 %v920, %v1352
      %v1649 = vadd.f32 %v921, %v1353
      %v1650 = vadd.f32 %v922, %v1354
      %v1651 = vadd.f32 %v923, %v1355
      %v1652 = vadd.f32 %v924, %v1356
      %v1653 = vadd.f32 %v925, %v1357
      %v1654 = vadd.f32 %v926, %v1358
      %v1655 = vadd.f32 %v927, %v1359
      %v1656 = vadd.f32 %v928, %v1360
      %v1657 = vadd.f32 %v929, %v1361
      %v1658 = vadd.f32 %v930, %v1362
      %v1659 = vadd.f32 %v931, %v1363
      %v1660 = vadd.f32 %v932, %v1364
      %v1661 = vadd.f32 %v933, %v1365
      %v1662 = vadd.f32 %v934, %v1366
      %v1663 = vadd.f32 %v935, %v1367
      %v1664 = vadd.f32 %v936, %v1368
      %v1665 = vadd.f32 %v937, %v1369
      %v1666 = vadd.f32 %v938, %v1370
      %v1667 = vadd.f32 %v939, %v1371
      %v1668 = vadd.f32 %v940, %v1372
      %v1669 = vadd.f32 %v941, %v1373
      %v1670 = vadd.f32 %v942, %v1374
      %v1671 = vadd.f32 %v943, %v1375
      %v1672 = vadd.f32 %v944, %v1376
      %v1673 = vadd.f32 %v945, %v1377
      %v1674 = vadd.f32 %v946, %v1378
      %v1675 = vadd.f32 %v947, %v1379
      %v1676 = vadd.f32 %v948, %v1380
      %v1677 = vadd.f32 %v949, %v1381
      %v1678 = vadd.f32 %v950, %v1382
      %v1679 = vadd.f32 %v951, %v1383
      %v1680 = vadd.f32 %v952, %v1384
      %v1681 = vadd.f32 %v953, %v1385
      %v1682 = vadd.f32 %v954, %v1386
      %v1683 = vadd.f32 %v955, %v1387
      %v1684 = vadd.f32 %v956, %v1388
      %v1685 = vadd.f32 %v957, %v1389
      %v1686 = vadd.f32 %v958, %v1390
      %v1687 = vadd.f32 %v959, %v1391
      %v1688 = vadd.f32 %v960, %v1392
      %v1689 = vadd.f32 %v961, %v1393
      %v1690 = vadd.f32 %v962, %v1394
      %v1691 = vadd.f32 %v963, %v1395
      %v1692 = vadd.f32 %v964, %v1396
      %v1693 = vadd.f32 %v965, %v1397
      %v1694 = vadd.f32 %v966, %v1398
      %v1695 = vadd.f32 %v967, %v1399
      %v1696 = vadd.f32 %v968, %v1400
      %v1697 = vadd.f32 %v969, %v1401
      %v1698 = vadd.f32 %v970, %v1402
      %v1699 = vadd.f32 %v971, %v1403
      %v1700 = vadd.f32 %v972, %v1404
      %v1701 = vadd.f32 %v973, %v1405
      %v1702 = vadd.f32 %v974, %v1406
      %v1703 = vadd.f32 %v975, %v1407
      %v1704 = vadd.f32 %v976, %v1408
      %v1705 = vadd.f32 %v977, %v1409
      %v1706 = vadd.f32 %v978, %v1410
      %v1707 = vadd.f32 %v979, %v1411
      %v1708 = vadd.f32 %v980, %v1412
      %v1709 = vadd.f32 %v981, %v1413
      %v1710 = vadd.f32 %v982, %v1414
      %v1711 = vadd.f32 %v983, %v1415
      %v1712 = vadd.f32 %v984, %v1416
      %v1713 = vadd.f32 %v985, %v1417
      %v1714 = vadd.f32 %v986, %v1418
      %v1715 = vadd.f32 %v987, %v1419
      %v1716 = vadd.f32 %v988, %v1420
      %v1717 = vadd.f32 %v989, %v1421
      %v1718 = vadd.f32 %v990, %v1422
      %v1719 = vadd.f32 %v991, %v1423
      %v1720 = vadd.f32 %v992, %v1424
      %v1721 = vadd.f32 %v993, %v1425
      %v1722 = vadd.f32 %v994, %v1426
      %v1723 = vadd.f32 %v995, %v1427
      %v1724 = vadd.f32 %v996, %v1428
      %v1725 = vadd.f32 %v997, %v1429
      %v1726 = vadd.f32 %v998, %v1430
      %v1727 = vadd.f32 %v999, %v1431
      %v1728 = vadd.f32 %v1000, %v1432
      %v1729 = vadd.f32 %v1001, %v1433
      %v1730 = vadd.f32 %v1002, %v1434
      %v1731 = vadd.f32 %v1003, %v1435
      %v1732 = vadd.f32 %v1004, %v1436
      %v1733 = vadd.f32 %v1005, %v1437
      %v1734 = vadd.f32 %v1006, %v1438
      %v1735 = vadd.f32 %v1007, %v1439
      %v1736 = vadd.f32 %v1008, %v1440
      %v1737 = vadd.f32 %v1009, %v1441
      %v1738 = vadd.f32 %v1010, %v1442
      %v1739 = vadd.f32 %v1011, %v1443
      %v1740 = vadd.f32 %v1012, %v1444
      %v1741 = vadd.f32 %v1013, %v1445
      %v1742 = vadd.f32 %v1014, %v1446
      %v1743 = vadd.f32 %v1015, %v1447
      %v1744 = vadd.f32 %v1016, %v1448
      %v1745 = vadd.f32 %v1017, %v1449
      %v1746 = vadd.f32 %v1018, %v1450
      %v1747 = vadd.f32 %v1019, %v1451
      %v1748 = vadd.f32 %v1020, %v1452
      %v1749 = vadd.f32 %v1021, %v1453
      %v1750 = vadd.f32 %v1022, %v1454
      %v1751 = vadd.f32 %v1023, %v1455
      %v1752 = vadd.f32 %v1024, %v1456
      %v1753 = vadd.f32 %v1025, %v1457
      %v1754 = vadd.f32 %v1026, %v1458
      %v1755 = vadd.f32 %v1027, %v1459
      %v1756 = vadd.f32 %v1028, %v1460
      %v1757 = vadd.f32 %v1029, %v1461
      %v1758 = vadd.f32 %v1030, %v1462
      %v1759 = vadd.f32 %v1031, %v1463
      %v1760 = vadd.f32 %v1032, %v1464
      %v1761 = vadd.f32 %v1033, %v1465
      %v1762 = vadd.f32 %v1034, %v1466
      %v1763 = vadd.f32 %v1035, %v1467
      %v1764 = vadd.f32 %v1036, %v1468
      %v1765 = vadd.f32 %v1037, %v1469
      %v1766 = vadd.f32 %v1038, %v1470
      %v1767 = vadd.f32 %v1039, %v1471
      %v1768 = vadd.f32 %v1040, %v1472
      %v1769 = vadd.f32 %v1041, %v1473
      %v1770 = vadd.f32 %v1042, %v1474
      %v1771 = vadd.f32 %v1043, %v1475
      %v1772 = vadd.f32 %v1044, %v1476
      %v1773 = vadd.f32 %v1045, %v1477
      %v1774 = vadd.f32 %v1046, %v1478
      %v1775 = vadd.f32 %v1047, %v1479
      %v1776 = vadd.f32 %v1048, %v1480
      %v1777 = vadd.f32 %v1049, %v1481
      %v1778 = vadd.f32 %v1050, %v1482
      %v1779 = vadd.f32 %v1051, %v1483
      %v1780 = vadd.f32 %v1052, %v1484
      %v1781 = vadd.f32 %v1053, %v1485
      %v1782 = vadd.f32 %v1054, %v1486
      %v1783 = vadd.f32 %v1055, %v1487
      %v1784 = vadd.f32 %v1056, %v1488
      %v1785 = vadd.f32 %v1057, %v1489
      %v1786 = vadd.f32 %v1058, %v1490
      %v1787 = vadd.f32 %v1059, %v1491
      %v1788 = vadd.f32 %v1060, %v1492
      %v1789 = vadd.f32 %v1061, %v1493
      %v1790 = vadd.f32 %v1062, %v1494
      %v1791 = vadd.f32 %v1063, %v1495
      %v1792 = vadd.f32 %v1064, %v1496
      %v1793 = vadd.f32 %v1065, %v1497
      %v1794 = vadd.f32 %v1066, %v1498
      %v1795 = vadd.f32 %v1067, %v1499
      %v1796 = vadd.f32 %v1068, %v1500
      %v1797 = vadd.f32 %v1069, %v1501
      %v1798 = vadd.f32 %v1070, %v1502
      %v1799 = vadd.f32 %v1071, %v1503
      %v1800 = vadd.f32 %v1072, %v1504
      %v1801 = vadd.f32 %v1073, %v1505
      %v1802 = vadd.f32 %v1074, %v1506
      %v1803 = vadd.f32 %v1075, %v1507
      %v1804 = vadd.f32 %v1076, %v1508
      %v1805 = vadd.f32 %v1077, %v1509
      %v1806 = vadd.f32 %v1078, %v1510
      %v1807 = vadd.f32 %v1079, %v1511
      %v1808 = vadd.f32 %v1080, %v1512
      %v1809 = vadd.f32 %v1081, %v1513
      %v1810 = vadd.f32 %v1082, %v1514
      %v1811 = vadd.f32 %v1083, %v1515
      %v1812 = vadd.f32 %v1084, %v1516
      %v1813 = vadd.f32 %v1085, %v1517
      %v1814 = vadd.f32 %v1086, %v1518
      %v1815 = vadd.f32 %v1087, %v1519
      %v1816 = vadd.f32 %v1088, %v1520
      %v1817 = vadd.f32 %v1089, %v1521
      %v1818 = vadd.f32 %v1090, %v1522
      %v1819 = vadd.f32 %v1091, %v1523
      %v1820 = vadd.f32 %v1092, %v1524
      %v1821 = vadd.f32 %v1093, %v1525
      %v1822 = vadd.f32 %v1094, %v1526
      %v1823 = vadd.f32 %v1095, %v1527
      %v1824 = vadd.f32 %v1096, %v1528
      %v1825 = vadd.f32 %v1097, %v1529
      %v1826 = vadd.f32 %v1098, %v1530
      %v1827 = vadd.f32 %v1099, %v1531
      %v1828 = vadd.f32 %v1100, %v1532
      %v1829 = vadd.f32 %v1101, %v1533
      %v1830 = vadd.f32 %v1102, %v1534
      %v1831 = vadd.f32 %v1103, %v1535
      %v1832 = vadd.f32 %v1104, %v1536
      %v1833 = vadd.f32 %v1105, %v1537
      %v1834 = vadd.f32 %v1106, %v1538
      %v1835 = vadd.f32 %v1107, %v1539
      %v1836 = vadd.f32 %v1108, %v1540
      %v1837 = vadd.f32 %v1109, %v1541
      %v1838 = vadd.f32 %v1110, %v1542
      %v1839 = vadd.f32 %v1111, %v1543
      %v1840 = vadd.f32 %v1112, %v1544
      %v1841 = vadd.f32 %v1113, %v1545
      %v1842 = vadd.f32 %v1114, %v1546
      %v1843 = vadd.f32 %v1115, %v1547
      %v1844 = vadd.f32 %v1116, %v1548
      %v1845 = vadd.f32 %v1117, %v1549
      %v1846 = vadd.f32 %v1118, %v1550
      %v1847 = vadd.f32 %v1119, %v1551
      %v1848 = vadd.f32 %v1120, %v1552
      %v1849 = vadd.f32 %v1121, %v1553
      %v1850 = vadd.f32 %v1122, %v1554
      %v1851 = vadd.f32 %v1123, %v1555
      %v1852 = vadd.f32 %v1124, %v1556
      %v1853 = vadd.f32 %v1125, %v1557
      %v1854 = vadd.f32 %v1126, %v1558
      %v1855 = vadd.f32 %v1127, %v1559
      %v1856 = vadd.f32 %v1128, %v1560
      %v1857 = vadd.f32 %v1129, %v1561
      %v1858 = vadd.f32 %v1130, %v1562
      %v1859 = vadd.f32 %v1131, %v1563
      %v1860 = vadd.f32 %v1132, %v1564
      %v1861 = vadd.f32 %v1133, %v1565
      %v1862 = vadd.f32 %v1134, %v1566
      %v1863 = vadd.f32 %v1135, %v1567
      %v1864 = vadd.f32 %v1136, %v1568
      %v1865 = vadd.f32 %v1137, %v1569
      %v1866 = vadd.f32 %v1138, %v1570
      %v1867 = vadd.f32 %v1139, %v1571
      %v1868 = vadd.f32 %v1140, %v1572
      %v1869 = vadd.f32 %v1141, %v1573
      %v1870 = vadd.f32 %v1142, %v1574
      %v1871 = vadd.f32 %v1143, %v1575
      %s1872 = scalar_lea.vmem %s0, 1
      %v1873 = vld [vmem:[%s1872] ss:$4 sm:$0xff]
      %s1874 = scalar_lea.vmem %s0, 33
      %v1875 = vld [vmem:[%s1874] ss:$4 sm:$0xff]
      %s1876 = scalar_lea.vmem %s0, 65
      %v1877 = vld [vmem:[%s1876] ss:$4 sm:$0xff]
      %s1878 = scalar_lea.vmem %s0, 97
      %v1879 = vld [vmem:[%s1878] ss:$4 sm:$0xff]
      %s1880 = scalar_lea.vmem %s0, 129
      %v1881 = vld [vmem:[%s1880] ss:$4 sm:$0x1f]
      %1882 = vset.pattern.permute.xlu0 1
      %1883 = vperm.xlu0 %1882, %v1144
      %v1884 = vpop.permute.xlu0 %1883
      %1886 = vset.pattern.permute.xlu0 1
      %1887 = vperm.xlu0 %1886, %v1145
      %v1888 = vpop.permute.xlu0 %1887
      %1890 = vset.pattern.permute.xlu0 1
      %1891 = vperm.xlu0 %1890, %v1146
      %v1892 = vpop.permute.xlu0 %1891
      %1894 = vset.pattern.permute.xlu0 1
      %1895 = vperm.xlu0 %1894, %v1147
      %v1896 = vpop.permute.xlu0 %1895
      %1898 = vset.pattern.permute.xlu0 1
      %1899 = vperm.xlu0 %1898, %v1148
      %v1900 = vpop.permute.xlu0 %1899
      %1902 = vset.pattern.permute.xlu0 1
      %1903 = vperm.xlu0 %1902, %v1149
      %v1904 = vpop.permute.xlu0 %1903
      %1906 = vset.pattern.permute.xlu0 1
      %1907 = vperm.xlu0 %1906, %v1150
      %v1908 = vpop.permute.xlu0 %1907
      %1910 = vset.pattern.permute.xlu0 1
      %1911 = vperm.xlu0 %1910, %v1151
      %v1912 = vpop.permute.xlu0 %1911
      %v1919 = vperm.slane %v1873, 0
      %v1920 = vperm.slane %v1873, 1
      %v1921 = vperm.slane %v1873, 2
      %v1922 = vperm.slane %v1873, 3
      %v1923 = vperm.slane %v1873, 4
      %v1924 = vperm.slane %v1873, 5
      %v1925 = vperm.slane %v1873, 6
      %v1926 = vperm.slane %v1873, 7
      %v1927 = vperm.slane %v1875, 0
      %v1928 = vperm.slane %v1875, 1
      %v1929 = vperm.slane %v1875, 2
      %v1930 = vperm.slane %v1875, 3
      %v1931 = vperm.slane %v1875, 4
      %v1932 = vperm.slane %v1875, 5
      %v1933 = vperm.slane %v1875, 6
      %v1934 = vperm.slane %v1875, 7
      %v1935 = vperm.slane %v1877, 0
      %v1936 = vperm.slane %v1877, 1
      %v1937 = vperm.slane %v1877, 2
      %v1938 = vperm.slane %v1877, 3
      %v1939 = vperm.slane %v1877, 4
      %v1940 = vperm.slane %v1877, 5
      %v1941 = vperm.slane %v1877, 6
      %v1942 = vperm.slane %v1877, 7
      %v1943 = vperm.slane %v1879, 0
      %v1944 = vperm.slane %v1879, 1
      %v1945 = vperm.slane %v1879, 2
      %v1946 = vperm.slane %v1879, 3
      %v1947 = vperm.slane %v1879, 4
      %v1948 = vperm.slane %v1879, 5
      %v1949 = vperm.slane %v1879, 6
      %v1950 = vperm.slane %v1879, 7
      %v1951 = vperm.slane %v1881, 0
      %v1952 = vperm.slane %v1881, 1
      %v1953 = vperm.slane %v1881, 2
      %v1954 = vperm.slane %v1881, 3
      %v1955 = vperm.slane %v1881, 4
      %v1993 = vmul.f32 %v1884, %v1919
      %v1994 = vmul.f32 %v1884, %v1920
      %v1995 = vmul.f32 %v1884, %v1921
      %v1996 = vmul.f32 %v1884, %v1922
      %v1997 = vmul.f32 %v1884, %v1923
      %v1998 = vmul.f32 %v1884, %v1924
      %v1999 = vmul.f32 %v1884, %v1925
      %v2000 = vmul.f32 %v1884, %v1926
      %v2001 = vmul.f32 %v1884, %v1927
      %v2002 = vmul.f32 %v1884, %v1928
      %v2003 = vmul.f32 %v1884, %v1929
      %v2004 = vmul.f32 %v1884, %v1930
      %v2005 = vmul.f32 %v1884, %v1931
      %v2006 = vmul.f32 %v1884, %v1932
      %v2007 = vmul.f32 %v1884, %v1933
      %v2008 = vmul.f32 %v1884, %v1934
      %v2009 = vmul.f32 %v1884, %v1935
      %v2010 = vmul.f32 %v1884, %v1936
      %v2011 = vmul.f32 %v1884, %v1937
      %v2012 = vmul.f32 %v1884, %v1938
      %v2013 = vmul.f32 %v1884, %v1939
      %v2014 = vmul.f32 %v1884, %v1940
      %v2015 = vmul.f32 %v1884, %v1941
      %v2016 = vmul.f32 %v1884, %v1942
      %v2017 = vmul.f32 %v1884, %v1943
      %v2018 = vmul.f32 %v1884, %v1944
      %v2019 = vmul.f32 %v1884, %v1945
      %v2020 = vmul.f32 %v1884, %v1946
      %v2021 = vmul.f32 %v1884, %v1947
      %v2022 = vmul.f32 %v1884, %v1948
      %v2023 = vmul.f32 %v1884, %v1949
      %v2024 = vmul.f32 %v1884, %v1950
      %v2025 = vmul.f32 %v1884, %v1951
      %v2026 = vmul.f32 %v1884, %v1952
      %v2027 = vmul.f32 %v1884, %v1953
      %v2028 = vmul.f32 %v1884, %v1954
      %v2029 = vmul.f32 %v1884, %v1955
      %v2030 = vmul.f32 %v1888, %v1919
      %v2031 = vmul.f32 %v1888, %v1920
      %v2032 = vmul.f32 %v1888, %v1921
      %v2033 = vmul.f32 %v1888, %v1922
      %v2034 = vmul.f32 %v1888, %v1923
      %v2035 = vmul.f32 %v1888, %v1924
      %v2036 = vmul.f32 %v1888, %v1925
      %v2037 = vmul.f32 %v1888, %v1926
      %v2038 = vmul.f32 %v1888, %v1927
      %v2039 = vmul.f32 %v1888, %v1928
      %v2040 = vmul.f32 %v1888, %v1929
      %v2041 = vmul.f32 %v1888, %v1930
      %v2042 = vmul.f32 %v1888, %v1931
      %v2043 = vmul.f32 %v1888, %v1932
      %v2044 = vmul.f32 %v1888, %v1933
      %v2045 = vmul.f32 %v1888, %v1934
      %v2046 = vmul.f32 %v1888, %v1935
      %v2047 = vmul.f32 %v1888, %v1936
      %v2048 = vmul.f32 %v1888, %v1937
      %v2049 = vmul.f32 %v1888, %v1938
      %v2050 = vmul.f32 %v1888, %v1939
      %v2051 = vmul.f32 %v1888, %v1940
      %v2052 = vmul.f32 %v1888, %v1941
      %v2053 = vmul.f32 %v1888, %v1942
      %v2054 = vmul.f32 %v1888, %v1943
      %v2055 = vmul.f32 %v1888, %v1944
      %v2056 = vmul.f32 %v1888, %v1945
      %v2057 = vmul.f32 %v1888, %v1946
      %v2058 = vmul.f32 %v1888, %v1947
      %v2059 = vmul.f32 %v1888, %v1948
      %v2060 = vmul.f32 %v1888, %v1949
      %v2061 = vmul.f32 %v1888, %v1950
      %v2062 = vmul.f32 %v1888, %v1951
      %v2063 = vmul.f32 %v1888, %v1952
      %v2064 = vmul.f32 %v1888, %v1953
      %v2065 = vmul.f32 %v1888, %v1954
      %v2066 = vmul.f32 %v1888, %v1955
      %v2067 = vmul.f32 %v1892, %v1919
      %v2068 = vmul.f32 %v1892, %v1920
      %v2069 = vmul.f32 %v1892, %v1921
      %v2070 = vmul.f32 %v1892, %v1922
      %v2071 = vmul.f32 %v1892, %v1923
      %v2072 = vmul.f32 %v1892, %v1924
      %v2073 = vmul.f32 %v1892, %v1925
      %v2074 = vmul.f32 %v1892, %v1926
      %v2075 = vmul.f32 %v1892, %v1927
      %v2076 = vmul.f32 %v1892, %v1928
      %v2077 = vmul.f32 %v1892, %v1929
      %v2078 = vmul.f32 %v1892, %v1930
      %v2079 = vmul.f32 %v1892, %v1931
      %v2080 = vmul.f32 %v1892, %v1932
      %v2081 = vmul.f32 %v1892, %v1933
      %v2082 = vmul.f32 %v1892, %v1934
      %v2083 = vmul.f32 %v1892, %v1935
      %v2084 = vmul.f32 %v1892, %v1936
      %v2085 = vmul.f32 %v1892, %v1937
      %v2086 = vmul.f32 %v1892, %v1938
      %v2087 = vmul.f32 %v1892, %v1939
      %v2088 = vmul.f32 %v1892, %v1940
      %v2089 = vmul.f32 %v1892, %v1941
      %v2090 = vmul.f32 %v1892, %v1942
      %v2091 = vmul.f32 %v1892, %v1943
      %v2092 = vmul.f32 %v1892, %v1944
      %v2093 = vmul.f32 %v1892, %v1945
      %v2094 = vmul.f32 %v1892, %v1946
      %v2095 = vmul.f32 %v1892, %v1947
      %v2096 = vmul.f32 %v1892, %v1948
      %v2097 = vmul.f32 %v1892, %v1949
      %v2098 = vmul.f32 %v1892, %v1950
      %v2099 = vmul.f32 %v1892, %v1951
      %v2100 = vmul.f32 %v1892, %v1952
      %v2101 = vmul.f32 %v1892, %v1953
      %v2102 = vmul.f32 %v1892, %v1954
      %v2103 = vmul.f32 %v1892, %v1955
      %v2104 = vmul.f32 %v1896, %v1919
      %v2105 = vmul.f32 %v1896, %v1920
      %v2106 = vmul.f32 %v1896, %v1921
      %v2107 = vmul.f32 %v1896, %v1922
      %v2108 = vmul.f32 %v1896, %v1923
      %v2109 = vmul.f32 %v1896, %v1924
      %v2110 = vmul.f32 %v1896, %v1925
      %v2111 = vmul.f32 %v1896, %v1926
      %v2112 = vmul.f32 %v1896, %v1927
      %v2113 = vmul.f32 %v1896, %v1928
      %v2114 = vmul.f32 %v1896, %v1929
      %v2115 = vmul.f32 %v1896, %v1930
      %v2116 = vmul.f32 %v1896, %v1931
      %v2117 = vmul.f32 %v1896, %v1932
      %v2118 = vmul.f32 %v1896, %v1933
      %v2119 = vmul.f32 %v1896, %v1934
      %v2120 = vmul.f32 %v1896, %v1935
      %v2121 = vmul.f32 %v1896, %v1936
      %v2122 = vmul.f32 %v1896, %v1937
      %v2123 = vmul.f32 %v1896, %v1938
      %v2124 = vmul.f32 %v1896, %v1939
      %v2125 = vmul.f32 %v1896, %v1940
      %v2126 = vmul.f32 %v1896, %v1941
      %v2127 = vmul.f32 %v1896, %v1942
      %v2128 = vmul.f32 %v1896, %v1943
      %v2129 = vmul.f32 %v1896, %v1944
      %v2130 = vmul.f32 %v1896, %v1945
      %v2131 = vmul.f32 %v1896, %v1946
      %v2132 = vmul.f32 %v1896, %v1947
      %v2133 = vmul.f32 %v1896, %v1948
      %v2134 = vmul.f32 %v1896, %v1949
      %v2135 = vmul.f32 %v1896, %v1950
      %v2136 = vmul.f32 %v1896, %v1951
      %v2137 = vmul.f32 %v1896, %v1952
      %v2138 = vmul.f32 %v1896, %v1953
      %v2139 = vmul.f32 %v1896, %v1954
      %v2140 = vmul.f32 %v1896, %v1955
      %v2141 = vmul.f32 %v1900, %v1919
      %v2142 = vmul.f32 %v1900, %v1920
      %v2143 = vmul.f32 %v1900, %v1921
      %v2144 = vmul.f32 %v1900, %v1922
      %v2145 = vmul.f32 %v1900, %v1923
      %v2146 = vmul.f32 %v1900, %v1924
      %v2147 = vmul.f32 %v1900, %v1925
      %v2148 = vmul.f32 %v1900, %v1926
      %v2149 = vmul.f32 %v1900, %v1927
      %v2150 = vmul.f32 %v1900, %v1928
      %v2151 = vmul.f32 %v1900, %v1929
      %v2152 = vmul.f32 %v1900, %v1930
      %v2153 = vmul.f32 %v1900, %v1931
      %v2154 = vmul.f32 %v1900, %v1932
      %v2155 = vmul.f32 %v1900, %v1933
      %v2156 = vmul.f32 %v1900, %v1934
      %v2157 = vmul.f32 %v1900, %v1935
      %v2158 = vmul.f32 %v1900, %v1936
      %v2159 = vmul.f32 %v1900, %v1937
      %v2160 = vmul.f32 %v1900, %v1938
      %v2161 = vmul.f32 %v1900, %v1939
      %v2162 = vmul.f32 %v1900, %v1940
      %v2163 = vmul.f32 %v1900, %v1941
      %v2164 = vmul.f32 %v1900, %v1942
      %v2165 = vmul.f32 %v1900, %v1943
      %v2166 = vmul.f32 %v1900, %v1944
      %v2167 = vmul.f32 %v1900, %v1945
      %v2168 = vmul.f32 %v1900, %v1946
      %v2169 = vmul.f32 %v1900, %v1947
      %v2170 = vmul.f32 %v1900, %v1948
      %v2171 = vmul.f32 %v1900, %v1949
      %v2172 = vmul.f32 %v1900, %v1950
      %v2173 = vmul.f32 %v1900, %v1951
      %v2174 = vmul.f32 %v1900, %v1952
      %v2175 = vmul.f32 %v1900, %v1953
      %v2176 = vmul.f32 %v1900, %v1954
      %v2177 = vmul.f32 %v1900, %v1955
      %v2178 = vmul.f32 %v1904, %v1919
      %v2179 = vmul.f32 %v1904, %v1920
      %v2180 = vmul.f32 %v1904, %v1921
      %v2181 = vmul.f32 %v1904, %v1922
      %v2182 = vmul.f32 %v1904, %v1923
      %v2183 = vmul.f32 %v1904, %v1924
      %v2184 = vmul.f32 %v1904, %v1925
      %v2185 = vmul.f32 %v1904, %v1926
      %v2186 = vmul.f32 %v1904, %v1927
      %v2187 = vmul.f32 %v1904, %v1928
      %v2188 = vmul.f32 %v1904, %v1929
      %v2189 = vmul.f32 %v1904, %v1930
      %v2190 = vmul.f32 %v1904, %v1931
      %v2191 = vmul.f32 %v1904, %v1932
      %v2192 = vmul.f32 %v1904, %v1933
      %v2193 = vmul.f32 %v1904, %v1934
      %v2194 = vmul.f32 %v1904, %v1935
      %v2195 = vmul.f32 %v1904, %v1936
      %v2196 = vmul.f32 %v1904, %v1937
      %v2197 = vmul.f32 %v1904, %v1938
      %v2198 = vmul.f32 %v1904, %v1939
      %v2199 = vmul.f32 %v1904, %v1940
      %v2200 = vmul.f32 %v1904, %v1941
      %v2201 = vmul.f32 %v1904, %v1942
      %v2202 = vmul.f32 %v1904, %v1943
      %v2203 = vmul.f32 %v1904, %v1944
      %v2204 = vmul.f32 %v1904, %v1945
      %v2205 = vmul.f32 %v1904, %v1946
      %v2206 = vmul.f32 %v1904, %v1947
      %v2207 = vmul.f32 %v1904, %v1948
      %v2208 = vmul.f32 %v1904, %v1949
      %v2209 = vmul.f32 %v1904, %v1950
      %v2210 = vmul.f32 %v1904, %v1951
      %v2211 = vmul.f32 %v1904, %v1952
      %v2212 = vmul.f32 %v1904, %v1953
      %v2213 = vmul.f32 %v1904, %v1954
      %v2214 = vmul.f32 %v1904, %v1955
      %v2215 = vmul.f32 %v1908, %v1919
      %v2216 = vmul.f32 %v1908, %v1920
      %v2217 = vmul.f32 %v1908, %v1921
      %v2218 = vmul.f32 %v1908, %v1922
      %v2219 = vmul.f32 %v1908, %v1923
      %v2220 = vmul.f32 %v1908, %v1924
      %v2221 = vmul.f32 %v1908, %v1925
      %v2222 = vmul.f32 %v1908, %v1926
      %v2223 = vmul.f32 %v1908, %v1927
      %v2224 = vmul.f32 %v1908, %v1928
      %v2225 = vmul.f32 %v1908, %v1929
      %v2226 = vmul.f32 %v1908, %v1930
      %v2227 = vmul.f32 %v1908, %v1931
      %v2228 = vmul.f32 %v1908, %v1932
      %v2229 = vmul.f32 %v1908, %v1933
      %v2230 = vmul.f32 %v1908, %v1934
      %v2231 = vmul.f32 %v1908, %v1935
      %v2232 = vmul.f32 %v1908, %v1936
      %v2233 = vmul.f32 %v1908, %v1937
      %v2234 = vmul.f32 %v1908, %v1938
      %v2235 = vmul.f32 %v1908, %v1939
      %v2236 = vmul.f32 %v1908, %v1940
      %v2237 = vmul.f32 %v1908, %v1941
      %v2238 = vmul.f32 %v1908, %v1942
      %v2239 = vmul.f32 %v1908, %v1943
      %v2240 = vmul.f32 %v1908, %v1944
      %v2241 = vmul.f32 %v1908, %v1945
      %v2242 = vmul.f32 %v1908, %v1946
      %v2243 = vmul.f32 %v1908, %v1947
      %v2244 = vmul.f32 %v1908, %v1948
      %v2245 = vmul.f32 %v1908, %v1949
      %v2246 = vmul.f32 %v1908, %v1950
      %v2247 = vmul.f32 %v1908, %v1951
      %v2248 = vmul.f32 %v1908, %v1952
      %v2249 = vmul.f32 %v1908, %v1953
      %v2250 = vmul.f32 %v1908, %v1954
      %v2251 = vmul.f32 %v1908, %v1955
      %v2252 = vmul.f32 %v1912, %v1919
      %v2253 = vmul.f32 %v1912, %v1920
      %v2254 = vmul.f32 %v1912, %v1921
      %v2255 = vmul.f32 %v1912, %v1922
      %v2256 = vmul.f32 %v1912, %v1923
      %v2257 = vmul.f32 %v1912, %v1924
      %v2258 = vmul.f32 %v1912, %v1925
      %v2259 = vmul.f32 %v1912, %v1926
      %v2260 = vmul.f32 %v1912, %v1927
      %v2261 = vmul.f32 %v1912, %v1928
      %v2262 = vmul.f32 %v1912, %v1929
      %v2263 = vmul.f32 %v1912, %v1930
      %v2264 = vmul.f32 %v1912, %v1931
      %v2265 = vmul.f32 %v1912, %v1932
      %v2266 = vmul.f32 %v1912, %v1933
      %v2267 = vmul.f32 %v1912, %v1934
      %v2268 = vmul.f32 %v1912, %v1935
      %v2269 = vmul.f32 %v1912, %v1936
      %v2270 = vmul.f32 %v1912, %v1937
      %v2271 = vmul.f32 %v1912, %v1938
      %v2272 = vmul.f32 %v1912, %v1939
      %v2273 = vmul.f32 %v1912, %v1940
      %v2274 = vmul.f32 %v1912, %v1941
      %v2275 = vmul.f32 %v1912, %v1942
      %v2276 = vmul.f32 %v1912, %v1943
      %v2277 = vmul.f32 %v1912, %v1944
      %v2278 = vmul.f32 %v1912, %v1945
      %v2279 = vmul.f32 %v1912, %v1946
      %v2280 = vmul.f32 %v1912, %v1947
      %v2281 = vmul.f32 %v1912, %v1948
      %v2282 = vmul.f32 %v1912, %v1949
      %v2283 = vmul.f32 %v1912, %v1950
      %v2284 = vmul.f32 %v1912, %v1951
      %v2285 = vmul.f32 %v1912, %v1952
      %v2286 = vmul.f32 %v1912, %v1953
      %v2287 = vmul.f32 %v1912, %v1954
      %v2288 = vmul.f32 %v1912, %v1955
      %v2289 = vadd.f32 %v1576, %v1993
      %v2290 = vadd.f32 %v1577, %v1994
      %v2291 = vadd.f32 %v1578, %v1995
      %v2292 = vadd.f32 %v1579, %v1996
      %v2293 = vadd.f32 %v1580, %v1997
      %v2294 = vadd.f32 %v1581, %v1998
      %v2295 = vadd.f32 %v1582, %v1999
      %v2296 = vadd.f32 %v1583, %v2000
      %v2297 = vadd.f32 %v1584, %v2001
      %v2298 = vadd.f32 %v1585, %v2002
      %v2299 = vadd.f32 %v1586, %v2003
      %v2300 = vadd.f32 %v1587, %v2004
      %v2301 = vadd.f32 %v1588, %v2005
      %v2302 = vadd.f32 %v1589, %v2006
      %v2303 = vadd.f32 %v1590, %v2007
      %v2304 = vadd.f32 %v1591, %v2008
      %v2305 = vadd.f32 %v1592, %v2009
      %v2306 = vadd.f32 %v1593, %v2010
      %v2307 = vadd.f32 %v1594, %v2011
      %v2308 = vadd.f32 %v1595, %v2012
      %v2309 = vadd.f32 %v1596, %v2013
      %v2310 = vadd.f32 %v1597, %v2014
      %v2311 = vadd.f32 %v1598, %v2015
      %v2312 = vadd.f32 %v1599, %v2016
      %v2313 = vadd.f32 %v1600, %v2017
      %v2314 = vadd.f32 %v1601, %v2018
      %v2315 = vadd.f32 %v1602, %v2019
      %v2316 = vadd.f32 %v1603, %v2020
      %v2317 = vadd.f32 %v1604, %v2021
      %v2318 = vadd.f32 %v1605, %v2022
      %v2319 = vadd.f32 %v1606, %v2023
      %v2320 = vadd.f32 %v1607, %v2024
      %v2321 = vadd.f32 %v1608, %v2025
      %v2322 = vadd.f32 %v1609, %v2026
      %v2323 = vadd.f32 %v1610, %v2027
      %v2324 = vadd.f32 %v1611, %v2028
      %v2325 = vadd.f32 %v1612, %v2029
      %v2326 = vadd.f32 %v1613, %v2030
      %v2327 = vadd.f32 %v1614, %v2031
      %v2328 = vadd.f32 %v1615, %v2032
      %v2329 = vadd.f32 %v1616, %v2033
      %v2330 = vadd.f32 %v1617, %v2034
      %v2331 = vadd.f32 %v1618, %v2035
      %v2332 = vadd.f32 %v1619, %v2036
      %v2333 = vadd.f32 %v1620, %v2037
      %v2334 = vadd.f32 %v1621, %v2038
      %v2335 = vadd.f32 %v1622, %v2039
      %v2336 = vadd.f32 %v1623, %v2040
      %v2337 = vadd.f32 %v1624, %v2041
      %v2338 = vadd.f32 %v1625, %v2042
      %v2339 = vadd.f32 %v1626, %v2043
      %v2340 = vadd.f32 %v1627, %v2044
      %v2341 = vadd.f32 %v1628, %v2045
      %v2342 = vadd.f32 %v1629, %v2046
      %v2343 = vadd.f32 %v1630, %v2047
      %v2344 = vadd.f32 %v1631, %v2048
      %v2345 = vadd.f32 %v1632, %v2049
      %v2346 = vadd.f32 %v1633, %v2050
      %v2347 = vadd.f32 %v1634, %v2051
      %v2348 = vadd.f32 %v1635, %v2052
      %v2349 = vadd.f32 %v1636, %v2053
      %v2350 = vadd.f32 %v1637, %v2054
      %v2351 = vadd.f32 %v1638, %v2055
      %v2352 = vadd.f32 %v1639, %v2056
      %v2353 = vadd.f32 %v1640, %v2057
      %v2354 = vadd.f32 %v1641, %v2058
      %v2355 = vadd.f32 %v1642, %v2059
      %v2356 = vadd.f32 %v1643, %v2060
      %v2357 = vadd.f32 %v1644, %v2061
      %v2358 = vadd.f32 %v1645, %v2062
      %v2359 = vadd.f32 %v1646, %v2063
      %v2360 = vadd.f32 %v1647, %v2064
      %v2361 = vadd.f32 %v1648, %v2065
      %v2362 = vadd.f32 %v1649, %v2066
      %v2363 = vadd.f32 %v1650, %v2067
      %v2364 = vadd.f32 %v1651, %v2068
      %v2365 = vadd.f32 %v1652, %v2069
      %v2366 = vadd.f32 %v1653, %v2070
      %v2367 = vadd.f32 %v1654, %v2071
      %v2368 = vadd.f32 %v1655, %v2072
      %v2369 = vadd.f32 %v1656, %v2073
      %v2370 = vadd.f32 %v1657, %v2074
      %v2371 = vadd.f32 %v1658, %v2075
      %v2372 = vadd.f32 %v1659, %v2076
      %v2373 = vadd.f32 %v1660, %v2077
      %v2374 = vadd.f32 %v1661, %v2078
      %v2375 = vadd.f32 %v1662, %v2079
      %v2376 = vadd.f32 %v1663, %v2080
      %v2377 = vadd.f32 %v1664, %v2081
      %v2378 = vadd.f32 %v1665, %v2082
      %v2379 = vadd.f32 %v1666, %v2083
      %v2380 = vadd.f32 %v1667, %v2084
      %v2381 = vadd.f32 %v1668, %v2085
      %v2382 = vadd.f32 %v1669, %v2086
      %v2383 = vadd.f32 %v1670, %v2087
      %v2384 = vadd.f32 %v1671, %v2088
      %v2385 = vadd.f32 %v1672, %v2089
      %v2386 = vadd.f32 %v1673, %v2090
      %v2387 = vadd.f32 %v1674, %v2091
      %v2388 = vadd.f32 %v1675, %v2092
      %v2389 = vadd.f32 %v1676, %v2093
      %v2390 = vadd.f32 %v1677, %v2094
      %v2391 = vadd.f32 %v1678, %v2095
      %v2392 = vadd.f32 %v1679, %v2096
      %v2393 = vadd.f32 %v1680, %v2097
      %v2394 = vadd.f32 %v1681, %v2098
      %v2395 = vadd.f32 %v1682, %v2099
      %v2396 = vadd.f32 %v1683, %v2100
      %v2397 = vadd.f32 %v1684, %v2101
      %v2398 = vadd.f32 %v1685, %v2102
      %v2399 = vadd.f32 %v1686, %v2103
      %v2400 = vadd.f32 %v1687, %v2104
      %v2401 = vadd.f32 %v1688, %v2105
      %v2402 = vadd.f32 %v1689, %v2106
      %v2403 = vadd.f32 %v1690, %v2107
      %v2404 = vadd.f32 %v1691, %v2108
      %v2405 = vadd.f32 %v1692, %v2109
      %v2406 = vadd.f32 %v1693, %v2110
      %v2407 = vadd.f32 %v1694, %v2111
      %v2408 = vadd.f32 %v1695, %v2112
      %v2409 = vadd.f32 %v1696, %v2113
      %v2410 = vadd.f32 %v1697, %v2114
      %v2411 = vadd.f32 %v1698, %v2115
      %v2412 = vadd.f32 %v1699, %v2116
      %v2413 = vadd.f32 %v1700, %v2117
      %v2414 = vadd.f32 %v1701, %v2118
      %v2415 = vadd.f32 %v1702, %v2119
      %v2416 = vadd.f32 %v1703, %v2120
      %v2417 = vadd.f32 %v1704, %v2121
      %v2418 = vadd.f32 %v1705, %v2122
      %v2419 = vadd.f32 %v1706, %v2123
      %v2420 = vadd.f32 %v1707, %v2124
      %v2421 = vadd.f32 %v1708, %v2125
      %v2422 = vadd.f32 %v1709, %v2126
      %v2423 = vadd.f32 %v1710, %v2127
      %v2424 = vadd.f32 %v1711, %v2128
      %v2425 = vadd.f32 %v1712, %v2129
      %v2426 = vadd.f32 %v1713, %v2130
      %v2427 = vadd.f32 %v1714, %v2131
      %v2428 = vadd.f32 %v1715, %v2132
      %v2429 = vadd.f32 %v1716, %v2133
      %v2430 = vadd.f32 %v1717, %v2134
      %v2431 = vadd.f32 %v1718, %v2135
      %v2432 = vadd.f32 %v1719, %v2136
      %v2433 = vadd.f32 %v1720, %v2137
      %v2434 = vadd.f32 %v1721, %v2138
      %v2435 = vadd.f32 %v1722, %v2139
      %v2436 = vadd.f32 %v1723, %v2140
      %v2437 = vadd.f32 %v1724, %v2141
      %v2438 = vadd.f32 %v1725, %v2142
      %v2439 = vadd.f32 %v1726, %v2143
      %v2440 = vadd.f32 %v1727, %v2144
      %v2441 = vadd.f32 %v1728, %v2145
      %v2442 = vadd.f32 %v1729, %v2146
      %v2443 = vadd.f32 %v1730, %v2147
      %v2444 = vadd.f32 %v1731, %v2148
      %v2445 = vadd.f32 %v1732, %v2149
      %v2446 = vadd.f32 %v1733, %v2150
      %v2447 = vadd.f32 %v1734, %v2151
      %v2448 = vadd.f32 %v1735, %v2152
      %v2449 = vadd.f32 %v1736, %v2153
      %v2450 = vadd.f32 %v1737, %v2154
      %v2451 = vadd.f32 %v1738, %v2155
      %v2452 = vadd.f32 %v1739, %v2156
      %v2453 = vadd.f32 %v1740, %v2157
      %v2454 = vadd.f32 %v1741, %v2158
      %v2455 = vadd.f32 %v1742, %v2159
      %v2456 = vadd.f32 %v1743, %v2160
      %v2457 = vadd.f32 %v1744, %v2161
      %v2458 = vadd.f32 %v1745, %v2162
      %v2459 = vadd.f32 %v1746, %v2163
      %v2460 = vadd.f32 %v1747, %v2164
      %v2461 = vadd.f32 %v1748, %v2165
      %v2462 = vadd.f32 %v1749, %v2166
      %v2463 = vadd.f32 %v1750, %v2167
      %v2464 = vadd.f32 %v1751, %v2168
      %v2465 = vadd.f32 %v1752, %v2169
      %v2466 = vadd.f32 %v1753, %v2170
      %v2467 = vadd.f32 %v1754, %v2171
      %v2468 = vadd.f32 %v1755, %v2172
      %v2469 = vadd.f32 %v1756, %v2173
      %v2470 = vadd.f32 %v1757, %v2174
      %v2471 = vadd.f32 %v1758, %v2175
      %v2472 = vadd.f32 %v1759, %v2176
      %v2473 = vadd.f32 %v1760, %v2177
      %v2474 = vadd.f32 %v1761, %v2178
      %v2475 = vadd.f32 %v1762, %v2179
      %v2476 = vadd.f32 %v1763, %v2180
      %v2477 = vadd.f32 %v1764, %v2181
      %v2478 = vadd.f32 %v1765, %v2182
      %v2479 = vadd.f32 %v1766, %v2183
      %v2480 = vadd.f32 %v1767, %v2184
      %v2481 = vadd.f32 %v1768, %v2185
      %v2482 = vadd.f32 %v1769, %v2186
      %v2483 = vadd.f32 %v1770, %v2187
      %v2484 = vadd.f32 %v1771, %v2188
      %v2485 = vadd.f32 %v1772, %v2189
      %v2486 = vadd.f32 %v1773, %v2190
      %v2487 = vadd.f32 %v1774, %v2191
      %v2488 = vadd.f32 %v1775, %v2192
      %v2489 = vadd.f32 %v1776, %v2193
      %v2490 = vadd.f32 %v1777, %v2194
      %v2491 = vadd.f32 %v1778, %v2195
      %v2492 = vadd.f32 %v1779, %v2196
      %v2493 = vadd.f32 %v1780, %v2197
      %v2494 = vadd.f32 %v1781, %v2198
      %v2495 = vadd.f32 %v1782, %v2199
      %v2496 = vadd.f32 %v1783, %v2200
      %v2497 = vadd.f32 %v1784, %v2201
      %v2498 = vadd.f32 %v1785, %v2202
      %v2499 = vadd.f32 %v1786, %v2203
      %v2500 = vadd.f32 %v1787, %v2204
      %v2501 = vadd.f32 %v1788, %v2205
      %v2502 = vadd.f32 %v1789, %v2206
      %v2503 = vadd.f32 %v1790, %v2207
      %v2504 = vadd.f32 %v1791, %v2208
      %v2505 = vadd.f32 %v1792, %v2209
      %v2506 = vadd.f32 %v1793, %v2210
      %v2507 = vadd.f32 %v1794, %v2211
      %v2508 = vadd.f32 %v1795, %v2212
      %v2509 = vadd.f32 %v1796, %v2213
      %v2510 = vadd.f32 %v1797, %v2214
      %v2511 = vadd.f32 %v1798, %v2215
      %v2512 = vadd.f32 %v1799, %v2216
      %v2513 = vadd.f32 %v1800, %v2217
      %v2514 = vadd.f32 %v1801, %v2218
      %v2515 = vadd.f32 %v1802, %v2219
      %v2516 = vadd.f32 %v1803, %v2220
      %v2517 = vadd.f32 %v1804, %v2221
      %v2518 = vadd.f32 %v1805, %v2222
      %v2519 = vadd.f32 %v1806, %v2223
      %v2520 = vadd.f32 %v1807, %v2224
      %v2521 = vadd.f32 %v1808, %v2225
      %v2522 = vadd.f32 %v1809, %v2226
      %v2523 = vadd.f32 %v1810, %v2227
      %v2524 = vadd.f32 %v1811, %v2228
      %v2525 = vadd.f32 %v1812, %v2229
      %v2526 = vadd.f32 %v1813, %v2230
      %v2527 = vadd.f32 %v1814, %v2231
      %v2528 = vadd.f32 %v1815, %v2232
      %v2529 = vadd.f32 %v1816, %v2233
      %v2530 = vadd.f32 %v1817, %v2234
      %v2531 = vadd.f32 %v1818, %v2235
      %v2532 = vadd.f32 %v1819, %v2236
      %v2533 = vadd.f32 %v1820, %v2237
      %v2534 = vadd.f32 %v1821, %v2238
      %v2535 = vadd.f32 %v1822, %v2239
      %v2536 = vadd.f32 %v1823, %v2240
      %v2537 = vadd.f32 %v1824, %v2241
      %v2538 = vadd.f32 %v1825, %v2242
      %v2539 = vadd.f32 %v1826, %v2243
      %v2540 = vadd.f32 %v1827, %v2244
      %v2541 = vadd.f32 %v1828, %v2245
      %v2542 = vadd.f32 %v1829, %v2246
      %v2543 = vadd.f32 %v1830, %v2247
      %v2544 = vadd.f32 %v1831, %v2248
      %v2545 = vadd.f32 %v1832, %v2249
      %v2546 = vadd.f32 %v1833, %v2250
      %v2547 = vadd.f32 %v1834, %v2251
      %v2548 = vadd.f32 %v1835, %v2252
      %v2549 = vadd.f32 %v1836, %v2253
      %v2550 = vadd.f32 %v1837, %v2254
      %v2551 = vadd.f32 %v1838, %v2255
      %v2552 = vadd.f32 %v1839, %v2256
      %v2553 = vadd.f32 %v1840, %v2257
      %v2554 = vadd.f32 %v1841, %v2258
      %v2555 = vadd.f32 %v1842, %v2259
      %v2556 = vadd.f32 %v1843, %v2260
      %v2557 = vadd.f32 %v1844, %v2261
      %v2558 = vadd.f32 %v1845, %v2262
      %v2559 = vadd.f32 %v1846, %v2263
      %v2560 = vadd.f32 %v1847, %v2264
      %v2561 = vadd.f32 %v1848, %v2265
      %v2562 = vadd.f32 %v1849, %v2266
      %v2563 = vadd.f32 %v1850, %v2267
      %v2564 = vadd.f32 %v1851, %v2268
      %v2565 = vadd.f32 %v1852, %v2269
      %v2566 = vadd.f32 %v1853, %v2270
      %v2567 = vadd.f32 %v1854, %v2271
      %v2568 = vadd.f32 %v1855, %v2272
      %v2569 = vadd.f32 %v1856, %v2273
      %v2570 = vadd.f32 %v1857, %v2274
      %v2571 = vadd.f32 %v1858, %v2275
      %v2572 = vadd.f32 %v1859, %v2276
      %v2573 = vadd.f32 %v1860, %v2277
      %v2574 = vadd.f32 %v1861, %v2278
      %v2575 = vadd.f32 %v1862, %v2279
      %v2576 = vadd.f32 %v1863, %v2280
      %v2577 = vadd.f32 %v1864, %v2281
      %v2578 = vadd.f32 %v1865, %v2282
      %v2579 = vadd.f32 %v1866, %v2283
      %v2580 = vadd.f32 %v1867, %v2284
      %v2581 = vadd.f32 %v1868, %v2285
      %v2582 = vadd.f32 %v1869, %v2286
      %v2583 = vadd.f32 %v1870, %v2287
      %v2584 = vadd.f32 %v1871, %v2288
      %s2585 = scalar_lea.vmem %s0, 2
      %v2586 = vld [vmem:[%s2585] ss:$4 sm:$0xff]
      %s2587 = scalar_lea.vmem %s0, 34
      %v2588 = vld [vmem:[%s2587] ss:$4 sm:$0xff]
      %s2589 = scalar_lea.vmem %s0, 66
      %v2590 = vld [vmem:[%s2589] ss:$4 sm:$0xff]
      %s2591 = scalar_lea.vmem %s0, 98
      %v2592 = vld [vmem:[%s2591] ss:$4 sm:$0xff]
      %s2593 = scalar_lea.vmem %s0, 130
      %v2594 = vld [vmem:[%s2593] ss:$4 sm:$0x1f]
      %2595 = vset.pattern.permute.xlu0 2
      %2596 = vperm.xlu0 %2595, %v1144
      %v2597 = vpop.permute.xlu0 %2596
      %2599 = vset.pattern.permute.xlu0 2
      %2600 = vperm.xlu0 %2599, %v1145
      %v2601 = vpop.permute.xlu0 %2600
      %2603 = vset.pattern.permute.xlu0 2
      %2604 = vperm.xlu0 %2603, %v1146
      %v2605 = vpop.permute.xlu0 %2604
      %2607 = vset.pattern.permute.xlu0 2
      %2608 = vperm.xlu0 %2607, %v1147
      %v2609 = vpop.permute.xlu0 %2608
      %2611 = vset.pattern.permute.xlu0 2
      %2612 = vperm.xlu0 %2611, %v1148
      %v2613 = vpop.permute.xlu0 %2612
      %2615 = vset.pattern.permute.xlu0 2
      %2616 = vperm.xlu0 %2615, %v1149
      %v2617 = vpop.permute.xlu0 %2616
      %2619 = vset.pattern.permute.xlu0 2
      %2620 = vperm.xlu0 %2619, %v1150
      %v2621 = vpop.permute.xlu0 %2620
      %2623 = vset.pattern.permute.xlu0 2
      %2624 = vperm.xlu0 %2623, %v1151
      %v2625 = vpop.permute.xlu0 %2624
      %v2632 = vperm.slane %v2586, 0
      %v2633 = vperm.slane %v2586, 1
      %v2634 = vperm.slane %v2586, 2
      %v2635 = vperm.slane %v2586, 3
      %v2636 = vperm.slane %v2586, 4
      %v2637 = vperm.slane %v2586, 5
      %v2638 = vperm.slane %v2586, 6
      %v2639 = vperm.slane %v2586, 7
      %v2640 = vperm.slane %v2588, 0
      %v2641 = vperm.slane %v2588, 1
      %v2642 = vperm.slane %v2588, 2
      %v2643 = vperm.slane %v2588, 3
      %v2644 = vperm.slane %v2588, 4
      %v2645 = vperm.slane %v2588, 5
      %v2646 = vperm.slane %v2588, 6
      %v2647 = vperm.slane %v2588, 7
      %v2648 = vperm.slane %v2590, 0
      %v2649 = vperm.slane %v2590, 1
      %v2650 = vperm.slane %v2590, 2
      %v2651 = vperm.slane %v2590, 3
      %v2652 = vperm.slane %v2590, 4
      %v2653 = vperm.slane %v2590, 5
      %v2654 = vperm.slane %v2590, 6
      %v2655 = vperm.slane %v2590, 7
      %v2656 = vperm.slane %v2592, 0
      %v2657 = vperm.slane %v2592, 1
      %v2658 = vperm.slane %v2592, 2
      %v2659 = vperm.slane %v2592, 3
      %v2660 = vperm.slane %v2592, 4
      %v2661 = vperm.slane %v2592, 5
      %v2662 = vperm.slane %v2592, 6
      %v2663 = vperm.slane %v2592, 7
      %v2664 = vperm.slane %v2594, 0
      %v2665 = vperm.slane %v2594, 1
      %v2666 = vperm.slane %v2594, 2
      %v2667 = vperm.slane %v2594, 3
      %v2668 = vperm.slane %v2594, 4
      %v2706 = vmul.f32 %v2597, %v2632
      %v2707 = vmul.f32 %v2597, %v2633
      %v2708 = vmul.f32 %v2597, %v2634
      %v2709 = vmul.f32 %v2597, %v2635
      %v2710 = vmul.f32 %v2597, %v2636
      %v2711 = vmul.f32 %v2597, %v2637
      %v2712 = vmul.f32 %v2597, %v2638
      %v2713 = vmul.f32 %v2597, %v2639
      %v2714 = vmul.f32 %v2597, %v2640
      %v2715 = vmul.f32 %v2597, %v2641
      %v2716 = vmul.f32 %v2597, %v2642
      %v2717 = vmul.f32 %v2597, %v2643
      %v2718 = vmul.f32 %v2597, %v2644
      %v2719 = vmul.f32 %v2597, %v2645
      %v2720 = vmul.f32 %v2597, %v2646
      %v2721 = vmul.f32 %v2597, %v2647
      %v2722 = vmul.f32 %v2597, %v2648
      %v2723 = vmul.f32 %v2597, %v2649
      %v2724 = vmul.f32 %v2597, %v2650
      %v2725 = vmul.f32 %v2597, %v2651
      %v2726 = vmul.f32 %v2597, %v2652
      %v2727 = vmul.f32 %v2597, %v2653
      %v2728 = vmul.f32 %v2597, %v2654
      %v2729 = vmul.f32 %v2597, %v2655
      %v2730 = vmul.f32 %v2597, %v2656
      %v2731 = vmul.f32 %v2597, %v2657
      %v2732 = vmul.f32 %v2597, %v2658
      %v2733 = vmul.f32 %v2597, %v2659
      %v2734 = vmul.f32 %v2597, %v2660
      %v2735 = vmul.f32 %v2597, %v2661
      %v2736 = vmul.f32 %v2597, %v2662
      %v2737 = vmul.f32 %v2597, %v2663
      %v2738 = vmul.f32 %v2597, %v2664
      %v2739 = vmul.f32 %v2597, %v2665
      %v2740 = vmul.f32 %v2597, %v2666
      %v2741 = vmul.f32 %v2597, %v2667
      %v2742 = vmul.f32 %v2597, %v2668
      %v2743 = vmul.f32 %v2601, %v2632
      %v2744 = vmul.f32 %v2601, %v2633
      %v2745 = vmul.f32 %v2601, %v2634
      %v2746 = vmul.f32 %v2601, %v2635
      %v2747 = vmul.f32 %v2601, %v2636
      %v2748 = vmul.f32 %v2601, %v2637
      %v2749 = vmul.f32 %v2601, %v2638
      %v2750 = vmul.f32 %v2601, %v2639
      %v2751 = vmul.f32 %v2601, %v2640
      %v2752 = vmul.f32 %v2601, %v2641
      %v2753 = vmul.f32 %v2601, %v2642
      %v2754 = vmul.f32 %v2601, %v2643
      %v2755 = vmul.f32 %v2601, %v2644
      %v2756 = vmul.f32 %v2601, %v2645
      %v2757 = vmul.f32 %v2601, %v2646
      %v2758 = vmul.f32 %v2601, %v2647
      %v2759 = vmul.f32 %v2601, %v2648
      %v2760 = vmul.f32 %v2601, %v2649
      %v2761 = vmul.f32 %v2601, %v2650
      %v2762 = vmul.f32 %v2601, %v2651
      %v2763 = vmul.f32 %v2601, %v2652
      %v2764 = vmul.f32 %v2601, %v2653
      %v2765 = vmul.f32 %v2601, %v2654
      %v2766 = vmul.f32 %v2601, %v2655
      %v2767 = vmul.f32 %v2601, %v2656
      %v2768 = vmul.f32 %v2601, %v2657
      %v2769 = vmul.f32 %v2601, %v2658
      %v2770 = vmul.f32 %v2601, %v2659
      %v2771 = vmul.f32 %v2601, %v2660
      %v2772 = vmul.f32 %v2601, %v2661
      %v2773 = vmul.f32 %v2601, %v2662
      %v2774 = vmul.f32 %v2601, %v2663
      %v2775 = vmul.f32 %v2601, %v2664
      %v2776 = vmul.f32 %v2601, %v2665
      %v2777 = vmul.f32 %v2601, %v2666
      %v2778 = vmul.f32 %v2601, %v2667
      %v2779 = vmul.f32 %v2601, %v2668
      %v2780 = vmul.f32 %v2605, %v2632
      %v2781 = vmul.f32 %v2605, %v2633
      %v2782 = vmul.f32 %v2605, %v2634
      %v2783 = vmul.f32 %v2605, %v2635
      %v2784 = vmul.f32 %v2605, %v2636
      %v2785 = vmul.f32 %v2605, %v2637
      %v2786 = vmul.f32 %v2605, %v2638
      %v2787 = vmul.f32 %v2605, %v2639
      %v2788 = vmul.f32 %v2605, %v2640
      %v2789 = vmul.f32 %v2605, %v2641
      %v2790 = vmul.f32 %v2605, %v2642
      %v2791 = vmul.f32 %v2605, %v2643
      %v2792 = vmul.f32 %v2605, %v2644
      %v2793 = vmul.f32 %v2605, %v2645
      %v2794 = vmul.f32 %v2605, %v2646
      %v2795 = vmul.f32 %v2605, %v2647
      %v2796 = vmul.f32 %v2605, %v2648
      %v2797 = vmul.f32 %v2605, %v2649
      %v2798 = vmul.f32 %v2605, %v2650
      %v2799 = vmul.f32 %v2605, %v2651
      %v2800 = vmul.f32 %v2605, %v2652
      %v2801 = vmul.f32 %v2605, %v2653
      %v2802 = vmul.f32 %v2605, %v2654
      %v2803 = vmul.f32 %v2605, %v2655
      %v2804 = vmul.f32 %v2605, %v2656
      %v2805 = vmul.f32 %v2605, %v2657
      %v2806 = vmul.f32 %v2605, %v2658
      %v2807 = vmul.f32 %v2605, %v2659
      %v2808 = vmul.f32 %v2605, %v2660
      %v2809 = vmul.f32 %v2605, %v2661
      %v2810 = vmul.f32 %v2605, %v2662
      %v2811 = vmul.f32 %v2605, %v2663
      %v2812 = vmul.f32 %v2605, %v2664
      %v2813 = vmul.f32 %v2605, %v2665
      %v2814 = vmul.f32 %v2605, %v2666
      %v2815 = vmul.f32 %v2605, %v2667
      %v2816 = vmul.f32 %v2605, %v2668
      %v2817 = vmul.f32 %v2609, %v2632
      %v2818 = vmul.f32 %v2609, %v2633
      %v2819 = vmul.f32 %v2609, %v2634
      %v2820 = vmul.f32 %v2609, %v2635
      %v2821 = vmul.f32 %v2609, %v2636
      %v2822 = vmul.f32 %v2609, %v2637
      %v2823 = vmul.f32 %v2609, %v2638
      %v2824 = vmul.f32 %v2609, %v2639
      %v2825 = vmul.f32 %v2609, %v2640
      %v2826 = vmul.f32 %v2609, %v2641
      %v2827 = vmul.f32 %v2609, %v2642
      %v2828 = vmul.f32 %v2609, %v2643
      %v2829 = vmul.f32 %v2609, %v2644
      %v2830 = vmul.f32 %v2609, %v2645
      %v2831 = vmul.f32 %v2609, %v2646
      %v2832 = vmul.f32 %v2609, %v2647
      %v2833 = vmul.f32 %v2609, %v2648
      %v2834 = vmul.f32 %v2609, %v2649
      %v2835 = vmul.f32 %v2609, %v2650
      %v2836 = vmul.f32 %v2609, %v2651
      %v2837 = vmul.f32 %v2609, %v2652
      %v2838 = vmul.f32 %v2609, %v2653
      %v2839 = vmul.f32 %v2609, %v2654
      %v2840 = vmul.f32 %v2609, %v2655
      %v2841 = vmul.f32 %v2609, %v2656
      %v2842 = vmul.f32 %v2609, %v2657
      %v2843 = vmul.f32 %v2609, %v2658
      %v2844 = vmul.f32 %v2609, %v2659
      %v2845 = vmul.f32 %v2609, %v2660
      %v2846 = vmul.f32 %v2609, %v2661
      %v2847 = vmul.f32 %v2609, %v2662
      %v2848 = vmul.f32 %v2609, %v2663
      %v2849 = vmul.f32 %v2609, %v2664
      %v2850 = vmul.f32 %v2609, %v2665
      %v2851 = vmul.f32 %v2609, %v2666
      %v2852 = vmul.f32 %v2609, %v2667
      %v2853 = vmul.f32 %v2609, %v2668
      %v2854 = vmul.f32 %v2613, %v2632
      %v2855 = vmul.f32 %v2613, %v2633
      %v2856 = vmul.f32 %v2613, %v2634
      %v2857 = vmul.f32 %v2613, %v2635
      %v2858 = vmul.f32 %v2613, %v2636
      %v2859 = vmul.f32 %v2613, %v2637
      %v2860 = vmul.f32 %v2613, %v2638
      %v2861 = vmul.f32 %v2613, %v2639
      %v2862 = vmul.f32 %v2613, %v2640
      %v2863 = vmul.f32 %v2613, %v2641
      %v2864 = vmul.f32 %v2613, %v2642
      %v2865 = vmul.f32 %v2613, %v2643
      %v2866 = vmul.f32 %v2613, %v2644
      %v2867 = vmul.f32 %v2613, %v2645
      %v2868 = vmul.f32 %v2613, %v2646
      %v2869 = vmul.f32 %v2613, %v2647
      %v2870 = vmul.f32 %v2613, %v2648
      %v2871 = vmul.f32 %v2613, %v2649
      %v2872 = vmul.f32 %v2613, %v2650
      %v2873 = vmul.f32 %v2613, %v2651
      %v2874 = vmul.f32 %v2613, %v2652
      %v2875 = vmul.f32 %v2613, %v2653
      %v2876 = vmul.f32 %v2613, %v2654
      %v2877 = vmul.f32 %v2613, %v2655
      %v2878 = vmul.f32 %v2613, %v2656
      %v2879 = vmul.f32 %v2613, %v2657
      %v2880 = vmul.f32 %v2613, %v2658
      %v2881 = vmul.f32 %v2613, %v2659
      %v2882 = vmul.f32 %v2613, %v2660
      %v2883 = vmul.f32 %v2613, %v2661
      %v2884 = vmul.f32 %v2613, %v2662
      %v2885 = vmul.f32 %v2613, %v2663
      %v2886 = vmul.f32 %v2613, %v2664
      %v2887 = vmul.f32 %v2613, %v2665
      %v2888 = vmul.f32 %v2613, %v2666
      %v2889 = vmul.f32 %v2613, %v2667
      %v2890 = vmul.f32 %v2613, %v2668
      %v2891 = vmul.f32 %v2617, %v2632
      %v2892 = vmul.f32 %v2617, %v2633
      %v2893 = vmul.f32 %v2617, %v2634
      %v2894 = vmul.f32 %v2617, %v2635
      %v2895 = vmul.f32 %v2617, %v2636
      %v2896 = vmul.f32 %v2617, %v2637
      %v2897 = vmul.f32 %v2617, %v2638
      %v2898 = vmul.f32 %v2617, %v2639
      %v2899 = vmul.f32 %v2617, %v2640
      %v2900 = vmul.f32 %v2617, %v2641
      %v2901 = vmul.f32 %v2617, %v2642
      %v2902 = vmul.f32 %v2617, %v2643
      %v2903 = vmul.f32 %v2617, %v2644
      %v2904 = vmul.f32 %v2617, %v2645
      %v2905 = vmul.f32 %v2617, %v2646
      %v2906 = vmul.f32 %v2617, %v2647
      %v2907 = vmul.f32 %v2617, %v2648
      %v2908 = vmul.f32 %v2617, %v2649
      %v2909 = vmul.f32 %v2617, %v2650
      %v2910 = vmul.f32 %v2617, %v2651
      %v2911 = vmul.f32 %v2617, %v2652
      %v2912 = vmul.f32 %v2617, %v2653
      %v2913 = vmul.f32 %v2617, %v2654
      %v2914 = vmul.f32 %v2617, %v2655
      %v2915 = vmul.f32 %v2617, %v2656
      %v2916 = vmul.f32 %v2617, %v2657
      %v2917 = vmul.f32 %v2617, %v2658
      %v2918 = vmul.f32 %v2617, %v2659
      %v2919 = vmul.f32 %v2617, %v2660
      %v2920 = vmul.f32 %v2617, %v2661
      %v2921 = vmul.f32 %v2617, %v2662
      %v2922 = vmul.f32 %v2617, %v2663
      %v2923 = vmul.f32 %v2617, %v2664
      %v2924 = vmul.f32 %v2617, %v2665
      %v2925 = vmul.f32 %v2617, %v2666
      %v2926 = vmul.f32 %v2617, %v2667
      %v2927 = vmul.f32 %v2617, %v2668
      %v2928 = vmul.f32 %v2621, %v2632
      %v2929 = vmul.f32 %v2621, %v2633
      %v2930 = vmul.f32 %v2621, %v2634
      %v2931 = vmul.f32 %v2621, %v2635
      %v2932 = vmul.f32 %v2621, %v2636
      %v2933 = vmul.f32 %v2621, %v2637
      %v2934 = vmul.f32 %v2621, %v2638
      %v2935 = vmul.f32 %v2621, %v2639
      %v2936 = vmul.f32 %v2621, %v2640
      %v2937 = vmul.f32 %v2621, %v2641
      %v2938 = vmul.f32 %v2621, %v2642
      %v2939 = vmul.f32 %v2621, %v2643
      %v2940 = vmul.f32 %v2621, %v2644
      %v2941 = vmul.f32 %v2621, %v2645
      %v2942 = vmul.f32 %v2621, %v2646
      %v2943 = vmul.f32 %v2621, %v2647
      %v2944 = vmul.f32 %v2621, %v2648
      %v2945 = vmul.f32 %v2621, %v2649
      %v2946 = vmul.f32 %v2621, %v2650
      %v2947 = vmul.f32 %v2621, %v2651
      %v2948 = vmul.f32 %v2621, %v2652
      %v2949 = vmul.f32 %v2621, %v2653
      %v2950 = vmul.f32 %v2621, %v2654
      %v2951 = vmul.f32 %v2621, %v2655
      %v2952 = vmul.f32 %v2621, %v2656
      %v2953 = vmul.f32 %v2621, %v2657
      %v2954 = vmul.f32 %v2621, %v2658
      %v2955 = vmul.f32 %v2621, %v2659
      %v2956 = vmul.f32 %v2621, %v2660
      %v2957 = vmul.f32 %v2621, %v2661
      %v2958 = vmul.f32 %v2621, %v2662
      %v2959 = vmul.f32 %v2621, %v2663
      %v2960 = vmul.f32 %v2621, %v2664
      %v2961 = vmul.f32 %v2621, %v2665
      %v2962 = vmul.f32 %v2621, %v2666
      %v2963 = vmul.f32 %v2621, %v2667
      %v2964 = vmul.f32 %v2621, %v2668
      %v2965 = vmul.f32 %v2625, %v2632
      %v2966 = vmul.f32 %v2625, %v2633
      %v2967 = vmul.f32 %v2625, %v2634
      %v2968 = vmul.f32 %v2625, %v2635
      %v2969 = vmul.f32 %v2625, %v2636
      %v2970 = vmul.f32 %v2625, %v2637
      %v2971 = vmul.f32 %v2625, %v2638
      %v2972 = vmul.f32 %v2625, %v2639
      %v2973 = vmul.f32 %v2625, %v2640
      %v2974 = vmul.f32 %v2625, %v2641
      %v2975 = vmul.f32 %v2625, %v2642
      %v2976 = vmul.f32 %v2625, %v2643
      %v2977 = vmul.f32 %v2625, %v2644
      %v2978 = vmul.f32 %v2625, %v2645
      %v2979 = vmul.f32 %v2625, %v2646
      %v2980 = vmul.f32 %v2625, %v2647
      %v2981 = vmul.f32 %v2625, %v2648
      %v2982 = vmul.f32 %v2625, %v2649
      %v2983 = vmul.f32 %v2625, %v2650
      %v2984 = vmul.f32 %v2625, %v2651
      %v2985 = vmul.f32 %v2625, %v2652
      %v2986 = vmul.f32 %v2625, %v2653
      %v2987 = vmul.f32 %v2625, %v2654
      %v2988 = vmul.f32 %v2625, %v2655
      %v2989 = vmul.f32 %v2625, %v2656
      %v2990 = vmul.f32 %v2625, %v2657
      %v2991 = vmul.f32 %v2625, %v2658
      %v2992 = vmul.f32 %v2625, %v2659
      %v2993 = vmul.f32 %v2625, %v2660
      %v2994 = vmul.f32 %v2625, %v2661
      %v2995 = vmul.f32 %v2625, %v2662
      %v2996 = vmul.f32 %v2625, %v2663
      %v2997 = vmul.f32 %v2625, %v2664
      %v2998 = vmul.f32 %v2625, %v2665
      %v2999 = vmul.f32 %v2625, %v2666
      %v3000 = vmul.f32 %v2625, %v2667
      %v3001 = vmul.f32 %v2625, %v2668
      %v3002 = vadd.f32 %v2289, %v2706
      %v3003 = vadd.f32 %v2290, %v2707
      %v3004 = vadd.f32 %v2291, %v2708
      %v3005 = vadd.f32 %v2292, %v2709
      %v3006 = vadd.f32 %v2293, %v2710
      %v3007 = vadd.f32 %v2294, %v2711
      %v3008 = vadd.f32 %v2295, %v2712
      %v3009 = vadd.f32 %v2296, %v2713
      %v3010 = vadd.f32 %v2297, %v2714
      %v3011 = vadd.f32 %v2298, %v2715
      %v3012 = vadd.f32 %v2299, %v2716
      %v3013 = vadd.f32 %v2300, %v2717
      %v3014 = vadd.f32 %v2301, %v2718
      %v3015 = vadd.f32 %v2302, %v2719
      %v3016 = vadd.f32 %v2303, %v2720
      %v3017 = vadd.f32 %v2304, %v2721
      %v3018 = vadd.f32 %v2305, %v2722
      %v3019 = vadd.f32 %v2306, %v2723
      %v3020 = vadd.f32 %v2307, %v2724
      %v3021 = vadd.f32 %v2308, %v2725
      %v3022 = vadd.f32 %v2309, %v2726
      %v3023 = vadd.f32 %v2310, %v2727
      %v3024 = vadd.f32 %v2311, %v2728
      %v3025 = vadd.f32 %v2312, %v2729
      %v3026 = vadd.f32 %v2313, %v2730
      %v3027 = vadd.f32 %v2314, %v2731
      %v3028 = vadd.f32 %v2315, %v2732
      %v3029 = vadd.f32 %v2316, %v2733
      %v3030 = vadd.f32 %v2317, %v2734
      %v3031 = vadd.f32 %v2318, %v2735
      %v3032 = vadd.f32 %v2319, %v2736
      %v3033 = vadd.f32 %v2320, %v2737
      %v3034 = vadd.f32 %v2321, %v2738
      %v3035 = vadd.f32 %v2322, %v2739
      %v3036 = vadd.f32 %v2323, %v2740
      %v3037 = vadd.f32 %v2324, %v2741
      %v3038 = vadd.f32 %v2325, %v2742
      %v3039 = vadd.f32 %v2326, %v2743
      %v3040 = vadd.f32 %v2327, %v2744
      %v3041 = vadd.f32 %v2328, %v2745
      %v3042 = vadd.f32 %v2329, %v2746
      %v3043 = vadd.f32 %v2330, %v2747
      %v3044 = vadd.f32 %v2331, %v2748
      %v3045 = vadd.f32 %v2332, %v2749
      %v3046 = vadd.f32 %v2333, %v2750
      %v3047 = vadd.f32 %v2334, %v2751
      %v3048 = vadd.f32 %v2335, %v2752
      %v3049 = vadd.f32 %v2336, %v2753
      %v3050 = vadd.f32 %v2337, %v2754
      %v3051 = vadd.f32 %v2338, %v2755
      %v3052 = vadd.f32 %v2339, %v2756
      %v3053 = vadd.f32 %v2340, %v2757
      %v3054 = vadd.f32 %v2341, %v2758
      %v3055 = vadd.f32 %v2342, %v2759
      %v3056 = vadd.f32 %v2343, %v2760
      %v3057 = vadd.f32 %v2344, %v2761
      %v3058 = vadd.f32 %v2345, %v2762
      %v3059 = vadd.f32 %v2346, %v2763
      %v3060 = vadd.f32 %v2347, %v2764
      %v3061 = vadd.f32 %v2348, %v2765
      %v3062 = vadd.f32 %v2349, %v2766
      %v3063 = vadd.f32 %v2350, %v2767
      %v3064 = vadd.f32 %v2351, %v2768
      %v3065 = vadd.f32 %v2352, %v2769
      %v3066 = vadd.f32 %v2353, %v2770
      %v3067 = vadd.f32 %v2354, %v2771
      %v3068 = vadd.f32 %v2355, %v2772
      %v3069 = vadd.f32 %v2356, %v2773
      %v3070 = vadd.f32 %v2357, %v2774
      %v3071 = vadd.f32 %v2358, %v2775
      %v3072 = vadd.f32 %v2359, %v2776
      %v3073 = vadd.f32 %v2360, %v2777
      %v3074 = vadd.f32 %v2361, %v2778
      %v3075 = vadd.f32 %v2362, %v2779
      %v3076 = vadd.f32 %v2363, %v2780
      %v3077 = vadd.f32 %v2364, %v2781
      %v3078 = vadd.f32 %v2365, %v2782
      %v3079 = vadd.f32 %v2366, %v2783
      %v3080 = vadd.f32 %v2367, %v2784
      %v3081 = vadd.f32 %v2368, %v2785
      %v3082 = vadd.f32 %v2369, %v2786
      %v3083 = vadd.f32 %v2370, %v2787
      %v3084 = vadd.f32 %v2371, %v2788
      %v3085 = vadd.f32 %v2372, %v2789
      %v3086 = vadd.f32 %v2373, %v2790
      %v3087 = vadd.f32 %v2374, %v2791
      %v3088 = vadd.f32 %v2375, %v2792
      %v3089 = vadd.f32 %v2376, %v2793
      %v3090 = vadd.f32 %v2377, %v2794
      %v3091 = vadd.f32 %v2378, %v2795
      %v3092 = vadd.f32 %v2379, %v2796
      %v3093 = vadd.f32 %v2380, %v2797
      %v3094 = vadd.f32 %v2381, %v2798
      %v3095 = vadd.f32 %v2382, %v2799
      %v3096 = vadd.f32 %v2383, %v2800
      %v3097 = vadd.f32 %v2384, %v2801
      %v3098 = vadd.f32 %v2385, %v2802
      %v3099 = vadd.f32 %v2386, %v2803
      %v3100 = vadd.f32 %v2387, %v2804
      %v3101 = vadd.f32 %v2388, %v2805
      %v3102 = vadd.f32 %v2389, %v2806
      %v3103 = vadd.f32 %v2390, %v2807
      %v3104 = vadd.f32 %v2391, %v2808
      %v3105 = vadd.f32 %v2392, %v2809
      %v3106 = vadd.f32 %v2393, %v2810
      %v3107 = vadd.f32 %v2394, %v2811
      %v3108 = vadd.f32 %v2395, %v2812
      %v3109 = vadd.f32 %v2396, %v2813
      %v3110 = vadd.f32 %v2397, %v2814
      %v3111 = vadd.f32 %v2398, %v2815
      %v3112 = vadd.f32 %v2399, %v2816
      %v3113 = vadd.f32 %v2400, %v2817
      %v3114 = vadd.f32 %v2401, %v2818
      %v3115 = vadd.f32 %v2402, %v2819
      %v3116 = vadd.f32 %v2403, %v2820
      %v3117 = vadd.f32 %v2404, %v2821
      %v3118 = vadd.f32 %v2405, %v2822
      %v3119 = vadd.f32 %v2406, %v2823
      %v3120 = vadd.f32 %v2407, %v2824
      %v3121 = vadd.f32 %v2408, %v2825
      %v3122 = vadd.f32 %v2409, %v2826
      %v3123 = vadd.f32 %v2410, %v2827
      %v3124 = vadd.f32 %v2411, %v2828
      %v3125 = vadd.f32 %v2412, %v2829
      %v3126 = vadd.f32 %v2413, %v2830
      %v3127 = vadd.f32 %v2414, %v2831
      %v3128 = vadd.f32 %v2415, %v2832
      %v3129 = vadd.f32 %v2416, %v2833
      %v3130 = vadd.f32 %v2417, %v2834
      %v3131 = vadd.f32 %v2418, %v2835
      %v3132 = vadd.f32 %v2419, %v2836
      %v3133 = vadd.f32 %v2420, %v2837
      %v3134 = vadd.f32 %v2421, %v2838
      %v3135 = vadd.f32 %v2422, %v2839
      %v3136 = vadd.f32 %v2423, %v2840
      %v3137 = vadd.f32 %v2424, %v2841
      %v3138 = vadd.f32 %v2425, %v2842
      %v3139 = vadd.f32 %v2426, %v2843
      %v3140 = vadd.f32 %v2427, %v2844
      %v3141 = vadd.f32 %v2428, %v2845
      %v3142 = vadd.f32 %v2429, %v2846
      %v3143 = vadd.f32 %v2430, %v2847
      %v3144 = vadd.f32 %v2431, %v2848
      %v3145 = vadd.f32 %v2432, %v2849
      %v3146 = vadd.f32 %v2433, %v2850
      %v3147 = vadd.f32 %v2434, %v2851
      %v3148 = vadd.f32 %v2435, %v2852
      %v3149 = vadd.f32 %v2436, %v2853
      %v3150 = vadd.f32 %v2437, %v2854
      %v3151 = vadd.f32 %v2438, %v2855
      %v3152 = vadd.f32 %v2439, %v2856
      %v3153 = vadd.f32 %v2440, %v2857
      %v3154 = vadd.f32 %v2441, %v2858
      %v3155 = vadd.f32 %v2442, %v2859
      %v3156 = vadd.f32 %v2443, %v2860
      %v3157 = vadd.f32 %v2444, %v2861
      %v3158 = vadd.f32 %v2445, %v2862
      %v3159 = vadd.f32 %v2446, %v2863
      %v3160 = vadd.f32 %v2447, %v2864
      %v3161 = vadd.f32 %v2448, %v2865
      %v3162 = vadd.f32 %v2449, %v2866
      %v3163 = vadd.f32 %v2450, %v2867
      %v3164 = vadd.f32 %v2451, %v2868
      %v3165 = vadd.f32 %v2452, %v2869
      %v3166 = vadd.f32 %v2453, %v2870
      %v3167 = vadd.f32 %v2454, %v2871
      %v3168 = vadd.f32 %v2455, %v2872
      %v3169 = vadd.f32 %v2456, %v2873
      %v3170 = vadd.f32 %v2457, %v2874
      %v3171 = vadd.f32 %v2458, %v2875
      %v3172 = vadd.f32 %v2459, %v2876
      %v3173 = vadd.f32 %v2460, %v2877
      %v3174 = vadd.f32 %v2461, %v2878
      %v3175 = vadd.f32 %v2462, %v2879
      %v3176 = vadd.f32 %v2463, %v2880
      %v3177 = vadd.f32 %v2464, %v2881
      %v3178 = vadd.f32 %v2465, %v2882
      %v3179 = vadd.f32 %v2466, %v2883
      %v3180 = vadd.f32 %v2467, %v2884
      %v3181 = vadd.f32 %v2468, %v2885
      %v3182 = vadd.f32 %v2469, %v2886
      %v3183 = vadd.f32 %v2470, %v2887
      %v3184 = vadd.f32 %v2471, %v2888
      %v3185 = vadd.f32 %v2472, %v2889
      %v3186 = vadd.f32 %v2473, %v2890
      %v3187 = vadd.f32 %v2474, %v2891
      %v3188 = vadd.f32 %v2475, %v2892
      %v3189 = vadd.f32 %v2476, %v2893
      %v3190 = vadd.f32 %v2477, %v2894
      %v3191 = vadd.f32 %v2478, %v2895
      %v3192 = vadd.f32 %v2479, %v2896
      %v3193 = vadd.f32 %v2480, %v2897
      %v3194 = vadd.f32 %v2481, %v2898
      %v3195 = vadd.f32 %v2482, %v2899
      %v3196 = vadd.f32 %v2483, %v2900
      %v3197 = vadd.f32 %v2484, %v2901
      %v3198 = vadd.f32 %v2485, %v2902
      %v3199 = vadd.f32 %v2486, %v2903
      %v3200 = vadd.f32 %v2487, %v2904
      %v3201 = vadd.f32 %v2488, %v2905
      %v3202 = vadd.f32 %v2489, %v2906
      %v3203 = vadd.f32 %v2490, %v2907
      %v3204 = vadd.f32 %v2491, %v2908
      %v3205 = vadd.f32 %v2492, %v2909
      %v3206 = vadd.f32 %v2493, %v2910
      %v3207 = vadd.f32 %v2494, %v2911
      %v3208 = vadd.f32 %v2495, %v2912
      %v3209 = vadd.f32 %v2496, %v2913
      %v3210 = vadd.f32 %v2497, %v2914
      %v3211 = vadd.f32 %v2498, %v2915
      %v3212 = vadd.f32 %v2499, %v2916
      %v3213 = vadd.f32 %v2500, %v2917
      %v3214 = vadd.f32 %v2501, %v2918
      %v3215 = vadd.f32 %v2502, %v2919
      %v3216 = vadd.f32 %v2503, %v2920
      %v3217 = vadd.f32 %v2504, %v2921
      %v3218 = vadd.f32 %v2505, %v2922
      %v3219 = vadd.f32 %v2506, %v2923
      %v3220 = vadd.f32 %v2507, %v2924
      %v3221 = vadd.f32 %v2508, %v2925
      %v3222 = vadd.f32 %v2509, %v2926
      %v3223 = vadd.f32 %v2510, %v2927
      %v3224 = vadd.f32 %v2511, %v2928
      %v3225 = vadd.f32 %v2512, %v2929
      %v3226 = vadd.f32 %v2513, %v2930
      %v3227 = vadd.f32 %v2514, %v2931
      %v3228 = vadd.f32 %v2515, %v2932
      %v3229 = vadd.f32 %v2516, %v2933
      %v3230 = vadd.f32 %v2517, %v2934
      %v3231 = vadd.f32 %v2518, %v2935
      %v3232 = vadd.f32 %v2519, %v2936
      %v3233 = vadd.f32 %v2520, %v2937
      %v3234 = vadd.f32 %v2521, %v2938
      %v3235 = vadd.f32 %v2522, %v2939
      %v3236 = vadd.f32 %v2523, %v2940
      %v3237 = vadd.f32 %v2524, %v2941
      %v3238 = vadd.f32 %v2525, %v2942
      %v3239 = vadd.f32 %v2526, %v2943
      %v3240 = vadd.f32 %v2527, %v2944
      %v3241 = vadd.f32 %v2528, %v2945
      %v3242 = vadd.f32 %v2529, %v2946
      %v3243 = vadd.f32 %v2530, %v2947
      %v3244 = vadd.f32 %v2531, %v2948
      %v3245 = vadd.f32 %v2532, %v2949
      %v3246 = vadd.f32 %v2533, %v2950
      %v3247 = vadd.f32 %v2534, %v2951
      %v3248 = vadd.f32 %v2535, %v2952
      %v3249 = vadd.f32 %v2536, %v2953
      %v3250 = vadd.f32 %v2537, %v2954
      %v3251 = vadd.f32 %v2538, %v2955
      %v3252 = vadd.f32 %v2539, %v2956
      %v3253 = vadd.f32 %v2540, %v2957
      %v3254 = vadd.f32 %v2541, %v2958
      %v3255 = vadd.f32 %v2542, %v2959
      %v3256 = vadd.f32 %v2543, %v2960
      %v3257 = vadd.f32 %v2544, %v2961
      %v3258 = vadd.f32 %v2545, %v2962
      %v3259 = vadd.f32 %v2546, %v2963
      %v3260 = vadd.f32 %v2547, %v2964
      %v3261 = vadd.f32 %v2548, %v2965
      %v3262 = vadd.f32 %v2549, %v2966
      %v3263 = vadd.f32 %v2550, %v2967
      %v3264 = vadd.f32 %v2551, %v2968
      %v3265 = vadd.f32 %v2552, %v2969
      %v3266 = vadd.f32 %v2553, %v2970
      %v3267 = vadd.f32 %v2554, %v2971
      %v3268 = vadd.f32 %v2555, %v2972
      %v3269 = vadd.f32 %v2556, %v2973
      %v3270 = vadd.f32 %v2557, %v2974
      %v3271 = vadd.f32 %v2558, %v2975
      %v3272 = vadd.f32 %v2559, %v2976
      %v3273 = vadd.f32 %v2560, %v2977
      %v3274 = vadd.f32 %v2561, %v2978
      %v3275 = vadd.f32 %v2562, %v2979
      %v3276 = vadd.f32 %v2563, %v2980
      %v3277 = vadd.f32 %v2564, %v2981
      %v3278 = vadd.f32 %v2565, %v2982
      %v3279 = vadd.f32 %v2566, %v2983
      %v3280 = vadd.f32 %v2567, %v2984
      %v3281 = vadd.f32 %v2568, %v2985
      %v3282 = vadd.f32 %v2569, %v2986
      %v3283 = vadd.f32 %v2570, %v2987
      %v3284 = vadd.f32 %v2571, %v2988
      %v3285 = vadd.f32 %v2572, %v2989
      %v3286 = vadd.f32 %v2573, %v2990
      %v3287 = vadd.f32 %v2574, %v2991
      %v3288 = vadd.f32 %v2575, %v2992
      %v3289 = vadd.f32 %v2576, %v2993
      %v3290 = vadd.f32 %v2577, %v2994
      %v3291 = vadd.f32 %v2578, %v2995
      %v3292 = vadd.f32 %v2579, %v2996
      %v3293 = vadd.f32 %v2580, %v2997
      %v3294 = vadd.f32 %v2581, %v2998
      %v3295 = vadd.f32 %v2582, %v2999
      %v3296 = vadd.f32 %v2583, %v3000
      %v3297 = vadd.f32 %v2584, %v3001
      %v3298 = vadd.f32 %v3002, %v3003
      %v3299 = vadd.f32 %v3298, %v3004
      %v3300 = vadd.f32 %v3299, %v3005
      %v3301 = vadd.f32 %v3300, %v3006
      %v3302 = vadd.f32 %v3301, %v3007
      %v3303 = vadd.f32 %v3302, %v3008
      %v3304 = vadd.f32 %v3303, %v3009
      %v3305 = vadd.f32 %v3304, %v3010
      %v3306 = vadd.f32 %v3305, %v3011
      %v3307 = vadd.f32 %v3306, %v3012
      %v3308 = vadd.f32 %v3307, %v3013
      %v3309 = vadd.f32 %v3308, %v3014
      %v3310 = vadd.f32 %v3309, %v3015
      %v3311 = vadd.f32 %v3310, %v3016
      %v3312 = vadd.f32 %v3311, %v3017
      %v3313 = vadd.f32 %v3312, %v3018
      %v3314 = vadd.f32 %v3313, %v3019
      %v3315 = vadd.f32 %v3314, %v3020
      %v3316 = vadd.f32 %v3315, %v3021
      %v3317 = vadd.f32 %v3316, %v3022
      %v3318 = vadd.f32 %v3317, %v3023
      %v3319 = vadd.f32 %v3318, %v3024
      %v3320 = vadd.f32 %v3319, %v3025
      %v3321 = vadd.f32 %v3320, %v3026
      %v3322 = vadd.f32 %v3321, %v3027
      %v3323 = vadd.f32 %v3322, %v3028
      %v3324 = vadd.f32 %v3323, %v3029
      %v3325 = vadd.f32 %v3324, %v3030
      %v3326 = vadd.f32 %v3325, %v3031
      %v3327 = vadd.f32 %v3326, %v3032
      %v3328 = vadd.f32 %v3327, %v3033
      %v3329 = vadd.f32 %v3328, %v3034
      %v3330 = vadd.f32 %v3329, %v3035
      %v3331 = vadd.f32 %v3330, %v3036
      %v3332 = vadd.f32 %v3331, %v3037
      %vm3333 = vcmask 130048
      %v3334 = vsel %vm3333, %v3038, 0.0
      %v3335 = vadd.f32 %v3332, %v3334
      %3336 = vadd.xlane.f32.xlu0 %v3335
      %v3337 = vpop.xlane.xlu0 %3336
      %v3338 = vadd.f32 %v3039, %v3040
      %v3339 = vadd.f32 %v3338, %v3041
      %v3340 = vadd.f32 %v3339, %v3042
      %v3341 = vadd.f32 %v3340, %v3043
      %v3342 = vadd.f32 %v3341, %v3044
      %v3343 = vadd.f32 %v3342, %v3045
      %v3344 = vadd.f32 %v3343, %v3046
      %v3345 = vadd.f32 %v3344, %v3047
      %v3346 = vadd.f32 %v3345, %v3048
      %v3347 = vadd.f32 %v3346, %v3049
      %v3348 = vadd.f32 %v3347, %v3050
      %v3349 = vadd.f32 %v3348, %v3051
      %v3350 = vadd.f32 %v3349, %v3052
      %v3351 = vadd.f32 %v3350, %v3053
      %v3352 = vadd.f32 %v3351, %v3054
      %v3353 = vadd.f32 %v3352, %v3055
      %v3354 = vadd.f32 %v3353, %v3056
      %v3355 = vadd.f32 %v3354, %v3057
      %v3356 = vadd.f32 %v3355, %v3058
      %v3357 = vadd.f32 %v3356, %v3059
      %v3358 = vadd.f32 %v3357, %v3060
      %v3359 = vadd.f32 %v3358, %v3061
      %v3360 = vadd.f32 %v3359, %v3062
      %v3361 = vadd.f32 %v3360, %v3063
      %v3362 = vadd.f32 %v3361, %v3064
      %v3363 = vadd.f32 %v3362, %v3065
      %v3364 = vadd.f32 %v3363, %v3066
      %v3365 = vadd.f32 %v3364, %v3067
      %v3366 = vadd.f32 %v3365, %v3068
      %v3367 = vadd.f32 %v3366, %v3069
      %v3368 = vadd.f32 %v3367, %v3070
      %v3369 = vadd.f32 %v3368, %v3071
      %v3370 = vadd.f32 %v3369, %v3072
      %v3371 = vadd.f32 %v3370, %v3073
      %v3372 = vadd.f32 %v3371, %v3074
      %v3373 = vsel %vm3333, %v3075, 0.0
      %v3374 = vadd.f32 %v3372, %v3373
      %3375 = vadd.xlane.f32.xlu0 %v3374
      %v3376 = vpop.xlane.xlu0 %3375
      %v3377 = vadd.f32 %v3076, %v3077
      %v3378 = vadd.f32 %v3377, %v3078
      %v3379 = vadd.f32 %v3378, %v3079
      %v3380 = vadd.f32 %v3379, %v3080
      %v3381 = vadd.f32 %v3380, %v3081
      %v3382 = vadd.f32 %v3381, %v3082
      %v3383 = vadd.f32 %v3382, %v3083
      %v3384 = vadd.f32 %v3383, %v3084
      %v3385 = vadd.f32 %v3384, %v3085
      %v3386 = vadd.f32 %v3385, %v3086
      %v3387 = vadd.f32 %v3386, %v3087
      %v3388 = vadd.f32 %v3387, %v3088
      %v3389 = vadd.f32 %v3388, %v3089
      %v3390 = vadd.f32 %v3389, %v3090
      %v3391 = vadd.f32 %v3390, %v3091
      %v3392 = vadd.f32 %v3391, %v3092
      %v3393 = vadd.f32 %v3392, %v3093
      %v3394 = vadd.f32 %v3393, %v3094
      %v3395 = vadd.f32 %v3394, %v3095
      %v3396 = vadd.f32 %v3395, %v3096
      %v3397 = vadd.f32 %v3396, %v3097
      %v3398 = vadd.f32 %v3397, %v3098
      %v3399 = vadd.f32 %v3398, %v3099
      %v3400 = vadd.f32 %v3399, %v3100
      %v3401 = vadd.f32 %v3400, %v3101
      %v3402 = vadd.f32 %v3401, %v3102
      %v3403 = vadd.f32 %v3402, %v3103
      %v3404 = vadd.f32 %v3403, %v3104
      %v3405 = vadd.f32 %v3404, %v3105
      %v3406 = vadd.f32 %v3405, %v3106
      %v3407 = vadd.f32 %v3406, %v3107
      %v3408 = vadd.f32 %v3407, %v3108
      %v3409 = vadd.f32 %v3408, %v3109
      %v3410 = vadd.f32 %v3409, %v3110
      %v3411 = vadd.f32 %v3410, %v3111
      %v3412 = vsel %vm3333, %v3112, 0.0
      %v3413 = vadd.f32 %v3411, %v3412
      %3414 = vadd.xlane.f32.xlu0 %v3413
      %v3415 = vpop.xlane.xlu0 %3414
      %v3416 = vadd.f32 %v3113, %v3114
      %v3417 = vadd.f32 %v3416, %v3115
      %v3418 = vadd.f32 %v3417, %v3116
      %v3419 = vadd.f32 %v3418, %v3117
      %v3420 = vadd.f32 %v3419, %v3118
      %v3421 = vadd.f32 %v3420, %v3119
      %v3422 = vadd.f32 %v3421, %v3120
      %v3423 = vadd.f32 %v3422, %v3121
      %v3424 = vadd.f32 %v3423, %v3122
      %v3425 = vadd.f32 %v3424, %v3123
      %v3426 = vadd.f32 %v3425, %v3124
      %v3427 = vadd.f32 %v3426, %v3125
      %v3428 = vadd.f32 %v3427, %v3126
      %v3429 = vadd.f32 %v3428, %v3127
      %v3430 = vadd.f32 %v3429, %v3128
      %v3431 = vadd.f32 %v3430, %v3129
      %v3432 = vadd.f32 %v3431, %v3130
      %v3433 = vadd.f32 %v3432, %v3131
      %v3434 = vadd.f32 %v3433, %v3132
      %v3435 = vadd.f32 %v3434, %v3133
      %v3436 = vadd.f32 %v3435, %v3134
      %v3437 = vadd.f32 %v3436, %v3135
      %v3438 = vadd.f32 %v3437, %v3136
      %v3439 = vadd.f32 %v3438, %v3137
      %v3440 = vadd.f32 %v3439, %v3138
      %v3441 = vadd.f32 %v3440, %v3139
      %v3442 = vadd.f32 %v3441, %v3140
      %v3443 = vadd.f32 %v3442, %v3141
      %v3444 = vadd.f32 %v3443, %v3142
      %v3445 = vadd.f32 %v3444, %v3143
      %v3446 = vadd.f32 %v3445, %v3144
      %v3447 = vadd.f32 %v3446, %v3145
      %v3448 = vadd.f32 %v3447, %v3146
      %v3449 = vadd.f32 %v3448, %v3147
      %v3450 = vadd.f32 %v3449, %v3148
      %v3451 = vsel %vm3333, %v3149, 0.0
      %v3452 = vadd.f32 %v3450, %v3451
      %3453 = vadd.xlane.f32.xlu0 %v3452
      %v3454 = vpop.xlane.xlu0 %3453
      %v3455 = vadd.f32 %v3150, %v3151
      %v3456 = vadd.f32 %v3455, %v3152
      %v3457 = vadd.f32 %v3456, %v3153
      %v3458 = vadd.f32 %v3457, %v3154
      %v3459 = vadd.f32 %v3458, %v3155
      %v3460 = vadd.f32 %v3459, %v3156
      %v3461 = vadd.f32 %v3460, %v3157
      %v3462 = vadd.f32 %v3461, %v3158
      %v3463 = vadd.f32 %v3462, %v3159
      %v3464 = vadd.f32 %v3463, %v3160
      %v3465 = vadd.f32 %v3464, %v3161
      %v3466 = vadd.f32 %v3465, %v3162
      %v3467 = vadd.f32 %v3466, %v3163
      %v3468 = vadd.f32 %v3467, %v3164
      %v3469 = vadd.f32 %v3468, %v3165
      %v3470 = vadd.f32 %v3469, %v3166
      %v3471 = vadd.f32 %v3470, %v3167
      %v3472 = vadd.f32 %v3471, %v3168
      %v3473 = vadd.f32 %v3472, %v3169
      %v3474 = vadd.f32 %v3473, %v3170
      %v3475 = vadd.f32 %v3474, %v3171
      %v3476 = vadd.f32 %v3475, %v3172
      %v3477 = vadd.f32 %v3476, %v3173
      %v3478 = vadd.f32 %v3477, %v3174
      %v3479 = vadd.f32 %v3478, %v3175
      %v3480 = vadd.f32 %v3479, %v3176
      %v3481 = vadd.f32 %v3480, %v3177
      %v3482 = vadd.f32 %v3481, %v3178
      %v3483 = vadd.f32 %v3482, %v3179
      %v3484 = vadd.f32 %v3483, %v3180
      %v3485 = vadd.f32 %v3484, %v3181
      %v3486 = vadd.f32 %v3485, %v3182
      %v3487 = vadd.f32 %v3486, %v3183
      %v3488 = vadd.f32 %v3487, %v3184
      %v3489 = vadd.f32 %v3488, %v3185
      %v3490 = vsel %vm3333, %v3186, 0.0
      %v3491 = vadd.f32 %v3489, %v3490
      %3492 = vadd.xlane.f32.xlu0 %v3491
      %v3493 = vpop.xlane.xlu0 %3492
      %v3494 = vadd.f32 %v3187, %v3188
      %v3495 = vadd.f32 %v3494, %v3189
      %v3496 = vadd.f32 %v3495, %v3190
      %v3497 = vadd.f32 %v3496, %v3191
      %v3498 = vadd.f32 %v3497, %v3192
      %v3499 = vadd.f32 %v3498, %v3193
      %v3500 = vadd.f32 %v3499, %v3194
      %v3501 = vadd.f32 %v3500, %v3195
      %v3502 = vadd.f32 %v3501, %v3196
      %v3503 = vadd.f32 %v3502, %v3197
      %v3504 = vadd.f32 %v3503, %v3198
      %v3505 = vadd.f32 %v3504, %v3199
      %v3506 = vadd.f32 %v3505, %v3200
      %v3507 = vadd.f32 %v3506, %v3201
      %v3508 = vadd.f32 %v3507, %v3202
      %v3509 = vadd.f32 %v3508, %v3203
      %v3510 = vadd.f32 %v3509, %v3204
      %v3511 = vadd.f32 %v3510, %v3205
      %v3512 = vadd.f32 %v3511, %v3206
      %v3513 = vadd.f32 %v3512, %v3207
      %v3514 = vadd.f32 %v3513, %v3208
      %v3515 = vadd.f32 %v3514, %v3209
      %v3516 = vadd.f32 %v3515, %v3210
      %v3517 = vadd.f32 %v3516, %v3211
      %v3518 = vadd.f32 %v3517, %v3212
      %v3519 = vadd.f32 %v3518, %v3213
      %v3520 = vadd.f32 %v3519, %v3214
      %v3521 = vadd.f32 %v3520, %v3215
      %v3522 = vadd.f32 %v3521, %v3216
      %v3523 = vadd.f32 %v3522, %v3217
      %v3524 = vadd.f32 %v3523, %v3218
      %v3525 = vadd.f32 %v3524, %v3219
      %v3526 = vadd.f32 %v3525, %v3220
      %v3527 = vadd.f32 %v3526, %v3221
      %v3528 = vadd.f32 %v3527, %v3222
      %v3529 = vsel %vm3333, %v3223, 0.0
      %v3530 = vadd.f32 %v3528, %v3529
      %3531 = vadd.xlane.f32.xlu0 %v3530
      %v3532 = vpop.xlane.xlu0 %3531
      %v3533 = vadd.f32 %v3224, %v3225
      %v3534 = vadd.f32 %v3533, %v3226
      %v3535 = vadd.f32 %v3534, %v3227
      %v3536 = vadd.f32 %v3535, %v3228
      %v3537 = vadd.f32 %v3536, %v3229
      %v3538 = vadd.f32 %v3537, %v3230
      %v3539 = vadd.f32 %v3538, %v3231
      %v3540 = vadd.f32 %v3539, %v3232
      %v3541 = vadd.f32 %v3540, %v3233
      %v3542 = vadd.f32 %v3541, %v3234
      %v3543 = vadd.f32 %v3542, %v3235
      %v3544 = vadd.f32 %v3543, %v3236
      %v3545 = vadd.f32 %v3544, %v3237
      %v3546 = vadd.f32 %v3545, %v3238
      %v3547 = vadd.f32 %v3546, %v3239
      %v3548 = vadd.f32 %v3547, %v3240
      %v3549 = vadd.f32 %v3548, %v3241
      %v3550 = vadd.f32 %v3549, %v3242
      %v3551 = vadd.f32 %v3550, %v3243
      %v3552 = vadd.f32 %v3551, %v3244
      %v3553 = vadd.f32 %v3552, %v3245
      %v3554 = vadd.f32 %v3553, %v3246
      %v3555 = vadd.f32 %v3554, %v3247
      %v3556 = vadd.f32 %v3555, %v3248
      %v3557 = vadd.f32 %v3556, %v3249
      %v3558 = vadd.f32 %v3557, %v3250
      %v3559 = vadd.f32 %v3558, %v3251
      %v3560 = vadd.f32 %v3559, %v3252
      %v3561 = vadd.f32 %v3560, %v3253
      %v3562 = vadd.f32 %v3561, %v3254
      %v3563 = vadd.f32 %v3562, %v3255
      %v3564 = vadd.f32 %v3563, %v3256
      %v3565 = vadd.f32 %v3564, %v3257
      %v3566 = vadd.f32 %v3565, %v3258
      %v3567 = vadd.f32 %v3566, %v3259
      %v3568 = vsel %vm3333, %v3260, 0.0
      %v3569 = vadd.f32 %v3567, %v3568
      %3570 = vadd.xlane.f32.xlu0 %v3569
      %v3571 = vpop.xlane.xlu0 %3570
      %v3572 = vadd.f32 %v3261, %v3262
      %v3573 = vadd.f32 %v3572, %v3263
      %v3574 = vadd.f32 %v3573, %v3264
      %v3575 = vadd.f32 %v3574, %v3265
      %v3576 = vadd.f32 %v3575, %v3266
      %v3577 = vadd.f32 %v3576, %v3267
      %v3578 = vadd.f32 %v3577, %v3268
      %v3579 = vadd.f32 %v3578, %v3269
      %v3580 = vadd.f32 %v3579, %v3270
      %v3581 = vadd.f32 %v3580, %v3271
      %v3582 = vadd.f32 %v3581, %v3272
      %v3583 = vadd.f32 %v3582, %v3273
      %v3584 = vadd.f32 %v3583, %v3274
      %v3585 = vadd.f32 %v3584, %v3275
      %v3586 = vadd.f32 %v3585, %v3276
      %v3587 = vadd.f32 %v3586, %v3277
      %v3588 = vadd.f32 %v3587, %v3278
      %v3589 = vadd.f32 %v3588, %v3279
      %v3590 = vadd.f32 %v3589, %v3280
      %v3591 = vadd.f32 %v3590, %v3281
      %v3592 = vadd.f32 %v3591, %v3282
      %v3593 = vadd.f32 %v3592, %v3283
      %v3594 = vadd.f32 %v3593, %v3284
      %v3595 = vadd.f32 %v3594, %v3285
      %v3596 = vadd.f32 %v3595, %v3286
      %v3597 = vadd.f32 %v3596, %v3287
      %v3598 = vadd.f32 %v3597, %v3288
      %v3599 = vadd.f32 %v3598, %v3289
      %v3600 = vadd.f32 %v3599, %v3290
      %v3601 = vadd.f32 %v3600, %v3291
      %v3602 = vadd.f32 %v3601, %v3292
      %v3603 = vadd.f32 %v3602, %v3293
      %v3604 = vadd.f32 %v3603, %v3294
      %v3605 = vadd.f32 %v3604, %v3295
      %v3606 = vadd.f32 %v3605, %v3296
      %v3607 = vsel %vm3333, %v3297, 0.0
      %v3608 = vadd.f32 %v3606, %v3607
      %3609 = vadd.xlane.f32.xlu0 %v3608
      %v3610 = vpop.xlane.xlu0 %3609
      %v3611 = vmul.f32 %v3337, 0.00021626298
      %v3612 = vmul.f32 %v3376, 0.00021626298
      %v3613 = vmul.f32 %v3415, 0.00021626298
      %v3614 = vmul.f32 %v3454, 0.00021626298
      %v3615 = vmul.f32 %v3493, 0.00021626298
      %v3616 = vmul.f32 %v3532, 0.00021626298
      %v3617 = vmul.f32 %v3571, 0.00021626298
      %v3618 = vmul.f32 %v3610, 0.00021626298
      %v3619 = vsub.f32 %v3002, %v3611
      %v3620 = vsub.f32 %v3003, %v3611
      %v3621 = vsub.f32 %v3004, %v3611
      %v3622 = vsub.f32 %v3005, %v3611
      %v3623 = vsub.f32 %v3006, %v3611
      %v3624 = vsub.f32 %v3007, %v3611
      %v3625 = vsub.f32 %v3008, %v3611
      %v3626 = vsub.f32 %v3009, %v3611
      %v3627 = vsub.f32 %v3010, %v3611
      %v3628 = vsub.f32 %v3011, %v3611
      %v3629 = vsub.f32 %v3012, %v3611
      %v3630 = vsub.f32 %v3013, %v3611
      %v3631 = vsub.f32 %v3014, %v3611
      %v3632 = vsub.f32 %v3015, %v3611
      %v3633 = vsub.f32 %v3016, %v3611
      %v3634 = vsub.f32 %v3017, %v3611
      %v3635 = vsub.f32 %v3018, %v3611
      %v3636 = vsub.f32 %v3019, %v3611
      %v3637 = vsub.f32 %v3020, %v3611
      %v3638 = vsub.f32 %v3021, %v3611
      %v3639 = vsub.f32 %v3022, %v3611
      %v3640 = vsub.f32 %v3023, %v3611
      %v3641 = vsub.f32 %v3024, %v3611
      %v3642 = vsub.f32 %v3025, %v3611
      %v3643 = vsub.f32 %v3026, %v3611
      %v3644 = vsub.f32 %v3027, %v3611
      %v3645 = vsub.f32 %v3028, %v3611
      %v3646 = vsub.f32 %v3029, %v3611
      %v3647 = vsub.f32 %v3030, %v3611
      %v3648 = vsub.f32 %v3031, %v3611
      %v3649 = vsub.f32 %v3032, %v3611
      %v3650 = vsub.f32 %v3033, %v3611
      %v3651 = vsub.f32 %v3034, %v3611
      %v3652 = vsub.f32 %v3035, %v3611
      %v3653 = vsub.f32 %v3036, %v3611
      %v3654 = vsub.f32 %v3037, %v3611
      %v3655 = vsub.f32 %v3038, %v3611
      %v3656 = vsub.f32 %v3039, %v3612
      %v3657 = vsub.f32 %v3040, %v3612
      %v3658 = vsub.f32 %v3041, %v3612
      %v3659 = vsub.f32 %v3042, %v3612
      %v3660 = vsub.f32 %v3043, %v3612
      %v3661 = vsub.f32 %v3044, %v3612
      %v3662 = vsub.f32 %v3045, %v3612
      %v3663 = vsub.f32 %v3046, %v3612
      %v3664 = vsub.f32 %v3047, %v3612
      %v3665 = vsub.f32 %v3048, %v3612
      %v3666 = vsub.f32 %v3049, %v3612
      %v3667 = vsub.f32 %v3050, %v3612
      %v3668 = vsub.f32 %v3051, %v3612
      %v3669 = vsub.f32 %v3052, %v3612
      %v3670 = vsub.f32 %v3053, %v3612
      %v3671 = vsub.f32 %v3054, %v3612
      %v3672 = vsub.f32 %v3055, %v3612
      %v3673 = vsub.f32 %v3056, %v3612
      %v3674 = vsub.f32 %v3057, %v3612
      %v3675 = vsub.f32 %v3058, %v3612
      %v3676 = vsub.f32 %v3059, %v3612
      %v3677 = vsub.f32 %v3060, %v3612
      %v3678 = vsub.f32 %v3061, %v3612
      %v3679 = vsub.f32 %v3062, %v3612
      %v3680 = vsub.f32 %v3063, %v3612
      %v3681 = vsub.f32 %v3064, %v3612
      %v3682 = vsub.f32 %v3065, %v3612
      %v3683 = vsub.f32 %v3066, %v3612
      %v3684 = vsub.f32 %v3067, %v3612
      %v3685 = vsub.f32 %v3068, %v3612
      %v3686 = vsub.f32 %v3069, %v3612
      %v3687 = vsub.f32 %v3070, %v3612
      %v3688 = vsub.f32 %v3071, %v3612
      %v3689 = vsub.f32 %v3072, %v3612
      %v3690 = vsub.f32 %v3073, %v3612
      %v3691 = vsub.f32 %v3074, %v3612
      %v3692 = vsub.f32 %v3075, %v3612
      %v3693 = vsub.f32 %v3076, %v3613
      %v3694 = vsub.f32 %v3077, %v3613
      %v3695 = vsub.f32 %v3078, %v3613
      %v3696 = vsub.f32 %v3079, %v3613
      %v3697 = vsub.f32 %v3080, %v3613
      %v3698 = vsub.f32 %v3081, %v3613
      %v3699 = vsub.f32 %v3082, %v3613
      %v3700 = vsub.f32 %v3083, %v3613
      %v3701 = vsub.f32 %v3084, %v3613
      %v3702 = vsub.f32 %v3085, %v3613
      %v3703 = vsub.f32 %v3086, %v3613
      %v3704 = vsub.f32 %v3087, %v3613
      %v3705 = vsub.f32 %v3088, %v3613
      %v3706 = vsub.f32 %v3089, %v3613
      %v3707 = vsub.f32 %v3090, %v3613
      %v3708 = vsub.f32 %v3091, %v3613
      %v3709 = vsub.f32 %v3092, %v3613
      %v3710 = vsub.f32 %v3093, %v3613
      %v3711 = vsub.f32 %v3094, %v3613
      %v3712 = vsub.f32 %v3095, %v3613
      %v3713 = vsub.f32 %v3096, %v3613
      %v3714 = vsub.f32 %v3097, %v3613
      %v3715 = vsub.f32 %v3098, %v3613
      %v3716 = vsub.f32 %v3099, %v3613
      %v3717 = vsub.f32 %v3100, %v3613
      %v3718 = vsub.f32 %v3101, %v3613
      %v3719 = vsub.f32 %v3102, %v3613
      %v3720 = vsub.f32 %v3103, %v3613
      %v3721 = vsub.f32 %v3104, %v3613
      %v3722 = vsub.f32 %v3105, %v3613
      %v3723 = vsub.f32 %v3106, %v3613
      %v3724 = vsub.f32 %v3107, %v3613
      %v3725 = vsub.f32 %v3108, %v3613
      %v3726 = vsub.f32 %v3109, %v3613
      %v3727 = vsub.f32 %v3110, %v3613
      %v3728 = vsub.f32 %v3111, %v3613
      %v3729 = vsub.f32 %v3112, %v3613
      %v3730 = vsub.f32 %v3113, %v3614
      %v3731 = vsub.f32 %v3114, %v3614
      %v3732 = vsub.f32 %v3115, %v3614
      %v3733 = vsub.f32 %v3116, %v3614
      %v3734 = vsub.f32 %v3117, %v3614
      %v3735 = vsub.f32 %v3118, %v3614
      %v3736 = vsub.f32 %v3119, %v3614
      %v3737 = vsub.f32 %v3120, %v3614
      %v3738 = vsub.f32 %v3121, %v3614
      %v3739 = vsub.f32 %v3122, %v3614
      %v3740 = vsub.f32 %v3123, %v3614
      %v3741 = vsub.f32 %v3124, %v3614
      %v3742 = vsub.f32 %v3125, %v3614
      %v3743 = vsub.f32 %v3126, %v3614
      %v3744 = vsub.f32 %v3127, %v3614
      %v3745 = vsub.f32 %v3128, %v3614
      %v3746 = vsub.f32 %v3129, %v3614
      %v3747 = vsub.f32 %v3130, %v3614
      %v3748 = vsub.f32 %v3131, %v3614
      %v3749 = vsub.f32 %v3132, %v3614
      %v3750 = vsub.f32 %v3133, %v3614
      %v3751 = vsub.f32 %v3134, %v3614
      %v3752 = vsub.f32 %v3135, %v3614
      %v3753 = vsub.f32 %v3136, %v3614
      %v3754 = vsub.f32 %v3137, %v3614
      %v3755 = vsub.f32 %v3138, %v3614
      %v3756 = vsub.f32 %v3139, %v3614
      %v3757 = vsub.f32 %v3140, %v3614
      %v3758 = vsub.f32 %v3141, %v3614
      %v3759 = vsub.f32 %v3142, %v3614
      %v3760 = vsub.f32 %v3143, %v3614
      %v3761 = vsub.f32 %v3144, %v3614
      %v3762 = vsub.f32 %v3145, %v3614
      %v3763 = vsub.f32 %v3146, %v3614
      %v3764 = vsub.f32 %v3147, %v3614
      %v3765 = vsub.f32 %v3148, %v3614
      %v3766 = vsub.f32 %v3149, %v3614
      %v3767 = vsub.f32 %v3150, %v3615
      %v3768 = vsub.f32 %v3151, %v3615
      %v3769 = vsub.f32 %v3152, %v3615
      %v3770 = vsub.f32 %v3153, %v3615
      %v3771 = vsub.f32 %v3154, %v3615
      %v3772 = vsub.f32 %v3155, %v3615
      %v3773 = vsub.f32 %v3156, %v3615
      %v3774 = vsub.f32 %v3157, %v3615
      %v3775 = vsub.f32 %v3158, %v3615
      %v3776 = vsub.f32 %v3159, %v3615
      %v3777 = vsub.f32 %v3160, %v3615
      %v3778 = vsub.f32 %v3161, %v3615
      %v3779 = vsub.f32 %v3162, %v3615
      %v3780 = vsub.f32 %v3163, %v3615
      %v3781 = vsub.f32 %v3164, %v3615
      %v3782 = vsub.f32 %v3165, %v3615
      %v3783 = vsub.f32 %v3166, %v3615
      %v3784 = vsub.f32 %v3167, %v3615
      %v3785 = vsub.f32 %v3168, %v3615
      %v3786 = vsub.f32 %v3169, %v3615
      %v3787 = vsub.f32 %v3170, %v3615
      %v3788 = vsub.f32 %v3171, %v3615
      %v3789 = vsub.f32 %v3172, %v3615
      %v3790 = vsub.f32 %v3173, %v3615
      %v3791 = vsub.f32 %v3174, %v3615
      %v3792 = vsub.f32 %v3175, %v3615
      %v3793 = vsub.f32 %v3176, %v3615
      %v3794 = vsub.f32 %v3177, %v3615
      %v3795 = vsub.f32 %v3178, %v3615
      %v3796 = vsub.f32 %v3179, %v3615
      %v3797 = vsub.f32 %v3180, %v3615
      %v3798 = vsub.f32 %v3181, %v3615
      %v3799 = vsub.f32 %v3182, %v3615
      %v3800 = vsub.f32 %v3183, %v3615
      %v3801 = vsub.f32 %v3184, %v3615
      %v3802 = vsub.f32 %v3185, %v3615
      %v3803 = vsub.f32 %v3186, %v3615
      %v3804 = vsub.f32 %v3187, %v3616
      %v3805 = vsub.f32 %v3188, %v3616
      %v3806 = vsub.f32 %v3189, %v3616
      %v3807 = vsub.f32 %v3190, %v3616
      %v3808 = vsub.f32 %v3191, %v3616
      %v3809 = vsub.f32 %v3192, %v3616
      %v3810 = vsub.f32 %v3193, %v3616
      %v3811 = vsub.f32 %v3194, %v3616
      %v3812 = vsub.f32 %v3195, %v3616
      %v3813 = vsub.f32 %v3196, %v3616
      %v3814 = vsub.f32 %v3197, %v3616
      %v3815 = vsub.f32 %v3198, %v3616
      %v3816 = vsub.f32 %v3199, %v3616
      %v3817 = vsub.f32 %v3200, %v3616
      %v3818 = vsub.f32 %v3201, %v3616
      %v3819 = vsub.f32 %v3202, %v3616
      %v3820 = vsub.f32 %v3203, %v3616
      %v3821 = vsub.f32 %v3204, %v3616
      %v3822 = vsub.f32 %v3205, %v3616
      %v3823 = vsub.f32 %v3206, %v3616
      %v3824 = vsub.f32 %v3207, %v3616
      %v3825 = vsub.f32 %v3208, %v3616
      %v3826 = vsub.f32 %v3209, %v3616
      %v3827 = vsub.f32 %v3210, %v3616
      %v3828 = vsub.f32 %v3211, %v3616
      %v3829 = vsub.f32 %v3212, %v3616
      %v3830 = vsub.f32 %v3213, %v3616
      %v3831 = vsub.f32 %v3214, %v3616
      %v3832 = vsub.f32 %v3215, %v3616
      %v3833 = vsub.f32 %v3216, %v3616
      %v3834 = vsub.f32 %v3217, %v3616
      %v3835 = vsub.f32 %v3218, %v3616
      %v3836 = vsub.f32 %v3219, %v3616
      %v3837 = vsub.f32 %v3220, %v3616
      %v3838 = vsub.f32 %v3221, %v3616
      %v3839 = vsub.f32 %v3222, %v3616
      %v3840 = vsub.f32 %v3223, %v3616
      %v3841 = vsub.f32 %v3224, %v3617
      %v3842 = vsub.f32 %v3225, %v3617
      %v3843 = vsub.f32 %v3226, %v3617
      %v3844 = vsub.f32 %v3227, %v3617
      %v3845 = vsub.f32 %v3228, %v3617
      %v3846 = vsub.f32 %v3229, %v3617
      %v3847 = vsub.f32 %v3230, %v3617
      %v3848 = vsub.f32 %v3231, %v3617
      %v3849 = vsub.f32 %v3232, %v3617
      %v3850 = vsub.f32 %v3233, %v3617
      %v3851 = vsub.f32 %v3234, %v3617
      %v3852 = vsub.f32 %v3235, %v3617
      %v3853 = vsub.f32 %v3236, %v3617
      %v3854 = vsub.f32 %v3237, %v3617
      %v3855 = vsub.f32 %v3238, %v3617
      %v3856 = vsub.f32 %v3239, %v3617
      %v3857 = vsub.f32 %v3240, %v3617
      %v3858 = vsub.f32 %v3241, %v3617
      %v3859 = vsub.f32 %v3242, %v3617
      %v3860 = vsub.f32 %v3243, %v3617
      %v3861 = vsub.f32 %v3244, %v3617
      %v3862 = vsub.f32 %v3245, %v3617
      %v3863 = vsub.f32 %v3246, %v3617
      %v3864 = vsub.f32 %v3247, %v3617
      %v3865 = vsub.f32 %v3248, %v3617
      %v3866 = vsub.f32 %v3249, %v3617
      %v3867 = vsub.f32 %v3250, %v3617
      %v3868 = vsub.f32 %v3251, %v3617
      %v3869 = vsub.f32 %v3252, %v3617
      %v3870 = vsub.f32 %v3253, %v3617
      %v3871 = vsub.f32 %v3254, %v3617
      %v3872 = vsub.f32 %v3255, %v3617
      %v3873 = vsub.f32 %v3256, %v3617
      %v3874 = vsub.f32 %v3257, %v3617
      %v3875 = vsub.f32 %v3258, %v3617
      %v3876 = vsub.f32 %v3259, %v3617
      %v3877 = vsub.f32 %v3260, %v3617
      %v3878 = vsub.f32 %v3261, %v3618
      %v3879 = vsub.f32 %v3262, %v3618
      %v3880 = vsub.f32 %v3263, %v3618
      %v3881 = vsub.f32 %v3264, %v3618
      %v3882 = vsub.f32 %v3265, %v3618
      %v3883 = vsub.f32 %v3266, %v3618
      %v3884 = vsub.f32 %v3267, %v3618
      %v3885 = vsub.f32 %v3268, %v3618
      %v3886 = vsub.f32 %v3269, %v3618
      %v3887 = vsub.f32 %v3270, %v3618
      %v3888 = vsub.f32 %v3271, %v3618
      %v3889 = vsub.f32 %v3272, %v3618
      %v3890 = vsub.f32 %v3273, %v3618
      %v3891 = vsub.f32 %v3274, %v3618
      %v3892 = vsub.f32 %v3275, %v3618
      %v3893 = vsub.f32 %v3276, %v3618
      %v3894 = vsub.f32 %v3277, %v3618
      %v3895 = vsub.f32 %v3278, %v3618
      %v3896 = vsub.f32 %v3279, %v3618
      %v3897 = vsub.f32 %v3280, %v3618
      %v3898 = vsub.f32 %v3281, %v3618
      %v3899 = vsub.f32 %v3282, %v3618
      %v3900 = vsub.f32 %v3283, %v3618
      %v3901 = vsub.f32 %v3284, %v3618
      %v3902 = vsub.f32 %v3285, %v3618
      %v3903 = vsub.f32 %v3286, %v3618
      %v3904 = vsub.f32 %v3287, %v3618
      %v3905 = vsub.f32 %v3288, %v3618
      %v3906 = vsub.f32 %v3289, %v3618
      %v3907 = vsub.f32 %v3290, %v3618
      %v3908 = vsub.f32 %v3291, %v3618
      %v3909 = vsub.f32 %v3292, %v3618
      %v3910 = vsub.f32 %v3293, %v3618
      %v3911 = vsub.f32 %v3294, %v3618
      %v3912 = vsub.f32 %v3295, %v3618
      %v3913 = vsub.f32 %v3296, %v3618
      %v3914 = vsub.f32 %v3297, %v3618
      %v3915 = vmul.f32 %v3619, %v3619
      %v3916 = vmul.f32 %v3620, %v3620
      %v3917 = vmul.f32 %v3621, %v3621
      %v3918 = vmul.f32 %v3622, %v3622
      %v3919 = vmul.f32 %v3623, %v3623
      %v3920 = vmul.f32 %v3624, %v3624
      %v3921 = vmul.f32 %v3625, %v3625
      %v3922 = vmul.f32 %v3626, %v3626
      %v3923 = vmul.f32 %v3627, %v3627
      %v3924 = vmul.f32 %v3628, %v3628
      %v3925 = vmul.f32 %v3629, %v3629
      %v3926 = vmul.f32 %v3630, %v3630
      %v3927 = vmul.f32 %v3631, %v3631
      %v3928 = vmul.f32 %v3632, %v3632
      %v3929 = vmul.f32 %v3633, %v3633
      %v3930 = vmul.f32 %v3634, %v3634
      %v3931 = vmul.f32 %v3635, %v3635
      %v3932 = vmul.f32 %v3636, %v3636
      %v3933 = vmul.f32 %v3637, %v3637
      %v3934 = vmul.f32 %v3638, %v3638
      %v3935 = vmul.f32 %v3639, %v3639
      %v3936 = vmul.f32 %v3640, %v3640
      %v3937 = vmul.f32 %v3641, %v3641
      %v3938 = vmul.f32 %v3642, %v3642
      %v3939 = vmul.f32 %v3643, %v3643
      %v3940 = vmul.f32 %v3644, %v3644
      %v3941 = vmul.f32 %v3645, %v3645
      %v3942 = vmul.f32 %v3646, %v3646
      %v3943 = vmul.f32 %v3647, %v3647
      %v3944 = vmul.f32 %v3648, %v3648
      %v3945 = vmul.f32 %v3649, %v3649
      %v3946 = vmul.f32 %v3650, %v3650
      %v3947 = vmul.f32 %v3651, %v3651
      %v3948 = vmul.f32 %v3652, %v3652
      %v3949 = vmul.f32 %v3653, %v3653
      %v3950 = vmul.f32 %v3654, %v3654
      %v3951 = vmul.f32 %v3655, %v3655
      %v3952 = vmul.f32 %v3656, %v3656
      %v3953 = vmul.f32 %v3657, %v3657
      %v3954 = vmul.f32 %v3658, %v3658
      %v3955 = vmul.f32 %v3659, %v3659
      %v3956 = vmul.f32 %v3660, %v3660
      %v3957 = vmul.f32 %v3661, %v3661
      %v3958 = vmul.f32 %v3662, %v3662
      %v3959 = vmul.f32 %v3663, %v3663
      %v3960 = vmul.f32 %v3664, %v3664
      %v3961 = vmul.f32 %v3665, %v3665
      %v3962 = vmul.f32 %v3666, %v3666
      %v3963 = vmul.f32 %v3667, %v3667
      %v3964 = vmul.f32 %v3668, %v3668
      %v3965 = vmul.f32 %v3669, %v3669
      %v3966 = vmul.f32 %v3670, %v3670
      %v3967 = vmul.f32 %v3671, %v3671
      %v3968 = vmul.f32 %v3672, %v3672
      %v3969 = vmul.f32 %v3673, %v3673
      %v3970 = vmul.f32 %v3674, %v3674
      %v3971 = vmul.f32 %v3675, %v3675
      %v3972 = vmul.f32 %v3676, %v3676
      %v3973 = vmul.f32 %v3677, %v3677
      %v3974 = vmul.f32 %v3678, %v3678
      %v3975 = vmul.f32 %v3679, %v3679
      %v3976 = vmul.f32 %v3680, %v3680
      %v3977 = vmul.f32 %v3681, %v3681
      %v3978 = vmul.f32 %v3682, %v3682
      %v3979 = vmul.f32 %v3683, %v3683
      %v3980 = vmul.f32 %v3684, %v3684
      %v3981 = vmul.f32 %v3685, %v3685
      %v3982 = vmul.f32 %v3686, %v3686
      %v3983 = vmul.f32 %v3687, %v3687
      %v3984 = vmul.f32 %v3688, %v3688
      %v3985 = vmul.f32 %v3689, %v3689
      %v3986 = vmul.f32 %v3690, %v3690
      %v3987 = vmul.f32 %v3691, %v3691
      %v3988 = vmul.f32 %v3692, %v3692
      %v3989 = vmul.f32 %v3693, %v3693
      %v3990 = vmul.f32 %v3694, %v3694
      %v3991 = vmul.f32 %v3695, %v3695
      %v3992 = vmul.f32 %v3696, %v3696
      %v3993 = vmul.f32 %v3697, %v3697
      %v3994 = vmul.f32 %v3698, %v3698
      %v3995 = vmul.f32 %v3699, %v3699
      %v3996 = vmul.f32 %v3700, %v3700
      %v3997 = vmul.f32 %v3701, %v3701
      %v3998 = vmul.f32 %v3702, %v3702
      %v3999 = vmul.f32 %v3703, %v3703
      %v4000 = vmul.f32 %v3704, %v3704
      %v4001 = vmul.f32 %v3705, %v3705
      %v4002 = vmul.f32 %v3706, %v3706
      %v4003 = vmul.f32 %v3707, %v3707
      %v4004 = vmul.f32 %v3708, %v3708
      %v4005 = vmul.f32 %v3709, %v3709
      %v4006 = vmul.f32 %v3710, %v3710
      %v4007 = vmul.f32 %v3711, %v3711
      %v4008 = vmul.f32 %v3712, %v3712
      %v4009 = vmul.f32 %v3713, %v3713
      %v4010 = vmul.f32 %v3714, %v3714
      %v4011 = vmul.f32 %v3715, %v3715
      %v4012 = vmul.f32 %v3716, %v3716
      %v4013 = vmul.f32 %v3717, %v3717
      %v4014 = vmul.f32 %v3718, %v3718
      %v4015 = vmul.f32 %v3719, %v3719
      %v4016 = vmul.f32 %v3720, %v3720
      %v4017 = vmul.f32 %v3721, %v3721
      %v4018 = vmul.f32 %v3722, %v3722
      %v4019 = vmul.f32 %v3723, %v3723
      %v4020 = vmul.f32 %v3724, %v3724
      %v4021 = vmul.f32 %v3725, %v3725
      %v4022 = vmul.f32 %v3726, %v3726
      %v4023 = vmul.f32 %v3727, %v3727
      %v4024 = vmul.f32 %v3728, %v3728
      %v4025 = vmul.f32 %v3729, %v3729
      %v4026 = vmul.f32 %v3730, %v3730
      %v4027 = vmul.f32 %v3731, %v3731
      %v4028 = vmul.f32 %v3732, %v3732
      %v4029 = vmul.f32 %v3733, %v3733
      %v4030 = vmul.f32 %v3734, %v3734
      %v4031 = vmul.f32 %v3735, %v3735
      %v4032 = vmul.f32 %v3736, %v3736
      %v4033 = vmul.f32 %v3737, %v3737
      %v4034 = vmul.f32 %v3738, %v3738
      %v4035 = vmul.f32 %v3739, %v3739
      %v4036 = vmul.f32 %v3740, %v3740
      %v4037 = vmul.f32 %v3741, %v3741
      %v4038 = vmul.f32 %v3742, %v3742
      %v4039 = vmul.f32 %v3743, %v3743
      %v4040 = vmul.f32 %v3744, %v3744
      %v4041 = vmul.f32 %v3745, %v3745
      %v4042 = vmul.f32 %v3746, %v3746
      %v4043 = vmul.f32 %v3747, %v3747
      %v4044 = vmul.f32 %v3748, %v3748
      %v4045 = vmul.f32 %v3749, %v3749
      %v4046 = vmul.f32 %v3750, %v3750
      %v4047 = vmul.f32 %v3751, %v3751
      %v4048 = vmul.f32 %v3752, %v3752
      %v4049 = vmul.f32 %v3753, %v3753
      %v4050 = vmul.f32 %v3754, %v3754
      %v4051 = vmul.f32 %v3755, %v3755
      %v4052 = vmul.f32 %v3756, %v3756
      %v4053 = vmul.f32 %v3757, %v3757
      %v4054 = vmul.f32 %v3758, %v3758
      %v4055 = vmul.f32 %v3759, %v3759
      %v4056 = vmul.f32 %v3760, %v3760
      %v4057 = vmul.f32 %v3761, %v3761
      %v4058 = vmul.f32 %v3762, %v3762
      %v4059 = vmul.f32 %v3763, %v3763
      %v4060 = vmul.f32 %v3764, %v3764
      %v4061 = vmul.f32 %v3765, %v3765
      %v4062 = vmul.f32 %v3766, %v3766
      %v4063 = vmul.f32 %v3767, %v3767
      %v4064 = vmul.f32 %v3768, %v3768
      %v4065 = vmul.f32 %v3769, %v3769
      %v4066 = vmul.f32 %v3770, %v3770
      %v4067 = vmul.f32 %v3771, %v3771
      %v4068 = vmul.f32 %v3772, %v3772
      %v4069 = vmul.f32 %v3773, %v3773
      %v4070 = vmul.f32 %v3774, %v3774
      %v4071 = vmul.f32 %v3775, %v3775
      %v4072 = vmul.f32 %v3776, %v3776
      %v4073 = vmul.f32 %v3777, %v3777
      %v4074 = vmul.f32 %v3778, %v3778
      %v4075 = vmul.f32 %v3779, %v3779
      %v4076 = vmul.f32 %v3780, %v3780
      %v4077 = vmul.f32 %v3781, %v3781
      %v4078 = vmul.f32 %v3782, %v3782
      %v4079 = vmul.f32 %v3783, %v3783
      %v4080 = vmul.f32 %v3784, %v3784
      %v4081 = vmul.f32 %v3785, %v3785
      %v4082 = vmul.f32 %v3786, %v3786
      %v4083 = vmul.f32 %v3787, %v3787
      %v4084 = vmul.f32 %v3788, %v3788
      %v4085 = vmul.f32 %v3789, %v3789
      %v4086 = vmul.f32 %v3790, %v3790
      %v4087 = vmul.f32 %v3791, %v3791
      %v4088 = vmul.f32 %v3792, %v3792
      %v4089 = vmul.f32 %v3793, %v3793
      %v4090 = vmul.f32 %v3794, %v3794
      %v4091 = vmul.f32 %v3795, %v3795
      %v4092 = vmul.f32 %v3796, %v3796
      %v4093 = vmul.f32 %v3797, %v3797
      %v4094 = vmul.f32 %v3798, %v3798
      %v4095 = vmul.f32 %v3799, %v3799
      %v4096 = vmul.f32 %v3800, %v3800
      %v4097 = vmul.f32 %v3801, %v3801
      %v4098 = vmul.f32 %v3802, %v3802
      %v4099 = vmul.f32 %v3803, %v3803
      %v4100 = vmul.f32 %v3804, %v3804
      %v4101 = vmul.f32 %v3805, %v3805
      %v4102 = vmul.f32 %v3806, %v3806
      %v4103 = vmul.f32 %v3807, %v3807
      %v4104 = vmul.f32 %v3808, %v3808
      %v4105 = vmul.f32 %v3809, %v3809
      %v4106 = vmul.f32 %v3810, %v3810
      %v4107 = vmul.f32 %v3811, %v3811
      %v4108 = vmul.f32 %v3812, %v3812
      %v4109 = vmul.f32 %v3813, %v3813
      %v4110 = vmul.f32 %v3814, %v3814
      %v4111 = vmul.f32 %v3815, %v3815
      %v4112 = vmul.f32 %v3816, %v3816
      %v4113 = vmul.f32 %v3817, %v3817
      %v4114 = vmul.f32 %v3818, %v3818
      %v4115 = vmul.f32 %v3819, %v3819
      %v4116 = vmul.f32 %v3820, %v3820
      %v4117 = vmul.f32 %v3821, %v3821
      %v4118 = vmul.f32 %v3822, %v3822
      %v4119 = vmul.f32 %v3823, %v3823
      %v4120 = vmul.f32 %v3824, %v3824
      %v4121 = vmul.f32 %v3825, %v3825
      %v4122 = vmul.f32 %v3826, %v3826
      %v4123 = vmul.f32 %v3827, %v3827
      %v4124 = vmul.f32 %v3828, %v3828
      %v4125 = vmul.f32 %v3829, %v3829
      %v4126 = vmul.f32 %v3830, %v3830
      %v4127 = vmul.f32 %v3831, %v3831
      %v4128 = vmul.f32 %v3832, %v3832
      %v4129 = vmul.f32 %v3833, %v3833
      %v4130 = vmul.f32 %v3834, %v3834
      %v4131 = vmul.f32 %v3835, %v3835
      %v4132 = vmul.f32 %v3836, %v3836
      %v4133 = vmul.f32 %v3837, %v3837
      %v4134 = vmul.f32 %v3838, %v3838
      %v4135 = vmul.f32 %v3839, %v3839
      %v4136 = vmul.f32 %v3840, %v3840
      %v4137 = vmul.f32 %v3841, %v3841
      %v4138 = vmul.f32 %v3842, %v3842
      %v4139 = vmul.f32 %v3843, %v3843
      %v4140 = vmul.f32 %v3844, %v3844
      %v4141 = vmul.f32 %v3845, %v3845
      %v4142 = vmul.f32 %v3846, %v3846
      %v4143 = vmul.f32 %v3847, %v3847
      %v4144 = vmul.f32 %v3848, %v3848
      %v4145 = vmul.f32 %v3849, %v3849
      %v4146 = vmul.f32 %v3850, %v3850
      %v4147 = vmul.f32 %v3851, %v3851
      %v4148 = vmul.f32 %v3852, %v3852
      %v4149 = vmul.f32 %v3853, %v3853
      %v4150 = vmul.f32 %v3854, %v3854
      %v4151 = vmul.f32 %v3855, %v3855
      %v4152 = vmul.f32 %v3856, %v3856
      %v4153 = vmul.f32 %v3857, %v3857
      %v4154 = vmul.f32 %v3858, %v3858
      %v4155 = vmul.f32 %v3859, %v3859
      %v4156 = vmul.f32 %v3860, %v3860
      %v4157 = vmul.f32 %v3861, %v3861
      %v4158 = vmul.f32 %v3862, %v3862
      %v4159 = vmul.f32 %v3863, %v3863
      %v4160 = vmul.f32 %v3864, %v3864
      %v4161 = vmul.f32 %v3865, %v3865
      %v4162 = vmul.f32 %v3866, %v3866
      %v4163 = vmul.f32 %v3867, %v3867
      %v4164 = vmul.f32 %v3868, %v3868
      %v4165 = vmul.f32 %v3869, %v3869
      %v4166 = vmul.f32 %v3870, %v3870
      %v4167 = vmul.f32 %v3871, %v3871
      %v4168 = vmul.f32 %v3872, %v3872
      %v4169 = vmul.f32 %v3873, %v3873
      %v4170 = vmul.f32 %v3874, %v3874
      %v4171 = vmul.f32 %v3875, %v3875
      %v4172 = vmul.f32 %v3876, %v3876
      %v4173 = vmul.f32 %v3877, %v3877
      %v4174 = vmul.f32 %v3878, %v3878
      %v4175 = vmul.f32 %v3879, %v3879
      %v4176 = vmul.f32 %v3880, %v3880
      %v4177 = vmul.f32 %v3881, %v3881
      %v4178 = vmul.f32 %v3882, %v3882
      %v4179 = vmul.f32 %v3883, %v3883
      %v4180 = vmul.f32 %v3884, %v3884
      %v4181 = vmul.f32 %v3885, %v3885
      %v4182 = vmul.f32 %v3886, %v3886
      %v4183 = vmul.f32 %v3887, %v3887
      %v4184 = vmul.f32 %v3888, %v3888
      %v4185 = vmul.f32 %v3889, %v3889
      %v4186 = vmul.f32 %v3890, %v3890
      %v4187 = vmul.f32 %v3891, %v3891
      %v4188 = vmul.f32 %v3892, %v3892
      %v4189 = vmul.f32 %v3893, %v3893
      %v4190 = vmul.f32 %v3894, %v3894
      %v4191 = vmul.f32 %v3895, %v3895
      %v4192 = vmul.f32 %v3896, %v3896
      %v4193 = vmul.f32 %v3897, %v3897
      %v4194 = vmul.f32 %v3898, %v3898
      %v4195 = vmul.f32 %v3899, %v3899
      %v4196 = vmul.f32 %v3900, %v3900
      %v4197 = vmul.f32 %v3901, %v3901
      %v4198 = vmul.f32 %v3902, %v3902
      %v4199 = vmul.f32 %v3903, %v3903
      %v4200 = vmul.f32 %v3904, %v3904
      %v4201 = vmul.f32 %v3905, %v3905
      %v4202 = vmul.f32 %v3906, %v3906
      %v4203 = vmul.f32 %v3907, %v3907
      %v4204 = vmul.f32 %v3908, %v3908
      %v4205 = vmul.f32 %v3909, %v3909
      %v4206 = vmul.f32 %v3910, %v3910
      %v4207 = vmul.f32 %v3911, %v3911
      %v4208 = vmul.f32 %v3912, %v3912
      %v4209 = vmul.f32 %v3913, %v3913
      %v4210 = vmul.f32 %v3914, %v3914
      %v4211 = vadd.f32 %v3915, %v3916
      %v4212 = vadd.f32 %v4211, %v3917
      %v4213 = vadd.f32 %v4212, %v3918
      %v4214 = vadd.f32 %v4213, %v3919
      %v4215 = vadd.f32 %v4214, %v3920
      %v4216 = vadd.f32 %v4215, %v3921
      %v4217 = vadd.f32 %v4216, %v3922
      %v4218 = vadd.f32 %v4217, %v3923
      %v4219 = vadd.f32 %v4218, %v3924
      %v4220 = vadd.f32 %v4219, %v3925
      %v4221 = vadd.f32 %v4220, %v3926
      %v4222 = vadd.f32 %v4221, %v3927
      %v4223 = vadd.f32 %v4222, %v3928
      %v4224 = vadd.f32 %v4223, %v3929
      %v4225 = vadd.f32 %v4224, %v3930
      %v4226 = vadd.f32 %v4225, %v3931
      %v4227 = vadd.f32 %v4226, %v3932
      %v4228 = vadd.f32 %v4227, %v3933
      %v4229 = vadd.f32 %v4228, %v3934
      %v4230 = vadd.f32 %v4229, %v3935
      %v4231 = vadd.f32 %v4230, %v3936
      %v4232 = vadd.f32 %v4231, %v3937
      %v4233 = vadd.f32 %v4232, %v3938
      %v4234 = vadd.f32 %v4233, %v3939
      %v4235 = vadd.f32 %v4234, %v3940
      %v4236 = vadd.f32 %v4235, %v3941
      %v4237 = vadd.f32 %v4236, %v3942
      %v4238 = vadd.f32 %v4237, %v3943
      %v4239 = vadd.f32 %v4238, %v3944
      %v4240 = vadd.f32 %v4239, %v3945
      %v4241 = vadd.f32 %v4240, %v3946
      %v4242 = vadd.f32 %v4241, %v3947
      %v4243 = vadd.f32 %v4242, %v3948
      %v4244 = vadd.f32 %v4243, %v3949
      %v4245 = vadd.f32 %v4244, %v3950
      %v4246 = vsel %vm3333, %v3951, 0.0
      %v4247 = vadd.f32 %v4245, %v4246
      %4248 = vadd.xlane.f32.xlu0 %v4247
      %v4249 = vpop.xlane.xlu0 %4248
      %v4250 = vadd.f32 %v3952, %v3953
      %v4251 = vadd.f32 %v4250, %v3954
      %v4252 = vadd.f32 %v4251, %v3955
      %v4253 = vadd.f32 %v4252, %v3956
      %v4254 = vadd.f32 %v4253, %v3957
      %v4255 = vadd.f32 %v4254, %v3958
      %v4256 = vadd.f32 %v4255, %v3959
      %v4257 = vadd.f32 %v4256, %v3960
      %v4258 = vadd.f32 %v4257, %v3961
      %v4259 = vadd.f32 %v4258, %v3962
      %v4260 = vadd.f32 %v4259, %v3963
      %v4261 = vadd.f32 %v4260, %v3964
      %v4262 = vadd.f32 %v4261, %v3965
      %v4263 = vadd.f32 %v4262, %v3966
      %v4264 = vadd.f32 %v4263, %v3967
      %v4265 = vadd.f32 %v4264, %v3968
      %v4266 = vadd.f32 %v4265, %v3969
      %v4267 = vadd.f32 %v4266, %v3970
      %v4268 = vadd.f32 %v4267, %v3971
      %v4269 = vadd.f32 %v4268, %v3972
      %v4270 = vadd.f32 %v4269, %v3973
      %v4271 = vadd.f32 %v4270, %v3974
      %v4272 = vadd.f32 %v4271, %v3975
      %v4273 = vadd.f32 %v4272, %v3976
      %v4274 = vadd.f32 %v4273, %v3977
      %v4275 = vadd.f32 %v4274, %v3978
      %v4276 = vadd.f32 %v4275, %v3979
      %v4277 = vadd.f32 %v4276, %v3980
      %v4278 = vadd.f32 %v4277, %v3981
      %v4279 = vadd.f32 %v4278, %v3982
      %v4280 = vadd.f32 %v4279, %v3983
      %v4281 = vadd.f32 %v4280, %v3984
      %v4282 = vadd.f32 %v4281, %v3985
      %v4283 = vadd.f32 %v4282, %v3986
      %v4284 = vadd.f32 %v4283, %v3987
      %v4285 = vsel %vm3333, %v3988, 0.0
      %v4286 = vadd.f32 %v4284, %v4285
      %4287 = vadd.xlane.f32.xlu0 %v4286
      %v4288 = vpop.xlane.xlu0 %4287
      %v4289 = vadd.f32 %v3989, %v3990
      %v4290 = vadd.f32 %v4289, %v3991
      %v4291 = vadd.f32 %v4290, %v3992
      %v4292 = vadd.f32 %v4291, %v3993
      %v4293 = vadd.f32 %v4292, %v3994
      %v4294 = vadd.f32 %v4293, %v3995
      %v4295 = vadd.f32 %v4294, %v3996
      %v4296 = vadd.f32 %v4295, %v3997
      %v4297 = vadd.f32 %v4296, %v3998
      %v4298 = vadd.f32 %v4297, %v3999
      %v4299 = vadd.f32 %v4298, %v4000
      %v4300 = vadd.f32 %v4299, %v4001
      %v4301 = vadd.f32 %v4300, %v4002
      %v4302 = vadd.f32 %v4301, %v4003
      %v4303 = vadd.f32 %v4302, %v4004
      %v4304 = vadd.f32 %v4303, %v4005
      %v4305 = vadd.f32 %v4304, %v4006
      %v4306 = vadd.f32 %v4305, %v4007
      %v4307 = vadd.f32 %v4306, %v4008
      %v4308 = vadd.f32 %v4307, %v4009
      %v4309 = vadd.f32 %v4308, %v4010
      %v4310 = vadd.f32 %v4309, %v4011
      %v4311 = vadd.f32 %v4310, %v4012
      %v4312 = vadd.f32 %v4311, %v4013
      %v4313 = vadd.f32 %v4312, %v4014
      %v4314 = vadd.f32 %v4313, %v4015
      %v4315 = vadd.f32 %v4314, %v4016
      %v4316 = vadd.f32 %v4315, %v4017
      %v4317 = vadd.f32 %v4316, %v4018
      %v4318 = vadd.f32 %v4317, %v4019
      %v4319 = vadd.f32 %v4318, %v4020
      %v4320 = vadd.f32 %v4319, %v4021
      %v4321 = vadd.f32 %v4320, %v4022
      %v4322 = vadd.f32 %v4321, %v4023
      %v4323 = vadd.f32 %v4322, %v4024
      %v4324 = vsel %vm3333, %v4025, 0.0
      %v4325 = vadd.f32 %v4323, %v4324
      %4326 = vadd.xlane.f32.xlu0 %v4325
      %v4327 = vpop.xlane.xlu0 %4326
      %v4328 = vadd.f32 %v4026, %v4027
      %v4329 = vadd.f32 %v4328, %v4028
      %v4330 = vadd.f32 %v4329, %v4029
      %v4331 = vadd.f32 %v4330, %v4030
      %v4332 = vadd.f32 %v4331, %v4031
      %v4333 = vadd.f32 %v4332, %v4032
      %v4334 = vadd.f32 %v4333, %v4033
      %v4335 = vadd.f32 %v4334, %v4034
      %v4336 = vadd.f32 %v4335, %v4035
      %v4337 = vadd.f32 %v4336, %v4036
      %v4338 = vadd.f32 %v4337, %v4037
      %v4339 = vadd.f32 %v4338, %v4038
      %v4340 = vadd.f32 %v4339, %v4039
      %v4341 = vadd.f32 %v4340, %v4040
      %v4342 = vadd.f32 %v4341, %v4041
      %v4343 = vadd.f32 %v4342, %v4042
      %v4344 = vadd.f32 %v4343, %v4043
      %v4345 = vadd.f32 %v4344, %v4044
      %v4346 = vadd.f32 %v4345, %v4045
      %v4347 = vadd.f32 %v4346, %v4046
      %v4348 = vadd.f32 %v4347, %v4047
      %v4349 = vadd.f32 %v4348, %v4048
      %v4350 = vadd.f32 %v4349, %v4049
      %v4351 = vadd.f32 %v4350, %v4050
      %v4352 = vadd.f32 %v4351, %v4051
      %v4353 = vadd.f32 %v4352, %v4052
      %v4354 = vadd.f32 %v4353, %v4053
      %v4355 = vadd.f32 %v4354, %v4054
      %v4356 = vadd.f32 %v4355, %v4055
      %v4357 = vadd.f32 %v4356, %v4056
      %v4358 = vadd.f32 %v4357, %v4057
      %v4359 = vadd.f32 %v4358, %v4058
      %v4360 = vadd.f32 %v4359, %v4059
      %v4361 = vadd.f32 %v4360, %v4060
      %v4362 = vadd.f32 %v4361, %v4061
      %v4363 = vsel %vm3333, %v4062, 0.0
      %v4364 = vadd.f32 %v4362, %v4363
      %4365 = vadd.xlane.f32.xlu0 %v4364
      %v4366 = vpop.xlane.xlu0 %4365
      %v4367 = vadd.f32 %v4063, %v4064
      %v4368 = vadd.f32 %v4367, %v4065
      %v4369 = vadd.f32 %v4368, %v4066
      %v4370 = vadd.f32 %v4369, %v4067
      %v4371 = vadd.f32 %v4370, %v4068
      %v4372 = vadd.f32 %v4371, %v4069
      %v4373 = vadd.f32 %v4372, %v4070
      %v4374 = vadd.f32 %v4373, %v4071
      %v4375 = vadd.f32 %v4374, %v4072
      %v4376 = vadd.f32 %v4375, %v4073
      %v4377 = vadd.f32 %v4376, %v4074
      %v4378 = vadd.f32 %v4377, %v4075
      %v4379 = vadd.f32 %v4378, %v4076
      %v4380 = vadd.f32 %v4379, %v4077
      %v4381 = vadd.f32 %v4380, %v4078
      %v4382 = vadd.f32 %v4381, %v4079
      %v4383 = vadd.f32 %v4382, %v4080
      %v4384 = vadd.f32 %v4383, %v4081
      %v4385 = vadd.f32 %v4384, %v4082
      %v4386 = vadd.f32 %v4385, %v4083
      %v4387 = vadd.f32 %v4386, %v4084
      %v4388 = vadd.f32 %v4387, %v4085
      %v4389 = vadd.f32 %v4388, %v4086
      %v4390 = vadd.f32 %v4389, %v4087
      %v4391 = vadd.f32 %v4390, %v4088
      %v4392 = vadd.f32 %v4391, %v4089
      %v4393 = vadd.f32 %v4392, %v4090
      %v4394 = vadd.f32 %v4393, %v4091
      %v4395 = vadd.f32 %v4394, %v4092
      %v4396 = vadd.f32 %v4395, %v4093
      %v4397 = vadd.f32 %v4396, %v4094
      %v4398 = vadd.f32 %v4397, %v4095
      %v4399 = vadd.f32 %v4398, %v4096
      %v4400 = vadd.f32 %v4399, %v4097
      %v4401 = vadd.f32 %v4400, %v4098
      %v4402 = vsel %vm3333, %v4099, 0.0
      %v4403 = vadd.f32 %v4401, %v4402
      %4404 = vadd.xlane.f32.xlu0 %v4403
      %v4405 = vpop.xlane.xlu0 %4404
      %v4406 = vadd.f32 %v4100, %v4101
      %v4407 = vadd.f32 %v4406, %v4102
      %v4408 = vadd.f32 %v4407, %v4103
      %v4409 = vadd.f32 %v4408, %v4104
      %v4410 = vadd.f32 %v4409, %v4105
      %v4411 = vadd.f32 %v4410, %v4106
      %v4412 = vadd.f32 %v4411, %v4107
      %v4413 = vadd.f32 %v4412, %v4108
      %v4414 = vadd.f32 %v4413, %v4109
      %v4415 = vadd.f32 %v4414, %v4110
      %v4416 = vadd.f32 %v4415, %v4111
      %v4417 = vadd.f32 %v4416, %v4112
      %v4418 = vadd.f32 %v4417, %v4113
      %v4419 = vadd.f32 %v4418, %v4114
      %v4420 = vadd.f32 %v4419, %v4115
      %v4421 = vadd.f32 %v4420, %v4116
      %v4422 = vadd.f32 %v4421, %v4117
      %v4423 = vadd.f32 %v4422, %v4118
      %v4424 = vadd.f32 %v4423, %v4119
      %v4425 = vadd.f32 %v4424, %v4120
      %v4426 = vadd.f32 %v4425, %v4121
      %v4427 = vadd.f32 %v4426, %v4122
      %v4428 = vadd.f32 %v4427, %v4123
      %v4429 = vadd.f32 %v4428, %v4124
      %v4430 = vadd.f32 %v4429, %v4125
      %v4431 = vadd.f32 %v4430, %v4126
      %v4432 = vadd.f32 %v4431, %v4127
      %v4433 = vadd.f32 %v4432, %v4128
      %v4434 = vadd.f32 %v4433, %v4129
      %v4435 = vadd.f32 %v4434, %v4130
      %v4436 = vadd.f32 %v4435, %v4131
      %v4437 = vadd.f32 %v4436, %v4132
      %v4438 = vadd.f32 %v4437, %v4133
      %v4439 = vadd.f32 %v4438, %v4134
      %v4440 = vadd.f32 %v4439, %v4135
      %v4441 = vsel %vm3333, %v4136, 0.0
      %v4442 = vadd.f32 %v4440, %v4441
      %4443 = vadd.xlane.f32.xlu0 %v4442
      %v4444 = vpop.xlane.xlu0 %4443
      %v4445 = vadd.f32 %v4137, %v4138
      %v4446 = vadd.f32 %v4445, %v4139
      %v4447 = vadd.f32 %v4446, %v4140
      %v4448 = vadd.f32 %v4447, %v4141
      %v4449 = vadd.f32 %v4448, %v4142
      %v4450 = vadd.f32 %v4449, %v4143
      %v4451 = vadd.f32 %v4450, %v4144
      %v4452 = vadd.f32 %v4451, %v4145
      %v4453 = vadd.f32 %v4452, %v4146
      %v4454 = vadd.f32 %v4453, %v4147
      %v4455 = vadd.f32 %v4454, %v4148
      %v4456 = vadd.f32 %v4455, %v4149
      %v4457 = vadd.f32 %v4456, %v4150
      %v4458 = vadd.f32 %v4457, %v4151
      %v4459 = vadd.f32 %v4458, %v4152
      %v4460 = vadd.f32 %v4459, %v4153
      %v4461 = vadd.f32 %v4460, %v4154
      %v4462 = vadd.f32 %v4461, %v4155
      %v4463 = vadd.f32 %v4462, %v4156
      %v4464 = vadd.f32 %v4463, %v4157
      %v4465 = vadd.f32 %v4464, %v4158
      %v4466 = vadd.f32 %v4465, %v4159
      %v4467 = vadd.f32 %v4466, %v4160
      %v4468 = vadd.f32 %v4467, %v4161
      %v4469 = vadd.f32 %v4468, %v4162
      %v4470 = vadd.f32 %v4469, %v4163
      %v4471 = vadd.f32 %v4470, %v4164
      %v4472 = vadd.f32 %v4471, %v4165
      %v4473 = vadd.f32 %v4472, %v4166
      %v4474 = vadd.f32 %v4473, %v4167
      %v4475 = vadd.f32 %v4474, %v4168
      %v4476 = vadd.f32 %v4475, %v4169
      %v4477 = vadd.f32 %v4476, %v4170
      %v4478 = vadd.f32 %v4477, %v4171
      %v4479 = vadd.f32 %v4478, %v4172
      %v4480 = vsel %vm3333, %v4173, 0.0
      %v4481 = vadd.f32 %v4479, %v4480
      %4482 = vadd.xlane.f32.xlu0 %v4481
      %v4483 = vpop.xlane.xlu0 %4482
      %v4484 = vadd.f32 %v4174, %v4175
      %v4485 = vadd.f32 %v4484, %v4176
      %v4486 = vadd.f32 %v4485, %v4177
      %v4487 = vadd.f32 %v4486, %v4178
      %v4488 = vadd.f32 %v4487, %v4179
      %v4489 = vadd.f32 %v4488, %v4180
      %v4490 = vadd.f32 %v4489, %v4181
      %v4491 = vadd.f32 %v4490, %v4182
      %v4492 = vadd.f32 %v4491, %v4183
      %v4493 = vadd.f32 %v4492, %v4184
      %v4494 = vadd.f32 %v4493, %v4185
      %v4495 = vadd.f32 %v4494, %v4186
      %v4496 = vadd.f32 %v4495, %v4187
      %v4497 = vadd.f32 %v4496, %v4188
      %v4498 = vadd.f32 %v4497, %v4189
      %v4499 = vadd.f32 %v4498, %v4190
      %v4500 = vadd.f32 %v4499, %v4191
      %v4501 = vadd.f32 %v4500, %v4192
      %v4502 = vadd.f32 %v4501, %v4193
      %v4503 = vadd.f32 %v4502, %v4194
      %v4504 = vadd.f32 %v4503, %v4195
      %v4505 = vadd.f32 %v4504, %v4196
      %v4506 = vadd.f32 %v4505, %v4197
      %v4507 = vadd.f32 %v4506, %v4198
      %v4508 = vadd.f32 %v4507, %v4199
      %v4509 = vadd.f32 %v4508, %v4200
      %v4510 = vadd.f32 %v4509, %v4201
      %v4511 = vadd.f32 %v4510, %v4202
      %v4512 = vadd.f32 %v4511, %v4203
      %v4513 = vadd.f32 %v4512, %v4204
      %v4514 = vadd.f32 %v4513, %v4205
      %v4515 = vadd.f32 %v4514, %v4206
      %v4516 = vadd.f32 %v4515, %v4207
      %v4517 = vadd.f32 %v4516, %v4208
      %v4518 = vadd.f32 %v4517, %v4209
      %v4519 = vsel %vm3333, %v4210, 0.0
      %v4520 = vadd.f32 %v4518, %v4519
      %4521 = vadd.xlane.f32.xlu0 %v4520
      %v4522 = vpop.xlane.xlu0 %4521
      %v4523 = vmul.f32 %v4249, 0.00021626298
      %v4524 = vmul.f32 %v4288, 0.00021626298
      %v4525 = vmul.f32 %v4327, 0.00021626298
      %v4526 = vmul.f32 %v4366, 0.00021626298
      %v4527 = vmul.f32 %v4405, 0.00021626298
      %v4528 = vmul.f32 %v4444, 0.00021626298
      %v4529 = vmul.f32 %v4483, 0.00021626298
      %v4530 = vmul.f32 %v4522, 0.00021626298
      %v4531 = vld [vmem:[%s357] sm:$0xff]
      %v4532 = vld [vmem:[%s357 + $0x8] sm:$0xff]
      %v4533 = vld [vmem:[%s357 + $0x10] sm:$0xff]
      %v4534 = vld [vmem:[%s357 + $0x18] sm:$0xff]
      %v4535 = vld [vmem:[%s357 + $0x20] sm:$0xff]
      %v4536 = vld [vmem:[%s357 + $0x28] sm:$0xff]
      %v4537 = vld [vmem:[%s357 + $0x30] sm:$0xff]
      %v4538 = vld [vmem:[%s357 + $0x38] sm:$0xff]
      %v4539 = vadd.f32 %v4523, 1e-05
      %v4540 = vadd.f32 %v4524, 1e-05
      %v4541 = vadd.f32 %v4525, 1e-05
      %v4542 = vadd.f32 %v4526, 1e-05
      %v4543 = vadd.f32 %v4527, 1e-05
      %v4544 = vadd.f32 %v4528, 1e-05
      %v4545 = vadd.f32 %v4529, 1e-05
      %v4546 = vadd.f32 %v4530, 1e-05
      %v4547 = vrsqrt.pop %v4539
      %v4548 = vmul.f32 %v4547, %v4539
      %v4549 = vmul.f32 %v4548, %v4547
      %v4550 = vmul.f32 0.5, %v4549
      %v4551 = vsub.f32 1.5, %v4550
      %v4552 = vmul.f32 %v4547, %v4551
      %vm4553 = vweird.f32 %v4539
      %vm4554 = vweird.f32 %v4547
      %vm4555 = vmor %vm4553, %vm4554
      %v4556 = vsel %vm4555, %v4547, %v4552
      %v4557 = vrsqrt.pop %v4540
      %v4558 = vmul.f32 %v4557, %v4540
      %v4559 = vmul.f32 %v4558, %v4557
      %v4560 = vmul.f32 0.5, %v4559
      %v4561 = vsub.f32 1.5, %v4560
      %v4562 = vmul.f32 %v4557, %v4561
      %vm4563 = vweird.f32 %v4540
      %vm4564 = vweird.f32 %v4557
      %vm4565 = vmor %vm4563, %vm4564
      %v4566 = vsel %vm4565, %v4557, %v4562
      %v4567 = vrsqrt.pop %v4541
      %v4568 = vmul.f32 %v4567, %v4541
      %v4569 = vmul.f32 %v4568, %v4567
      %v4570 = vmul.f32 0.5, %v4569
      %v4571 = vsub.f32 1.5, %v4570
      %v4572 = vmul.f32 %v4567, %v4571
      %vm4573 = vweird.f32 %v4541
      %vm4574 = vweird.f32 %v4567
      %vm4575 = vmor %vm4573, %vm4574
      %v4576 = vsel %vm4575, %v4567, %v4572
      %v4577 = vrsqrt.pop %v4542
      %v4578 = vmul.f32 %v4577, %v4542
      %v4579 = vmul.f32 %v4578, %v4577
      %v4580 = vmul.f32 0.5, %v4579
      %v4581 = vsub.f32 1.5, %v4580
      %v4582 = vmul.f32 %v4577, %v4581
      %vm4583 = vweird.f32 %v4542
      %vm4584 = vweird.f32 %v4577
      %vm4585 = vmor %vm4583, %vm4584
      %v4586 = vsel %vm4585, %v4577, %v4582
      %v4587 = vrsqrt.pop %v4543
      %v4588 = vmul.f32 %v4587, %v4543
      %v4589 = vmul.f32 %v4588, %v4587
      %v4590 = vmul.f32 0.5, %v4589
      %v4591 = vsub.f32 1.5, %v4590
      %v4592 = vmul.f32 %v4587, %v4591
      %vm4593 = vweird.f32 %v4543
      %vm4594 = vweird.f32 %v4587
      %vm4595 = vmor %vm4593, %vm4594
      %v4596 = vsel %vm4595, %v4587, %v4592
      %v4597 = vrsqrt.pop %v4544
      %v4598 = vmul.f32 %v4597, %v4544
      %v4599 = vmul.f32 %v4598, %v4597
      %v4600 = vmul.f32 0.5, %v4599
      %v4601 = vsub.f32 1.5, %v4600
      %v4602 = vmul.f32 %v4597, %v4601
      %vm4603 = vweird.f32 %v4544
      %vm4604 = vweird.f32 %v4597
      %vm4605 = vmor %vm4603, %vm4604
      %v4606 = vsel %vm4605, %v4597, %v4602
      %v4607 = vrsqrt.pop %v4545
      %v4608 = vmul.f32 %v4607, %v4545
      %v4609 = vmul.f32 %v4608, %v4607
      %v4610 = vmul.f32 0.5, %v4609
      %v4611 = vsub.f32 1.5, %v4610
      %v4612 = vmul.f32 %v4607, %v4611
      %vm4613 = vweird.f32 %v4545
      %vm4614 = vweird.f32 %v4607
      %vm4615 = vmor %vm4613, %vm4614
      %v4616 = vsel %vm4615, %v4607, %v4612
      %v4617 = vrsqrt.pop %v4546
      %v4618 = vmul.f32 %v4617, %v4546
      %v4619 = vmul.f32 %v4618, %v4617
      %v4620 = vmul.f32 0.5, %v4619
      %v4621 = vsub.f32 1.5, %v4620
      %v4622 = vmul.f32 %v4617, %v4621
      %vm4623 = vweird.f32 %v4546
      %vm4624 = vweird.f32 %v4617
      %vm4625 = vmor %vm4623, %vm4624
      %v4626 = vsel %vm4625, %v4617, %v4622
      %v4627 = vmul.f32 %v4531, %v4556
      %v4628 = vmul.f32 %v4532, %v4566
      %v4629 = vmul.f32 %v4533, %v4576
      %v4630 = vmul.f32 %v4534, %v4586
      %v4631 = vmul.f32 %v4535, %v4596
      %v4632 = vmul.f32 %v4536, %v4606
      %v4633 = vmul.f32 %v4537, %v4616
      %v4634 = vmul.f32 %v4538, %v4626
      %4636 = vset.pattern.permute.xlu0 0
      %4637 = vperm.xlu0 %4636, %v4627
      %v4638 = vpop.permute.xlu0 %4637
      %4641 = vset.pattern.permute.xlu0 0
      %4642 = vperm.xlu0 %4641, %v4628
      %v4643 = vpop.permute.xlu0 %4642
      %4646 = vset.pattern.permute.xlu0 0
      %4647 = vperm.xlu0 %4646, %v4629
      %v4648 = vpop.permute.xlu0 %4647
      %4651 = vset.pattern.permute.xlu0 0
      %4652 = vperm.xlu0 %4651, %v4630
      %v4653 = vpop.permute.xlu0 %4652
      %4656 = vset.pattern.permute.xlu0 0
      %4657 = vperm.xlu0 %4656, %v4631
      %v4658 = vpop.permute.xlu0 %4657
      %4661 = vset.pattern.permute.xlu0 0
      %4662 = vperm.xlu0 %4661, %v4632
      %v4663 = vpop.permute.xlu0 %4662
      %4666 = vset.pattern.permute.xlu0 0
      %4667 = vperm.xlu0 %4666, %v4633
      %v4668 = vpop.permute.xlu0 %4667
      %4671 = vset.pattern.permute.xlu0 0
      %4672 = vperm.xlu0 %4671, %v4634
      %v4673 = vpop.permute.xlu0 %4672
      %v4675 = vmul.f32 %v3619, %v4638
      %v4676 = vmul.f32 %v3620, %v4638
      %v4677 = vmul.f32 %v3621, %v4638
      %v4678 = vmul.f32 %v3622, %v4638
      %v4679 = vmul.f32 %v3623, %v4638
      %v4680 = vmul.f32 %v3624, %v4638
      %v4681 = vmul.f32 %v3625, %v4638
      %v4682 = vmul.f32 %v3626, %v4638
      %v4683 = vmul.f32 %v3627, %v4638
      %v4684 = vmul.f32 %v3628, %v4638
      %v4685 = vmul.f32 %v3629, %v4638
      %v4686 = vmul.f32 %v3630, %v4638
      %v4687 = vmul.f32 %v3631, %v4638
      %v4688 = vmul.f32 %v3632, %v4638
      %v4689 = vmul.f32 %v3633, %v4638
      %v4690 = vmul.f32 %v3634, %v4638
      %v4691 = vmul.f32 %v3635, %v4638
      %v4692 = vmul.f32 %v3636, %v4638
      %v4693 = vmul.f32 %v3637, %v4638
      %v4694 = vmul.f32 %v3638, %v4638
      %v4695 = vmul.f32 %v3639, %v4638
      %v4696 = vmul.f32 %v3640, %v4638
      %v4697 = vmul.f32 %v3641, %v4638
      %v4698 = vmul.f32 %v3642, %v4638
      %v4699 = vmul.f32 %v3643, %v4638
      %v4700 = vmul.f32 %v3644, %v4638
      %v4701 = vmul.f32 %v3645, %v4638
      %v4702 = vmul.f32 %v3646, %v4638
      %v4703 = vmul.f32 %v3647, %v4638
      %v4704 = vmul.f32 %v3648, %v4638
      %v4705 = vmul.f32 %v3649, %v4638
      %v4706 = vmul.f32 %v3650, %v4638
      %v4707 = vmul.f32 %v3651, %v4638
      %v4708 = vmul.f32 %v3652, %v4638
      %v4709 = vmul.f32 %v3653, %v4638
      %v4710 = vmul.f32 %v3654, %v4638
      %v4711 = vmul.f32 %v3655, %v4638
      %v4712 = vmul.f32 %v3656, %v4643
      %v4713 = vmul.f32 %v3657, %v4643
      %v4714 = vmul.f32 %v3658, %v4643
      %v4715 = vmul.f32 %v3659, %v4643
      %v4716 = vmul.f32 %v3660, %v4643
      %v4717 = vmul.f32 %v3661, %v4643
      %v4718 = vmul.f32 %v3662, %v4643
      %v4719 = vmul.f32 %v3663, %v4643
      %v4720 = vmul.f32 %v3664, %v4643
      %v4721 = vmul.f32 %v3665, %v4643
      %v4722 = vmul.f32 %v3666, %v4643
      %v4723 = vmul.f32 %v3667, %v4643
      %v4724 = vmul.f32 %v3668, %v4643
      %v4725 = vmul.f32 %v3669, %v4643
      %v4726 = vmul.f32 %v3670, %v4643
      %v4727 = vmul.f32 %v3671, %v4643
      %v4728 = vmul.f32 %v3672, %v4643
      %v4729 = vmul.f32 %v3673, %v4643
      %v4730 = vmul.f32 %v3674, %v4643
      %v4731 = vmul.f32 %v3675, %v4643
      %v4732 = vmul.f32 %v3676, %v4643
      %v4733 = vmul.f32 %v3677, %v4643
      %v4734 = vmul.f32 %v3678, %v4643
      %v4735 = vmul.f32 %v3679, %v4643
      %v4736 = vmul.f32 %v3680, %v4643
      %v4737 = vmul.f32 %v3681, %v4643
      %v4738 = vmul.f32 %v3682, %v4643
      %v4739 = vmul.f32 %v3683, %v4643
      %v4740 = vmul.f32 %v3684, %v4643
      %v4741 = vmul.f32 %v3685, %v4643
      %v4742 = vmul.f32 %v3686, %v4643
      %v4743 = vmul.f32 %v3687, %v4643
      %v4744 = vmul.f32 %v3688, %v4643
      %v4745 = vmul.f32 %v3689, %v4643
      %v4746 = vmul.f32 %v3690, %v4643
      %v4747 = vmul.f32 %v3691, %v4643
      %v4748 = vmul.f32 %v3692, %v4643
      %v4749 = vmul.f32 %v3693, %v4648
      %v4750 = vmul.f32 %v3694, %v4648
      %v4751 = vmul.f32 %v3695, %v4648
      %v4752 = vmul.f32 %v3696, %v4648
      %v4753 = vmul.f32 %v3697, %v4648
      %v4754 = vmul.f32 %v3698, %v4648
      %v4755 = vmul.f32 %v3699, %v4648
      %v4756 = vmul.f32 %v3700, %v4648
      %v4757 = vmul.f32 %v3701, %v4648
      %v4758 = vmul.f32 %v3702, %v4648
      %v4759 = vmul.f32 %v3703, %v4648
      %v4760 = vmul.f32 %v3704, %v4648
      %v4761 = vmul.f32 %v3705, %v4648
      %v4762 = vmul.f32 %v3706, %v4648
      %v4763 = vmul.f32 %v3707, %v4648
      %v4764 = vmul.f32 %v3708, %v4648
      %v4765 = vmul.f32 %v3709, %v4648
      %v4766 = vmul.f32 %v3710, %v4648
      %v4767 = vmul.f32 %v3711, %v4648
      %v4768 = vmul.f32 %v3712, %v4648
      %v4769 = vmul.f32 %v3713, %v4648
      %v4770 = vmul.f32 %v3714, %v4648
      %v4771 = vmul.f32 %v3715, %v4648
      %v4772 = vmul.f32 %v3716, %v4648
      %v4773 = vmul.f32 %v3717, %v4648
      %v4774 = vmul.f32 %v3718, %v4648
      %v4775 = vmul.f32 %v3719, %v4648
      %v4776 = vmul.f32 %v3720, %v4648
      %v4777 = vmul.f32 %v3721, %v4648
      %v4778 = vmul.f32 %v3722, %v4648
      %v4779 = vmul.f32 %v3723, %v4648
      %v4780 = vmul.f32 %v3724, %v4648
      %v4781 = vmul.f32 %v3725, %v4648
      %v4782 = vmul.f32 %v3726, %v4648
      %v4783 = vmul.f32 %v3727, %v4648
      %v4784 = vmul.f32 %v3728, %v4648
      %v4785 = vmul.f32 %v3729, %v4648
      %v4786 = vmul.f32 %v3730, %v4653
      %v4787 = vmul.f32 %v3731, %v4653
      %v4788 = vmul.f32 %v3732, %v4653
      %v4789 = vmul.f32 %v3733, %v4653
      %v4790 = vmul.f32 %v3734, %v4653
      %v4791 = vmul.f32 %v3735, %v4653
      %v4792 = vmul.f32 %v3736, %v4653
      %v4793 = vmul.f32 %v3737, %v4653
      %v4794 = vmul.f32 %v3738, %v4653
      %v4795 = vmul.f32 %v3739, %v4653
      %v4796 = vmul.f32 %v3740, %v4653
      %v4797 = vmul.f32 %v3741, %v4653
      %v4798 = vmul.f32 %v3742, %v4653
      %v4799 = vmul.f32 %v3743, %v4653
      %v4800 = vmul.f32 %v3744, %v4653
      %v4801 = vmul.f32 %v3745, %v4653
      %v4802 = vmul.f32 %v3746, %v4653
      %v4803 = vmul.f32 %v3747, %v4653
      %v4804 = vmul.f32 %v3748, %v4653
      %v4805 = vmul.f32 %v3749, %v4653
      %v4806 = vmul.f32 %v3750, %v4653
      %v4807 = vmul.f32 %v3751, %v4653
      %v4808 = vmul.f32 %v3752, %v4653
      %v4809 = vmul.f32 %v3753, %v4653
      %v4810 = vmul.f32 %v3754, %v4653
      %v4811 = vmul.f32 %v3755, %v4653
      %v4812 = vmul.f32 %v3756, %v4653
      %v4813 = vmul.f32 %v3757, %v4653
      %v4814 = vmul.f32 %v3758, %v4653
      %v4815 = vmul.f32 %v3759, %v4653
      %v4816 = vmul.f32 %v3760, %v4653
      %v4817 = vmul.f32 %v3761, %v4653
      %v4818 = vmul.f32 %v3762, %v4653
      %v4819 = vmul.f32 %v3763, %v4653
      %v4820 = vmul.f32 %v3764, %v4653
      %v4821 = vmul.f32 %v3765, %v4653
      %v4822 = vmul.f32 %v3766, %v4653
      %v4823 = vmul.f32 %v3767, %v4658
      %v4824 = vmul.f32 %v3768, %v4658
      %v4825 = vmul.f32 %v3769, %v4658
      %v4826 = vmul.f32 %v3770, %v4658
      %v4827 = vmul.f32 %v3771, %v4658
      %v4828 = vmul.f32 %v3772, %v4658
      %v4829 = vmul.f32 %v3773, %v4658
      %v4830 = vmul.f32 %v3774, %v4658
      %v4831 = vmul.f32 %v3775, %v4658
      %v4832 = vmul.f32 %v3776, %v4658
      %v4833 = vmul.f32 %v3777, %v4658
      %v4834 = vmul.f32 %v3778, %v4658
      %v4835 = vmul.f32 %v3779, %v4658
      %v4836 = vmul.f32 %v3780, %v4658
      %v4837 = vmul.f32 %v3781, %v4658
      %v4838 = vmul.f32 %v3782, %v4658
      %v4839 = vmul.f32 %v3783, %v4658
      %v4840 = vmul.f32 %v3784, %v4658
      %v4841 = vmul.f32 %v3785, %v4658
      %v4842 = vmul.f32 %v3786, %v4658
      %v4843 = vmul.f32 %v3787, %v4658
      %v4844 = vmul.f32 %v3788, %v4658
      %v4845 = vmul.f32 %v3789, %v4658
      %v4846 = vmul.f32 %v3790, %v4658
      %v4847 = vmul.f32 %v3791, %v4658
      %v4848 = vmul.f32 %v3792, %v4658
      %v4849 = vmul.f32 %v3793, %v4658
      %v4850 = vmul.f32 %v3794, %v4658
      %v4851 = vmul.f32 %v3795, %v4658
      %v4852 = vmul.f32 %v3796, %v4658
      %v4853 = vmul.f32 %v3797, %v4658
      %v4854 = vmul.f32 %v3798, %v4658
      %v4855 = vmul.f32 %v3799, %v4658
      %v4856 = vmul.f32 %v3800, %v4658
      %v4857 = vmul.f32 %v3801, %v4658
      %v4858 = vmul.f32 %v3802, %v4658
      %v4859 = vmul.f32 %v3803, %v4658
      %v4860 = vmul.f32 %v3804, %v4663
      %v4861 = vmul.f32 %v3805, %v4663
      %v4862 = vmul.f32 %v3806, %v4663
      %v4863 = vmul.f32 %v3807, %v4663
      %v4864 = vmul.f32 %v3808, %v4663
      %v4865 = vmul.f32 %v3809, %v4663
      %v4866 = vmul.f32 %v3810, %v4663
      %v4867 = vmul.f32 %v3811, %v4663
      %v4868 = vmul.f32 %v3812, %v4663
      %v4869 = vmul.f32 %v3813, %v4663
      %v4870 = vmul.f32 %v3814, %v4663
      %v4871 = vmul.f32 %v3815, %v4663
      %v4872 = vmul.f32 %v3816, %v4663
      %v4873 = vmul.f32 %v3817, %v4663
      %v4874 = vmul.f32 %v3818, %v4663
      %v4875 = vmul.f32 %v3819, %v4663
      %v4876 = vmul.f32 %v3820, %v4663
      %v4877 = vmul.f32 %v3821, %v4663
      %v4878 = vmul.f32 %v3822, %v4663
      %v4879 = vmul.f32 %v3823, %v4663
      %v4880 = vmul.f32 %v3824, %v4663
      %v4881 = vmul.f32 %v3825, %v4663
      %v4882 = vmul.f32 %v3826, %v4663
      %v4883 = vmul.f32 %v3827, %v4663
      %v4884 = vmul.f32 %v3828, %v4663
      %v4885 = vmul.f32 %v3829, %v4663
      %v4886 = vmul.f32 %v3830, %v4663
      %v4887 = vmul.f32 %v3831, %v4663
      %v4888 = vmul.f32 %v3832, %v4663
      %v4889 = vmul.f32 %v3833, %v4663
      %v4890 = vmul.f32 %v3834, %v4663
      %v4891 = vmul.f32 %v3835, %v4663
      %v4892 = vmul.f32 %v3836, %v4663
      %v4893 = vmul.f32 %v3837, %v4663
      %v4894 = vmul.f32 %v3838, %v4663
      %v4895 = vmul.f32 %v3839, %v4663
      %v4896 = vmul.f32 %v3840, %v4663
      %v4897 = vmul.f32 %v3841, %v4668
      %v4898 = vmul.f32 %v3842, %v4668
      %v4899 = vmul.f32 %v3843, %v4668
      %v4900 = vmul.f32 %v3844, %v4668
      %v4901 = vmul.f32 %v3845, %v4668
      %v4902 = vmul.f32 %v3846, %v4668
      %v4903 = vmul.f32 %v3847, %v4668
      %v4904 = vmul.f32 %v3848, %v4668
      %v4905 = vmul.f32 %v3849, %v4668
      %v4906 = vmul.f32 %v3850, %v4668
      %v4907 = vmul.f32 %v3851, %v4668
      %v4908 = vmul.f32 %v3852, %v4668
      %v4909 = vmul.f32 %v3853, %v4668
      %v4910 = vmul.f32 %v3854, %v4668
      %v4911 = vmul.f32 %v3855, %v4668
      %v4912 = vmul.f32 %v3856, %v4668
      %v4913 = vmul.f32 %v3857, %v4668
      %v4914 = vmul.f32 %v3858, %v4668
      %v4915 = vmul.f32 %v3859, %v4668
      %v4916 = vmul.f32 %v3860, %v4668
      %v4917 = vmul.f32 %v3861, %v4668
      %v4918 = vmul.f32 %v3862, %v4668
      %v4919 = vmul.f32 %v3863, %v4668
      %v4920 = vmul.f32 %v3864, %v4668
      %v4921 = vmul.f32 %v3865, %v4668
      %v4922 = vmul.f32 %v3866, %v4668
      %v4923 = vmul.f32 %v3867, %v4668
      %v4924 = vmul.f32 %v3868, %v4668
      %v4925 = vmul.f32 %v3869, %v4668
      %v4926 = vmul.f32 %v3870, %v4668
      %v4927 = vmul.f32 %v3871, %v4668
      %v4928 = vmul.f32 %v3872, %v4668
      %v4929 = vmul.f32 %v3873, %v4668
      %v4930 = vmul.f32 %v3874, %v4668
      %v4931 = vmul.f32 %v3875, %v4668
      %v4932 = vmul.f32 %v3876, %v4668
      %v4933 = vmul.f32 %v3877, %v4668
      %v4934 = vmul.f32 %v3878, %v4673
      %v4935 = vmul.f32 %v3879, %v4673
      %v4936 = vmul.f32 %v3880, %v4673
      %v4937 = vmul.f32 %v3881, %v4673
      %v4938 = vmul.f32 %v3882, %v4673
      %v4939 = vmul.f32 %v3883, %v4673
      %v4940 = vmul.f32 %v3884, %v4673
      %v4941 = vmul.f32 %v3885, %v4673
      %v4942 = vmul.f32 %v3886, %v4673
      %v4943 = vmul.f32 %v3887, %v4673
      %v4944 = vmul.f32 %v3888, %v4673
      %v4945 = vmul.f32 %v3889, %v4673
      %v4946 = vmul.f32 %v3890, %v4673
      %v4947 = vmul.f32 %v3891, %v4673
      %v4948 = vmul.f32 %v3892, %v4673
      %v4949 = vmul.f32 %v3893, %v4673
      %v4950 = vmul.f32 %v3894, %v4673
      %v4951 = vmul.f32 %v3895, %v4673
      %v4952 = vmul.f32 %v3896, %v4673
      %v4953 = vmul.f32 %v3897, %v4673
      %v4954 = vmul.f32 %v3898, %v4673
      %v4955 = vmul.f32 %v3899, %v4673
      %v4956 = vmul.f32 %v3900, %v4673
      %v4957 = vmul.f32 %v3901, %v4673
      %v4958 = vmul.f32 %v3902, %v4673
      %v4959 = vmul.f32 %v3903, %v4673
      %v4960 = vmul.f32 %v3904, %v4673
      %v4961 = vmul.f32 %v3905, %v4673
      %v4962 = vmul.f32 %v3906, %v4673
      %v4963 = vmul.f32 %v3907, %v4673
      %v4964 = vmul.f32 %v3908, %v4673
      %v4965 = vmul.f32 %v3909, %v4673
      %v4966 = vmul.f32 %v3910, %v4673
      %v4967 = vmul.f32 %v3911, %v4673
      %v4968 = vmul.f32 %v3912, %v4673
      %v4969 = vmul.f32 %v3913, %v4673
      %v4970 = vmul.f32 %v3914, %v4673
      %v4971 = vld [vmem:[%s363] sm:$0xff]
      %v4972 = vld [vmem:[%s363 + $0x8] sm:$0xff]
      %v4973 = vld [vmem:[%s363 + $0x10] sm:$0xff]
      %v4974 = vld [vmem:[%s363 + $0x18] sm:$0xff]
      %v4975 = vld [vmem:[%s363 + $0x20] sm:$0xff]
      %v4976 = vld [vmem:[%s363 + $0x28] sm:$0xff]
      %v4977 = vld [vmem:[%s363 + $0x30] sm:$0xff]
      %v4978 = vld [vmem:[%s363 + $0x38] sm:$0xff]
      %4980 = vset.pattern.permute.xlu0 0
      %4981 = vperm.xlu0 %4980, %v4971
      %v4982 = vpop.permute.xlu0 %4981
      %4985 = vset.pattern.permute.xlu0 0
      %4986 = vperm.xlu0 %4985, %v4972
      %v4987 = vpop.permute.xlu0 %4986
      %4990 = vset.pattern.permute.xlu0 0
      %4991 = vperm.xlu0 %4990, %v4973
      %v4992 = vpop.permute.xlu0 %4991
      %4995 = vset.pattern.permute.xlu0 0
      %4996 = vperm.xlu0 %4995, %v4974
      %v4997 = vpop.permute.xlu0 %4996
      %5000 = vset.pattern.permute.xlu0 0
      %5001 = vperm.xlu0 %5000, %v4975
      %v5002 = vpop.permute.xlu0 %5001
      %5005 = vset.pattern.permute.xlu0 0
      %5006 = vperm.xlu0 %5005, %v4976
      %v5007 = vpop.permute.xlu0 %5006
      %5010 = vset.pattern.permute.xlu0 0
      %5011 = vperm.xlu0 %5010, %v4977
      %v5012 = vpop.permute.xlu0 %5011
      %5015 = vset.pattern.permute.xlu0 0
      %5016 = vperm.xlu0 %5015, %v4978
      %v5017 = vpop.permute.xlu0 %5016
      %v5019 = vadd.f32 %v4675, %v4982
      %v5020 = vadd.f32 %v4676, %v4982
      %v5021 = vadd.f32 %v4677, %v4982
      %v5022 = vadd.f32 %v4678, %v4982
      %v5023 = vadd.f32 %v4679, %v4982
      %v5024 = vadd.f32 %v4680, %v4982
      %v5025 = vadd.f32 %v4681, %v4982
      %v5026 = vadd.f32 %v4682, %v4982
      %v5027 = vadd.f32 %v4683, %v4982
      %v5028 = vadd.f32 %v4684, %v4982
      %v5029 = vadd.f32 %v4685, %v4982
      %v5030 = vadd.f32 %v4686, %v4982
      %v5031 = vadd.f32 %v4687, %v4982
      %v5032 = vadd.f32 %v4688, %v4982
      %v5033 = vadd.f32 %v4689, %v4982
      %v5034 = vadd.f32 %v4690, %v4982
      %v5035 = vadd.f32 %v4691, %v4982
      %v5036 = vadd.f32 %v4692, %v4982
      %v5037 = vadd.f32 %v4693, %v4982
      %v5038 = vadd.f32 %v4694, %v4982
      %v5039 = vadd.f32 %v4695, %v4982
      %v5040 = vadd.f32 %v4696, %v4982
      %v5041 = vadd.f32 %v4697, %v4982
      %v5042 = vadd.f32 %v4698, %v4982
      %v5043 = vadd.f32 %v4699, %v4982
      %v5044 = vadd.f32 %v4700, %v4982
      %v5045 = vadd.f32 %v4701, %v4982
      %v5046 = vadd.f32 %v4702, %v4982
      %v5047 = vadd.f32 %v4703, %v4982
      %v5048 = vadd.f32 %v4704, %v4982
      %v5049 = vadd.f32 %v4705, %v4982
      %v5050 = vadd.f32 %v4706, %v4982
      %v5051 = vadd.f32 %v4707, %v4982
      %v5052 = vadd.f32 %v4708, %v4982
      %v5053 = vadd.f32 %v4709, %v4982
      %v5054 = vadd.f32 %v4710, %v4982
      %v5055 = vadd.f32 %v4711, %v4982
      %v5056 = vadd.f32 %v4712, %v4987
      %v5057 = vadd.f32 %v4713, %v4987
      %v5058 = vadd.f32 %v4714, %v4987
      %v5059 = vadd.f32 %v4715, %v4987
      %v5060 = vadd.f32 %v4716, %v4987
      %v5061 = vadd.f32 %v4717, %v4987
      %v5062 = vadd.f32 %v4718, %v4987
      %v5063 = vadd.f32 %v4719, %v4987
      %v5064 = vadd.f32 %v4720, %v4987
      %v5065 = vadd.f32 %v4721, %v4987
      %v5066 = vadd.f32 %v4722, %v4987
      %v5067 = vadd.f32 %v4723, %v4987
      %v5068 = vadd.f32 %v4724, %v4987
      %v5069 = vadd.f32 %v4725, %v4987
      %v5070 = vadd.f32 %v4726, %v4987
      %v5071 = vadd.f32 %v4727, %v4987
      %v5072 = vadd.f32 %v4728, %v4987
      %v5073 = vadd.f32 %v4729, %v4987
      %v5074 = vadd.f32 %v4730, %v4987
      %v5075 = vadd.f32 %v4731, %v4987
      %v5076 = vadd.f32 %v4732, %v4987
      %v5077 = vadd.f32 %v4733, %v4987
      %v5078 = vadd.f32 %v4734, %v4987
      %v5079 = vadd.f32 %v4735, %v4987
      %v5080 = vadd.f32 %v4736, %v4987
      %v5081 = vadd.f32 %v4737, %v4987
      %v5082 = vadd.f32 %v4738, %v4987
      %v5083 = vadd.f32 %v4739, %v4987
      %v5084 = vadd.f32 %v4740, %v4987
      %v5085 = vadd.f32 %v4741, %v4987
      %v5086 = vadd.f32 %v4742, %v4987
      %v5087 = vadd.f32 %v4743, %v4987
      %v5088 = vadd.f32 %v4744, %v4987
      %v5089 = vadd.f32 %v4745, %v4987
      %v5090 = vadd.f32 %v4746, %v4987
      %v5091 = vadd.f32 %v4747, %v4987
      %v5092 = vadd.f32 %v4748, %v4987
      %v5093 = vadd.f32 %v4749, %v4992
      %v5094 = vadd.f32 %v4750, %v4992
      %v5095 = vadd.f32 %v4751, %v4992
      %v5096 = vadd.f32 %v4752, %v4992
      %v5097 = vadd.f32 %v4753, %v4992
      %v5098 = vadd.f32 %v4754, %v4992
      %v5099 = vadd.f32 %v4755, %v4992
      %v5100 = vadd.f32 %v4756, %v4992
      %v5101 = vadd.f32 %v4757, %v4992
      %v5102 = vadd.f32 %v4758, %v4992
      %v5103 = vadd.f32 %v4759, %v4992
      %v5104 = vadd.f32 %v4760, %v4992
      %v5105 = vadd.f32 %v4761, %v4992
      %v5106 = vadd.f32 %v4762, %v4992
      %v5107 = vadd.f32 %v4763, %v4992
      %v5108 = vadd.f32 %v4764, %v4992
      %v5109 = vadd.f32 %v4765, %v4992
      %v5110 = vadd.f32 %v4766, %v4992
      %v5111 = vadd.f32 %v4767, %v4992
      %v5112 = vadd.f32 %v4768, %v4992
      %v5113 = vadd.f32 %v4769, %v4992
      %v5114 = vadd.f32 %v4770, %v4992
      %v5115 = vadd.f32 %v4771, %v4992
      %v5116 = vadd.f32 %v4772, %v4992
      %v5117 = vadd.f32 %v4773, %v4992
      %v5118 = vadd.f32 %v4774, %v4992
      %v5119 = vadd.f32 %v4775, %v4992
      %v5120 = vadd.f32 %v4776, %v4992
      %v5121 = vadd.f32 %v4777, %v4992
      %v5122 = vadd.f32 %v4778, %v4992
      %v5123 = vadd.f32 %v4779, %v4992
      %v5124 = vadd.f32 %v4780, %v4992
      %v5125 = vadd.f32 %v4781, %v4992
      %v5126 = vadd.f32 %v4782, %v4992
      %v5127 = vadd.f32 %v4783, %v4992
      %v5128 = vadd.f32 %v4784, %v4992
      %v5129 = vadd.f32 %v4785, %v4992
      %v5130 = vadd.f32 %v4786, %v4997
      %v5131 = vadd.f32 %v4787, %v4997
      %v5132 = vadd.f32 %v4788, %v4997
      %v5133 = vadd.f32 %v4789, %v4997
      %v5134 = vadd.f32 %v4790, %v4997
      %v5135 = vadd.f32 %v4791, %v4997
      %v5136 = vadd.f32 %v4792, %v4997
      %v5137 = vadd.f32 %v4793, %v4997
      %v5138 = vadd.f32 %v4794, %v4997
      %v5139 = vadd.f32 %v4795, %v4997
      %v5140 = vadd.f32 %v4796, %v4997
      %v5141 = vadd.f32 %v4797, %v4997
      %v5142 = vadd.f32 %v4798, %v4997
      %v5143 = vadd.f32 %v4799, %v4997
      %v5144 = vadd.f32 %v4800, %v4997
      %v5145 = vadd.f32 %v4801, %v4997
      %v5146 = vadd.f32 %v4802, %v4997
      %v5147 = vadd.f32 %v4803, %v4997
      %v5148 = vadd.f32 %v4804, %v4997
      %v5149 = vadd.f32 %v4805, %v4997
      %v5150 = vadd.f32 %v4806, %v4997
      %v5151 = vadd.f32 %v4807, %v4997
      %v5152 = vadd.f32 %v4808, %v4997
      %v5153 = vadd.f32 %v4809, %v4997
      %v5154 = vadd.f32 %v4810, %v4997
      %v5155 = vadd.f32 %v4811, %v4997
      %v5156 = vadd.f32 %v4812, %v4997
      %v5157 = vadd.f32 %v4813, %v4997
      %v5158 = vadd.f32 %v4814, %v4997
      %v5159 = vadd.f32 %v4815, %v4997
      %v5160 = vadd.f32 %v4816, %v4997
      %v5161 = vadd.f32 %v4817, %v4997
      %v5162 = vadd.f32 %v4818, %v4997
      %v5163 = vadd.f32 %v4819, %v4997
      %v5164 = vadd.f32 %v4820, %v4997
      %v5165 = vadd.f32 %v4821, %v4997
      %v5166 = vadd.f32 %v4822, %v4997
      %v5167 = vadd.f32 %v4823, %v5002
      %v5168 = vadd.f32 %v4824, %v5002
      %v5169 = vadd.f32 %v4825, %v5002
      %v5170 = vadd.f32 %v4826, %v5002
      %v5171 = vadd.f32 %v4827, %v5002
      %v5172 = vadd.f32 %v4828, %v5002
      %v5173 = vadd.f32 %v4829, %v5002
      %v5174 = vadd.f32 %v4830, %v5002
      %v5175 = vadd.f32 %v4831, %v5002
      %v5176 = vadd.f32 %v4832, %v5002
      %v5177 = vadd.f32 %v4833, %v5002
      %v5178 = vadd.f32 %v4834, %v5002
      %v5179 = vadd.f32 %v4835, %v5002
      %v5180 = vadd.f32 %v4836, %v5002
      %v5181 = vadd.f32 %v4837, %v5002
      %v5182 = vadd.f32 %v4838, %v5002
      %v5183 = vadd.f32 %v4839, %v5002
      %v5184 = vadd.f32 %v4840, %v5002
      %v5185 = vadd.f32 %v4841, %v5002
      %v5186 = vadd.f32 %v4842, %v5002
      %v5187 = vadd.f32 %v4843, %v5002
      %v5188 = vadd.f32 %v4844, %v5002
      %v5189 = vadd.f32 %v4845, %v5002
      %v5190 = vadd.f32 %v4846, %v5002
      %v5191 = vadd.f32 %v4847, %v5002
      %v5192 = vadd.f32 %v4848, %v5002
      %v5193 = vadd.f32 %v4849, %v5002
      %v5194 = vadd.f32 %v4850, %v5002
      %v5195 = vadd.f32 %v4851, %v5002
      %v5196 = vadd.f32 %v4852, %v5002
      %v5197 = vadd.f32 %v4853, %v5002
      %v5198 = vadd.f32 %v4854, %v5002
      %v5199 = vadd.f32 %v4855, %v5002
      %v5200 = vadd.f32 %v4856, %v5002
      %v5201 = vadd.f32 %v4857, %v5002
      %v5202 = vadd.f32 %v4858, %v5002
      %v5203 = vadd.f32 %v4859, %v5002
      %v5204 = vadd.f32 %v4860, %v5007
      %v5205 = vadd.f32 %v4861, %v5007
      %v5206 = vadd.f32 %v4862, %v5007
      %v5207 = vadd.f32 %v4863, %v5007
      %v5208 = vadd.f32 %v4864, %v5007
      %v5209 = vadd.f32 %v4865, %v5007
      %v5210 = vadd.f32 %v4866, %v5007
      %v5211 = vadd.f32 %v4867, %v5007
      %v5212 = vadd.f32 %v4868, %v5007
      %v5213 = vadd.f32 %v4869, %v5007
      %v5214 = vadd.f32 %v4870, %v5007
      %v5215 = vadd.f32 %v4871, %v5007
      %v5216 = vadd.f32 %v4872, %v5007
      %v5217 = vadd.f32 %v4873, %v5007
      %v5218 = vadd.f32 %v4874, %v5007
      %v5219 = vadd.f32 %v4875, %v5007
      %v5220 = vadd.f32 %v4876, %v5007
      %v5221 = vadd.f32 %v4877, %v5007
      %v5222 = vadd.f32 %v4878, %v5007
      %v5223 = vadd.f32 %v4879, %v5007
      %v5224 = vadd.f32 %v4880, %v5007
      %v5225 = vadd.f32 %v4881, %v5007
      %v5226 = vadd.f32 %v4882, %v5007
      %v5227 = vadd.f32 %v4883, %v5007
      %v5228 = vadd.f32 %v4884, %v5007
      %v5229 = vadd.f32 %v4885, %v5007
      %v5230 = vadd.f32 %v4886, %v5007
      %v5231 = vadd.f32 %v4887, %v5007
      %v5232 = vadd.f32 %v4888, %v5007
      %v5233 = vadd.f32 %v4889, %v5007
      %v5234 = vadd.f32 %v4890, %v5007
      %v5235 = vadd.f32 %v4891, %v5007
      %v5236 = vadd.f32 %v4892, %v5007
      %v5237 = vadd.f32 %v4893, %v5007
      %v5238 = vadd.f32 %v4894, %v5007
      %v5239 = vadd.f32 %v4895, %v5007
      %v5240 = vadd.f32 %v4896, %v5007
      %v5241 = vadd.f32 %v4897, %v5012
      %v5242 = vadd.f32 %v4898, %v5012
      %v5243 = vadd.f32 %v4899, %v5012
      %v5244 = vadd.f32 %v4900, %v5012
      %v5245 = vadd.f32 %v4901, %v5012
      %v5246 = vadd.f32 %v4902, %v5012
      %v5247 = vadd.f32 %v4903, %v5012
      %v5248 = vadd.f32 %v4904, %v5012
      %v5249 = vadd.f32 %v4905, %v5012
      %v5250 = vadd.f32 %v4906, %v5012
      %v5251 = vadd.f32 %v4907, %v5012
      %v5252 = vadd.f32 %v4908, %v5012
      %v5253 = vadd.f32 %v4909, %v5012
      %v5254 = vadd.f32 %v4910, %v5012
      %v5255 = vadd.f32 %v4911, %v5012
      %v5256 = vadd.f32 %v4912, %v5012
      %v5257 = vadd.f32 %v4913, %v5012
      %v5258 = vadd.f32 %v4914, %v5012
      %v5259 = vadd.f32 %v4915, %v5012
      %v5260 = vadd.f32 %v4916, %v5012
      %v5261 = vadd.f32 %v4917, %v5012
      %v5262 = vadd.f32 %v4918, %v5012
      %v5263 = vadd.f32 %v4919, %v5012
      %v5264 = vadd.f32 %v4920, %v5012
      %v5265 = vadd.f32 %v4921, %v5012
      %v5266 = vadd.f32 %v4922, %v5012
      %v5267 = vadd.f32 %v4923, %v5012
      %v5268 = vadd.f32 %v4924, %v5012
      %v5269 = vadd.f32 %v4925, %v5012
      %v5270 = vadd.f32 %v4926, %v5012
      %v5271 = vadd.f32 %v4927, %v5012
      %v5272 = vadd.f32 %v4928, %v5012
      %v5273 = vadd.f32 %v4929, %v5012
      %v5274 = vadd.f32 %v4930, %v5012
      %v5275 = vadd.f32 %v4931, %v5012
      %v5276 = vadd.f32 %v4932, %v5012
      %v5277 = vadd.f32 %v4933, %v5012
      %v5278 = vadd.f32 %v4934, %v5017
      %v5279 = vadd.f32 %v4935, %v5017
      %v5280 = vadd.f32 %v4936, %v5017
      %v5281 = vadd.f32 %v4937, %v5017
      %v5282 = vadd.f32 %v4938, %v5017
      %v5283 = vadd.f32 %v4939, %v5017
      %v5284 = vadd.f32 %v4940, %v5017
      %v5285 = vadd.f32 %v4941, %v5017
      %v5286 = vadd.f32 %v4942, %v5017
      %v5287 = vadd.f32 %v4943, %v5017
      %v5288 = vadd.f32 %v4944, %v5017
      %v5289 = vadd.f32 %v4945, %v5017
      %v5290 = vadd.f32 %v4946, %v5017
      %v5291 = vadd.f32 %v4947, %v5017
      %v5292 = vadd.f32 %v4948, %v5017
      %v5293 = vadd.f32 %v4949, %v5017
      %v5294 = vadd.f32 %v4950, %v5017
      %v5295 = vadd.f32 %v4951, %v5017
      %v5296 = vadd.f32 %v4952, %v5017
      %v5297 = vadd.f32 %v4953, %v5017
      %v5298 = vadd.f32 %v4954, %v5017
      %v5299 = vadd.f32 %v4955, %v5017
      %v5300 = vadd.f32 %v4956, %v5017
      %v5301 = vadd.f32 %v4957, %v5017
      %v5302 = vadd.f32 %v4958, %v5017
      %v5303 = vadd.f32 %v4959, %v5017
      %v5304 = vadd.f32 %v4960, %v5017
      %v5305 = vadd.f32 %v4961, %v5017
      %v5306 = vadd.f32 %v4962, %v5017
      %v5307 = vadd.f32 %v4963, %v5017
      %v5308 = vadd.f32 %v4964, %v5017
      %v5309 = vadd.f32 %v4965, %v5017
      %v5310 = vadd.f32 %v4966, %v5017
      %v5311 = vadd.f32 %v4967, %v5017
      %v5312 = vadd.f32 %v4968, %v5017
      %v5313 = vadd.f32 %v4969, %v5017
      %v5314 = vadd.f32 %v4970, %v5017
      %v5315 = vxor.u32 %v5019, 2147483648
      %v5316 = vxor.u32 %v5020, 2147483648
      %v5317 = vxor.u32 %v5021, 2147483648
      %v5318 = vxor.u32 %v5022, 2147483648
      %v5319 = vxor.u32 %v5023, 2147483648
      %v5320 = vxor.u32 %v5024, 2147483648
      %v5321 = vxor.u32 %v5025, 2147483648
      %v5322 = vxor.u32 %v5026, 2147483648
      %v5323 = vxor.u32 %v5027, 2147483648
      %v5324 = vxor.u32 %v5028, 2147483648
      %v5325 = vxor.u32 %v5029, 2147483648
      %v5326 = vxor.u32 %v5030, 2147483648
      %v5327 = vxor.u32 %v5031, 2147483648
      %v5328 = vxor.u32 %v5032, 2147483648
      %v5329 = vxor.u32 %v5033, 2147483648
      %v5330 = vxor.u32 %v5034, 2147483648
      %v5331 = vxor.u32 %v5035, 2147483648
      %v5332 = vxor.u32 %v5036, 2147483648
      %v5333 = vxor.u32 %v5037, 2147483648
      %v5334 = vxor.u32 %v5038, 2147483648
      %v5335 = vxor.u32 %v5039, 2147483648
      %v5336 = vxor.u32 %v5040, 2147483648
      %v5337 = vxor.u32 %v5041, 2147483648
      %v5338 = vxor.u32 %v5042, 2147483648
      %v5339 = vxor.u32 %v5043, 2147483648
      %v5340 = vxor.u32 %v5044, 2147483648
      %v5341 = vxor.u32 %v5045, 2147483648
      %v5342 = vxor.u32 %v5046, 2147483648
      %v5343 = vxor.u32 %v5047, 2147483648
      %v5344 = vxor.u32 %v5048, 2147483648
      %v5345 = vxor.u32 %v5049, 2147483648
      %v5346 = vxor.u32 %v5050, 2147483648
      %v5347 = vxor.u32 %v5051, 2147483648
      %v5348 = vxor.u32 %v5052, 2147483648
      %v5349 = vxor.u32 %v5053, 2147483648
      %v5350 = vxor.u32 %v5054, 2147483648
      %v5351 = vxor.u32 %v5055, 2147483648
      %v5352 = vxor.u32 %v5056, 2147483648
      %v5353 = vxor.u32 %v5057, 2147483648
      %v5354 = vxor.u32 %v5058, 2147483648
      %v5355 = vxor.u32 %v5059, 2147483648
      %v5356 = vxor.u32 %v5060, 2147483648
      %v5357 = vxor.u32 %v5061, 2147483648
      %v5358 = vxor.u32 %v5062, 2147483648
      %v5359 = vxor.u32 %v5063, 2147483648
      %v5360 = vxor.u32 %v5064, 2147483648
      %v5361 = vxor.u32 %v5065, 2147483648
      %v5362 = vxor.u32 %v5066, 2147483648
      %v5363 = vxor.u32 %v5067, 2147483648
      %v5364 = vxor.u32 %v5068, 2147483648
      %v5365 = vxor.u32 %v5069, 2147483648
      %v5366 = vxor.u32 %v5070, 2147483648
      %v5367 = vxor.u32 %v5071, 2147483648
      %v5368 = vxor.u32 %v5072, 2147483648
      %v5369 = vxor.u32 %v5073, 2147483648
      %v5370 = vxor.u32 %v5074, 2147483648
      %v5371 = vxor.u32 %v5075, 2147483648
      %v5372 = vxor.u32 %v5076, 2147483648
      %v5373 = vxor.u32 %v5077, 2147483648
      %v5374 = vxor.u32 %v5078, 2147483648
      %v5375 = vxor.u32 %v5079, 2147483648
      %v5376 = vxor.u32 %v5080, 2147483648
      %v5377 = vxor.u32 %v5081, 2147483648
      %v5378 = vxor.u32 %v5082, 2147483648
      %v5379 = vxor.u32 %v5083, 2147483648
      %v5380 = vxor.u32 %v5084, 2147483648
      %v5381 = vxor.u32 %v5085, 2147483648
      %v5382 = vxor.u32 %v5086, 2147483648
      %v5383 = vxor.u32 %v5087, 2147483648
      %v5384 = vxor.u32 %v5088, 2147483648
      %v5385 = vxor.u32 %v5089, 2147483648
      %v5386 = vxor.u32 %v5090, 2147483648
      %v5387 = vxor.u32 %v5091, 2147483648
      %v5388 = vxor.u32 %v5092, 2147483648
      %v5389 = vxor.u32 %v5093, 2147483648
      %v5390 = vxor.u32 %v5094, 2147483648
      %v5391 = vxor.u32 %v5095, 2147483648
      %v5392 = vxor.u32 %v5096, 2147483648
      %v5393 = vxor.u32 %v5097, 2147483648
      %v5394 = vxor.u32 %v5098, 2147483648
      %v5395 = vxor.u32 %v5099, 2147483648
      %v5396 = vxor.u32 %v5100, 2147483648
      %v5397 = vxor.u32 %v5101, 2147483648
      %v5398 = vxor.u32 %v5102, 2147483648
      %v5399 = vxor.u32 %v5103, 2147483648
      %v5400 = vxor.u32 %v5104, 2147483648
      %v5401 = vxor.u32 %v5105, 2147483648
      %v5402 = vxor.u32 %v5106, 2147483648
      %v5403 = vxor.u32 %v5107, 2147483648
      %v5404 = vxor.u32 %v5108, 2147483648
      %v5405 = vxor.u32 %v5109, 2147483648
      %v5406 = vxor.u32 %v5110, 2147483648
      %v5407 = vxor.u32 %v5111, 2147483648
      %v5408 = vxor.u32 %v5112, 2147483648
      %v5409 = vxor.u32 %v5113, 2147483648
      %v5410 = vxor.u32 %v5114, 2147483648
      %v5411 = vxor.u32 %v5115, 2147483648
      %v5412 = vxor.u32 %v5116, 2147483648
      %v5413 = vxor.u32 %v5117, 2147483648
      %v5414 = vxor.u32 %v5118, 2147483648
      %v5415 = vxor.u32 %v5119, 2147483648
      %v5416 = vxor.u32 %v5120, 2147483648
      %v5417 = vxor.u32 %v5121, 2147483648
      %v5418 = vxor.u32 %v5122, 2147483648
      %v5419 = vxor.u32 %v5123, 2147483648
      %v5420 = vxor.u32 %v5124, 2147483648
      %v5421 = vxor.u32 %v5125, 2147483648
      %v5422 = vxor.u32 %v5126, 2147483648
      %v5423 = vxor.u32 %v5127, 2147483648
      %v5424 = vxor.u32 %v5128, 2147483648
      %v5425 = vxor.u32 %v5129, 2147483648
      %v5426 = vxor.u32 %v5130, 2147483648
      %v5427 = vxor.u32 %v5131, 2147483648
      %v5428 = vxor.u32 %v5132, 2147483648
      %v5429 = vxor.u32 %v5133, 2147483648
      %v5430 = vxor.u32 %v5134, 2147483648
      %v5431 = vxor.u32 %v5135, 2147483648
      %v5432 = vxor.u32 %v5136, 2147483648
      %v5433 = vxor.u32 %v5137, 2147483648
      %v5434 = vxor.u32 %v5138, 2147483648
      %v5435 = vxor.u32 %v5139, 2147483648
      %v5436 = vxor.u32 %v5140, 2147483648
      %v5437 = vxor.u32 %v5141, 2147483648
      %v5438 = vxor.u32 %v5142, 2147483648
      %v5439 = vxor.u32 %v5143, 2147483648
      %v5440 = vxor.u32 %v5144, 2147483648
      %v5441 = vxor.u32 %v5145, 2147483648
      %v5442 = vxor.u32 %v5146, 2147483648
      %v5443 = vxor.u32 %v5147, 2147483648
      %v5444 = vxor.u32 %v5148, 2147483648
      %v5445 = vxor.u32 %v5149, 2147483648
      %v5446 = vxor.u32 %v5150, 2147483648
      %v5447 = vxor.u32 %v5151, 2147483648
      %v5448 = vxor.u32 %v5152, 2147483648
      %v5449 = vxor.u32 %v5153, 2147483648
      %v5450 = vxor.u32 %v5154, 2147483648
      %v5451 = vxor.u32 %v5155, 2147483648
      %v5452 = vxor.u32 %v5156, 2147483648
      %v5453 = vxor.u32 %v5157, 2147483648
      %v5454 = vxor.u32 %v5158, 2147483648
      %v5455 = vxor.u32 %v5159, 2147483648
      %v5456 = vxor.u32 %v5160, 2147483648
      %v5457 = vxor.u32 %v5161, 2147483648
      %v5458 = vxor.u32 %v5162, 2147483648
      %v5459 = vxor.u32 %v5163, 2147483648
      %v5460 = vxor.u32 %v5164, 2147483648
      %v5461 = vxor.u32 %v5165, 2147483648
      %v5462 = vxor.u32 %v5166, 2147483648
      %v5463 = vxor.u32 %v5167, 2147483648
      %v5464 = vxor.u32 %v5168, 2147483648
      %v5465 = vxor.u32 %v5169, 2147483648
      %v5466 = vxor.u32 %v5170, 2147483648
      %v5467 = vxor.u32 %v5171, 2147483648
      %v5468 = vxor.u32 %v5172, 2147483648
      %v5469 = vxor.u32 %v5173, 2147483648
      %v5470 = vxor.u32 %v5174, 2147483648
      %v5471 = vxor.u32 %v5175, 2147483648
      %v5472 = vxor.u32 %v5176, 2147483648
      %v5473 = vxor.u32 %v5177, 2147483648
      %v5474 = vxor.u32 %v5178, 2147483648
      %v5475 = vxor.u32 %v5179, 2147483648
      %v5476 = vxor.u32 %v5180, 2147483648
      %v5477 = vxor.u32 %v5181, 2147483648
      %v5478 = vxor.u32 %v5182, 2147483648
      %v5479 = vxor.u32 %v5183, 2147483648
      %v5480 = vxor.u32 %v5184, 2147483648
      %v5481 = vxor.u32 %v5185, 2147483648
      %v5482 = vxor.u32 %v5186, 2147483648
      %v5483 = vxor.u32 %v5187, 2147483648
      %v5484 = vxor.u32 %v5188, 2147483648
      %v5485 = vxor.u32 %v5189, 2147483648
      %v5486 = vxor.u32 %v5190, 2147483648
      %v5487 = vxor.u32 %v5191, 2147483648
      %v5488 = vxor.u32 %v5192, 2147483648
      %v5489 = vxor.u32 %v5193, 2147483648
      %v5490 = vxor.u32 %v5194, 2147483648
      %v5491 = vxor.u32 %v5195, 2147483648
      %v5492 = vxor.u32 %v5196, 2147483648
      %v5493 = vxor.u32 %v5197, 2147483648
      %v5494 = vxor.u32 %v5198, 2147483648
      %v5495 = vxor.u32 %v5199, 2147483648
      %v5496 = vxor.u32 %v5200, 2147483648
      %v5497 = vxor.u32 %v5201, 2147483648
      %v5498 = vxor.u32 %v5202, 2147483648
      %v5499 = vxor.u32 %v5203, 2147483648
      %v5500 = vxor.u32 %v5204, 2147483648
      %v5501 = vxor.u32 %v5205, 2147483648
      %v5502 = vxor.u32 %v5206, 2147483648
      %v5503 = vxor.u32 %v5207, 2147483648
      %v5504 = vxor.u32 %v5208, 2147483648
      %v5505 = vxor.u32 %v5209, 2147483648
      %v5506 = vxor.u32 %v5210, 2147483648
      %v5507 = vxor.u32 %v5211, 2147483648
      %v5508 = vxor.u32 %v5212, 2147483648
      %v5509 = vxor.u32 %v5213, 2147483648
      %v5510 = vxor.u32 %v5214, 2147483648
      %v5511 = vxor.u32 %v5215, 2147483648
      %v5512 = vxor.u32 %v5216, 2147483648
      %v5513 = vxor.u32 %v5217, 2147483648
      %v5514 = vxor.u32 %v5218, 2147483648
      %v5515 = vxor.u32 %v5219, 2147483648
      %v5516 = vxor.u32 %v5220, 2147483648
      %v5517 = vxor.u32 %v5221, 2147483648
      %v5518 = vxor.u32 %v5222, 2147483648
      %v5519 = vxor.u32 %v5223, 2147483648
      %v5520 = vxor.u32 %v5224, 2147483648
      %v5521 = vxor.u32 %v5225, 2147483648
      %v5522 = vxor.u32 %v5226, 2147483648
      %v5523 = vxor.u32 %v5227, 2147483648
      %v5524 = vxor.u32 %v5228, 2147483648
      %v5525 = vxor.u32 %v5229, 2147483648
      %v5526 = vxor.u32 %v5230, 2147483648
      %v5527 = vxor.u32 %v5231, 2147483648
      %v5528 = vxor.u32 %v5232, 2147483648
      %v5529 = vxor.u32 %v5233, 2147483648
      %v5530 = vxor.u32 %v5234, 2147483648
      %v5531 = vxor.u32 %v5235, 2147483648
      %v5532 = vxor.u32 %v5236, 2147483648
      %v5533 = vxor.u32 %v5237, 2147483648
      %v5534 = vxor.u32 %v5238, 2147483648
      %v5535 = vxor.u32 %v5239, 2147483648
      %v5536 = vxor.u32 %v5240, 2147483648
      %v5537 = vxor.u32 %v5241, 2147483648
      %v5538 = vxor.u32 %v5242, 2147483648
      %v5539 = vxor.u32 %v5243, 2147483648
      %v5540 = vxor.u32 %v5244, 2147483648
      %v5541 = vxor.u32 %v5245, 2147483648
      %v5542 = vxor.u32 %v5246, 2147483648
      %v5543 = vxor.u32 %v5247, 2147483648
      %v5544 = vxor.u32 %v5248, 2147483648
      %v5545 = vxor.u32 %v5249, 2147483648
      %v5546 = vxor.u32 %v5250, 2147483648
      %v5547 = vxor.u32 %v5251, 2147483648
      %v5548 = vxor.u32 %v5252, 2147483648
      %v5549 = vxor.u32 %v5253, 2147483648
      %v5550 = vxor.u32 %v5254, 2147483648
      %v5551 = vxor.u32 %v5255, 2147483648
      %v5552 = vxor.u32 %v5256, 2147483648
      %v5553 = vxor.u32 %v5257, 2147483648
      %v5554 = vxor.u32 %v5258, 2147483648
      %v5555 = vxor.u32 %v5259, 2147483648
      %v5556 = vxor.u32 %v5260, 2147483648
      %v5557 = vxor.u32 %v5261, 2147483648
      %v5558 = vxor.u32 %v5262, 2147483648
      %v5559 = vxor.u32 %v5263, 2147483648
      %v5560 = vxor.u32 %v5264, 2147483648
      %v5561 = vxor.u32 %v5265, 2147483648
      %v5562 = vxor.u32 %v5266, 2147483648
      %v5563 = vxor.u32 %v5267, 2147483648
      %v5564 = vxor.u32 %v5268, 2147483648
      %v5565 = vxor.u32 %v5269, 2147483648
      %v5566 = vxor.u32 %v5270, 2147483648
      %v5567 = vxor.u32 %v5271, 2147483648
      %v5568 = vxor.u32 %v5272, 2147483648
      %v5569 = vxor.u32 %v5273, 2147483648
      %v5570 = vxor.u32 %v5274, 2147483648
      %v5571 = vxor.u32 %v5275, 2147483648
      %v5572 = vxor.u32 %v5276, 2147483648
      %v5573 = vxor.u32 %v5277, 2147483648
      %v5574 = vxor.u32 %v5278, 2147483648
      %v5575 = vxor.u32 %v5279, 2147483648
      %v5576 = vxor.u32 %v5280, 2147483648
      %v5577 = vxor.u32 %v5281, 2147483648
      %v5578 = vxor.u32 %v5282, 2147483648
      %v5579 = vxor.u32 %v5283, 2147483648
      %v5580 = vxor.u32 %v5284, 2147483648
      %v5581 = vxor.u32 %v5285, 2147483648
      %v5582 = vxor.u32 %v5286, 2147483648
      %v5583 = vxor.u32 %v5287, 2147483648
      %v5584 = vxor.u32 %v5288, 2147483648
      %v5585 = vxor.u32 %v5289, 2147483648
      %v5586 = vxor.u32 %v5290, 2147483648
      %v5587 = vxor.u32 %v5291, 2147483648
      %v5588 = vxor.u32 %v5292, 2147483648
      %v5589 = vxor.u32 %v5293, 2147483648
      %v5590 = vxor.u32 %v5294, 2147483648
      %v5591 = vxor.u32 %v5295, 2147483648
      %v5592 = vxor.u32 %v5296, 2147483648
      %v5593 = vxor.u32 %v5297, 2147483648
      %v5594 = vxor.u32 %v5298, 2147483648
      %v5595 = vxor.u32 %v5299, 2147483648
      %v5596 = vxor.u32 %v5300, 2147483648
      %v5597 = vxor.u32 %v5301, 2147483648
      %v5598 = vxor.u32 %v5302, 2147483648
      %v5599 = vxor.u32 %v5303, 2147483648
      %v5600 = vxor.u32 %v5304, 2147483648
      %v5601 = vxor.u32 %v5305, 2147483648
      %v5602 = vxor.u32 %v5306, 2147483648
      %v5603 = vxor.u32 %v5307, 2147483648
      %v5604 = vxor.u32 %v5308, 2147483648
      %v5605 = vxor.u32 %v5309, 2147483648
      %v5606 = vxor.u32 %v5310, 2147483648
      %v5607 = vxor.u32 %v5311, 2147483648
      %v5608 = vxor.u32 %v5312, 2147483648
      %v5609 = vxor.u32 %v5313, 2147483648
      %v5610 = vxor.u32 %v5314, 2147483648
      %v5611 = vmul.f32 %v5315, 1.442695
      %v5612 = vpow.pop %v5611
      %v5613 = vmul.f32 %v5316, 1.442695
      %v5614 = vpow.pop %v5613
      %v5615 = vmul.f32 %v5317, 1.442695
      %v5616 = vpow.pop %v5615
      %v5617 = vmul.f32 %v5318, 1.442695
      %v5618 = vpow.pop %v5617
      %v5619 = vmul.f32 %v5319, 1.442695
      %v5620 = vpow.pop %v5619
      %v5621 = vmul.f32 %v5320, 1.442695
      %v5622 = vpow.pop %v5621
      %v5623 = vmul.f32 %v5321, 1.442695
      %v5624 = vpow.pop %v5623
      %v5625 = vmul.f32 %v5322, 1.442695
      %v5626 = vpow.pop %v5625
      %v5627 = vmul.f32 %v5323, 1.442695
      %v5628 = vpow.pop %v5627
      %v5629 = vmul.f32 %v5324, 1.442695
      %v5630 = vpow.pop %v5629
      %v5631 = vmul.f32 %v5325, 1.442695
      %v5632 = vpow.pop %v5631
      %v5633 = vmul.f32 %v5326, 1.442695
      %v5634 = vpow.pop %v5633
      %v5635 = vmul.f32 %v5327, 1.442695
      %v5636 = vpow.pop %v5635
      %v5637 = vmul.f32 %v5328, 1.442695
      %v5638 = vpow.pop %v5637
      %v5639 = vmul.f32 %v5329, 1.442695
      %v5640 = vpow.pop %v5639
      %v5641 = vmul.f32 %v5330, 1.442695
      %v5642 = vpow.pop %v5641
      %v5643 = vmul.f32 %v5331, 1.442695
      %v5644 = vpow.pop %v5643
      %v5645 = vmul.f32 %v5332, 1.442695
      %v5646 = vpow.pop %v5645
      %v5647 = vmul.f32 %v5333, 1.442695
      %v5648 = vpow.pop %v5647
      %v5649 = vmul.f32 %v5334, 1.442695
      %v5650 = vpow.pop %v5649
      %v5651 = vmul.f32 %v5335, 1.442695
      %v5652 = vpow.pop %v5651
      %v5653 = vmul.f32 %v5336, 1.442695
      %v5654 = vpow.pop %v5653
      %v5655 = vmul.f32 %v5337, 1.442695
      %v5656 = vpow.pop %v5655
      %v5657 = vmul.f32 %v5338, 1.442695
      %v5658 = vpow.pop %v5657
      %v5659 = vmul.f32 %v5339, 1.442695
      %v5660 = vpow.pop %v5659
      %v5661 = vmul.f32 %v5340, 1.442695
      %v5662 = vpow.pop %v5661
      %v5663 = vmul.f32 %v5341, 1.442695
      %v5664 = vpow.pop %v5663
      %v5665 = vmul.f32 %v5342, 1.442695
      %v5666 = vpow.pop %v5665
      %v5667 = vmul.f32 %v5343, 1.442695
      %v5668 = vpow.pop %v5667
      %v5669 = vmul.f32 %v5344, 1.442695
      %v5670 = vpow.pop %v5669
      %v5671 = vmul.f32 %v5345, 1.442695
      %v5672 = vpow.pop %v5671
      %v5673 = vmul.f32 %v5346, 1.442695
      %v5674 = vpow.pop %v5673
      %v5675 = vmul.f32 %v5347, 1.442695
      %v5676 = vpow.pop %v5675
      %v5677 = vmul.f32 %v5348, 1.442695
      %v5678 = vpow.pop %v5677
      %v5679 = vmul.f32 %v5349, 1.442695
      %v5680 = vpow.pop %v5679
      %v5681 = vmul.f32 %v5350, 1.442695
      %v5682 = vpow.pop %v5681
      %v5683 = vmul.f32 %v5351, 1.442695
      %v5684 = vpow.pop %v5683
      %v5685 = vmul.f32 %v5352, 1.442695
      %v5686 = vpow.pop %v5685
      %v5687 = vmul.f32 %v5353, 1.442695
      %v5688 = vpow.pop %v5687
      %v5689 = vmul.f32 %v5354, 1.442695
      %v5690 = vpow.pop %v5689
      %v5691 = vmul.f32 %v5355, 1.442695
      %v5692 = vpow.pop %v5691
      %v5693 = vmul.f32 %v5356, 1.442695
      %v5694 = vpow.pop %v5693
      %v5695 = vmul.f32 %v5357, 1.442695
      %v5696 = vpow.pop %v5695
      %v5697 = vmul.f32 %v5358, 1.442695
      %v5698 = vpow.pop %v5697
      %v5699 = vmul.f32 %v5359, 1.442695
      %v5700 = vpow.pop %v5699
      %v5701 = vmul.f32 %v5360, 1.442695
      %v5702 = vpow.pop %v5701
      %v5703 = vmul.f32 %v5361, 1.442695
      %v5704 = vpow.pop %v5703
      %v5705 = vmul.f32 %v5362, 1.442695
      %v5706 = vpow.pop %v5705
      %v5707 = vmul.f32 %v5363, 1.442695
      %v5708 = vpow.pop %v5707
      %v5709 = vmul.f32 %v5364, 1.442695
      %v5710 = vpow.pop %v5709
      %v5711 = vmul.f32 %v5365, 1.442695
      %v5712 = vpow.pop %v5711
      %v5713 = vmul.f32 %v5366, 1.442695
      %v5714 = vpow.pop %v5713
      %v5715 = vmul.f32 %v5367, 1.442695
      %v5716 = vpow.pop %v5715
      %v5717 = vmul.f32 %v5368, 1.442695
      %v5718 = vpow.pop %v5717
      %v5719 = vmul.f32 %v5369, 1.442695
      %v5720 = vpow.pop %v5719
      %v5721 = vmul.f32 %v5370, 1.442695
      %v5722 = vpow.pop %v5721
      %v5723 = vmul.f32 %v5371, 1.442695
      %v5724 = vpow.pop %v5723
      %v5725 = vmul.f32 %v5372, 1.442695
      %v5726 = vpow.pop %v5725
      %v5727 = vmul.f32 %v5373, 1.442695
      %v5728 = vpow.pop %v5727
      %v5729 = vmul.f32 %v5374, 1.442695
      %v5730 = vpow.pop %v5729
      %v5731 = vmul.f32 %v5375, 1.442695
      %v5732 = vpow.pop %v5731
      %v5733 = vmul.f32 %v5376, 1.442695
      %v5734 = vpow.pop %v5733
      %v5735 = vmul.f32 %v5377, 1.442695
      %v5736 = vpow.pop %v5735
      %v5737 = vmul.f32 %v5378, 1.442695
      %v5738 = vpow.pop %v5737
      %v5739 = vmul.f32 %v5379, 1.442695
      %v5740 = vpow.pop %v5739
      %v5741 = vmul.f32 %v5380, 1.442695
      %v5742 = vpow.pop %v5741
      %v5743 = vmul.f32 %v5381, 1.442695
      %v5744 = vpow.pop %v5743
      %v5745 = vmul.f32 %v5382, 1.442695
      %v5746 = vpow.pop %v5745
      %v5747 = vmul.f32 %v5383, 1.442695
      %v5748 = vpow.pop %v5747
      %v5749 = vmul.f32 %v5384, 1.442695
      %v5750 = vpow.pop %v5749
      %v5751 = vmul.f32 %v5385, 1.442695
      %v5752 = vpow.pop %v5751
      %v5753 = vmul.f32 %v5386, 1.442695
      %v5754 = vpow.pop %v5753
      %v5755 = vmul.f32 %v5387, 1.442695
      %v5756 = vpow.pop %v5755
      %v5757 = vmul.f32 %v5388, 1.442695
      %v5758 = vpow.pop %v5757
      %v5759 = vmul.f32 %v5389, 1.442695
      %v5760 = vpow.pop %v5759
      %v5761 = vmul.f32 %v5390, 1.442695
      %v5762 = vpow.pop %v5761
      %v5763 = vmul.f32 %v5391, 1.442695
      %v5764 = vpow.pop %v5763
      %v5765 = vmul.f32 %v5392, 1.442695
      %v5766 = vpow.pop %v5765
      %v5767 = vmul.f32 %v5393, 1.442695
      %v5768 = vpow.pop %v5767
      %v5769 = vmul.f32 %v5394, 1.442695
      %v5770 = vpow.pop %v5769
      %v5771 = vmul.f32 %v5395, 1.442695
      %v5772 = vpow.pop %v5771
      %v5773 = vmul.f32 %v5396, 1.442695
      %v5774 = vpow.pop %v5773
      %v5775 = vmul.f32 %v5397, 1.442695
      %v5776 = vpow.pop %v5775
      %v5777 = vmul.f32 %v5398, 1.442695
      %v5778 = vpow.pop %v5777
      %v5779 = vmul.f32 %v5399, 1.442695
      %v5780 = vpow.pop %v5779
      %v5781 = vmul.f32 %v5400, 1.442695
      %v5782 = vpow.pop %v5781
      %v5783 = vmul.f32 %v5401, 1.442695
      %v5784 = vpow.pop %v5783
      %v5785 = vmul.f32 %v5402, 1.442695
      %v5786 = vpow.pop %v5785
      %v5787 = vmul.f32 %v5403, 1.442695
      %v5788 = vpow.pop %v5787
      %v5789 = vmul.f32 %v5404, 1.442695
      %v5790 = vpow.pop %v5789
      %v5791 = vmul.f32 %v5405, 1.442695
      %v5792 = vpow.pop %v5791
      %v5793 = vmul.f32 %v5406, 1.442695
      %v5794 = vpow.pop %v5793
      %v5795 = vmul.f32 %v5407, 1.442695
      %v5796 = vpow.pop %v5795
      %v5797 = vmul.f32 %v5408, 1.442695
      %v5798 = vpow.pop %v5797
      %v5799 = vmul.f32 %v5409, 1.442695
      %v5800 = vpow.pop %v5799
      %v5801 = vmul.f32 %v5410, 1.442695
      %v5802 = vpow.pop %v5801
      %v5803 = vmul.f32 %v5411, 1.442695
      %v5804 = vpow.pop %v5803
      %v5805 = vmul.f32 %v5412, 1.442695
      %v5806 = vpow.pop %v5805
      %v5807 = vmul.f32 %v5413, 1.442695
      %v5808 = vpow.pop %v5807
      %v5809 = vmul.f32 %v5414, 1.442695
      %v5810 = vpow.pop %v5809
      %v5811 = vmul.f32 %v5415, 1.442695
      %v5812 = vpow.pop %v5811
      %v5813 = vmul.f32 %v5416, 1.442695
      %v5814 = vpow.pop %v5813
      %v5815 = vmul.f32 %v5417, 1.442695
      %v5816 = vpow.pop %v5815
      %v5817 = vmul.f32 %v5418, 1.442695
      %v5818 = vpow.pop %v5817
      %v5819 = vmul.f32 %v5419, 1.442695
      %v5820 = vpow.pop %v5819
      %v5821 = vmul.f32 %v5420, 1.442695
      %v5822 = vpow.pop %v5821
      %v5823 = vmul.f32 %v5421, 1.442695
      %v5824 = vpow.pop %v5823
      %v5825 = vmul.f32 %v5422, 1.442695
      %v5826 = vpow.pop %v5825
      %v5827 = vmul.f32 %v5423, 1.442695
      %v5828 = vpow.pop %v5827
      %v5829 = vmul.f32 %v5424, 1.442695
      %v5830 = vpow.pop %v5829
      %v5831 = vmul.f32 %v5425, 1.442695
      %v5832 = vpow.pop %v5831
      %v5833 = vmul.f32 %v5426, 1.442695
      %v5834 = vpow.pop %v5833
      %v5835 = vmul.f32 %v5427, 1.442695
      %v5836 = vpow.pop %v5835
      %v5837 = vmul.f32 %v5428, 1.442695
      %v5838 = vpow.pop %v5837
      %v5839 = vmul.f32 %v5429, 1.442695
      %v5840 = vpow.pop %v5839
      %v5841 = vmul.f32 %v5430, 1.442695
      %v5842 = vpow.pop %v5841
      %v5843 = vmul.f32 %v5431, 1.442695
      %v5844 = vpow.pop %v5843
      %v5845 = vmul.f32 %v5432, 1.442695
      %v5846 = vpow.pop %v5845
      %v5847 = vmul.f32 %v5433, 1.442695
      %v5848 = vpow.pop %v5847
      %v5849 = vmul.f32 %v5434, 1.442695
      %v5850 = vpow.pop %v5849
      %v5851 = vmul.f32 %v5435, 1.442695
      %v5852 = vpow.pop %v5851
      %v5853 = vmul.f32 %v5436, 1.442695
      %v5854 = vpow.pop %v5853
      %v5855 = vmul.f32 %v5437, 1.442695
      %v5856 = vpow.pop %v5855
      %v5857 = vmul.f32 %v5438, 1.442695
      %v5858 = vpow.pop %v5857
      %v5859 = vmul.f32 %v5439, 1.442695
      %v5860 = vpow.pop %v5859
      %v5861 = vmul.f32 %v5440, 1.442695
      %v5862 = vpow.pop %v5861
      %v5863 = vmul.f32 %v5441, 1.442695
      %v5864 = vpow.pop %v5863
      %v5865 = vmul.f32 %v5442, 1.442695
      %v5866 = vpow.pop %v5865
      %v5867 = vmul.f32 %v5443, 1.442695
      %v5868 = vpow.pop %v5867
      %v5869 = vmul.f32 %v5444, 1.442695
      %v5870 = vpow.pop %v5869
      %v5871 = vmul.f32 %v5445, 1.442695
      %v5872 = vpow.pop %v5871
      %v5873 = vmul.f32 %v5446, 1.442695
      %v5874 = vpow.pop %v5873
      %v5875 = vmul.f32 %v5447, 1.442695
      %v5876 = vpow.pop %v5875
      %v5877 = vmul.f32 %v5448, 1.442695
      %v5878 = vpow.pop %v5877
      %v5879 = vmul.f32 %v5449, 1.442695
      %v5880 = vpow.pop %v5879
      %v5881 = vmul.f32 %v5450, 1.442695
      %v5882 = vpow.pop %v5881
      %v5883 = vmul.f32 %v5451, 1.442695
      %v5884 = vpow.pop %v5883
      %v5885 = vmul.f32 %v5452, 1.442695
      %v5886 = vpow.pop %v5885
      %v5887 = vmul.f32 %v5453, 1.442695
      %v5888 = vpow.pop %v5887
      %v5889 = vmul.f32 %v5454, 1.442695
      %v5890 = vpow.pop %v5889
      %v5891 = vmul.f32 %v5455, 1.442695
      %v5892 = vpow.pop %v5891
      %v5893 = vmul.f32 %v5456, 1.442695
      %v5894 = vpow.pop %v5893
      %v5895 = vmul.f32 %v5457, 1.442695
      %v5896 = vpow.pop %v5895
      %v5897 = vmul.f32 %v5458, 1.442695
      %v5898 = vpow.pop %v5897
      %v5899 = vmul.f32 %v5459, 1.442695
      %v5900 = vpow.pop %v5899
      %v5901 = vmul.f32 %v5460, 1.442695
      %v5902 = vpow.pop %v5901
      %v5903 = vmul.f32 %v5461, 1.442695
      %v5904 = vpow.pop %v5903
      %v5905 = vmul.f32 %v5462, 1.442695
      %v5906 = vpow.pop %v5905
      %v5907 = vmul.f32 %v5463, 1.442695
      %v5908 = vpow.pop %v5907
      %v5909 = vmul.f32 %v5464, 1.442695
      %v5910 = vpow.pop %v5909
      %v5911 = vmul.f32 %v5465, 1.442695
      %v5912 = vpow.pop %v5911
      %v5913 = vmul.f32 %v5466, 1.442695
      %v5914 = vpow.pop %v5913
      %v5915 = vmul.f32 %v5467, 1.442695
      %v5916 = vpow.pop %v5915
      %v5917 = vmul.f32 %v5468, 1.442695
      %v5918 = vpow.pop %v5917
      %v5919 = vmul.f32 %v5469, 1.442695
      %v5920 = vpow.pop %v5919
      %v5921 = vmul.f32 %v5470, 1.442695
      %v5922 = vpow.pop %v5921
      %v5923 = vmul.f32 %v5471, 1.442695
      %v5924 = vpow.pop %v5923
      %v5925 = vmul.f32 %v5472, 1.442695
      %v5926 = vpow.pop %v5925
      %v5927 = vmul.f32 %v5473, 1.442695
      %v5928 = vpow.pop %v5927
      %v5929 = vmul.f32 %v5474, 1.442695
      %v5930 = vpow.pop %v5929
      %v5931 = vmul.f32 %v5475, 1.442695
      %v5932 = vpow.pop %v5931
      %v5933 = vmul.f32 %v5476, 1.442695
      %v5934 = vpow.pop %v5933
      %v5935 = vmul.f32 %v5477, 1.442695
      %v5936 = vpow.pop %v5935
      %v5937 = vmul.f32 %v5478, 1.442695
      %v5938 = vpow.pop %v5937
      %v5939 = vmul.f32 %v5479, 1.442695
      %v5940 = vpow.pop %v5939
      %v5941 = vmul.f32 %v5480, 1.442695
      %v5942 = vpow.pop %v5941
      %v5943 = vmul.f32 %v5481, 1.442695
      %v5944 = vpow.pop %v5943
      %v5945 = vmul.f32 %v5482, 1.442695
      %v5946 = vpow.pop %v5945
      %v5947 = vmul.f32 %v5483, 1.442695
      %v5948 = vpow.pop %v5947
      %v5949 = vmul.f32 %v5484, 1.442695
      %v5950 = vpow.pop %v5949
      %v5951 = vmul.f32 %v5485, 1.442695
      %v5952 = vpow.pop %v5951
      %v5953 = vmul.f32 %v5486, 1.442695
      %v5954 = vpow.pop %v5953
      %v5955 = vmul.f32 %v5487, 1.442695
      %v5956 = vpow.pop %v5955
      %v5957 = vmul.f32 %v5488, 1.442695
      %v5958 = vpow.pop %v5957
      %v5959 = vmul.f32 %v5489, 1.442695
      %v5960 = vpow.pop %v5959
      %v5961 = vmul.f32 %v5490, 1.442695
      %v5962 = vpow.pop %v5961
      %v5963 = vmul.f32 %v5491, 1.442695
      %v5964 = vpow.pop %v5963
      %v5965 = vmul.f32 %v5492, 1.442695
      %v5966 = vpow.pop %v5965
      %v5967 = vmul.f32 %v5493, 1.442695
      %v5968 = vpow.pop %v5967
      %v5969 = vmul.f32 %v5494, 1.442695
      %v5970 = vpow.pop %v5969
      %v5971 = vmul.f32 %v5495, 1.442695
      %v5972 = vpow.pop %v5971
      %v5973 = vmul.f32 %v5496, 1.442695
      %v5974 = vpow.pop %v5973
      %v5975 = vmul.f32 %v5497, 1.442695
      %v5976 = vpow.pop %v5975
      %v5977 = vmul.f32 %v5498, 1.442695
      %v5978 = vpow.pop %v5977
      %v5979 = vmul.f32 %v5499, 1.442695
      %v5980 = vpow.pop %v5979
      %v5981 = vmul.f32 %v5500, 1.442695
      %v5982 = vpow.pop %v5981
      %v5983 = vmul.f32 %v5501, 1.442695
      %v5984 = vpow.pop %v5983
      %v5985 = vmul.f32 %v5502, 1.442695
      %v5986 = vpow.pop %v5985
      %v5987 = vmul.f32 %v5503, 1.442695
      %v5988 = vpow.pop %v5987
      %v5989 = vmul.f32 %v5504, 1.442695
      %v5990 = vpow.pop %v5989
      %v5991 = vmul.f32 %v5505, 1.442695
      %v5992 = vpow.pop %v5991
      %v5993 = vmul.f32 %v5506, 1.442695
      %v5994 = vpow.pop %v5993
      %v5995 = vmul.f32 %v5507, 1.442695
      %v5996 = vpow.pop %v5995
      %v5997 = vmul.f32 %v5508, 1.442695
      %v5998 = vpow.pop %v5997
      %v5999 = vmul.f32 %v5509, 1.442695
      %v6000 = vpow.pop %v5999
      %v6001 = vmul.f32 %v5510, 1.442695
      %v6002 = vpow.pop %v6001
      %v6003 = vmul.f32 %v5511, 1.442695
      %v6004 = vpow.pop %v6003
      %v6005 = vmul.f32 %v5512, 1.442695
      %v6006 = vpow.pop %v6005
      %v6007 = vmul.f32 %v5513, 1.442695
      %v6008 = vpow.pop %v6007
      %v6009 = vmul.f32 %v5514, 1.442695
      %v6010 = vpow.pop %v6009
      %v6011 = vmul.f32 %v5515, 1.442695
      %v6012 = vpow.pop %v6011
      %v6013 = vmul.f32 %v5516, 1.442695
      %v6014 = vpow.pop %v6013
      %v6015 = vmul.f32 %v5517, 1.442695
      %v6016 = vpow.pop %v6015
      %v6017 = vmul.f32 %v5518, 1.442695
      %v6018 = vpow.pop %v6017
      %v6019 = vmul.f32 %v5519, 1.442695
      %v6020 = vpow.pop %v6019
      %v6021 = vmul.f32 %v5520, 1.442695
      %v6022 = vpow.pop %v6021
      %v6023 = vmul.f32 %v5521, 1.442695
      %v6024 = vpow.pop %v6023
      %v6025 = vmul.f32 %v5522, 1.442695
      %v6026 = vpow.pop %v6025
      %v6027 = vmul.f32 %v5523, 1.442695
      %v6028 = vpow.pop %v6027
      %v6029 = vmul.f32 %v5524, 1.442695
      %v6030 = vpow.pop %v6029
      %v6031 = vmul.f32 %v5525, 1.442695
      %v6032 = vpow.pop %v6031
      %v6033 = vmul.f32 %v5526, 1.442695
      %v6034 = vpow.pop %v6033
      %v6035 = vmul.f32 %v5527, 1.442695
      %v6036 = vpow.pop %v6035
      %v6037 = vmul.f32 %v5528, 1.442695
      %v6038 = vpow.pop %v6037
      %v6039 = vmul.f32 %v5529, 1.442695
      %v6040 = vpow.pop %v6039
      %v6041 = vmul.f32 %v5530, 1.442695
      %v6042 = vpow.pop %v6041
      %v6043 = vmul.f32 %v5531, 1.442695
      %v6044 = vpow.pop %v6043
      %v6045 = vmul.f32 %v5532, 1.442695
      %v6046 = vpow.pop %v6045
      %v6047 = vmul.f32 %v5533, 1.442695
      %v6048 = vpow.pop %v6047
      %v6049 = vmul.f32 %v5534, 1.442695
      %v6050 = vpow.pop %v6049
      %v6051 = vmul.f32 %v5535, 1.442695
      %v6052 = vpow.pop %v6051
      %v6053 = vmul.f32 %v5536, 1.442695
      %v6054 = vpow.pop %v6053
      %v6055 = vmul.f32 %v5537, 1.442695
      %v6056 = vpow.pop %v6055
      %v6057 = vmul.f32 %v5538, 1.442695
      %v6058 = vpow.pop %v6057
      %v6059 = vmul.f32 %v5539, 1.442695
      %v6060 = vpow.pop %v6059
      %v6061 = vmul.f32 %v5540, 1.442695
      %v6062 = vpow.pop %v6061
      %v6063 = vmul.f32 %v5541, 1.442695
      %v6064 = vpow.pop %v6063
      %v6065 = vmul.f32 %v5542, 1.442695
      %v6066 = vpow.pop %v6065
      %v6067 = vmul.f32 %v5543, 1.442695
      %v6068 = vpow.pop %v6067
      %v6069 = vmul.f32 %v5544, 1.442695
      %v6070 = vpow.pop %v6069
      %v6071 = vmul.f32 %v5545, 1.442695
      %v6072 = vpow.pop %v6071
      %v6073 = vmul.f32 %v5546, 1.442695
      %v6074 = vpow.pop %v6073
      %v6075 = vmul.f32 %v5547, 1.442695
      %v6076 = vpow.pop %v6075
      %v6077 = vmul.f32 %v5548, 1.442695
      %v6078 = vpow.pop %v6077
      %v6079 = vmul.f32 %v5549, 1.442695
      %v6080 = vpow.pop %v6079
      %v6081 = vmul.f32 %v5550, 1.442695
      %v6082 = vpow.pop %v6081
      %v6083 = vmul.f32 %v5551, 1.442695
      %v6084 = vpow.pop %v6083
      %v6085 = vmul.f32 %v5552, 1.442695
      %v6086 = vpow.pop %v6085
      %v6087 = vmul.f32 %v5553, 1.442695
      %v6088 = vpow.pop %v6087
      %v6089 = vmul.f32 %v5554, 1.442695
      %v6090 = vpow.pop %v6089
      %v6091 = vmul.f32 %v5555, 1.442695
      %v6092 = vpow.pop %v6091
      %v6093 = vmul.f32 %v5556, 1.442695
      %v6094 = vpow.pop %v6093
      %v6095 = vmul.f32 %v5557, 1.442695
      %v6096 = vpow.pop %v6095
      %v6097 = vmul.f32 %v5558, 1.442695
      %v6098 = vpow.pop %v6097
      %v6099 = vmul.f32 %v5559, 1.442695
      %v6100 = vpow.pop %v6099
      %v6101 = vmul.f32 %v5560, 1.442695
      %v6102 = vpow.pop %v6101
      %v6103 = vmul.f32 %v5561, 1.442695
      %v6104 = vpow.pop %v6103
      %v6105 = vmul.f32 %v5562, 1.442695
      %v6106 = vpow.pop %v6105
      %v6107 = vmul.f32 %v5563, 1.442695
      %v6108 = vpow.pop %v6107
      %v6109 = vmul.f32 %v5564, 1.442695
      %v6110 = vpow.pop %v6109
      %v6111 = vmul.f32 %v5565, 1.442695
      %v6112 = vpow.pop %v6111
      %v6113 = vmul.f32 %v5566, 1.442695
      %v6114 = vpow.pop %v6113
      %v6115 = vmul.f32 %v5567, 1.442695
      %v6116 = vpow.pop %v6115
      %v6117 = vmul.f32 %v5568, 1.442695
      %v6118 = vpow.pop %v6117
      %v6119 = vmul.f32 %v5569, 1.442695
      %v6120 = vpow.pop %v6119
      %v6121 = vmul.f32 %v5570, 1.442695
      %v6122 = vpow.pop %v6121
      %v6123 = vmul.f32 %v5571, 1.442695
      %v6124 = vpow.pop %v6123
      %v6125 = vmul.f32 %v5572, 1.442695
      %v6126 = vpow.pop %v6125
      %v6127 = vmul.f32 %v5573, 1.442695
      %v6128 = vpow.pop %v6127
      %v6129 = vmul.f32 %v5574, 1.442695
      %v6130 = vpow.pop %v6129
      %v6131 = vmul.f32 %v5575, 1.442695
      %v6132 = vpow.pop %v6131
      %v6133 = vmul.f32 %v5576, 1.442695
      %v6134 = vpow.pop %v6133
      %v6135 = vmul.f32 %v5577, 1.442695
      %v6136 = vpow.pop %v6135
      %v6137 = vmul.f32 %v5578, 1.442695
      %v6138 = vpow.pop %v6137
      %v6139 = vmul.f32 %v5579, 1.442695
      %v6140 = vpow.pop %v6139
      %v6141 = vmul.f32 %v5580, 1.442695
      %v6142 = vpow.pop %v6141
      %v6143 = vmul.f32 %v5581, 1.442695
      %v6144 = vpow.pop %v6143
      %v6145 = vmul.f32 %v5582, 1.442695
      %v6146 = vpow.pop %v6145
      %v6147 = vmul.f32 %v5583, 1.442695
      %v6148 = vpow.pop %v6147
      %v6149 = vmul.f32 %v5584, 1.442695
      %v6150 = vpow.pop %v6149
      %v6151 = vmul.f32 %v5585, 1.442695
      %v6152 = vpow.pop %v6151
      %v6153 = vmul.f32 %v5586, 1.442695
      %v6154 = vpow.pop %v6153
      %v6155 = vmul.f32 %v5587, 1.442695
      %v6156 = vpow.pop %v6155
      %v6157 = vmul.f32 %v5588, 1.442695
      %v6158 = vpow.pop %v6157
      %v6159 = vmul.f32 %v5589, 1.442695
      %v6160 = vpow.pop %v6159
      %v6161 = vmul.f32 %v5590, 1.442695
      %v6162 = vpow.pop %v6161
      %v6163 = vmul.f32 %v5591, 1.442695
      %v6164 = vpow.pop %v6163
      %v6165 = vmul.f32 %v5592, 1.442695
      %v6166 = vpow.pop %v6165
      %v6167 = vmul.f32 %v5593, 1.442695
      %v6168 = vpow.pop %v6167
      %v6169 = vmul.f32 %v5594, 1.442695
      %v6170 = vpow.pop %v6169
      %v6171 = vmul.f32 %v5595, 1.442695
      %v6172 = vpow.pop %v6171
      %v6173 = vmul.f32 %v5596, 1.442695
      %v6174 = vpow.pop %v6173
      %v6175 = vmul.f32 %v5597, 1.442695
      %v6176 = vpow.pop %v6175
      %v6177 = vmul.f32 %v5598, 1.442695
      %v6178 = vpow.pop %v6177
      %v6179 = vmul.f32 %v5599, 1.442695
      %v6180 = vpow.pop %v6179
      %v6181 = vmul.f32 %v5600, 1.442695
      %v6182 = vpow.pop %v6181
      %v6183 = vmul.f32 %v5601, 1.442695
      %v6184 = vpow.pop %v6183
      %v6185 = vmul.f32 %v5602, 1.442695
      %v6186 = vpow.pop %v6185
      %v6187 = vmul.f32 %v5603, 1.442695
      %v6188 = vpow.pop %v6187
      %v6189 = vmul.f32 %v5604, 1.442695
      %v6190 = vpow.pop %v6189
      %v6191 = vmul.f32 %v5605, 1.442695
      %v6192 = vpow.pop %v6191
      %v6193 = vmul.f32 %v5606, 1.442695
      %v6194 = vpow.pop %v6193
      %v6195 = vmul.f32 %v5607, 1.442695
      %v6196 = vpow.pop %v6195
      %v6197 = vmul.f32 %v5608, 1.442695
      %v6198 = vpow.pop %v6197
      %v6199 = vmul.f32 %v5609, 1.442695
      %v6200 = vpow.pop %v6199
      %v6201 = vmul.f32 %v5610, 1.442695
      %v6202 = vpow.pop %v6201
      %v6203 = vadd.f32 %v5612, 1.0
      %v6204 = vadd.f32 %v5614, 1.0
      %v6205 = vadd.f32 %v5616, 1.0
      %v6206 = vadd.f32 %v5618, 1.0
      %v6207 = vadd.f32 %v5620, 1.0
      %v6208 = vadd.f32 %v5622, 1.0
      %v6209 = vadd.f32 %v5624, 1.0
      %v6210 = vadd.f32 %v5626, 1.0
      %v6211 = vadd.f32 %v5628, 1.0
      %v6212 = vadd.f32 %v5630, 1.0
      %v6213 = vadd.f32 %v5632, 1.0
      %v6214 = vadd.f32 %v5634, 1.0
      %v6215 = vadd.f32 %v5636, 1.0
      %v6216 = vadd.f32 %v5638, 1.0
      %v6217 = vadd.f32 %v5640, 1.0
      %v6218 = vadd.f32 %v5642, 1.0
      %v6219 = vadd.f32 %v5644, 1.0
      %v6220 = vadd.f32 %v5646, 1.0
      %v6221 = vadd.f32 %v5648, 1.0
      %v6222 = vadd.f32 %v5650, 1.0
      %v6223 = vadd.f32 %v5652, 1.0
      %v6224 = vadd.f32 %v5654, 1.0
      %v6225 = vadd.f32 %v5656, 1.0
      %v6226 = vadd.f32 %v5658, 1.0
      %v6227 = vadd.f32 %v5660, 1.0
      %v6228 = vadd.f32 %v5662, 1.0
      %v6229 = vadd.f32 %v5664, 1.0
      %v6230 = vadd.f32 %v5666, 1.0
      %v6231 = vadd.f32 %v5668, 1.0
      %v6232 = vadd.f32 %v5670, 1.0
      %v6233 = vadd.f32 %v5672, 1.0
      %v6234 = vadd.f32 %v5674, 1.0
      %v6235 = vadd.f32 %v5676, 1.0
      %v6236 = vadd.f32 %v5678, 1.0
      %v6237 = vadd.f32 %v5680, 1.0
      %v6238 = vadd.f32 %v5682, 1.0
      %v6239 = vadd.f32 %v5684, 1.0
      %v6240 = vadd.f32 %v5686, 1.0
      %v6241 = vadd.f32 %v5688, 1.0
      %v6242 = vadd.f32 %v5690, 1.0
      %v6243 = vadd.f32 %v5692, 1.0
      %v6244 = vadd.f32 %v5694, 1.0
      %v6245 = vadd.f32 %v5696, 1.0
      %v6246 = vadd.f32 %v5698, 1.0
      %v6247 = vadd.f32 %v5700, 1.0
      %v6248 = vadd.f32 %v5702, 1.0
      %v6249 = vadd.f32 %v5704, 1.0
      %v6250 = vadd.f32 %v5706, 1.0
      %v6251 = vadd.f32 %v5708, 1.0
      %v6252 = vadd.f32 %v5710, 1.0
      %v6253 = vadd.f32 %v5712, 1.0
      %v6254 = vadd.f32 %v5714, 1.0
      %v6255 = vadd.f32 %v5716, 1.0
      %v6256 = vadd.f32 %v5718, 1.0
      %v6257 = vadd.f32 %v5720, 1.0
      %v6258 = vadd.f32 %v5722, 1.0
      %v6259 = vadd.f32 %v5724, 1.0
      %v6260 = vadd.f32 %v5726, 1.0
      %v6261 = vadd.f32 %v5728, 1.0
      %v6262 = vadd.f32 %v5730, 1.0
      %v6263 = vadd.f32 %v5732, 1.0
      %v6264 = vadd.f32 %v5734, 1.0
      %v6265 = vadd.f32 %v5736, 1.0
      %v6266 = vadd.f32 %v5738, 1.0
      %v6267 = vadd.f32 %v5740, 1.0
      %v6268 = vadd.f32 %v5742, 1.0
      %v6269 = vadd.f32 %v5744, 1.0
      %v6270 = vadd.f32 %v5746, 1.0
      %v6271 = vadd.f32 %v5748, 1.0
      %v6272 = vadd.f32 %v5750, 1.0
      %v6273 = vadd.f32 %v5752, 1.0
      %v6274 = vadd.f32 %v5754, 1.0
      %v6275 = vadd.f32 %v5756, 1.0
      %v6276 = vadd.f32 %v5758, 1.0
      %v6277 = vadd.f32 %v5760, 1.0
      %v6278 = vadd.f32 %v5762, 1.0
      %v6279 = vadd.f32 %v5764, 1.0
      %v6280 = vadd.f32 %v5766, 1.0
      %v6281 = vadd.f32 %v5768, 1.0
      %v6282 = vadd.f32 %v5770, 1.0
      %v6283 = vadd.f32 %v5772, 1.0
      %v6284 = vadd.f32 %v5774, 1.0
      %v6285 = vadd.f32 %v5776, 1.0
      %v6286 = vadd.f32 %v5778, 1.0
      %v6287 = vadd.f32 %v5780, 1.0
      %v6288 = vadd.f32 %v5782, 1.0
      %v6289 = vadd.f32 %v5784, 1.0
      %v6290 = vadd.f32 %v5786, 1.0
      %v6291 = vadd.f32 %v5788, 1.0
      %v6292 = vadd.f32 %v5790, 1.0
      %v6293 = vadd.f32 %v5792, 1.0
      %v6294 = vadd.f32 %v5794, 1.0
      %v6295 = vadd.f32 %v5796, 1.0
      %v6296 = vadd.f32 %v5798, 1.0
      %v6297 = vadd.f32 %v5800, 1.0
      %v6298 = vadd.f32 %v5802, 1.0
      %v6299 = vadd.f32 %v5804, 1.0
      %v6300 = vadd.f32 %v5806, 1.0
      %v6301 = vadd.f32 %v5808, 1.0
      %v6302 = vadd.f32 %v5810, 1.0
      %v6303 = vadd.f32 %v5812, 1.0
      %v6304 = vadd.f32 %v5814, 1.0
      %v6305 = vadd.f32 %v5816, 1.0
      %v6306 = vadd.f32 %v5818, 1.0
      %v6307 = vadd.f32 %v5820, 1.0
      %v6308 = vadd.f32 %v5822, 1.0
      %v6309 = vadd.f32 %v5824, 1.0
      %v6310 = vadd.f32 %v5826, 1.0
      %v6311 = vadd.f32 %v5828, 1.0
      %v6312 = vadd.f32 %v5830, 1.0
      %v6313 = vadd.f32 %v5832, 1.0
      %v6314 = vadd.f32 %v5834, 1.0
      %v6315 = vadd.f32 %v5836, 1.0
      %v6316 = vadd.f32 %v5838, 1.0
      %v6317 = vadd.f32 %v5840, 1.0
      %v6318 = vadd.f32 %v5842, 1.0
      %v6319 = vadd.f32 %v5844, 1.0
      %v6320 = vadd.f32 %v5846, 1.0
      %v6321 = vadd.f32 %v5848, 1.0
      %v6322 = vadd.f32 %v5850, 1.0
      %v6323 = vadd.f32 %v5852, 1.0
      %v6324 = vadd.f32 %v5854, 1.0
      %v6325 = vadd.f32 %v5856, 1.0
      %v6326 = vadd.f32 %v5858, 1.0
      %v6327 = vadd.f32 %v5860, 1.0
      %v6328 = vadd.f32 %v5862, 1.0
      %v6329 = vadd.f32 %v5864, 1.0
      %v6330 = vadd.f32 %v5866, 1.0
      %v6331 = vadd.f32 %v5868, 1.0
      %v6332 = vadd.f32 %v5870, 1.0
      %v6333 = vadd.f32 %v5872, 1.0
      %v6334 = vadd.f32 %v5874, 1.0
      %v6335 = vadd.f32 %v5876, 1.0
      %v6336 = vadd.f32 %v5878, 1.0
      %v6337 = vadd.f32 %v5880, 1.0
      %v6338 = vadd.f32 %v5882, 1.0
      %v6339 = vadd.f32 %v5884, 1.0
      %v6340 = vadd.f32 %v5886, 1.0
      %v6341 = vadd.f32 %v5888, 1.0
      %v6342 = vadd.f32 %v5890, 1.0
      %v6343 = vadd.f32 %v5892, 1.0
      %v6344 = vadd.f32 %v5894, 1.0
      %v6345 = vadd.f32 %v5896, 1.0
      %v6346 = vadd.f32 %v5898, 1.0
      %v6347 = vadd.f32 %v5900, 1.0
      %v6348 = vadd.f32 %v5902, 1.0
      %v6349 = vadd.f32 %v5904, 1.0
      %v6350 = vadd.f32 %v5906, 1.0
      %v6351 = vadd.f32 %v5908, 1.0
      %v6352 = vadd.f32 %v5910, 1.0
      %v6353 = vadd.f32 %v5912, 1.0
      %v6354 = vadd.f32 %v5914, 1.0
      %v6355 = vadd.f32 %v5916, 1.0
      %v6356 = vadd.f32 %v5918, 1.0
      %v6357 = vadd.f32 %v5920, 1.0
      %v6358 = vadd.f32 %v5922, 1.0
      %v6359 = vadd.f32 %v5924, 1.0
      %v6360 = vadd.f32 %v5926, 1.0
      %v6361 = vadd.f32 %v5928, 1.0
      %v6362 = vadd.f32 %v5930, 1.0
      %v6363 = vadd.f32 %v5932, 1.0
      %v6364 = vadd.f32 %v5934, 1.0
      %v6365 = vadd.f32 %v5936, 1.0
      %v6366 = vadd.f32 %v5938, 1.0
      %v6367 = vadd.f32 %v5940, 1.0
      %v6368 = vadd.f32 %v5942, 1.0
      %v6369 = vadd.f32 %v5944, 1.0
      %v6370 = vadd.f32 %v5946, 1.0
      %v6371 = vadd.f32 %v5948, 1.0
      %v6372 = vadd.f32 %v5950, 1.0
      %v6373 = vadd.f32 %v5952, 1.0
      %v6374 = vadd.f32 %v5954, 1.0
      %v6375 = vadd.f32 %v5956, 1.0
      %v6376 = vadd.f32 %v5958, 1.0
      %v6377 = vadd.f32 %v5960, 1.0
      %v6378 = vadd.f32 %v5962, 1.0
      %v6379 = vadd.f32 %v5964, 1.0
      %v6380 = vadd.f32 %v5966, 1.0
      %v6381 = vadd.f32 %v5968, 1.0
      %v6382 = vadd.f32 %v5970, 1.0
      %v6383 = vadd.f32 %v5972, 1.0
      %v6384 = vadd.f32 %v5974, 1.0
      %v6385 = vadd.f32 %v5976, 1.0
      %v6386 = vadd.f32 %v5978, 1.0
      %v6387 = vadd.f32 %v5980, 1.0
      %v6388 = vadd.f32 %v5982, 1.0
      %v6389 = vadd.f32 %v5984, 1.0
      %v6390 = vadd.f32 %v5986, 1.0
      %v6391 = vadd.f32 %v5988, 1.0
      %v6392 = vadd.f32 %v5990, 1.0
      %v6393 = vadd.f32 %v5992, 1.0
      %v6394 = vadd.f32 %v5994, 1.0
      %v6395 = vadd.f32 %v5996, 1.0
      %v6396 = vadd.f32 %v5998, 1.0
      %v6397 = vadd.f32 %v6000, 1.0
      %v6398 = vadd.f32 %v6002, 1.0
      %v6399 = vadd.f32 %v6004, 1.0
      %v6400 = vadd.f32 %v6006, 1.0
      %v6401 = vadd.f32 %v6008, 1.0
      %v6402 = vadd.f32 %v6010, 1.0
      %v6403 = vadd.f32 %v6012, 1.0
      %v6404 = vadd.f32 %v6014, 1.0
      %v6405 = vadd.f32 %v6016, 1.0
      %v6406 = vadd.f32 %v6018, 1.0
      %v6407 = vadd.f32 %v6020, 1.0
      %v6408 = vadd.f32 %v6022, 1.0
      %v6409 = vadd.f32 %v6024, 1.0
      %v6410 = vadd.f32 %v6026, 1.0
      %v6411 = vadd.f32 %v6028, 1.0
      %v6412 = vadd.f32 %v6030, 1.0
      %v6413 = vadd.f32 %v6032, 1.0
      %v6414 = vadd.f32 %v6034, 1.0
      %v6415 = vadd.f32 %v6036, 1.0
      %v6416 = vadd.f32 %v6038, 1.0
      %v6417 = vadd.f32 %v6040, 1.0
      %v6418 = vadd.f32 %v6042, 1.0
      %v6419 = vadd.f32 %v6044, 1.0
      %v6420 = vadd.f32 %v6046, 1.0
      %v6421 = vadd.f32 %v6048, 1.0
      %v6422 = vadd.f32 %v6050, 1.0
      %v6423 = vadd.f32 %v6052, 1.0
      %v6424 = vadd.f32 %v6054, 1.0
      %v6425 = vadd.f32 %v6056, 1.0
      %v6426 = vadd.f32 %v6058, 1.0
      %v6427 = vadd.f32 %v6060, 1.0
      %v6428 = vadd.f32 %v6062, 1.0
      %v6429 = vadd.f32 %v6064, 1.0
      %v6430 = vadd.f32 %v6066, 1.0
      %v6431 = vadd.f32 %v6068, 1.0
      %v6432 = vadd.f32 %v6070, 1.0
      %v6433 = vadd.f32 %v6072, 1.0
      %v6434 = vadd.f32 %v6074, 1.0
      %v6435 = vadd.f32 %v6076, 1.0
      %v6436 = vadd.f32 %v6078, 1.0
      %v6437 = vadd.f32 %v6080, 1.0
      %v6438 = vadd.f32 %v6082, 1.0
      %v6439 = vadd.f32 %v6084, 1.0
      %v6440 = vadd.f32 %v6086, 1.0
      %v6441 = vadd.f32 %v6088, 1.0
      %v6442 = vadd.f32 %v6090, 1.0
      %v6443 = vadd.f32 %v6092, 1.0
      %v6444 = vadd.f32 %v6094, 1.0
      %v6445 = vadd.f32 %v6096, 1.0
      %v6446 = vadd.f32 %v6098, 1.0
      %v6447 = vadd.f32 %v6100, 1.0
      %v6448 = vadd.f32 %v6102, 1.0
      %v6449 = vadd.f32 %v6104, 1.0
      %v6450 = vadd.f32 %v6106, 1.0
      %v6451 = vadd.f32 %v6108, 1.0
      %v6452 = vadd.f32 %v6110, 1.0
      %v6453 = vadd.f32 %v6112, 1.0
      %v6454 = vadd.f32 %v6114, 1.0
      %v6455 = vadd.f32 %v6116, 1.0
      %v6456 = vadd.f32 %v6118, 1.0
      %v6457 = vadd.f32 %v6120, 1.0
      %v6458 = vadd.f32 %v6122, 1.0
      %v6459 = vadd.f32 %v6124, 1.0
      %v6460 = vadd.f32 %v6126, 1.0
      %v6461 = vadd.f32 %v6128, 1.0
      %v6462 = vadd.f32 %v6130, 1.0
      %v6463 = vadd.f32 %v6132, 1.0
      %v6464 = vadd.f32 %v6134, 1.0
      %v6465 = vadd.f32 %v6136, 1.0
      %v6466 = vadd.f32 %v6138, 1.0
      %v6467 = vadd.f32 %v6140, 1.0
      %v6468 = vadd.f32 %v6142, 1.0
      %v6469 = vadd.f32 %v6144, 1.0
      %v6470 = vadd.f32 %v6146, 1.0
      %v6471 = vadd.f32 %v6148, 1.0
      %v6472 = vadd.f32 %v6150, 1.0
      %v6473 = vadd.f32 %v6152, 1.0
      %v6474 = vadd.f32 %v6154, 1.0
      %v6475 = vadd.f32 %v6156, 1.0
      %v6476 = vadd.f32 %v6158, 1.0
      %v6477 = vadd.f32 %v6160, 1.0
      %v6478 = vadd.f32 %v6162, 1.0
      %v6479 = vadd.f32 %v6164, 1.0
      %v6480 = vadd.f32 %v6166, 1.0
      %v6481 = vadd.f32 %v6168, 1.0
      %v6482 = vadd.f32 %v6170, 1.0
      %v6483 = vadd.f32 %v6172, 1.0
      %v6484 = vadd.f32 %v6174, 1.0
      %v6485 = vadd.f32 %v6176, 1.0
      %v6486 = vadd.f32 %v6178, 1.0
      %v6487 = vadd.f32 %v6180, 1.0
      %v6488 = vadd.f32 %v6182, 1.0
      %v6489 = vadd.f32 %v6184, 1.0
      %v6490 = vadd.f32 %v6186, 1.0
      %v6491 = vadd.f32 %v6188, 1.0
      %v6492 = vadd.f32 %v6190, 1.0
      %v6493 = vadd.f32 %v6192, 1.0
      %v6494 = vadd.f32 %v6194, 1.0
      %v6495 = vadd.f32 %v6196, 1.0
      %v6496 = vadd.f32 %v6198, 1.0
      %v6497 = vadd.f32 %v6200, 1.0
      %v6498 = vadd.f32 %v6202, 1.0
      %v6499 = vrcp.pop %v6203
      %v6500 = vmul.f32 %v6203, %v6499
      %v6501 = vsub.f32 1.0, %v6500
      %v6502 = vmul.f32 %v6499, %v6501
      %v6503 = vadd.f32 %v6499, %v6502
      %vm6504 = vweird.f32 %v6203
      %vm6505 = vweird.f32 %v6499
      %vm6506 = vmor %vm6504, %vm6505
      %v6507 = vsel %vm6506, %v6499, %v6503
      %v6508 = vand.u32 2147483647, %v6203
      %vm6509 = vcmp.eq.f32.partialorder %v6508, 8.507059e+37
      %v6510 = vand.u32 %v6203, 2147483648
      %v6511 = vor.u32 1.1754944e-38, %v6510
      %v6512 = vsel %vm6509, %v6511, %v6507
      %v6513 = vmul.f32 1.0, %v6512
      %v6514 = vrcp.pop %v6204
      %v6515 = vmul.f32 %v6204, %v6514
      %v6516 = vsub.f32 1.0, %v6515
      %v6517 = vmul.f32 %v6514, %v6516
      %v6518 = vadd.f32 %v6514, %v6517
      %vm6519 = vweird.f32 %v6204
      %vm6520 = vweird.f32 %v6514
      %vm6521 = vmor %vm6519, %vm6520
      %v6522 = vsel %vm6521, %v6514, %v6518
      %v6523 = vand.u32 2147483647, %v6204
      %vm6524 = vcmp.eq.f32.partialorder %v6523, 8.507059e+37
      %v6525 = vand.u32 %v6204, 2147483648
      %v6526 = vor.u32 1.1754944e-38, %v6525
      %v6527 = vsel %vm6524, %v6526, %v6522
      %v6528 = vmul.f32 1.0, %v6527
      %v6529 = vrcp.pop %v6205
      %v6530 = vmul.f32 %v6205, %v6529
      %v6531 = vsub.f32 1.0, %v6530
      %v6532 = vmul.f32 %v6529, %v6531
      %v6533 = vadd.f32 %v6529, %v6532
      %vm6534 = vweird.f32 %v6205
      %vm6535 = vweird.f32 %v6529
      %vm6536 = vmor %vm6534, %vm6535
      %v6537 = vsel %vm6536, %v6529, %v6533
      %v6538 = vand.u32 2147483647, %v6205
      %vm6539 = vcmp.eq.f32.partialorder %v6538, 8.507059e+37
      %v6540 = vand.u32 %v6205, 2147483648
      %v6541 = vor.u32 1.1754944e-38, %v6540
      %v6542 = vsel %vm6539, %v6541, %v6537
      %v6543 = vmul.f32 1.0, %v6542
      %v6544 = vrcp.pop %v6206
      %v6545 = vmul.f32 %v6206, %v6544
      %v6546 = vsub.f32 1.0, %v6545
      %v6547 = vmul.f32 %v6544, %v6546
      %v6548 = vadd.f32 %v6544, %v6547
      %vm6549 = vweird.f32 %v6206
      %vm6550 = vweird.f32 %v6544
      %vm6551 = vmor %vm6549, %vm6550
      %v6552 = vsel %vm6551, %v6544, %v6548
      %v6553 = vand.u32 2147483647, %v6206
      %vm6554 = vcmp.eq.f32.partialorder %v6553, 8.507059e+37
      %v6555 = vand.u32 %v6206, 2147483648
      %v6556 = vor.u32 1.1754944e-38, %v6555
      %v6557 = vsel %vm6554, %v6556, %v6552
      %v6558 = vmul.f32 1.0, %v6557
      %v6559 = vrcp.pop %v6207
      %v6560 = vmul.f32 %v6207, %v6559
      %v6561 = vsub.f32 1.0, %v6560
      %v6562 = vmul.f32 %v6559, %v6561
      %v6563 = vadd.f32 %v6559, %v6562
      %vm6564 = vweird.f32 %v6207
      %vm6565 = vweird.f32 %v6559
      %vm6566 = vmor %vm6564, %vm6565
      %v6567 = vsel %vm6566, %v6559, %v6563
      %v6568 = vand.u32 2147483647, %v6207
      %vm6569 = vcmp.eq.f32.partialorder %v6568, 8.507059e+37
      %v6570 = vand.u32 %v6207, 2147483648
      %v6571 = vor.u32 1.1754944e-38, %v6570
      %v6572 = vsel %vm6569, %v6571, %v6567
      %v6573 = vmul.f32 1.0, %v6572
      %v6574 = vrcp.pop %v6208
      %v6575 = vmul.f32 %v6208, %v6574
      %v6576 = vsub.f32 1.0, %v6575
      %v6577 = vmul.f32 %v6574, %v6576
      %v6578 = vadd.f32 %v6574, %v6577
      %vm6579 = vweird.f32 %v6208
      %vm6580 = vweird.f32 %v6574
      %vm6581 = vmor %vm6579, %vm6580
      %v6582 = vsel %vm6581, %v6574, %v6578
      %v6583 = vand.u32 2147483647, %v6208
      %vm6584 = vcmp.eq.f32.partialorder %v6583, 8.507059e+37
      %v6585 = vand.u32 %v6208, 2147483648
      %v6586 = vor.u32 1.1754944e-38, %v6585
      %v6587 = vsel %vm6584, %v6586, %v6582
      %v6588 = vmul.f32 1.0, %v6587
      %v6589 = vrcp.pop %v6209
      %v6590 = vmul.f32 %v6209, %v6589
      %v6591 = vsub.f32 1.0, %v6590
      %v6592 = vmul.f32 %v6589, %v6591
      %v6593 = vadd.f32 %v6589, %v6592
      %vm6594 = vweird.f32 %v6209
      %vm6595 = vweird.f32 %v6589
      %vm6596 = vmor %vm6594, %vm6595
      %v6597 = vsel %vm6596, %v6589, %v6593
      %v6598 = vand.u32 2147483647, %v6209
      %vm6599 = vcmp.eq.f32.partialorder %v6598, 8.507059e+37
      %v6600 = vand.u32 %v6209, 2147483648
      %v6601 = vor.u32 1.1754944e-38, %v6600
      %v6602 = vsel %vm6599, %v6601, %v6597
      %v6603 = vmul.f32 1.0, %v6602
      %v6604 = vrcp.pop %v6210
      %v6605 = vmul.f32 %v6210, %v6604
      %v6606 = vsub.f32 1.0, %v6605
      %v6607 = vmul.f32 %v6604, %v6606
      %v6608 = vadd.f32 %v6604, %v6607
      %vm6609 = vweird.f32 %v6210
      %vm6610 = vweird.f32 %v6604
      %vm6611 = vmor %vm6609, %vm6610
      %v6612 = vsel %vm6611, %v6604, %v6608
      %v6613 = vand.u32 2147483647, %v6210
      %vm6614 = vcmp.eq.f32.partialorder %v6613, 8.507059e+37
      %v6615 = vand.u32 %v6210, 2147483648
      %v6616 = vor.u32 1.1754944e-38, %v6615
      %v6617 = vsel %vm6614, %v6616, %v6612
      %v6618 = vmul.f32 1.0, %v6617
      %v6619 = vrcp.pop %v6211
      %v6620 = vmul.f32 %v6211, %v6619
      %v6621 = vsub.f32 1.0, %v6620
      %v6622 = vmul.f32 %v6619, %v6621
      %v6623 = vadd.f32 %v6619, %v6622
      %vm6624 = vweird.f32 %v6211
      %vm6625 = vweird.f32 %v6619
      %vm6626 = vmor %vm6624, %vm6625
      %v6627 = vsel %vm6626, %v6619, %v6623
      %v6628 = vand.u32 2147483647, %v6211
      %vm6629 = vcmp.eq.f32.partialorder %v6628, 8.507059e+37
      %v6630 = vand.u32 %v6211, 2147483648
      %v6631 = vor.u32 1.1754944e-38, %v6630
      %v6632 = vsel %vm6629, %v6631, %v6627
      %v6633 = vmul.f32 1.0, %v6632
      %v6634 = vrcp.pop %v6212
      %v6635 = vmul.f32 %v6212, %v6634
      %v6636 = vsub.f32 1.0, %v6635
      %v6637 = vmul.f32 %v6634, %v6636
      %v6638 = vadd.f32 %v6634, %v6637
      %vm6639 = vweird.f32 %v6212
      %vm6640 = vweird.f32 %v6634
      %vm6641 = vmor %vm6639, %vm6640
      %v6642 = vsel %vm6641, %v6634, %v6638
      %v6643 = vand.u32 2147483647, %v6212
      %vm6644 = vcmp.eq.f32.partialorder %v6643, 8.507059e+37
      %v6645 = vand.u32 %v6212, 2147483648
      %v6646 = vor.u32 1.1754944e-38, %v6645
      %v6647 = vsel %vm6644, %v6646, %v6642
      %v6648 = vmul.f32 1.0, %v6647
      %v6649 = vrcp.pop %v6213
      %v6650 = vmul.f32 %v6213, %v6649
      %v6651 = vsub.f32 1.0, %v6650
      %v6652 = vmul.f32 %v6649, %v6651
      %v6653 = vadd.f32 %v6649, %v6652
      %vm6654 = vweird.f32 %v6213
      %vm6655 = vweird.f32 %v6649
      %vm6656 = vmor %vm6654, %vm6655
      %v6657 = vsel %vm6656, %v6649, %v6653
      %v6658 = vand.u32 2147483647, %v6213
      %vm6659 = vcmp.eq.f32.partialorder %v6658, 8.507059e+37
      %v6660 = vand.u32 %v6213, 2147483648
      %v6661 = vor.u32 1.1754944e-38, %v6660
      %v6662 = vsel %vm6659, %v6661, %v6657
      %v6663 = vmul.f32 1.0, %v6662
      %v6664 = vrcp.pop %v6214
      %v6665 = vmul.f32 %v6214, %v6664
      %v6666 = vsub.f32 1.0, %v6665
      %v6667 = vmul.f32 %v6664, %v6666
      %v6668 = vadd.f32 %v6664, %v6667
      %vm6669 = vweird.f32 %v6214
      %vm6670 = vweird.f32 %v6664
      %vm6671 = vmor %vm6669, %vm6670
      %v6672 = vsel %vm6671, %v6664, %v6668
      %v6673 = vand.u32 2147483647, %v6214
      %vm6674 = vcmp.eq.f32.partialorder %v6673, 8.507059e+37
      %v6675 = vand.u32 %v6214, 2147483648
      %v6676 = vor.u32 1.1754944e-38, %v6675
      %v6677 = vsel %vm6674, %v6676, %v6672
      %v6678 = vmul.f32 1.0, %v6677
      %v6679 = vrcp.pop %v6215
      %v6680 = vmul.f32 %v6215, %v6679
      %v6681 = vsub.f32 1.0, %v6680
      %v6682 = vmul.f32 %v6679, %v6681
      %v6683 = vadd.f32 %v6679, %v6682
      %vm6684 = vweird.f32 %v6215
      %vm6685 = vweird.f32 %v6679
      %vm6686 = vmor %vm6684, %vm6685
      %v6687 = vsel %vm6686, %v6679, %v6683
      %v6688 = vand.u32 2147483647, %v6215
      %vm6689 = vcmp.eq.f32.partialorder %v6688, 8.507059e+37
      %v6690 = vand.u32 %v6215, 2147483648
      %v6691 = vor.u32 1.1754944e-38, %v6690
      %v6692 = vsel %vm6689, %v6691, %v6687
      %v6693 = vmul.f32 1.0, %v6692
      %v6694 = vrcp.pop %v6216
      %v6695 = vmul.f32 %v6216, %v6694
      %v6696 = vsub.f32 1.0, %v6695
      %v6697 = vmul.f32 %v6694, %v6696
      %v6698 = vadd.f32 %v6694, %v6697
      %vm6699 = vweird.f32 %v6216
      %vm6700 = vweird.f32 %v6694
      %vm6701 = vmor %vm6699, %vm6700
      %v6702 = vsel %vm6701, %v6694, %v6698
      %v6703 = vand.u32 2147483647, %v6216
      %vm6704 = vcmp.eq.f32.partialorder %v6703, 8.507059e+37
      %v6705 = vand.u32 %v6216, 2147483648
      %v6706 = vor.u32 1.1754944e-38, %v6705
      %v6707 = vsel %vm6704, %v6706, %v6702
      %v6708 = vmul.f32 1.0, %v6707
      %v6709 = vrcp.pop %v6217
      %v6710 = vmul.f32 %v6217, %v6709
      %v6711 = vsub.f32 1.0, %v6710
      %v6712 = vmul.f32 %v6709, %v6711
      %v6713 = vadd.f32 %v6709, %v6712
      %vm6714 = vweird.f32 %v6217
      %vm6715 = vweird.f32 %v6709
      %vm6716 = vmor %vm6714, %vm6715
      %v6717 = vsel %vm6716, %v6709, %v6713
      %v6718 = vand.u32 2147483647, %v6217
      %vm6719 = vcmp.eq.f32.partialorder %v6718, 8.507059e+37
      %v6720 = vand.u32 %v6217, 2147483648
      %v6721 = vor.u32 1.1754944e-38, %v6720
      %v6722 = vsel %vm6719, %v6721, %v6717
      %v6723 = vmul.f32 1.0, %v6722
      %v6724 = vrcp.pop %v6218
      %v6725 = vmul.f32 %v6218, %v6724
      %v6726 = vsub.f32 1.0, %v6725
      %v6727 = vmul.f32 %v6724, %v6726
      %v6728 = vadd.f32 %v6724, %v6727
      %vm6729 = vweird.f32 %v6218
      %vm6730 = vweird.f32 %v6724
      %vm6731 = vmor %vm6729, %vm6730
      %v6732 = vsel %vm6731, %v6724, %v6728
      %v6733 = vand.u32 2147483647, %v6218
      %vm6734 = vcmp.eq.f32.partialorder %v6733, 8.507059e+37
      %v6735 = vand.u32 %v6218, 2147483648
      %v6736 = vor.u32 1.1754944e-38, %v6735
      %v6737 = vsel %vm6734, %v6736, %v6732
      %v6738 = vmul.f32 1.0, %v6737
      %v6739 = vrcp.pop %v6219
      %v6740 = vmul.f32 %v6219, %v6739
      %v6741 = vsub.f32 1.0, %v6740
      %v6742 = vmul.f32 %v6739, %v6741
      %v6743 = vadd.f32 %v6739, %v6742
      %vm6744 = vweird.f32 %v6219
      %vm6745 = vweird.f32 %v6739
      %vm6746 = vmor %vm6744, %vm6745
      %v6747 = vsel %vm6746, %v6739, %v6743
      %v6748 = vand.u32 2147483647, %v6219
      %vm6749 = vcmp.eq.f32.partialorder %v6748, 8.507059e+37
      %v6750 = vand.u32 %v6219, 2147483648
      %v6751 = vor.u32 1.1754944e-38, %v6750
      %v6752 = vsel %vm6749, %v6751, %v6747
      %v6753 = vmul.f32 1.0, %v6752
      %v6754 = vrcp.pop %v6220
      %v6755 = vmul.f32 %v6220, %v6754
      %v6756 = vsub.f32 1.0, %v6755
      %v6757 = vmul.f32 %v6754, %v6756
      %v6758 = vadd.f32 %v6754, %v6757
      %vm6759 = vweird.f32 %v6220
      %vm6760 = vweird.f32 %v6754
      %vm6761 = vmor %vm6759, %vm6760
      %v6762 = vsel %vm6761, %v6754, %v6758
      %v6763 = vand.u32 2147483647, %v6220
      %vm6764 = vcmp.eq.f32.partialorder %v6763, 8.507059e+37
      %v6765 = vand.u32 %v6220, 2147483648
      %v6766 = vor.u32 1.1754944e-38, %v6765
      %v6767 = vsel %vm6764, %v6766, %v6762
      %v6768 = vmul.f32 1.0, %v6767
      %v6769 = vrcp.pop %v6221
      %v6770 = vmul.f32 %v6221, %v6769
      %v6771 = vsub.f32 1.0, %v6770
      %v6772 = vmul.f32 %v6769, %v6771
      %v6773 = vadd.f32 %v6769, %v6772
      %vm6774 = vweird.f32 %v6221
      %vm6775 = vweird.f32 %v6769
      %vm6776 = vmor %vm6774, %vm6775
      %v6777 = vsel %vm6776, %v6769, %v6773
      %v6778 = vand.u32 2147483647, %v6221
      %vm6779 = vcmp.eq.f32.partialorder %v6778, 8.507059e+37
      %v6780 = vand.u32 %v6221, 2147483648
      %v6781 = vor.u32 1.1754944e-38, %v6780
      %v6782 = vsel %vm6779, %v6781, %v6777
      %v6783 = vmul.f32 1.0, %v6782
      %v6784 = vrcp.pop %v6222
      %v6785 = vmul.f32 %v6222, %v6784
      %v6786 = vsub.f32 1.0, %v6785
      %v6787 = vmul.f32 %v6784, %v6786
      %v6788 = vadd.f32 %v6784, %v6787
      %vm6789 = vweird.f32 %v6222
      %vm6790 = vweird.f32 %v6784
      %vm6791 = vmor %vm6789, %vm6790
      %v6792 = vsel %vm6791, %v6784, %v6788
      %v6793 = vand.u32 2147483647, %v6222
      %vm6794 = vcmp.eq.f32.partialorder %v6793, 8.507059e+37
      %v6795 = vand.u32 %v6222, 2147483648
      %v6796 = vor.u32 1.1754944e-38, %v6795
      %v6797 = vsel %vm6794, %v6796, %v6792
      %v6798 = vmul.f32 1.0, %v6797
      %v6799 = vrcp.pop %v6223
      %v6800 = vmul.f32 %v6223, %v6799
      %v6801 = vsub.f32 1.0, %v6800
      %v6802 = vmul.f32 %v6799, %v6801
      %v6803 = vadd.f32 %v6799, %v6802
      %vm6804 = vweird.f32 %v6223
      %vm6805 = vweird.f32 %v6799
      %vm6806 = vmor %vm6804, %vm6805
      %v6807 = vsel %vm6806, %v6799, %v6803
      %v6808 = vand.u32 2147483647, %v6223
      %vm6809 = vcmp.eq.f32.partialorder %v6808, 8.507059e+37
      %v6810 = vand.u32 %v6223, 2147483648
      %v6811 = vor.u32 1.1754944e-38, %v6810
      %v6812 = vsel %vm6809, %v6811, %v6807
      %v6813 = vmul.f32 1.0, %v6812
      %v6814 = vrcp.pop %v6224
      %v6815 = vmul.f32 %v6224, %v6814
      %v6816 = vsub.f32 1.0, %v6815
      %v6817 = vmul.f32 %v6814, %v6816
      %v6818 = vadd.f32 %v6814, %v6817
      %vm6819 = vweird.f32 %v6224
      %vm6820 = vweird.f32 %v6814
      %vm6821 = vmor %vm6819, %vm6820
      %v6822 = vsel %vm6821, %v6814, %v6818
      %v6823 = vand.u32 2147483647, %v6224
      %vm6824 = vcmp.eq.f32.partialorder %v6823, 8.507059e+37
      %v6825 = vand.u32 %v6224, 2147483648
      %v6826 = vor.u32 1.1754944e-38, %v6825
      %v6827 = vsel %vm6824, %v6826, %v6822
      %v6828 = vmul.f32 1.0, %v6827
      %v6829 = vrcp.pop %v6225
      %v6830 = vmul.f32 %v6225, %v6829
      %v6831 = vsub.f32 1.0, %v6830
      %v6832 = vmul.f32 %v6829, %v6831
      %v6833 = vadd.f32 %v6829, %v6832
      %vm6834 = vweird.f32 %v6225
      %vm6835 = vweird.f32 %v6829
      %vm6836 = vmor %vm6834, %vm6835
      %v6837 = vsel %vm6836, %v6829, %v6833
      %v6838 = vand.u32 2147483647, %v6225
      %vm6839 = vcmp.eq.f32.partialorder %v6838, 8.507059e+37
      %v6840 = vand.u32 %v6225, 2147483648
      %v6841 = vor.u32 1.1754944e-38, %v6840
      %v6842 = vsel %vm6839, %v6841, %v6837
      %v6843 = vmul.f32 1.0, %v6842
      %v6844 = vrcp.pop %v6226
      %v6845 = vmul.f32 %v6226, %v6844
      %v6846 = vsub.f32 1.0, %v6845
      %v6847 = vmul.f32 %v6844, %v6846
      %v6848 = vadd.f32 %v6844, %v6847
      %vm6849 = vweird.f32 %v6226
      %vm6850 = vweird.f32 %v6844
      %vm6851 = vmor %vm6849, %vm6850
      %v6852 = vsel %vm6851, %v6844, %v6848
      %v6853 = vand.u32 2147483647, %v6226
      %vm6854 = vcmp.eq.f32.partialorder %v6853, 8.507059e+37
      %v6855 = vand.u32 %v6226, 2147483648
      %v6856 = vor.u32 1.1754944e-38, %v6855
      %v6857 = vsel %vm6854, %v6856, %v6852
      %v6858 = vmul.f32 1.0, %v6857
      %v6859 = vrcp.pop %v6227
      %v6860 = vmul.f32 %v6227, %v6859
      %v6861 = vsub.f32 1.0, %v6860
      %v6862 = vmul.f32 %v6859, %v6861
      %v6863 = vadd.f32 %v6859, %v6862
      %vm6864 = vweird.f32 %v6227
      %vm6865 = vweird.f32 %v6859
      %vm6866 = vmor %vm6864, %vm6865
      %v6867 = vsel %vm6866, %v6859, %v6863
      %v6868 = vand.u32 2147483647, %v6227
      %vm6869 = vcmp.eq.f32.partialorder %v6868, 8.507059e+37
      %v6870 = vand.u32 %v6227, 2147483648
      %v6871 = vor.u32 1.1754944e-38, %v6870
      %v6872 = vsel %vm6869, %v6871, %v6867
      %v6873 = vmul.f32 1.0, %v6872
      %v6874 = vrcp.pop %v6228
      %v6875 = vmul.f32 %v6228, %v6874
      %v6876 = vsub.f32 1.0, %v6875
      %v6877 = vmul.f32 %v6874, %v6876
      %v6878 = vadd.f32 %v6874, %v6877
      %vm6879 = vweird.f32 %v6228
      %vm6880 = vweird.f32 %v6874
      %vm6881 = vmor %vm6879, %vm6880
      %v6882 = vsel %vm6881, %v6874, %v6878
      %v6883 = vand.u32 2147483647, %v6228
      %vm6884 = vcmp.eq.f32.partialorder %v6883, 8.507059e+37
      %v6885 = vand.u32 %v6228, 2147483648
      %v6886 = vor.u32 1.1754944e-38, %v6885
      %v6887 = vsel %vm6884, %v6886, %v6882
      %v6888 = vmul.f32 1.0, %v6887
      %v6889 = vrcp.pop %v6229
      %v6890 = vmul.f32 %v6229, %v6889
      %v6891 = vsub.f32 1.0, %v6890
      %v6892 = vmul.f32 %v6889, %v6891
      %v6893 = vadd.f32 %v6889, %v6892
      %vm6894 = vweird.f32 %v6229
      %vm6895 = vweird.f32 %v6889
      %vm6896 = vmor %vm6894, %vm6895
      %v6897 = vsel %vm6896, %v6889, %v6893
      %v6898 = vand.u32 2147483647, %v6229
      %vm6899 = vcmp.eq.f32.partialorder %v6898, 8.507059e+37
      %v6900 = vand.u32 %v6229, 2147483648
      %v6901 = vor.u32 1.1754944e-38, %v6900
      %v6902 = vsel %vm6899, %v6901, %v6897
      %v6903 = vmul.f32 1.0, %v6902
      %v6904 = vrcp.pop %v6230
      %v6905 = vmul.f32 %v6230, %v6904
      %v6906 = vsub.f32 1.0, %v6905
      %v6907 = vmul.f32 %v6904, %v6906
      %v6908 = vadd.f32 %v6904, %v6907
      %vm6909 = vweird.f32 %v6230
      %vm6910 = vweird.f32 %v6904
      %vm6911 = vmor %vm6909, %vm6910
      %v6912 = vsel %vm6911, %v6904, %v6908
      %v6913 = vand.u32 2147483647, %v6230
      %vm6914 = vcmp.eq.f32.partialorder %v6913, 8.507059e+37
      %v6915 = vand.u32 %v6230, 2147483648
      %v6916 = vor.u32 1.1754944e-38, %v6915
      %v6917 = vsel %vm6914, %v6916, %v6912
      %v6918 = vmul.f32 1.0, %v6917
      %v6919 = vrcp.pop %v6231
      %v6920 = vmul.f32 %v6231, %v6919
      %v6921 = vsub.f32 1.0, %v6920
      %v6922 = vmul.f32 %v6919, %v6921
      %v6923 = vadd.f32 %v6919, %v6922
      %vm6924 = vweird.f32 %v6231
      %vm6925 = vweird.f32 %v6919
      %vm6926 = vmor %vm6924, %vm6925
      %v6927 = vsel %vm6926, %v6919, %v6923
      %v6928 = vand.u32 2147483647, %v6231
      %vm6929 = vcmp.eq.f32.partialorder %v6928, 8.507059e+37
      %v6930 = vand.u32 %v6231, 2147483648
      %v6931 = vor.u32 1.1754944e-38, %v6930
      %v6932 = vsel %vm6929, %v6931, %v6927
      %v6933 = vmul.f32 1.0, %v6932
      %v6934 = vrcp.pop %v6232
      %v6935 = vmul.f32 %v6232, %v6934
      %v6936 = vsub.f32 1.0, %v6935
      %v6937 = vmul.f32 %v6934, %v6936
      %v6938 = vadd.f32 %v6934, %v6937
      %vm6939 = vweird.f32 %v6232
      %vm6940 = vweird.f32 %v6934
      %vm6941 = vmor %vm6939, %vm6940
      %v6942 = vsel %vm6941, %v6934, %v6938
      %v6943 = vand.u32 2147483647, %v6232
      %vm6944 = vcmp.eq.f32.partialorder %v6943, 8.507059e+37
      %v6945 = vand.u32 %v6232, 2147483648
      %v6946 = vor.u32 1.1754944e-38, %v6945
      %v6947 = vsel %vm6944, %v6946, %v6942
      %v6948 = vmul.f32 1.0, %v6947
      %v6949 = vrcp.pop %v6233
      %v6950 = vmul.f32 %v6233, %v6949
      %v6951 = vsub.f32 1.0, %v6950
      %v6952 = vmul.f32 %v6949, %v6951
      %v6953 = vadd.f32 %v6949, %v6952
      %vm6954 = vweird.f32 %v6233
      %vm6955 = vweird.f32 %v6949
      %vm6956 = vmor %vm6954, %vm6955
      %v6957 = vsel %vm6956, %v6949, %v6953
      %v6958 = vand.u32 2147483647, %v6233
      %vm6959 = vcmp.eq.f32.partialorder %v6958, 8.507059e+37
      %v6960 = vand.u32 %v6233, 2147483648
      %v6961 = vor.u32 1.1754944e-38, %v6960
      %v6962 = vsel %vm6959, %v6961, %v6957
      %v6963 = vmul.f32 1.0, %v6962
      %v6964 = vrcp.pop %v6234
      %v6965 = vmul.f32 %v6234, %v6964
      %v6966 = vsub.f32 1.0, %v6965
      %v6967 = vmul.f32 %v6964, %v6966
      %v6968 = vadd.f32 %v6964, %v6967
      %vm6969 = vweird.f32 %v6234
      %vm6970 = vweird.f32 %v6964
      %vm6971 = vmor %vm6969, %vm6970
      %v6972 = vsel %vm6971, %v6964, %v6968
      %v6973 = vand.u32 2147483647, %v6234
      %vm6974 = vcmp.eq.f32.partialorder %v6973, 8.507059e+37
      %v6975 = vand.u32 %v6234, 2147483648
      %v6976 = vor.u32 1.1754944e-38, %v6975
      %v6977 = vsel %vm6974, %v6976, %v6972
      %v6978 = vmul.f32 1.0, %v6977
      %v6979 = vrcp.pop %v6235
      %v6980 = vmul.f32 %v6235, %v6979
      %v6981 = vsub.f32 1.0, %v6980
      %v6982 = vmul.f32 %v6979, %v6981
      %v6983 = vadd.f32 %v6979, %v6982
      %vm6984 = vweird.f32 %v6235
      %vm6985 = vweird.f32 %v6979
      %vm6986 = vmor %vm6984, %vm6985
      %v6987 = vsel %vm6986, %v6979, %v6983
      %v6988 = vand.u32 2147483647, %v6235
      %vm6989 = vcmp.eq.f32.partialorder %v6988, 8.507059e+37
      %v6990 = vand.u32 %v6235, 2147483648
      %v6991 = vor.u32 1.1754944e-38, %v6990
      %v6992 = vsel %vm6989, %v6991, %v6987
      %v6993 = vmul.f32 1.0, %v6992
      %v6994 = vrcp.pop %v6236
      %v6995 = vmul.f32 %v6236, %v6994
      %v6996 = vsub.f32 1.0, %v6995
      %v6997 = vmul.f32 %v6994, %v6996
      %v6998 = vadd.f32 %v6994, %v6997
      %vm6999 = vweird.f32 %v6236
      %vm7000 = vweird.f32 %v6994
      %vm7001 = vmor %vm6999, %vm7000
      %v7002 = vsel %vm7001, %v6994, %v6998
      %v7003 = vand.u32 2147483647, %v6236
      %vm7004 = vcmp.eq.f32.partialorder %v7003, 8.507059e+37
      %v7005 = vand.u32 %v6236, 2147483648
      %v7006 = vor.u32 1.1754944e-38, %v7005
      %v7007 = vsel %vm7004, %v7006, %v7002
      %v7008 = vmul.f32 1.0, %v7007
      %v7009 = vrcp.pop %v6237
      %v7010 = vmul.f32 %v6237, %v7009
      %v7011 = vsub.f32 1.0, %v7010
      %v7012 = vmul.f32 %v7009, %v7011
      %v7013 = vadd.f32 %v7009, %v7012
      %vm7014 = vweird.f32 %v6237
      %vm7015 = vweird.f32 %v7009
      %vm7016 = vmor %vm7014, %vm7015
      %v7017 = vsel %vm7016, %v7009, %v7013
      %v7018 = vand.u32 2147483647, %v6237
      %vm7019 = vcmp.eq.f32.partialorder %v7018, 8.507059e+37
      %v7020 = vand.u32 %v6237, 2147483648
      %v7021 = vor.u32 1.1754944e-38, %v7020
      %v7022 = vsel %vm7019, %v7021, %v7017
      %v7023 = vmul.f32 1.0, %v7022
      %v7024 = vrcp.pop %v6238
      %v7025 = vmul.f32 %v6238, %v7024
      %v7026 = vsub.f32 1.0, %v7025
      %v7027 = vmul.f32 %v7024, %v7026
      %v7028 = vadd.f32 %v7024, %v7027
      %vm7029 = vweird.f32 %v6238
      %vm7030 = vweird.f32 %v7024
      %vm7031 = vmor %vm7029, %vm7030
      %v7032 = vsel %vm7031, %v7024, %v7028
      %v7033 = vand.u32 2147483647, %v6238
      %vm7034 = vcmp.eq.f32.partialorder %v7033, 8.507059e+37
      %v7035 = vand.u32 %v6238, 2147483648
      %v7036 = vor.u32 1.1754944e-38, %v7035
      %v7037 = vsel %vm7034, %v7036, %v7032
      %v7038 = vmul.f32 1.0, %v7037
      %v7039 = vrcp.pop %v6239
      %v7040 = vmul.f32 %v6239, %v7039
      %v7041 = vsub.f32 1.0, %v7040
      %v7042 = vmul.f32 %v7039, %v7041
      %v7043 = vadd.f32 %v7039, %v7042
      %vm7044 = vweird.f32 %v6239
      %vm7045 = vweird.f32 %v7039
      %vm7046 = vmor %vm7044, %vm7045
      %v7047 = vsel %vm7046, %v7039, %v7043
      %v7048 = vand.u32 2147483647, %v6239
      %vm7049 = vcmp.eq.f32.partialorder %v7048, 8.507059e+37
      %v7050 = vand.u32 %v6239, 2147483648
      %v7051 = vor.u32 1.1754944e-38, %v7050
      %v7052 = vsel %vm7049, %v7051, %v7047
      %v7053 = vmul.f32 1.0, %v7052
      %v7054 = vrcp.pop %v6240
      %v7055 = vmul.f32 %v6240, %v7054
      %v7056 = vsub.f32 1.0, %v7055
      %v7057 = vmul.f32 %v7054, %v7056
      %v7058 = vadd.f32 %v7054, %v7057
      %vm7059 = vweird.f32 %v6240
      %vm7060 = vweird.f32 %v7054
      %vm7061 = vmor %vm7059, %vm7060
      %v7062 = vsel %vm7061, %v7054, %v7058
      %v7063 = vand.u32 2147483647, %v6240
      %vm7064 = vcmp.eq.f32.partialorder %v7063, 8.507059e+37
      %v7065 = vand.u32 %v6240, 2147483648
      %v7066 = vor.u32 1.1754944e-38, %v7065
      %v7067 = vsel %vm7064, %v7066, %v7062
      %v7068 = vmul.f32 1.0, %v7067
      %v7069 = vrcp.pop %v6241
      %v7070 = vmul.f32 %v6241, %v7069
      %v7071 = vsub.f32 1.0, %v7070
      %v7072 = vmul.f32 %v7069, %v7071
      %v7073 = vadd.f32 %v7069, %v7072
      %vm7074 = vweird.f32 %v6241
      %vm7075 = vweird.f32 %v7069
      %vm7076 = vmor %vm7074, %vm7075
      %v7077 = vsel %vm7076, %v7069, %v7073
      %v7078 = vand.u32 2147483647, %v6241
      %vm7079 = vcmp.eq.f32.partialorder %v7078, 8.507059e+37
      %v7080 = vand.u32 %v6241, 2147483648
      %v7081 = vor.u32 1.1754944e-38, %v7080
      %v7082 = vsel %vm7079, %v7081, %v7077
      %v7083 = vmul.f32 1.0, %v7082
      %v7084 = vrcp.pop %v6242
      %v7085 = vmul.f32 %v6242, %v7084
      %v7086 = vsub.f32 1.0, %v7085
      %v7087 = vmul.f32 %v7084, %v7086
      %v7088 = vadd.f32 %v7084, %v7087
      %vm7089 = vweird.f32 %v6242
      %vm7090 = vweird.f32 %v7084
      %vm7091 = vmor %vm7089, %vm7090
      %v7092 = vsel %vm7091, %v7084, %v7088
      %v7093 = vand.u32 2147483647, %v6242
      %vm7094 = vcmp.eq.f32.partialorder %v7093, 8.507059e+37
      %v7095 = vand.u32 %v6242, 2147483648
      %v7096 = vor.u32 1.1754944e-38, %v7095
      %v7097 = vsel %vm7094, %v7096, %v7092
      %v7098 = vmul.f32 1.0, %v7097
      %v7099 = vrcp.pop %v6243
      %v7100 = vmul.f32 %v6243, %v7099
      %v7101 = vsub.f32 1.0, %v7100
      %v7102 = vmul.f32 %v7099, %v7101
      %v7103 = vadd.f32 %v7099, %v7102
      %vm7104 = vweird.f32 %v6243
      %vm7105 = vweird.f32 %v7099
      %vm7106 = vmor %vm7104, %vm7105
      %v7107 = vsel %vm7106, %v7099, %v7103
      %v7108 = vand.u32 2147483647, %v6243
      %vm7109 = vcmp.eq.f32.partialorder %v7108, 8.507059e+37
      %v7110 = vand.u32 %v6243, 2147483648
      %v7111 = vor.u32 1.1754944e-38, %v7110
      %v7112 = vsel %vm7109, %v7111, %v7107
      %v7113 = vmul.f32 1.0, %v7112
      %v7114 = vrcp.pop %v6244
      %v7115 = vmul.f32 %v6244, %v7114
      %v7116 = vsub.f32 1.0, %v7115
      %v7117 = vmul.f32 %v7114, %v7116
      %v7118 = vadd.f32 %v7114, %v7117
      %vm7119 = vweird.f32 %v6244
      %vm7120 = vweird.f32 %v7114
      %vm7121 = vmor %vm7119, %vm7120
      %v7122 = vsel %vm7121, %v7114, %v7118
      %v7123 = vand.u32 2147483647, %v6244
      %vm7124 = vcmp.eq.f32.partialorder %v7123, 8.507059e+37
      %v7125 = vand.u32 %v6244, 2147483648
      %v7126 = vor.u32 1.1754944e-38, %v7125
      %v7127 = vsel %vm7124, %v7126, %v7122
      %v7128 = vmul.f32 1.0, %v7127
      %v7129 = vrcp.pop %v6245
      %v7130 = vmul.f32 %v6245, %v7129
      %v7131 = vsub.f32 1.0, %v7130
      %v7132 = vmul.f32 %v7129, %v7131
      %v7133 = vadd.f32 %v7129, %v7132
      %vm7134 = vweird.f32 %v6245
      %vm7135 = vweird.f32 %v7129
      %vm7136 = vmor %vm7134, %vm7135
      %v7137 = vsel %vm7136, %v7129, %v7133
      %v7138 = vand.u32 2147483647, %v6245
      %vm7139 = vcmp.eq.f32.partialorder %v7138, 8.507059e+37
      %v7140 = vand.u32 %v6245, 2147483648
      %v7141 = vor.u32 1.1754944e-38, %v7140
      %v7142 = vsel %vm7139, %v7141, %v7137
      %v7143 = vmul.f32 1.0, %v7142
      %v7144 = vrcp.pop %v6246
      %v7145 = vmul.f32 %v6246, %v7144
      %v7146 = vsub.f32 1.0, %v7145
      %v7147 = vmul.f32 %v7144, %v7146
      %v7148 = vadd.f32 %v7144, %v7147
      %vm7149 = vweird.f32 %v6246
      %vm7150 = vweird.f32 %v7144
      %vm7151 = vmor %vm7149, %vm7150
      %v7152 = vsel %vm7151, %v7144, %v7148
      %v7153 = vand.u32 2147483647, %v6246
      %vm7154 = vcmp.eq.f32.partialorder %v7153, 8.507059e+37
      %v7155 = vand.u32 %v6246, 2147483648
      %v7156 = vor.u32 1.1754944e-38, %v7155
      %v7157 = vsel %vm7154, %v7156, %v7152
      %v7158 = vmul.f32 1.0, %v7157
      %v7159 = vrcp.pop %v6247
      %v7160 = vmul.f32 %v6247, %v7159
      %v7161 = vsub.f32 1.0, %v7160
      %v7162 = vmul.f32 %v7159, %v7161
      %v7163 = vadd.f32 %v7159, %v7162
      %vm7164 = vweird.f32 %v6247
      %vm7165 = vweird.f32 %v7159
      %vm7166 = vmor %vm7164, %vm7165
      %v7167 = vsel %vm7166, %v7159, %v7163
      %v7168 = vand.u32 2147483647, %v6247
      %vm7169 = vcmp.eq.f32.partialorder %v7168, 8.507059e+37
      %v7170 = vand.u32 %v6247, 2147483648
      %v7171 = vor.u32 1.1754944e-38, %v7170
      %v7172 = vsel %vm7169, %v7171, %v7167
      %v7173 = vmul.f32 1.0, %v7172
      %v7174 = vrcp.pop %v6248
      %v7175 = vmul.f32 %v6248, %v7174
      %v7176 = vsub.f32 1.0, %v7175
      %v7177 = vmul.f32 %v7174, %v7176
      %v7178 = vadd.f32 %v7174, %v7177
      %vm7179 = vweird.f32 %v6248
      %vm7180 = vweird.f32 %v7174
      %vm7181 = vmor %vm7179, %vm7180
      %v7182 = vsel %vm7181, %v7174, %v7178
      %v7183 = vand.u32 2147483647, %v6248
      %vm7184 = vcmp.eq.f32.partialorder %v7183, 8.507059e+37
      %v7185 = vand.u32 %v6248, 2147483648
      %v7186 = vor.u32 1.1754944e-38, %v7185
      %v7187 = vsel %vm7184, %v7186, %v7182
      %v7188 = vmul.f32 1.0, %v7187
      %v7189 = vrcp.pop %v6249
      %v7190 = vmul.f32 %v6249, %v7189
      %v7191 = vsub.f32 1.0, %v7190
      %v7192 = vmul.f32 %v7189, %v7191
      %v7193 = vadd.f32 %v7189, %v7192
      %vm7194 = vweird.f32 %v6249
      %vm7195 = vweird.f32 %v7189
      %vm7196 = vmor %vm7194, %vm7195
      %v7197 = vsel %vm7196, %v7189, %v7193
      %v7198 = vand.u32 2147483647, %v6249
      %vm7199 = vcmp.eq.f32.partialorder %v7198, 8.507059e+37
      %v7200 = vand.u32 %v6249, 2147483648
      %v7201 = vor.u32 1.1754944e-38, %v7200
      %v7202 = vsel %vm7199, %v7201, %v7197
      %v7203 = vmul.f32 1.0, %v7202
      %v7204 = vrcp.pop %v6250
      %v7205 = vmul.f32 %v6250, %v7204
      %v7206 = vsub.f32 1.0, %v7205
      %v7207 = vmul.f32 %v7204, %v7206
      %v7208 = vadd.f32 %v7204, %v7207
      %vm7209 = vweird.f32 %v6250
      %vm7210 = vweird.f32 %v7204
      %vm7211 = vmor %vm7209, %vm7210
      %v7212 = vsel %vm7211, %v7204, %v7208
      %v7213 = vand.u32 2147483647, %v6250
      %vm7214 = vcmp.eq.f32.partialorder %v7213, 8.507059e+37
      %v7215 = vand.u32 %v6250, 2147483648
      %v7216 = vor.u32 1.1754944e-38, %v7215
      %v7217 = vsel %vm7214, %v7216, %v7212
      %v7218 = vmul.f32 1.0, %v7217
      %v7219 = vrcp.pop %v6251
      %v7220 = vmul.f32 %v6251, %v7219
      %v7221 = vsub.f32 1.0, %v7220
      %v7222 = vmul.f32 %v7219, %v7221
      %v7223 = vadd.f32 %v7219, %v7222
      %vm7224 = vweird.f32 %v6251
      %vm7225 = vweird.f32 %v7219
      %vm7226 = vmor %vm7224, %vm7225
      %v7227 = vsel %vm7226, %v7219, %v7223
      %v7228 = vand.u32 2147483647, %v6251
      %vm7229 = vcmp.eq.f32.partialorder %v7228, 8.507059e+37
      %v7230 = vand.u32 %v6251, 2147483648
      %v7231 = vor.u32 1.1754944e-38, %v7230
      %v7232 = vsel %vm7229, %v7231, %v7227
      %v7233 = vmul.f32 1.0, %v7232
      %v7234 = vrcp.pop %v6252
      %v7235 = vmul.f32 %v6252, %v7234
      %v7236 = vsub.f32 1.0, %v7235
      %v7237 = vmul.f32 %v7234, %v7236
      %v7238 = vadd.f32 %v7234, %v7237
      %vm7239 = vweird.f32 %v6252
      %vm7240 = vweird.f32 %v7234
      %vm7241 = vmor %vm7239, %vm7240
      %v7242 = vsel %vm7241, %v7234, %v7238
      %v7243 = vand.u32 2147483647, %v6252
      %vm7244 = vcmp.eq.f32.partialorder %v7243, 8.507059e+37
      %v7245 = vand.u32 %v6252, 2147483648
      %v7246 = vor.u32 1.1754944e-38, %v7245
      %v7247 = vsel %vm7244, %v7246, %v7242
      %v7248 = vmul.f32 1.0, %v7247
      %v7249 = vrcp.pop %v6253
      %v7250 = vmul.f32 %v6253, %v7249
      %v7251 = vsub.f32 1.0, %v7250
      %v7252 = vmul.f32 %v7249, %v7251
      %v7253 = vadd.f32 %v7249, %v7252
      %vm7254 = vweird.f32 %v6253
      %vm7255 = vweird.f32 %v7249
      %vm7256 = vmor %vm7254, %vm7255
      %v7257 = vsel %vm7256, %v7249, %v7253
      %v7258 = vand.u32 2147483647, %v6253
      %vm7259 = vcmp.eq.f32.partialorder %v7258, 8.507059e+37
      %v7260 = vand.u32 %v6253, 2147483648
      %v7261 = vor.u32 1.1754944e-38, %v7260
      %v7262 = vsel %vm7259, %v7261, %v7257
      %v7263 = vmul.f32 1.0, %v7262
      %v7264 = vrcp.pop %v6254
      %v7265 = vmul.f32 %v6254, %v7264
      %v7266 = vsub.f32 1.0, %v7265
      %v7267 = vmul.f32 %v7264, %v7266
      %v7268 = vadd.f32 %v7264, %v7267
      %vm7269 = vweird.f32 %v6254
      %vm7270 = vweird.f32 %v7264
      %vm7271 = vmor %vm7269, %vm7270
      %v7272 = vsel %vm7271, %v7264, %v7268
      %v7273 = vand.u32 2147483647, %v6254
      %vm7274 = vcmp.eq.f32.partialorder %v7273, 8.507059e+37
      %v7275 = vand.u32 %v6254, 2147483648
      %v7276 = vor.u32 1.1754944e-38, %v7275
      %v7277 = vsel %vm7274, %v7276, %v7272
      %v7278 = vmul.f32 1.0, %v7277
      %v7279 = vrcp.pop %v6255
      %v7280 = vmul.f32 %v6255, %v7279
      %v7281 = vsub.f32 1.0, %v7280
      %v7282 = vmul.f32 %v7279, %v7281
      %v7283 = vadd.f32 %v7279, %v7282
      %vm7284 = vweird.f32 %v6255
      %vm7285 = vweird.f32 %v7279
      %vm7286 = vmor %vm7284, %vm7285
      %v7287 = vsel %vm7286, %v7279, %v7283
      %v7288 = vand.u32 2147483647, %v6255
      %vm7289 = vcmp.eq.f32.partialorder %v7288, 8.507059e+37
      %v7290 = vand.u32 %v6255, 2147483648
      %v7291 = vor.u32 1.1754944e-38, %v7290
      %v7292 = vsel %vm7289, %v7291, %v7287
      %v7293 = vmul.f32 1.0, %v7292
      %v7294 = vrcp.pop %v6256
      %v7295 = vmul.f32 %v6256, %v7294
      %v7296 = vsub.f32 1.0, %v7295
      %v7297 = vmul.f32 %v7294, %v7296
      %v7298 = vadd.f32 %v7294, %v7297
      %vm7299 = vweird.f32 %v6256
      %vm7300 = vweird.f32 %v7294
      %vm7301 = vmor %vm7299, %vm7300
      %v7302 = vsel %vm7301, %v7294, %v7298
      %v7303 = vand.u32 2147483647, %v6256
      %vm7304 = vcmp.eq.f32.partialorder %v7303, 8.507059e+37
      %v7305 = vand.u32 %v6256, 2147483648
      %v7306 = vor.u32 1.1754944e-38, %v7305
      %v7307 = vsel %vm7304, %v7306, %v7302
      %v7308 = vmul.f32 1.0, %v7307
      %v7309 = vrcp.pop %v6257
      %v7310 = vmul.f32 %v6257, %v7309
      %v7311 = vsub.f32 1.0, %v7310
      %v7312 = vmul.f32 %v7309, %v7311
      %v7313 = vadd.f32 %v7309, %v7312
      %vm7314 = vweird.f32 %v6257
      %vm7315 = vweird.f32 %v7309
      %vm7316 = vmor %vm7314, %vm7315
      %v7317 = vsel %vm7316, %v7309, %v7313
      %v7318 = vand.u32 2147483647, %v6257
      %vm7319 = vcmp.eq.f32.partialorder %v7318, 8.507059e+37
      %v7320 = vand.u32 %v6257, 2147483648
      %v7321 = vor.u32 1.1754944e-38, %v7320
      %v7322 = vsel %vm7319, %v7321, %v7317
      %v7323 = vmul.f32 1.0, %v7322
      %v7324 = vrcp.pop %v6258
      %v7325 = vmul.f32 %v6258, %v7324
      %v7326 = vsub.f32 1.0, %v7325
      %v7327 = vmul.f32 %v7324, %v7326
      %v7328 = vadd.f32 %v7324, %v7327
      %vm7329 = vweird.f32 %v6258
      %vm7330 = vweird.f32 %v7324
      %vm7331 = vmor %vm7329, %vm7330
      %v7332 = vsel %vm7331, %v7324, %v7328
      %v7333 = vand.u32 2147483647, %v6258
      %vm7334 = vcmp.eq.f32.partialorder %v7333, 8.507059e+37
      %v7335 = vand.u32 %v6258, 2147483648
      %v7336 = vor.u32 1.1754944e-38, %v7335
      %v7337 = vsel %vm7334, %v7336, %v7332
      %v7338 = vmul.f32 1.0, %v7337
      %v7339 = vrcp.pop %v6259
      %v7340 = vmul.f32 %v6259, %v7339
      %v7341 = vsub.f32 1.0, %v7340
      %v7342 = vmul.f32 %v7339, %v7341
      %v7343 = vadd.f32 %v7339, %v7342
      %vm7344 = vweird.f32 %v6259
      %vm7345 = vweird.f32 %v7339
      %vm7346 = vmor %vm7344, %vm7345
      %v7347 = vsel %vm7346, %v7339, %v7343
      %v7348 = vand.u32 2147483647, %v6259
      %vm7349 = vcmp.eq.f32.partialorder %v7348, 8.507059e+37
      %v7350 = vand.u32 %v6259, 2147483648
      %v7351 = vor.u32 1.1754944e-38, %v7350
      %v7352 = vsel %vm7349, %v7351, %v7347
      %v7353 = vmul.f32 1.0, %v7352
      %v7354 = vrcp.pop %v6260
      %v7355 = vmul.f32 %v6260, %v7354
      %v7356 = vsub.f32 1.0, %v7355
      %v7357 = vmul.f32 %v7354, %v7356
      %v7358 = vadd.f32 %v7354, %v7357
      %vm7359 = vweird.f32 %v6260
      %vm7360 = vweird.f32 %v7354
      %vm7361 = vmor %vm7359, %vm7360
      %v7362 = vsel %vm7361, %v7354, %v7358
      %v7363 = vand.u32 2147483647, %v6260
      %vm7364 = vcmp.eq.f32.partialorder %v7363, 8.507059e+37
      %v7365 = vand.u32 %v6260, 2147483648
      %v7366 = vor.u32 1.1754944e-38, %v7365
      %v7367 = vsel %vm7364, %v7366, %v7362
      %v7368 = vmul.f32 1.0, %v7367
      %v7369 = vrcp.pop %v6261
      %v7370 = vmul.f32 %v6261, %v7369
      %v7371 = vsub.f32 1.0, %v7370
      %v7372 = vmul.f32 %v7369, %v7371
      %v7373 = vadd.f32 %v7369, %v7372
      %vm7374 = vweird.f32 %v6261
      %vm7375 = vweird.f32 %v7369
      %vm7376 = vmor %vm7374, %vm7375
      %v7377 = vsel %vm7376, %v7369, %v7373
      %v7378 = vand.u32 2147483647, %v6261
      %vm7379 = vcmp.eq.f32.partialorder %v7378, 8.507059e+37
      %v7380 = vand.u32 %v6261, 2147483648
      %v7381 = vor.u32 1.1754944e-38, %v7380
      %v7382 = vsel %vm7379, %v7381, %v7377
      %v7383 = vmul.f32 1.0, %v7382
      %v7384 = vrcp.pop %v6262
      %v7385 = vmul.f32 %v6262, %v7384
      %v7386 = vsub.f32 1.0, %v7385
      %v7387 = vmul.f32 %v7384, %v7386
      %v7388 = vadd.f32 %v7384, %v7387
      %vm7389 = vweird.f32 %v6262
      %vm7390 = vweird.f32 %v7384
      %vm7391 = vmor %vm7389, %vm7390
      %v7392 = vsel %vm7391, %v7384, %v7388
      %v7393 = vand.u32 2147483647, %v6262
      %vm7394 = vcmp.eq.f32.partialorder %v7393, 8.507059e+37
      %v7395 = vand.u32 %v6262, 2147483648
      %v7396 = vor.u32 1.1754944e-38, %v7395
      %v7397 = vsel %vm7394, %v7396, %v7392
      %v7398 = vmul.f32 1.0, %v7397
      %v7399 = vrcp.pop %v6263
      %v7400 = vmul.f32 %v6263, %v7399
      %v7401 = vsub.f32 1.0, %v7400
      %v7402 = vmul.f32 %v7399, %v7401
      %v7403 = vadd.f32 %v7399, %v7402
      %vm7404 = vweird.f32 %v6263
      %vm7405 = vweird.f32 %v7399
      %vm7406 = vmor %vm7404, %vm7405
      %v7407 = vsel %vm7406, %v7399, %v7403
      %v7408 = vand.u32 2147483647, %v6263
      %vm7409 = vcmp.eq.f32.partialorder %v7408, 8.507059e+37
      %v7410 = vand.u32 %v6263, 2147483648
      %v7411 = vor.u32 1.1754944e-38, %v7410
      %v7412 = vsel %vm7409, %v7411, %v7407
      %v7413 = vmul.f32 1.0, %v7412
      %v7414 = vrcp.pop %v6264
      %v7415 = vmul.f32 %v6264, %v7414
      %v7416 = vsub.f32 1.0, %v7415
      %v7417 = vmul.f32 %v7414, %v7416
      %v7418 = vadd.f32 %v7414, %v7417
      %vm7419 = vweird.f32 %v6264
      %vm7420 = vweird.f32 %v7414
      %vm7421 = vmor %vm7419, %vm7420
      %v7422 = vsel %vm7421, %v7414, %v7418
      %v7423 = vand.u32 2147483647, %v6264
      %vm7424 = vcmp.eq.f32.partialorder %v7423, 8.507059e+37
      %v7425 = vand.u32 %v6264, 2147483648
      %v7426 = vor.u32 1.1754944e-38, %v7425
      %v7427 = vsel %vm7424, %v7426, %v7422
      %v7428 = vmul.f32 1.0, %v7427
      %v7429 = vrcp.pop %v6265
      %v7430 = vmul.f32 %v6265, %v7429
      %v7431 = vsub.f32 1.0, %v7430
      %v7432 = vmul.f32 %v7429, %v7431
      %v7433 = vadd.f32 %v7429, %v7432
      %vm7434 = vweird.f32 %v6265
      %vm7435 = vweird.f32 %v7429
      %vm7436 = vmor %vm7434, %vm7435
      %v7437 = vsel %vm7436, %v7429, %v7433
      %v7438 = vand.u32 2147483647, %v6265
      %vm7439 = vcmp.eq.f32.partialorder %v7438, 8.507059e+37
      %v7440 = vand.u32 %v6265, 2147483648
      %v7441 = vor.u32 1.1754944e-38, %v7440
      %v7442 = vsel %vm7439, %v7441, %v7437
      %v7443 = vmul.f32 1.0, %v7442
      %v7444 = vrcp.pop %v6266
      %v7445 = vmul.f32 %v6266, %v7444
      %v7446 = vsub.f32 1.0, %v7445
      %v7447 = vmul.f32 %v7444, %v7446
      %v7448 = vadd.f32 %v7444, %v7447
      %vm7449 = vweird.f32 %v6266
      %vm7450 = vweird.f32 %v7444
      %vm7451 = vmor %vm7449, %vm7450
      %v7452 = vsel %vm7451, %v7444, %v7448
      %v7453 = vand.u32 2147483647, %v6266
      %vm7454 = vcmp.eq.f32.partialorder %v7453, 8.507059e+37
      %v7455 = vand.u32 %v6266, 2147483648
      %v7456 = vor.u32 1.1754944e-38, %v7455
      %v7457 = vsel %vm7454, %v7456, %v7452
      %v7458 = vmul.f32 1.0, %v7457
      %v7459 = vrcp.pop %v6267
      %v7460 = vmul.f32 %v6267, %v7459
      %v7461 = vsub.f32 1.0, %v7460
      %v7462 = vmul.f32 %v7459, %v7461
      %v7463 = vadd.f32 %v7459, %v7462
      %vm7464 = vweird.f32 %v6267
      %vm7465 = vweird.f32 %v7459
      %vm7466 = vmor %vm7464, %vm7465
      %v7467 = vsel %vm7466, %v7459, %v7463
      %v7468 = vand.u32 2147483647, %v6267
      %vm7469 = vcmp.eq.f32.partialorder %v7468, 8.507059e+37
      %v7470 = vand.u32 %v6267, 2147483648
      %v7471 = vor.u32 1.1754944e-38, %v7470
      %v7472 = vsel %vm7469, %v7471, %v7467
      %v7473 = vmul.f32 1.0, %v7472
      %v7474 = vrcp.pop %v6268
      %v7475 = vmul.f32 %v6268, %v7474
      %v7476 = vsub.f32 1.0, %v7475
      %v7477 = vmul.f32 %v7474, %v7476
      %v7478 = vadd.f32 %v7474, %v7477
      %vm7479 = vweird.f32 %v6268
      %vm7480 = vweird.f32 %v7474
      %vm7481 = vmor %vm7479, %vm7480
      %v7482 = vsel %vm7481, %v7474, %v7478
      %v7483 = vand.u32 2147483647, %v6268
      %vm7484 = vcmp.eq.f32.partialorder %v7483, 8.507059e+37
      %v7485 = vand.u32 %v6268, 2147483648
      %v7486 = vor.u32 1.1754944e-38, %v7485
      %v7487 = vsel %vm7484, %v7486, %v7482
      %v7488 = vmul.f32 1.0, %v7487
      %v7489 = vrcp.pop %v6269
      %v7490 = vmul.f32 %v6269, %v7489
      %v7491 = vsub.f32 1.0, %v7490
      %v7492 = vmul.f32 %v7489, %v7491
      %v7493 = vadd.f32 %v7489, %v7492
      %vm7494 = vweird.f32 %v6269
      %vm7495 = vweird.f32 %v7489
      %vm7496 = vmor %vm7494, %vm7495
      %v7497 = vsel %vm7496, %v7489, %v7493
      %v7498 = vand.u32 2147483647, %v6269
      %vm7499 = vcmp.eq.f32.partialorder %v7498, 8.507059e+37
      %v7500 = vand.u32 %v6269, 2147483648
      %v7501 = vor.u32 1.1754944e-38, %v7500
      %v7502 = vsel %vm7499, %v7501, %v7497
      %v7503 = vmul.f32 1.0, %v7502
      %v7504 = vrcp.pop %v6270
      %v7505 = vmul.f32 %v6270, %v7504
      %v7506 = vsub.f32 1.0, %v7505
      %v7507 = vmul.f32 %v7504, %v7506
      %v7508 = vadd.f32 %v7504, %v7507
      %vm7509 = vweird.f32 %v6270
      %vm7510 = vweird.f32 %v7504
      %vm7511 = vmor %vm7509, %vm7510
      %v7512 = vsel %vm7511, %v7504, %v7508
      %v7513 = vand.u32 2147483647, %v6270
      %vm7514 = vcmp.eq.f32.partialorder %v7513, 8.507059e+37
      %v7515 = vand.u32 %v6270, 2147483648
      %v7516 = vor.u32 1.1754944e-38, %v7515
      %v7517 = vsel %vm7514, %v7516, %v7512
      %v7518 = vmul.f32 1.0, %v7517
      %v7519 = vrcp.pop %v6271
      %v7520 = vmul.f32 %v6271, %v7519
      %v7521 = vsub.f32 1.0, %v7520
      %v7522 = vmul.f32 %v7519, %v7521
      %v7523 = vadd.f32 %v7519, %v7522
      %vm7524 = vweird.f32 %v6271
      %vm7525 = vweird.f32 %v7519
      %vm7526 = vmor %vm7524, %vm7525
      %v7527 = vsel %vm7526, %v7519, %v7523
      %v7528 = vand.u32 2147483647, %v6271
      %vm7529 = vcmp.eq.f32.partialorder %v7528, 8.507059e+37
      %v7530 = vand.u32 %v6271, 2147483648
      %v7531 = vor.u32 1.1754944e-38, %v7530
      %v7532 = vsel %vm7529, %v7531, %v7527
      %v7533 = vmul.f32 1.0, %v7532
      %v7534 = vrcp.pop %v6272
      %v7535 = vmul.f32 %v6272, %v7534
      %v7536 = vsub.f32 1.0, %v7535
      %v7537 = vmul.f32 %v7534, %v7536
      %v7538 = vadd.f32 %v7534, %v7537
      %vm7539 = vweird.f32 %v6272
      %vm7540 = vweird.f32 %v7534
      %vm7541 = vmor %vm7539, %vm7540
      %v7542 = vsel %vm7541, %v7534, %v7538
      %v7543 = vand.u32 2147483647, %v6272
      %vm7544 = vcmp.eq.f32.partialorder %v7543, 8.507059e+37
      %v7545 = vand.u32 %v6272, 2147483648
      %v7546 = vor.u32 1.1754944e-38, %v7545
      %v7547 = vsel %vm7544, %v7546, %v7542
      %v7548 = vmul.f32 1.0, %v7547
      %v7549 = vrcp.pop %v6273
      %v7550 = vmul.f32 %v6273, %v7549
      %v7551 = vsub.f32 1.0, %v7550
      %v7552 = vmul.f32 %v7549, %v7551
      %v7553 = vadd.f32 %v7549, %v7552
      %vm7554 = vweird.f32 %v6273
      %vm7555 = vweird.f32 %v7549
      %vm7556 = vmor %vm7554, %vm7555
      %v7557 = vsel %vm7556, %v7549, %v7553
      %v7558 = vand.u32 2147483647, %v6273
      %vm7559 = vcmp.eq.f32.partialorder %v7558, 8.507059e+37
      %v7560 = vand.u32 %v6273, 2147483648
      %v7561 = vor.u32 1.1754944e-38, %v7560
      %v7562 = vsel %vm7559, %v7561, %v7557
      %v7563 = vmul.f32 1.0, %v7562
      %v7564 = vrcp.pop %v6274
      %v7565 = vmul.f32 %v6274, %v7564
      %v7566 = vsub.f32 1.0, %v7565
      %v7567 = vmul.f32 %v7564, %v7566
      %v7568 = vadd.f32 %v7564, %v7567
      %vm7569 = vweird.f32 %v6274
      %vm7570 = vweird.f32 %v7564
      %vm7571 = vmor %vm7569, %vm7570
      %v7572 = vsel %vm7571, %v7564, %v7568
      %v7573 = vand.u32 2147483647, %v6274
      %vm7574 = vcmp.eq.f32.partialorder %v7573, 8.507059e+37
      %v7575 = vand.u32 %v6274, 2147483648
      %v7576 = vor.u32 1.1754944e-38, %v7575
      %v7577 = vsel %vm7574, %v7576, %v7572
      %v7578 = vmul.f32 1.0, %v7577
      %v7579 = vrcp.pop %v6275
      %v7580 = vmul.f32 %v6275, %v7579
      %v7581 = vsub.f32 1.0, %v7580
      %v7582 = vmul.f32 %v7579, %v7581
      %v7583 = vadd.f32 %v7579, %v7582
      %vm7584 = vweird.f32 %v6275
      %vm7585 = vweird.f32 %v7579
      %vm7586 = vmor %vm7584, %vm7585
      %v7587 = vsel %vm7586, %v7579, %v7583
      %v7588 = vand.u32 2147483647, %v6275
      %vm7589 = vcmp.eq.f32.partialorder %v7588, 8.507059e+37
      %v7590 = vand.u32 %v6275, 2147483648
      %v7591 = vor.u32 1.1754944e-38, %v7590
      %v7592 = vsel %vm7589, %v7591, %v7587
      %v7593 = vmul.f32 1.0, %v7592
      %v7594 = vrcp.pop %v6276
      %v7595 = vmul.f32 %v6276, %v7594
      %v7596 = vsub.f32 1.0, %v7595
      %v7597 = vmul.f32 %v7594, %v7596
      %v7598 = vadd.f32 %v7594, %v7597
      %vm7599 = vweird.f32 %v6276
      %vm7600 = vweird.f32 %v7594
      %vm7601 = vmor %vm7599, %vm7600
      %v7602 = vsel %vm7601, %v7594, %v7598
      %v7603 = vand.u32 2147483647, %v6276
      %vm7604 = vcmp.eq.f32.partialorder %v7603, 8.507059e+37
      %v7605 = vand.u32 %v6276, 2147483648
      %v7606 = vor.u32 1.1754944e-38, %v7605
      %v7607 = vsel %vm7604, %v7606, %v7602
      %v7608 = vmul.f32 1.0, %v7607
      %v7609 = vrcp.pop %v6277
      %v7610 = vmul.f32 %v6277, %v7609
      %v7611 = vsub.f32 1.0, %v7610
      %v7612 = vmul.f32 %v7609, %v7611
      %v7613 = vadd.f32 %v7609, %v7612
      %vm7614 = vweird.f32 %v6277
      %vm7615 = vweird.f32 %v7609
      %vm7616 = vmor %vm7614, %vm7615
      %v7617 = vsel %vm7616, %v7609, %v7613
      %v7618 = vand.u32 2147483647, %v6277
      %vm7619 = vcmp.eq.f32.partialorder %v7618, 8.507059e+37
      %v7620 = vand.u32 %v6277, 2147483648
      %v7621 = vor.u32 1.1754944e-38, %v7620
      %v7622 = vsel %vm7619, %v7621, %v7617
      %v7623 = vmul.f32 1.0, %v7622
      %v7624 = vrcp.pop %v6278
      %v7625 = vmul.f32 %v6278, %v7624
      %v7626 = vsub.f32 1.0, %v7625
      %v7627 = vmul.f32 %v7624, %v7626
      %v7628 = vadd.f32 %v7624, %v7627
      %vm7629 = vweird.f32 %v6278
      %vm7630 = vweird.f32 %v7624
      %vm7631 = vmor %vm7629, %vm7630
      %v7632 = vsel %vm7631, %v7624, %v7628
      %v7633 = vand.u32 2147483647, %v6278
      %vm7634 = vcmp.eq.f32.partialorder %v7633, 8.507059e+37
      %v7635 = vand.u32 %v6278, 2147483648
      %v7636 = vor.u32 1.1754944e-38, %v7635
      %v7637 = vsel %vm7634, %v7636, %v7632
      %v7638 = vmul.f32 1.0, %v7637
      %v7639 = vrcp.pop %v6279
      %v7640 = vmul.f32 %v6279, %v7639
      %v7641 = vsub.f32 1.0, %v7640
      %v7642 = vmul.f32 %v7639, %v7641
      %v7643 = vadd.f32 %v7639, %v7642
      %vm7644 = vweird.f32 %v6279
      %vm7645 = vweird.f32 %v7639
      %vm7646 = vmor %vm7644, %vm7645
      %v7647 = vsel %vm7646, %v7639, %v7643
      %v7648 = vand.u32 2147483647, %v6279
      %vm7649 = vcmp.eq.f32.partialorder %v7648, 8.507059e+37
      %v7650 = vand.u32 %v6279, 2147483648
      %v7651 = vor.u32 1.1754944e-38, %v7650
      %v7652 = vsel %vm7649, %v7651, %v7647
      %v7653 = vmul.f32 1.0, %v7652
      %v7654 = vrcp.pop %v6280
      %v7655 = vmul.f32 %v6280, %v7654
      %v7656 = vsub.f32 1.0, %v7655
      %v7657 = vmul.f32 %v7654, %v7656
      %v7658 = vadd.f32 %v7654, %v7657
      %vm7659 = vweird.f32 %v6280
      %vm7660 = vweird.f32 %v7654
      %vm7661 = vmor %vm7659, %vm7660
      %v7662 = vsel %vm7661, %v7654, %v7658
      %v7663 = vand.u32 2147483647, %v6280
      %vm7664 = vcmp.eq.f32.partialorder %v7663, 8.507059e+37
      %v7665 = vand.u32 %v6280, 2147483648
      %v7666 = vor.u32 1.1754944e-38, %v7665
      %v7667 = vsel %vm7664, %v7666, %v7662
      %v7668 = vmul.f32 1.0, %v7667
      %v7669 = vrcp.pop %v6281
      %v7670 = vmul.f32 %v6281, %v7669
      %v7671 = vsub.f32 1.0, %v7670
      %v7672 = vmul.f32 %v7669, %v7671
      %v7673 = vadd.f32 %v7669, %v7672
      %vm7674 = vweird.f32 %v6281
      %vm7675 = vweird.f32 %v7669
      %vm7676 = vmor %vm7674, %vm7675
      %v7677 = vsel %vm7676, %v7669, %v7673
      %v7678 = vand.u32 2147483647, %v6281
      %vm7679 = vcmp.eq.f32.partialorder %v7678, 8.507059e+37
      %v7680 = vand.u32 %v6281, 2147483648
      %v7681 = vor.u32 1.1754944e-38, %v7680
      %v7682 = vsel %vm7679, %v7681, %v7677
      %v7683 = vmul.f32 1.0, %v7682
      %v7684 = vrcp.pop %v6282
      %v7685 = vmul.f32 %v6282, %v7684
      %v7686 = vsub.f32 1.0, %v7685
      %v7687 = vmul.f32 %v7684, %v7686
      %v7688 = vadd.f32 %v7684, %v7687
      %vm7689 = vweird.f32 %v6282
      %vm7690 = vweird.f32 %v7684
      %vm7691 = vmor %vm7689, %vm7690
      %v7692 = vsel %vm7691, %v7684, %v7688
      %v7693 = vand.u32 2147483647, %v6282
      %vm7694 = vcmp.eq.f32.partialorder %v7693, 8.507059e+37
      %v7695 = vand.u32 %v6282, 2147483648
      %v7696 = vor.u32 1.1754944e-38, %v7695
      %v7697 = vsel %vm7694, %v7696, %v7692
      %v7698 = vmul.f32 1.0, %v7697
      %v7699 = vrcp.pop %v6283
      %v7700 = vmul.f32 %v6283, %v7699
      %v7701 = vsub.f32 1.0, %v7700
      %v7702 = vmul.f32 %v7699, %v7701
      %v7703 = vadd.f32 %v7699, %v7702
      %vm7704 = vweird.f32 %v6283
      %vm7705 = vweird.f32 %v7699
      %vm7706 = vmor %vm7704, %vm7705
      %v7707 = vsel %vm7706, %v7699, %v7703
      %v7708 = vand.u32 2147483647, %v6283
      %vm7709 = vcmp.eq.f32.partialorder %v7708, 8.507059e+37
      %v7710 = vand.u32 %v6283, 2147483648
      %v7711 = vor.u32 1.1754944e-38, %v7710
      %v7712 = vsel %vm7709, %v7711, %v7707
      %v7713 = vmul.f32 1.0, %v7712
      %v7714 = vrcp.pop %v6284
      %v7715 = vmul.f32 %v6284, %v7714
      %v7716 = vsub.f32 1.0, %v7715
      %v7717 = vmul.f32 %v7714, %v7716
      %v7718 = vadd.f32 %v7714, %v7717
      %vm7719 = vweird.f32 %v6284
      %vm7720 = vweird.f32 %v7714
      %vm7721 = vmor %vm7719, %vm7720
      %v7722 = vsel %vm7721, %v7714, %v7718
      %v7723 = vand.u32 2147483647, %v6284
      %vm7724 = vcmp.eq.f32.partialorder %v7723, 8.507059e+37
      %v7725 = vand.u32 %v6284, 2147483648
      %v7726 = vor.u32 1.1754944e-38, %v7725
      %v7727 = vsel %vm7724, %v7726, %v7722
      %v7728 = vmul.f32 1.0, %v7727
      %v7729 = vrcp.pop %v6285
      %v7730 = vmul.f32 %v6285, %v7729
      %v7731 = vsub.f32 1.0, %v7730
      %v7732 = vmul.f32 %v7729, %v7731
      %v7733 = vadd.f32 %v7729, %v7732
      %vm7734 = vweird.f32 %v6285
      %vm7735 = vweird.f32 %v7729
      %vm7736 = vmor %vm7734, %vm7735
      %v7737 = vsel %vm7736, %v7729, %v7733
      %v7738 = vand.u32 2147483647, %v6285
      %vm7739 = vcmp.eq.f32.partialorder %v7738, 8.507059e+37
      %v7740 = vand.u32 %v6285, 2147483648
      %v7741 = vor.u32 1.1754944e-38, %v7740
      %v7742 = vsel %vm7739, %v7741, %v7737
      %v7743 = vmul.f32 1.0, %v7742
      %v7744 = vrcp.pop %v6286
      %v7745 = vmul.f32 %v6286, %v7744
      %v7746 = vsub.f32 1.0, %v7745
      %v7747 = vmul.f32 %v7744, %v7746
      %v7748 = vadd.f32 %v7744, %v7747
      %vm7749 = vweird.f32 %v6286
      %vm7750 = vweird.f32 %v7744
      %vm7751 = vmor %vm7749, %vm7750
      %v7752 = vsel %vm7751, %v7744, %v7748
      %v7753 = vand.u32 2147483647, %v6286
      %vm7754 = vcmp.eq.f32.partialorder %v7753, 8.507059e+37
      %v7755 = vand.u32 %v6286, 2147483648
      %v7756 = vor.u32 1.1754944e-38, %v7755
      %v7757 = vsel %vm7754, %v7756, %v7752
      %v7758 = vmul.f32 1.0, %v7757
      %v7759 = vrcp.pop %v6287
      %v7760 = vmul.f32 %v6287, %v7759
      %v7761 = vsub.f32 1.0, %v7760
      %v7762 = vmul.f32 %v7759, %v7761
      %v7763 = vadd.f32 %v7759, %v7762
      %vm7764 = vweird.f32 %v6287
      %vm7765 = vweird.f32 %v7759
      %vm7766 = vmor %vm7764, %vm7765
      %v7767 = vsel %vm7766, %v7759, %v7763
      %v7768 = vand.u32 2147483647, %v6287
      %vm7769 = vcmp.eq.f32.partialorder %v7768, 8.507059e+37
      %v7770 = vand.u32 %v6287, 2147483648
      %v7771 = vor.u32 1.1754944e-38, %v7770
      %v7772 = vsel %vm7769, %v7771, %v7767
      %v7773 = vmul.f32 1.0, %v7772
      %v7774 = vrcp.pop %v6288
      %v7775 = vmul.f32 %v6288, %v7774
      %v7776 = vsub.f32 1.0, %v7775
      %v7777 = vmul.f32 %v7774, %v7776
      %v7778 = vadd.f32 %v7774, %v7777
      %vm7779 = vweird.f32 %v6288
      %vm7780 = vweird.f32 %v7774
      %vm7781 = vmor %vm7779, %vm7780
      %v7782 = vsel %vm7781, %v7774, %v7778
      %v7783 = vand.u32 2147483647, %v6288
      %vm7784 = vcmp.eq.f32.partialorder %v7783, 8.507059e+37
      %v7785 = vand.u32 %v6288, 2147483648
      %v7786 = vor.u32 1.1754944e-38, %v7785
      %v7787 = vsel %vm7784, %v7786, %v7782
      %v7788 = vmul.f32 1.0, %v7787
      %v7789 = vrcp.pop %v6289
      %v7790 = vmul.f32 %v6289, %v7789
      %v7791 = vsub.f32 1.0, %v7790
      %v7792 = vmul.f32 %v7789, %v7791
      %v7793 = vadd.f32 %v7789, %v7792
      %vm7794 = vweird.f32 %v6289
      %vm7795 = vweird.f32 %v7789
      %vm7796 = vmor %vm7794, %vm7795
      %v7797 = vsel %vm7796, %v7789, %v7793
      %v7798 = vand.u32 2147483647, %v6289
      %vm7799 = vcmp.eq.f32.partialorder %v7798, 8.507059e+37
      %v7800 = vand.u32 %v6289, 2147483648
      %v7801 = vor.u32 1.1754944e-38, %v7800
      %v7802 = vsel %vm7799, %v7801, %v7797
      %v7803 = vmul.f32 1.0, %v7802
      %v7804 = vrcp.pop %v6290
      %v7805 = vmul.f32 %v6290, %v7804
      %v7806 = vsub.f32 1.0, %v7805
      %v7807 = vmul.f32 %v7804, %v7806
      %v7808 = vadd.f32 %v7804, %v7807
      %vm7809 = vweird.f32 %v6290
      %vm7810 = vweird.f32 %v7804
      %vm7811 = vmor %vm7809, %vm7810
      %v7812 = vsel %vm7811, %v7804, %v7808
      %v7813 = vand.u32 2147483647, %v6290
      %vm7814 = vcmp.eq.f32.partialorder %v7813, 8.507059e+37
      %v7815 = vand.u32 %v6290, 2147483648
      %v7816 = vor.u32 1.1754944e-38, %v7815
      %v7817 = vsel %vm7814, %v7816, %v7812
      %v7818 = vmul.f32 1.0, %v7817
      %v7819 = vrcp.pop %v6291
      %v7820 = vmul.f32 %v6291, %v7819
      %v7821 = vsub.f32 1.0, %v7820
      %v7822 = vmul.f32 %v7819, %v7821
      %v7823 = vadd.f32 %v7819, %v7822
      %vm7824 = vweird.f32 %v6291
      %vm7825 = vweird.f32 %v7819
      %vm7826 = vmor %vm7824, %vm7825
      %v7827 = vsel %vm7826, %v7819, %v7823
      %v7828 = vand.u32 2147483647, %v6291
      %vm7829 = vcmp.eq.f32.partialorder %v7828, 8.507059e+37
      %v7830 = vand.u32 %v6291, 2147483648
      %v7831 = vor.u32 1.1754944e-38, %v7830
      %v7832 = vsel %vm7829, %v7831, %v7827
      %v7833 = vmul.f32 1.0, %v7832
      %v7834 = vrcp.pop %v6292
      %v7835 = vmul.f32 %v6292, %v7834
      %v7836 = vsub.f32 1.0, %v7835
      %v7837 = vmul.f32 %v7834, %v7836
      %v7838 = vadd.f32 %v7834, %v7837
      %vm7839 = vweird.f32 %v6292
      %vm7840 = vweird.f32 %v7834
      %vm7841 = vmor %vm7839, %vm7840
      %v7842 = vsel %vm7841, %v7834, %v7838
      %v7843 = vand.u32 2147483647, %v6292
      %vm7844 = vcmp.eq.f32.partialorder %v7843, 8.507059e+37
      %v7845 = vand.u32 %v6292, 2147483648
      %v7846 = vor.u32 1.1754944e-38, %v7845
      %v7847 = vsel %vm7844, %v7846, %v7842
      %v7848 = vmul.f32 1.0, %v7847
      %v7849 = vrcp.pop %v6293
      %v7850 = vmul.f32 %v6293, %v7849
      %v7851 = vsub.f32 1.0, %v7850
      %v7852 = vmul.f32 %v7849, %v7851
      %v7853 = vadd.f32 %v7849, %v7852
      %vm7854 = vweird.f32 %v6293
      %vm7855 = vweird.f32 %v7849
      %vm7856 = vmor %vm7854, %vm7855
      %v7857 = vsel %vm7856, %v7849, %v7853
      %v7858 = vand.u32 2147483647, %v6293
      %vm7859 = vcmp.eq.f32.partialorder %v7858, 8.507059e+37
      %v7860 = vand.u32 %v6293, 2147483648
      %v7861 = vor.u32 1.1754944e-38, %v7860
      %v7862 = vsel %vm7859, %v7861, %v7857
      %v7863 = vmul.f32 1.0, %v7862
      %v7864 = vrcp.pop %v6294
      %v7865 = vmul.f32 %v6294, %v7864
      %v7866 = vsub.f32 1.0, %v7865
      %v7867 = vmul.f32 %v7864, %v7866
      %v7868 = vadd.f32 %v7864, %v7867
      %vm7869 = vweird.f32 %v6294
      %vm7870 = vweird.f32 %v7864
      %vm7871 = vmor %vm7869, %vm7870
      %v7872 = vsel %vm7871, %v7864, %v7868
      %v7873 = vand.u32 2147483647, %v6294
      %vm7874 = vcmp.eq.f32.partialorder %v7873, 8.507059e+37
      %v7875 = vand.u32 %v6294, 2147483648
      %v7876 = vor.u32 1.1754944e-38, %v7875
      %v7877 = vsel %vm7874, %v7876, %v7872
      %v7878 = vmul.f32 1.0, %v7877
      %v7879 = vrcp.pop %v6295
      %v7880 = vmul.f32 %v6295, %v7879
      %v7881 = vsub.f32 1.0, %v7880
      %v7882 = vmul.f32 %v7879, %v7881
      %v7883 = vadd.f32 %v7879, %v7882
      %vm7884 = vweird.f32 %v6295
      %vm7885 = vweird.f32 %v7879
      %vm7886 = vmor %vm7884, %vm7885
      %v7887 = vsel %vm7886, %v7879, %v7883
      %v7888 = vand.u32 2147483647, %v6295
      %vm7889 = vcmp.eq.f32.partialorder %v7888, 8.507059e+37
      %v7890 = vand.u32 %v6295, 2147483648
      %v7891 = vor.u32 1.1754944e-38, %v7890
      %v7892 = vsel %vm7889, %v7891, %v7887
      %v7893 = vmul.f32 1.0, %v7892
      %v7894 = vrcp.pop %v6296
      %v7895 = vmul.f32 %v6296, %v7894
      %v7896 = vsub.f32 1.0, %v7895
      %v7897 = vmul.f32 %v7894, %v7896
      %v7898 = vadd.f32 %v7894, %v7897
      %vm7899 = vweird.f32 %v6296
      %vm7900 = vweird.f32 %v7894
      %vm7901 = vmor %vm7899, %vm7900
      %v7902 = vsel %vm7901, %v7894, %v7898
      %v7903 = vand.u32 2147483647, %v6296
      %vm7904 = vcmp.eq.f32.partialorder %v7903, 8.507059e+37
      %v7905 = vand.u32 %v6296, 2147483648
      %v7906 = vor.u32 1.1754944e-38, %v7905
      %v7907 = vsel %vm7904, %v7906, %v7902
      %v7908 = vmul.f32 1.0, %v7907
      %v7909 = vrcp.pop %v6297
      %v7910 = vmul.f32 %v6297, %v7909
      %v7911 = vsub.f32 1.0, %v7910
      %v7912 = vmul.f32 %v7909, %v7911
      %v7913 = vadd.f32 %v7909, %v7912
      %vm7914 = vweird.f32 %v6297
      %vm7915 = vweird.f32 %v7909
      %vm7916 = vmor %vm7914, %vm7915
      %v7917 = vsel %vm7916, %v7909, %v7913
      %v7918 = vand.u32 2147483647, %v6297
      %vm7919 = vcmp.eq.f32.partialorder %v7918, 8.507059e+37
      %v7920 = vand.u32 %v6297, 2147483648
      %v7921 = vor.u32 1.1754944e-38, %v7920
      %v7922 = vsel %vm7919, %v7921, %v7917
      %v7923 = vmul.f32 1.0, %v7922
      %v7924 = vrcp.pop %v6298
      %v7925 = vmul.f32 %v6298, %v7924
      %v7926 = vsub.f32 1.0, %v7925
      %v7927 = vmul.f32 %v7924, %v7926
      %v7928 = vadd.f32 %v7924, %v7927
      %vm7929 = vweird.f32 %v6298
      %vm7930 = vweird.f32 %v7924
      %vm7931 = vmor %vm7929, %vm7930
      %v7932 = vsel %vm7931, %v7924, %v7928
      %v7933 = vand.u32 2147483647, %v6298
      %vm7934 = vcmp.eq.f32.partialorder %v7933, 8.507059e+37
      %v7935 = vand.u32 %v6298, 2147483648
      %v7936 = vor.u32 1.1754944e-38, %v7935
      %v7937 = vsel %vm7934, %v7936, %v7932
      %v7938 = vmul.f32 1.0, %v7937
      %v7939 = vrcp.pop %v6299
      %v7940 = vmul.f32 %v6299, %v7939
      %v7941 = vsub.f32 1.0, %v7940
      %v7942 = vmul.f32 %v7939, %v7941
      %v7943 = vadd.f32 %v7939, %v7942
      %vm7944 = vweird.f32 %v6299
      %vm7945 = vweird.f32 %v7939
      %vm7946 = vmor %vm7944, %vm7945
      %v7947 = vsel %vm7946, %v7939, %v7943
      %v7948 = vand.u32 2147483647, %v6299
      %vm7949 = vcmp.eq.f32.partialorder %v7948, 8.507059e+37
      %v7950 = vand.u32 %v6299, 2147483648
      %v7951 = vor.u32 1.1754944e-38, %v7950
      %v7952 = vsel %vm7949, %v7951, %v7947
      %v7953 = vmul.f32 1.0, %v7952
      %v7954 = vrcp.pop %v6300
      %v7955 = vmul.f32 %v6300, %v7954
      %v7956 = vsub.f32 1.0, %v7955
      %v7957 = vmul.f32 %v7954, %v7956
      %v7958 = vadd.f32 %v7954, %v7957
      %vm7959 = vweird.f32 %v6300
      %vm7960 = vweird.f32 %v7954
      %vm7961 = vmor %vm7959, %vm7960
      %v7962 = vsel %vm7961, %v7954, %v7958
      %v7963 = vand.u32 2147483647, %v6300
      %vm7964 = vcmp.eq.f32.partialorder %v7963, 8.507059e+37
      %v7965 = vand.u32 %v6300, 2147483648
      %v7966 = vor.u32 1.1754944e-38, %v7965
      %v7967 = vsel %vm7964, %v7966, %v7962
      %v7968 = vmul.f32 1.0, %v7967
      %v7969 = vrcp.pop %v6301
      %v7970 = vmul.f32 %v6301, %v7969
      %v7971 = vsub.f32 1.0, %v7970
      %v7972 = vmul.f32 %v7969, %v7971
      %v7973 = vadd.f32 %v7969, %v7972
      %vm7974 = vweird.f32 %v6301
      %vm7975 = vweird.f32 %v7969
      %vm7976 = vmor %vm7974, %vm7975
      %v7977 = vsel %vm7976, %v7969, %v7973
      %v7978 = vand.u32 2147483647, %v6301
      %vm7979 = vcmp.eq.f32.partialorder %v7978, 8.507059e+37
      %v7980 = vand.u32 %v6301, 2147483648
      %v7981 = vor.u32 1.1754944e-38, %v7980
      %v7982 = vsel %vm7979, %v7981, %v7977
      %v7983 = vmul.f32 1.0, %v7982
      %v7984 = vrcp.pop %v6302
      %v7985 = vmul.f32 %v6302, %v7984
      %v7986 = vsub.f32 1.0, %v7985
      %v7987 = vmul.f32 %v7984, %v7986
      %v7988 = vadd.f32 %v7984, %v7987
      %vm7989 = vweird.f32 %v6302
      %vm7990 = vweird.f32 %v7984
      %vm7991 = vmor %vm7989, %vm7990
      %v7992 = vsel %vm7991, %v7984, %v7988
      %v7993 = vand.u32 2147483647, %v6302
      %vm7994 = vcmp.eq.f32.partialorder %v7993, 8.507059e+37
      %v7995 = vand.u32 %v6302, 2147483648
      %v7996 = vor.u32 1.1754944e-38, %v7995
      %v7997 = vsel %vm7994, %v7996, %v7992
      %v7998 = vmul.f32 1.0, %v7997
      %v7999 = vrcp.pop %v6303
      %v8000 = vmul.f32 %v6303, %v7999
      %v8001 = vsub.f32 1.0, %v8000
      %v8002 = vmul.f32 %v7999, %v8001
      %v8003 = vadd.f32 %v7999, %v8002
      %vm8004 = vweird.f32 %v6303
      %vm8005 = vweird.f32 %v7999
      %vm8006 = vmor %vm8004, %vm8005
      %v8007 = vsel %vm8006, %v7999, %v8003
      %v8008 = vand.u32 2147483647, %v6303
      %vm8009 = vcmp.eq.f32.partialorder %v8008, 8.507059e+37
      %v8010 = vand.u32 %v6303, 2147483648
      %v8011 = vor.u32 1.1754944e-38, %v8010
      %v8012 = vsel %vm8009, %v8011, %v8007
      %v8013 = vmul.f32 1.0, %v8012
      %v8014 = vrcp.pop %v6304
      %v8015 = vmul.f32 %v6304, %v8014
      %v8016 = vsub.f32 1.0, %v8015
      %v8017 = vmul.f32 %v8014, %v8016
      %v8018 = vadd.f32 %v8014, %v8017
      %vm8019 = vweird.f32 %v6304
      %vm8020 = vweird.f32 %v8014
      %vm8021 = vmor %vm8019, %vm8020
      %v8022 = vsel %vm8021, %v8014, %v8018
      %v8023 = vand.u32 2147483647, %v6304
      %vm8024 = vcmp.eq.f32.partialorder %v8023, 8.507059e+37
      %v8025 = vand.u32 %v6304, 2147483648
      %v8026 = vor.u32 1.1754944e-38, %v8025
      %v8027 = vsel %vm8024, %v8026, %v8022
      %v8028 = vmul.f32 1.0, %v8027
      %v8029 = vrcp.pop %v6305
      %v8030 = vmul.f32 %v6305, %v8029
      %v8031 = vsub.f32 1.0, %v8030
      %v8032 = vmul.f32 %v8029, %v8031
      %v8033 = vadd.f32 %v8029, %v8032
      %vm8034 = vweird.f32 %v6305
      %vm8035 = vweird.f32 %v8029
      %vm8036 = vmor %vm8034, %vm8035
      %v8037 = vsel %vm8036, %v8029, %v8033
      %v8038 = vand.u32 2147483647, %v6305
      %vm8039 = vcmp.eq.f32.partialorder %v8038, 8.507059e+37
      %v8040 = vand.u32 %v6305, 2147483648
      %v8041 = vor.u32 1.1754944e-38, %v8040
      %v8042 = vsel %vm8039, %v8041, %v8037
      %v8043 = vmul.f32 1.0, %v8042
      %v8044 = vrcp.pop %v6306
      %v8045 = vmul.f32 %v6306, %v8044
      %v8046 = vsub.f32 1.0, %v8045
      %v8047 = vmul.f32 %v8044, %v8046
      %v8048 = vadd.f32 %v8044, %v8047
      %vm8049 = vweird.f32 %v6306
      %vm8050 = vweird.f32 %v8044
      %vm8051 = vmor %vm8049, %vm8050
      %v8052 = vsel %vm8051, %v8044, %v8048
      %v8053 = vand.u32 2147483647, %v6306
      %vm8054 = vcmp.eq.f32.partialorder %v8053, 8.507059e+37
      %v8055 = vand.u32 %v6306, 2147483648
      %v8056 = vor.u32 1.1754944e-38, %v8055
      %v8057 = vsel %vm8054, %v8056, %v8052
      %v8058 = vmul.f32 1.0, %v8057
      %v8059 = vrcp.pop %v6307
      %v8060 = vmul.f32 %v6307, %v8059
      %v8061 = vsub.f32 1.0, %v8060
      %v8062 = vmul.f32 %v8059, %v8061
      %v8063 = vadd.f32 %v8059, %v8062
      %vm8064 = vweird.f32 %v6307
      %vm8065 = vweird.f32 %v8059
      %vm8066 = vmor %vm8064, %vm8065
      %v8067 = vsel %vm8066, %v8059, %v8063
      %v8068 = vand.u32 2147483647, %v6307
      %vm8069 = vcmp.eq.f32.partialorder %v8068, 8.507059e+37
      %v8070 = vand.u32 %v6307, 2147483648
      %v8071 = vor.u32 1.1754944e-38, %v8070
      %v8072 = vsel %vm8069, %v8071, %v8067
      %v8073 = vmul.f32 1.0, %v8072
      %v8074 = vrcp.pop %v6308
      %v8075 = vmul.f32 %v6308, %v8074
      %v8076 = vsub.f32 1.0, %v8075
      %v8077 = vmul.f32 %v8074, %v8076
      %v8078 = vadd.f32 %v8074, %v8077
      %vm8079 = vweird.f32 %v6308
      %vm8080 = vweird.f32 %v8074
      %vm8081 = vmor %vm8079, %vm8080
      %v8082 = vsel %vm8081, %v8074, %v8078
      %v8083 = vand.u32 2147483647, %v6308
      %vm8084 = vcmp.eq.f32.partialorder %v8083, 8.507059e+37
      %v8085 = vand.u32 %v6308, 2147483648
      %v8086 = vor.u32 1.1754944e-38, %v8085
      %v8087 = vsel %vm8084, %v8086, %v8082
      %v8088 = vmul.f32 1.0, %v8087
      %v8089 = vrcp.pop %v6309
      %v8090 = vmul.f32 %v6309, %v8089
      %v8091 = vsub.f32 1.0, %v8090
      %v8092 = vmul.f32 %v8089, %v8091
      %v8093 = vadd.f32 %v8089, %v8092
      %vm8094 = vweird.f32 %v6309
      %vm8095 = vweird.f32 %v8089
      %vm8096 = vmor %vm8094, %vm8095
      %v8097 = vsel %vm8096, %v8089, %v8093
      %v8098 = vand.u32 2147483647, %v6309
      %vm8099 = vcmp.eq.f32.partialorder %v8098, 8.507059e+37
      %v8100 = vand.u32 %v6309, 2147483648
      %v8101 = vor.u32 1.1754944e-38, %v8100
      %v8102 = vsel %vm8099, %v8101, %v8097
      %v8103 = vmul.f32 1.0, %v8102
      %v8104 = vrcp.pop %v6310
      %v8105 = vmul.f32 %v6310, %v8104
      %v8106 = vsub.f32 1.0, %v8105
      %v8107 = vmul.f32 %v8104, %v8106
      %v8108 = vadd.f32 %v8104, %v8107
      %vm8109 = vweird.f32 %v6310
      %vm8110 = vweird.f32 %v8104
      %vm8111 = vmor %vm8109, %vm8110
      %v8112 = vsel %vm8111, %v8104, %v8108
      %v8113 = vand.u32 2147483647, %v6310
      %vm8114 = vcmp.eq.f32.partialorder %v8113, 8.507059e+37
      %v8115 = vand.u32 %v6310, 2147483648
      %v8116 = vor.u32 1.1754944e-38, %v8115
      %v8117 = vsel %vm8114, %v8116, %v8112
      %v8118 = vmul.f32 1.0, %v8117
      %v8119 = vrcp.pop %v6311
      %v8120 = vmul.f32 %v6311, %v8119
      %v8121 = vsub.f32 1.0, %v8120
      %v8122 = vmul.f32 %v8119, %v8121
      %v8123 = vadd.f32 %v8119, %v8122
      %vm8124 = vweird.f32 %v6311
      %vm8125 = vweird.f32 %v8119
      %vm8126 = vmor %vm8124, %vm8125
      %v8127 = vsel %vm8126, %v8119, %v8123
      %v8128 = vand.u32 2147483647, %v6311
      %vm8129 = vcmp.eq.f32.partialorder %v8128, 8.507059e+37
      %v8130 = vand.u32 %v6311, 2147483648
      %v8131 = vor.u32 1.1754944e-38, %v8130
      %v8132 = vsel %vm8129, %v8131, %v8127
      %v8133 = vmul.f32 1.0, %v8132
      %v8134 = vrcp.pop %v6312
      %v8135 = vmul.f32 %v6312, %v8134
      %v8136 = vsub.f32 1.0, %v8135
      %v8137 = vmul.f32 %v8134, %v8136
      %v8138 = vadd.f32 %v8134, %v8137
      %vm8139 = vweird.f32 %v6312
      %vm8140 = vweird.f32 %v8134
      %vm8141 = vmor %vm8139, %vm8140
      %v8142 = vsel %vm8141, %v8134, %v8138
      %v8143 = vand.u32 2147483647, %v6312
      %vm8144 = vcmp.eq.f32.partialorder %v8143, 8.507059e+37
      %v8145 = vand.u32 %v6312, 2147483648
      %v8146 = vor.u32 1.1754944e-38, %v8145
      %v8147 = vsel %vm8144, %v8146, %v8142
      %v8148 = vmul.f32 1.0, %v8147
      %v8149 = vrcp.pop %v6313
      %v8150 = vmul.f32 %v6313, %v8149
      %v8151 = vsub.f32 1.0, %v8150
      %v8152 = vmul.f32 %v8149, %v8151
      %v8153 = vadd.f32 %v8149, %v8152
      %vm8154 = vweird.f32 %v6313
      %vm8155 = vweird.f32 %v8149
      %vm8156 = vmor %vm8154, %vm8155
      %v8157 = vsel %vm8156, %v8149, %v8153
      %v8158 = vand.u32 2147483647, %v6313
      %vm8159 = vcmp.eq.f32.partialorder %v8158, 8.507059e+37
      %v8160 = vand.u32 %v6313, 2147483648
      %v8161 = vor.u32 1.1754944e-38, %v8160
      %v8162 = vsel %vm8159, %v8161, %v8157
      %v8163 = vmul.f32 1.0, %v8162
      %v8164 = vrcp.pop %v6314
      %v8165 = vmul.f32 %v6314, %v8164
      %v8166 = vsub.f32 1.0, %v8165
      %v8167 = vmul.f32 %v8164, %v8166
      %v8168 = vadd.f32 %v8164, %v8167
      %vm8169 = vweird.f32 %v6314
      %vm8170 = vweird.f32 %v8164
      %vm8171 = vmor %vm8169, %vm8170
      %v8172 = vsel %vm8171, %v8164, %v8168
      %v8173 = vand.u32 2147483647, %v6314
      %vm8174 = vcmp.eq.f32.partialorder %v8173, 8.507059e+37
      %v8175 = vand.u32 %v6314, 2147483648
      %v8176 = vor.u32 1.1754944e-38, %v8175
      %v8177 = vsel %vm8174, %v8176, %v8172
      %v8178 = vmul.f32 1.0, %v8177
      %v8179 = vrcp.pop %v6315
      %v8180 = vmul.f32 %v6315, %v8179
      %v8181 = vsub.f32 1.0, %v8180
      %v8182 = vmul.f32 %v8179, %v8181
      %v8183 = vadd.f32 %v8179, %v8182
      %vm8184 = vweird.f32 %v6315
      %vm8185 = vweird.f32 %v8179
      %vm8186 = vmor %vm8184, %vm8185
      %v8187 = vsel %vm8186, %v8179, %v8183
      %v8188 = vand.u32 2147483647, %v6315
      %vm8189 = vcmp.eq.f32.partialorder %v8188, 8.507059e+37
      %v8190 = vand.u32 %v6315, 2147483648
      %v8191 = vor.u32 1.1754944e-38, %v8190
      %v8192 = vsel %vm8189, %v8191, %v8187
      %v8193 = vmul.f32 1.0, %v8192
      %v8194 = vrcp.pop %v6316
      %v8195 = vmul.f32 %v6316, %v8194
      %v8196 = vsub.f32 1.0, %v8195
      %v8197 = vmul.f32 %v8194, %v8196
      %v8198 = vadd.f32 %v8194, %v8197
      %vm8199 = vweird.f32 %v6316
      %vm8200 = vweird.f32 %v8194
      %vm8201 = vmor %vm8199, %vm8200
      %v8202 = vsel %vm8201, %v8194, %v8198
      %v8203 = vand.u32 2147483647, %v6316
      %vm8204 = vcmp.eq.f32.partialorder %v8203, 8.507059e+37
      %v8205 = vand.u32 %v6316, 2147483648
      %v8206 = vor.u32 1.1754944e-38, %v8205
      %v8207 = vsel %vm8204, %v8206, %v8202
      %v8208 = vmul.f32 1.0, %v8207
      %v8209 = vrcp.pop %v6317
      %v8210 = vmul.f32 %v6317, %v8209
      %v8211 = vsub.f32 1.0, %v8210
      %v8212 = vmul.f32 %v8209, %v8211
      %v8213 = vadd.f32 %v8209, %v8212
      %vm8214 = vweird.f32 %v6317
      %vm8215 = vweird.f32 %v8209
      %vm8216 = vmor %vm8214, %vm8215
      %v8217 = vsel %vm8216, %v8209, %v8213
      %v8218 = vand.u32 2147483647, %v6317
      %vm8219 = vcmp.eq.f32.partialorder %v8218, 8.507059e+37
      %v8220 = vand.u32 %v6317, 2147483648
      %v8221 = vor.u32 1.1754944e-38, %v8220
      %v8222 = vsel %vm8219, %v8221, %v8217
      %v8223 = vmul.f32 1.0, %v8222
      %v8224 = vrcp.pop %v6318
      %v8225 = vmul.f32 %v6318, %v8224
      %v8226 = vsub.f32 1.0, %v8225
      %v8227 = vmul.f32 %v8224, %v8226
      %v8228 = vadd.f32 %v8224, %v8227
      %vm8229 = vweird.f32 %v6318
      %vm8230 = vweird.f32 %v8224
      %vm8231 = vmor %vm8229, %vm8230
      %v8232 = vsel %vm8231, %v8224, %v8228
      %v8233 = vand.u32 2147483647, %v6318
      %vm8234 = vcmp.eq.f32.partialorder %v8233, 8.507059e+37
      %v8235 = vand.u32 %v6318, 2147483648
      %v8236 = vor.u32 1.1754944e-38, %v8235
      %v8237 = vsel %vm8234, %v8236, %v8232
      %v8238 = vmul.f32 1.0, %v8237
      %v8239 = vrcp.pop %v6319
      %v8240 = vmul.f32 %v6319, %v8239
      %v8241 = vsub.f32 1.0, %v8240
      %v8242 = vmul.f32 %v8239, %v8241
      %v8243 = vadd.f32 %v8239, %v8242
      %vm8244 = vweird.f32 %v6319
      %vm8245 = vweird.f32 %v8239
      %vm8246 = vmor %vm8244, %vm8245
      %v8247 = vsel %vm8246, %v8239, %v8243
      %v8248 = vand.u32 2147483647, %v6319
      %vm8249 = vcmp.eq.f32.partialorder %v8248, 8.507059e+37
      %v8250 = vand.u32 %v6319, 2147483648
      %v8251 = vor.u32 1.1754944e-38, %v8250
      %v8252 = vsel %vm8249, %v8251, %v8247
      %v8253 = vmul.f32 1.0, %v8252
      %v8254 = vrcp.pop %v6320
      %v8255 = vmul.f32 %v6320, %v8254
      %v8256 = vsub.f32 1.0, %v8255
      %v8257 = vmul.f32 %v8254, %v8256
      %v8258 = vadd.f32 %v8254, %v8257
      %vm8259 = vweird.f32 %v6320
      %vm8260 = vweird.f32 %v8254
      %vm8261 = vmor %vm8259, %vm8260
      %v8262 = vsel %vm8261, %v8254, %v8258
      %v8263 = vand.u32 2147483647, %v6320
      %vm8264 = vcmp.eq.f32.partialorder %v8263, 8.507059e+37
      %v8265 = vand.u32 %v6320, 2147483648
      %v8266 = vor.u32 1.1754944e-38, %v8265
      %v8267 = vsel %vm8264, %v8266, %v8262
      %v8268 = vmul.f32 1.0, %v8267
      %v8269 = vrcp.pop %v6321
      %v8270 = vmul.f32 %v6321, %v8269
      %v8271 = vsub.f32 1.0, %v8270
      %v8272 = vmul.f32 %v8269, %v8271
      %v8273 = vadd.f32 %v8269, %v8272
      %vm8274 = vweird.f32 %v6321
      %vm8275 = vweird.f32 %v8269
      %vm8276 = vmor %vm8274, %vm8275
      %v8277 = vsel %vm8276, %v8269, %v8273
      %v8278 = vand.u32 2147483647, %v6321
      %vm8279 = vcmp.eq.f32.partialorder %v8278, 8.507059e+37
      %v8280 = vand.u32 %v6321, 2147483648
      %v8281 = vor.u32 1.1754944e-38, %v8280
      %v8282 = vsel %vm8279, %v8281, %v8277
      %v8283 = vmul.f32 1.0, %v8282
      %v8284 = vrcp.pop %v6322
      %v8285 = vmul.f32 %v6322, %v8284
      %v8286 = vsub.f32 1.0, %v8285
      %v8287 = vmul.f32 %v8284, %v8286
      %v8288 = vadd.f32 %v8284, %v8287
      %vm8289 = vweird.f32 %v6322
      %vm8290 = vweird.f32 %v8284
      %vm8291 = vmor %vm8289, %vm8290
      %v8292 = vsel %vm8291, %v8284, %v8288
      %v8293 = vand.u32 2147483647, %v6322
      %vm8294 = vcmp.eq.f32.partialorder %v8293, 8.507059e+37
      %v8295 = vand.u32 %v6322, 2147483648
      %v8296 = vor.u32 1.1754944e-38, %v8295
      %v8297 = vsel %vm8294, %v8296, %v8292
      %v8298 = vmul.f32 1.0, %v8297
      %v8299 = vrcp.pop %v6323
      %v8300 = vmul.f32 %v6323, %v8299
      %v8301 = vsub.f32 1.0, %v8300
      %v8302 = vmul.f32 %v8299, %v8301
      %v8303 = vadd.f32 %v8299, %v8302
      %vm8304 = vweird.f32 %v6323
      %vm8305 = vweird.f32 %v8299
      %vm8306 = vmor %vm8304, %vm8305
      %v8307 = vsel %vm8306, %v8299, %v8303
      %v8308 = vand.u32 2147483647, %v6323
      %vm8309 = vcmp.eq.f32.partialorder %v8308, 8.507059e+37
      %v8310 = vand.u32 %v6323, 2147483648
      %v8311 = vor.u32 1.1754944e-38, %v8310
      %v8312 = vsel %vm8309, %v8311, %v8307
      %v8313 = vmul.f32 1.0, %v8312
      %v8314 = vrcp.pop %v6324
      %v8315 = vmul.f32 %v6324, %v8314
      %v8316 = vsub.f32 1.0, %v8315
      %v8317 = vmul.f32 %v8314, %v8316
      %v8318 = vadd.f32 %v8314, %v8317
      %vm8319 = vweird.f32 %v6324
      %vm8320 = vweird.f32 %v8314
      %vm8321 = vmor %vm8319, %vm8320
      %v8322 = vsel %vm8321, %v8314, %v8318
      %v8323 = vand.u32 2147483647, %v6324
      %vm8324 = vcmp.eq.f32.partialorder %v8323, 8.507059e+37
      %v8325 = vand.u32 %v6324, 2147483648
      %v8326 = vor.u32 1.1754944e-38, %v8325
      %v8327 = vsel %vm8324, %v8326, %v8322
      %v8328 = vmul.f32 1.0, %v8327
      %v8329 = vrcp.pop %v6325
      %v8330 = vmul.f32 %v6325, %v8329
      %v8331 = vsub.f32 1.0, %v8330
      %v8332 = vmul.f32 %v8329, %v8331
      %v8333 = vadd.f32 %v8329, %v8332
      %vm8334 = vweird.f32 %v6325
      %vm8335 = vweird.f32 %v8329
      %vm8336 = vmor %vm8334, %vm8335
      %v8337 = vsel %vm8336, %v8329, %v8333
      %v8338 = vand.u32 2147483647, %v6325
      %vm8339 = vcmp.eq.f32.partialorder %v8338, 8.507059e+37
      %v8340 = vand.u32 %v6325, 2147483648
      %v8341 = vor.u32 1.1754944e-38, %v8340
      %v8342 = vsel %vm8339, %v8341, %v8337
      %v8343 = vmul.f32 1.0, %v8342
      %v8344 = vrcp.pop %v6326
      %v8345 = vmul.f32 %v6326, %v8344
      %v8346 = vsub.f32 1.0, %v8345
      %v8347 = vmul.f32 %v8344, %v8346
      %v8348 = vadd.f32 %v8344, %v8347
      %vm8349 = vweird.f32 %v6326
      %vm8350 = vweird.f32 %v8344
      %vm8351 = vmor %vm8349, %vm8350
      %v8352 = vsel %vm8351, %v8344, %v8348
      %v8353 = vand.u32 2147483647, %v6326
      %vm8354 = vcmp.eq.f32.partialorder %v8353, 8.507059e+37
      %v8355 = vand.u32 %v6326, 2147483648
      %v8356 = vor.u32 1.1754944e-38, %v8355
      %v8357 = vsel %vm8354, %v8356, %v8352
      %v8358 = vmul.f32 1.0, %v8357
      %v8359 = vrcp.pop %v6327
      %v8360 = vmul.f32 %v6327, %v8359
      %v8361 = vsub.f32 1.0, %v8360
      %v8362 = vmul.f32 %v8359, %v8361
      %v8363 = vadd.f32 %v8359, %v8362
      %vm8364 = vweird.f32 %v6327
      %vm8365 = vweird.f32 %v8359
      %vm8366 = vmor %vm8364, %vm8365
      %v8367 = vsel %vm8366, %v8359, %v8363
      %v8368 = vand.u32 2147483647, %v6327
      %vm8369 = vcmp.eq.f32.partialorder %v8368, 8.507059e+37
      %v8370 = vand.u32 %v6327, 2147483648
      %v8371 = vor.u32 1.1754944e-38, %v8370
      %v8372 = vsel %vm8369, %v8371, %v8367
      %v8373 = vmul.f32 1.0, %v8372
      %v8374 = vrcp.pop %v6328
      %v8375 = vmul.f32 %v6328, %v8374
      %v8376 = vsub.f32 1.0, %v8375
      %v8377 = vmul.f32 %v8374, %v8376
      %v8378 = vadd.f32 %v8374, %v8377
      %vm8379 = vweird.f32 %v6328
      %vm8380 = vweird.f32 %v8374
      %vm8381 = vmor %vm8379, %vm8380
      %v8382 = vsel %vm8381, %v8374, %v8378
      %v8383 = vand.u32 2147483647, %v6328
      %vm8384 = vcmp.eq.f32.partialorder %v8383, 8.507059e+37
      %v8385 = vand.u32 %v6328, 2147483648
      %v8386 = vor.u32 1.1754944e-38, %v8385
      %v8387 = vsel %vm8384, %v8386, %v8382
      %v8388 = vmul.f32 1.0, %v8387
      %v8389 = vrcp.pop %v6329
      %v8390 = vmul.f32 %v6329, %v8389
      %v8391 = vsub.f32 1.0, %v8390
      %v8392 = vmul.f32 %v8389, %v8391
      %v8393 = vadd.f32 %v8389, %v8392
      %vm8394 = vweird.f32 %v6329
      %vm8395 = vweird.f32 %v8389
      %vm8396 = vmor %vm8394, %vm8395
      %v8397 = vsel %vm8396, %v8389, %v8393
      %v8398 = vand.u32 2147483647, %v6329
      %vm8399 = vcmp.eq.f32.partialorder %v8398, 8.507059e+37
      %v8400 = vand.u32 %v6329, 2147483648
      %v8401 = vor.u32 1.1754944e-38, %v8400
      %v8402 = vsel %vm8399, %v8401, %v8397
      %v8403 = vmul.f32 1.0, %v8402
      %v8404 = vrcp.pop %v6330
      %v8405 = vmul.f32 %v6330, %v8404
      %v8406 = vsub.f32 1.0, %v8405
      %v8407 = vmul.f32 %v8404, %v8406
      %v8408 = vadd.f32 %v8404, %v8407
      %vm8409 = vweird.f32 %v6330
      %vm8410 = vweird.f32 %v8404
      %vm8411 = vmor %vm8409, %vm8410
      %v8412 = vsel %vm8411, %v8404, %v8408
      %v8413 = vand.u32 2147483647, %v6330
      %vm8414 = vcmp.eq.f32.partialorder %v8413, 8.507059e+37
      %v8415 = vand.u32 %v6330, 2147483648
      %v8416 = vor.u32 1.1754944e-38, %v8415
      %v8417 = vsel %vm8414, %v8416, %v8412
      %v8418 = vmul.f32 1.0, %v8417
      %v8419 = vrcp.pop %v6331
      %v8420 = vmul.f32 %v6331, %v8419
      %v8421 = vsub.f32 1.0, %v8420
      %v8422 = vmul.f32 %v8419, %v8421
      %v8423 = vadd.f32 %v8419, %v8422
      %vm8424 = vweird.f32 %v6331
      %vm8425 = vweird.f32 %v8419
      %vm8426 = vmor %vm8424, %vm8425
      %v8427 = vsel %vm8426, %v8419, %v8423
      %v8428 = vand.u32 2147483647, %v6331
      %vm8429 = vcmp.eq.f32.partialorder %v8428, 8.507059e+37
      %v8430 = vand.u32 %v6331, 2147483648
      %v8431 = vor.u32 1.1754944e-38, %v8430
      %v8432 = vsel %vm8429, %v8431, %v8427
      %v8433 = vmul.f32 1.0, %v8432
      %v8434 = vrcp.pop %v6332
      %v8435 = vmul.f32 %v6332, %v8434
      %v8436 = vsub.f32 1.0, %v8435
      %v8437 = vmul.f32 %v8434, %v8436
      %v8438 = vadd.f32 %v8434, %v8437
      %vm8439 = vweird.f32 %v6332
      %vm8440 = vweird.f32 %v8434
      %vm8441 = vmor %vm8439, %vm8440
      %v8442 = vsel %vm8441, %v8434, %v8438
      %v8443 = vand.u32 2147483647, %v6332
      %vm8444 = vcmp.eq.f32.partialorder %v8443, 8.507059e+37
      %v8445 = vand.u32 %v6332, 2147483648
      %v8446 = vor.u32 1.1754944e-38, %v8445
      %v8447 = vsel %vm8444, %v8446, %v8442
      %v8448 = vmul.f32 1.0, %v8447
      %v8449 = vrcp.pop %v6333
      %v8450 = vmul.f32 %v6333, %v8449
      %v8451 = vsub.f32 1.0, %v8450
      %v8452 = vmul.f32 %v8449, %v8451
      %v8453 = vadd.f32 %v8449, %v8452
      %vm8454 = vweird.f32 %v6333
      %vm8455 = vweird.f32 %v8449
      %vm8456 = vmor %vm8454, %vm8455
      %v8457 = vsel %vm8456, %v8449, %v8453
      %v8458 = vand.u32 2147483647, %v6333
      %vm8459 = vcmp.eq.f32.partialorder %v8458, 8.507059e+37
      %v8460 = vand.u32 %v6333, 2147483648
      %v8461 = vor.u32 1.1754944e-38, %v8460
      %v8462 = vsel %vm8459, %v8461, %v8457
      %v8463 = vmul.f32 1.0, %v8462
      %v8464 = vrcp.pop %v6334
      %v8465 = vmul.f32 %v6334, %v8464
      %v8466 = vsub.f32 1.0, %v8465
      %v8467 = vmul.f32 %v8464, %v8466
      %v8468 = vadd.f32 %v8464, %v8467
      %vm8469 = vweird.f32 %v6334
      %vm8470 = vweird.f32 %v8464
      %vm8471 = vmor %vm8469, %vm8470
      %v8472 = vsel %vm8471, %v8464, %v8468
      %v8473 = vand.u32 2147483647, %v6334
      %vm8474 = vcmp.eq.f32.partialorder %v8473, 8.507059e+37
      %v8475 = vand.u32 %v6334, 2147483648
      %v8476 = vor.u32 1.1754944e-38, %v8475
      %v8477 = vsel %vm8474, %v8476, %v8472
      %v8478 = vmul.f32 1.0, %v8477
      %v8479 = vrcp.pop %v6335
      %v8480 = vmul.f32 %v6335, %v8479
      %v8481 = vsub.f32 1.0, %v8480
      %v8482 = vmul.f32 %v8479, %v8481
      %v8483 = vadd.f32 %v8479, %v8482
      %vm8484 = vweird.f32 %v6335
      %vm8485 = vweird.f32 %v8479
      %vm8486 = vmor %vm8484, %vm8485
      %v8487 = vsel %vm8486, %v8479, %v8483
      %v8488 = vand.u32 2147483647, %v6335
      %vm8489 = vcmp.eq.f32.partialorder %v8488, 8.507059e+37
      %v8490 = vand.u32 %v6335, 2147483648
      %v8491 = vor.u32 1.1754944e-38, %v8490
      %v8492 = vsel %vm8489, %v8491, %v8487
      %v8493 = vmul.f32 1.0, %v8492
      %v8494 = vrcp.pop %v6336
      %v8495 = vmul.f32 %v6336, %v8494
      %v8496 = vsub.f32 1.0, %v8495
      %v8497 = vmul.f32 %v8494, %v8496
      %v8498 = vadd.f32 %v8494, %v8497
      %vm8499 = vweird.f32 %v6336
      %vm8500 = vweird.f32 %v8494
      %vm8501 = vmor %vm8499, %vm8500
      %v8502 = vsel %vm8501, %v8494, %v8498
      %v8503 = vand.u32 2147483647, %v6336
      %vm8504 = vcmp.eq.f32.partialorder %v8503, 8.507059e+37
      %v8505 = vand.u32 %v6336, 2147483648
      %v8506 = vor.u32 1.1754944e-38, %v8505
      %v8507 = vsel %vm8504, %v8506, %v8502
      %v8508 = vmul.f32 1.0, %v8507
      %v8509 = vrcp.pop %v6337
      %v8510 = vmul.f32 %v6337, %v8509
      %v8511 = vsub.f32 1.0, %v8510
      %v8512 = vmul.f32 %v8509, %v8511
      %v8513 = vadd.f32 %v8509, %v8512
      %vm8514 = vweird.f32 %v6337
      %vm8515 = vweird.f32 %v8509
      %vm8516 = vmor %vm8514, %vm8515
      %v8517 = vsel %vm8516, %v8509, %v8513
      %v8518 = vand.u32 2147483647, %v6337
      %vm8519 = vcmp.eq.f32.partialorder %v8518, 8.507059e+37
      %v8520 = vand.u32 %v6337, 2147483648
      %v8521 = vor.u32 1.1754944e-38, %v8520
      %v8522 = vsel %vm8519, %v8521, %v8517
      %v8523 = vmul.f32 1.0, %v8522
      %v8524 = vrcp.pop %v6338
      %v8525 = vmul.f32 %v6338, %v8524
      %v8526 = vsub.f32 1.0, %v8525
      %v8527 = vmul.f32 %v8524, %v8526
      %v8528 = vadd.f32 %v8524, %v8527
      %vm8529 = vweird.f32 %v6338
      %vm8530 = vweird.f32 %v8524
      %vm8531 = vmor %vm8529, %vm8530
      %v8532 = vsel %vm8531, %v8524, %v8528
      %v8533 = vand.u32 2147483647, %v6338
      %vm8534 = vcmp.eq.f32.partialorder %v8533, 8.507059e+37
      %v8535 = vand.u32 %v6338, 2147483648
      %v8536 = vor.u32 1.1754944e-38, %v8535
      %v8537 = vsel %vm8534, %v8536, %v8532
      %v8538 = vmul.f32 1.0, %v8537
      %v8539 = vrcp.pop %v6339
      %v8540 = vmul.f32 %v6339, %v8539
      %v8541 = vsub.f32 1.0, %v8540
      %v8542 = vmul.f32 %v8539, %v8541
      %v8543 = vadd.f32 %v8539, %v8542
      %vm8544 = vweird.f32 %v6339
      %vm8545 = vweird.f32 %v8539
      %vm8546 = vmor %vm8544, %vm8545
      %v8547 = vsel %vm8546, %v8539, %v8543
      %v8548 = vand.u32 2147483647, %v6339
      %vm8549 = vcmp.eq.f32.partialorder %v8548, 8.507059e+37
      %v8550 = vand.u32 %v6339, 2147483648
      %v8551 = vor.u32 1.1754944e-38, %v8550
      %v8552 = vsel %vm8549, %v8551, %v8547
      %v8553 = vmul.f32 1.0, %v8552
      %v8554 = vrcp.pop %v6340
      %v8555 = vmul.f32 %v6340, %v8554
      %v8556 = vsub.f32 1.0, %v8555
      %v8557 = vmul.f32 %v8554, %v8556
      %v8558 = vadd.f32 %v8554, %v8557
      %vm8559 = vweird.f32 %v6340
      %vm8560 = vweird.f32 %v8554
      %vm8561 = vmor %vm8559, %vm8560
      %v8562 = vsel %vm8561, %v8554, %v8558
      %v8563 = vand.u32 2147483647, %v6340
      %vm8564 = vcmp.eq.f32.partialorder %v8563, 8.507059e+37
      %v8565 = vand.u32 %v6340, 2147483648
      %v8566 = vor.u32 1.1754944e-38, %v8565
      %v8567 = vsel %vm8564, %v8566, %v8562
      %v8568 = vmul.f32 1.0, %v8567
      %v8569 = vrcp.pop %v6341
      %v8570 = vmul.f32 %v6341, %v8569
      %v8571 = vsub.f32 1.0, %v8570
      %v8572 = vmul.f32 %v8569, %v8571
      %v8573 = vadd.f32 %v8569, %v8572
      %vm8574 = vweird.f32 %v6341
      %vm8575 = vweird.f32 %v8569
      %vm8576 = vmor %vm8574, %vm8575
      %v8577 = vsel %vm8576, %v8569, %v8573
      %v8578 = vand.u32 2147483647, %v6341
      %vm8579 = vcmp.eq.f32.partialorder %v8578, 8.507059e+37
      %v8580 = vand.u32 %v6341, 2147483648
      %v8581 = vor.u32 1.1754944e-38, %v8580
      %v8582 = vsel %vm8579, %v8581, %v8577
      %v8583 = vmul.f32 1.0, %v8582
      %v8584 = vrcp.pop %v6342
      %v8585 = vmul.f32 %v6342, %v8584
      %v8586 = vsub.f32 1.0, %v8585
      %v8587 = vmul.f32 %v8584, %v8586
      %v8588 = vadd.f32 %v8584, %v8587
      %vm8589 = vweird.f32 %v6342
      %vm8590 = vweird.f32 %v8584
      %vm8591 = vmor %vm8589, %vm8590
      %v8592 = vsel %vm8591, %v8584, %v8588
      %v8593 = vand.u32 2147483647, %v6342
      %vm8594 = vcmp.eq.f32.partialorder %v8593, 8.507059e+37
      %v8595 = vand.u32 %v6342, 2147483648
      %v8596 = vor.u32 1.1754944e-38, %v8595
      %v8597 = vsel %vm8594, %v8596, %v8592
      %v8598 = vmul.f32 1.0, %v8597
      %v8599 = vrcp.pop %v6343
      %v8600 = vmul.f32 %v6343, %v8599
      %v8601 = vsub.f32 1.0, %v8600
      %v8602 = vmul.f32 %v8599, %v8601
      %v8603 = vadd.f32 %v8599, %v8602
      %vm8604 = vweird.f32 %v6343
      %vm8605 = vweird.f32 %v8599
      %vm8606 = vmor %vm8604, %vm8605
      %v8607 = vsel %vm8606, %v8599, %v8603
      %v8608 = vand.u32 2147483647, %v6343
      %vm8609 = vcmp.eq.f32.partialorder %v8608, 8.507059e+37
      %v8610 = vand.u32 %v6343, 2147483648
      %v8611 = vor.u32 1.1754944e-38, %v8610
      %v8612 = vsel %vm8609, %v8611, %v8607
      %v8613 = vmul.f32 1.0, %v8612
      %v8614 = vrcp.pop %v6344
      %v8615 = vmul.f32 %v6344, %v8614
      %v8616 = vsub.f32 1.0, %v8615
      %v8617 = vmul.f32 %v8614, %v8616
      %v8618 = vadd.f32 %v8614, %v8617
      %vm8619 = vweird.f32 %v6344
      %vm8620 = vweird.f32 %v8614
      %vm8621 = vmor %vm8619, %vm8620
      %v8622 = vsel %vm8621, %v8614, %v8618
      %v8623 = vand.u32 2147483647, %v6344
      %vm8624 = vcmp.eq.f32.partialorder %v8623, 8.507059e+37
      %v8625 = vand.u32 %v6344, 2147483648
      %v8626 = vor.u32 1.1754944e-38, %v8625
      %v8627 = vsel %vm8624, %v8626, %v8622
      %v8628 = vmul.f32 1.0, %v8627
      %v8629 = vrcp.pop %v6345
      %v8630 = vmul.f32 %v6345, %v8629
      %v8631 = vsub.f32 1.0, %v8630
      %v8632 = vmul.f32 %v8629, %v8631
      %v8633 = vadd.f32 %v8629, %v8632
      %vm8634 = vweird.f32 %v6345
      %vm8635 = vweird.f32 %v8629
      %vm8636 = vmor %vm8634, %vm8635
      %v8637 = vsel %vm8636, %v8629, %v8633
      %v8638 = vand.u32 2147483647, %v6345
      %vm8639 = vcmp.eq.f32.partialorder %v8638, 8.507059e+37
      %v8640 = vand.u32 %v6345, 2147483648
      %v8641 = vor.u32 1.1754944e-38, %v8640
      %v8642 = vsel %vm8639, %v8641, %v8637
      %v8643 = vmul.f32 1.0, %v8642
      %v8644 = vrcp.pop %v6346
      %v8645 = vmul.f32 %v6346, %v8644
      %v8646 = vsub.f32 1.0, %v8645
      %v8647 = vmul.f32 %v8644, %v8646
      %v8648 = vadd.f32 %v8644, %v8647
      %vm8649 = vweird.f32 %v6346
      %vm8650 = vweird.f32 %v8644
      %vm8651 = vmor %vm8649, %vm8650
      %v8652 = vsel %vm8651, %v8644, %v8648
      %v8653 = vand.u32 2147483647, %v6346
      %vm8654 = vcmp.eq.f32.partialorder %v8653, 8.507059e+37
      %v8655 = vand.u32 %v6346, 2147483648
      %v8656 = vor.u32 1.1754944e-38, %v8655
      %v8657 = vsel %vm8654, %v8656, %v8652
      %v8658 = vmul.f32 1.0, %v8657
      %v8659 = vrcp.pop %v6347
      %v8660 = vmul.f32 %v6347, %v8659
      %v8661 = vsub.f32 1.0, %v8660
      %v8662 = vmul.f32 %v8659, %v8661
      %v8663 = vadd.f32 %v8659, %v8662
      %vm8664 = vweird.f32 %v6347
      %vm8665 = vweird.f32 %v8659
      %vm8666 = vmor %vm8664, %vm8665
      %v8667 = vsel %vm8666, %v8659, %v8663
      %v8668 = vand.u32 2147483647, %v6347
      %vm8669 = vcmp.eq.f32.partialorder %v8668, 8.507059e+37
      %v8670 = vand.u32 %v6347, 2147483648
      %v8671 = vor.u32 1.1754944e-38, %v8670
      %v8672 = vsel %vm8669, %v8671, %v8667
      %v8673 = vmul.f32 1.0, %v8672
      %v8674 = vrcp.pop %v6348
      %v8675 = vmul.f32 %v6348, %v8674
      %v8676 = vsub.f32 1.0, %v8675
      %v8677 = vmul.f32 %v8674, %v8676
      %v8678 = vadd.f32 %v8674, %v8677
      %vm8679 = vweird.f32 %v6348
      %vm8680 = vweird.f32 %v8674
      %vm8681 = vmor %vm8679, %vm8680
      %v8682 = vsel %vm8681, %v8674, %v8678
      %v8683 = vand.u32 2147483647, %v6348
      %vm8684 = vcmp.eq.f32.partialorder %v8683, 8.507059e+37
      %v8685 = vand.u32 %v6348, 2147483648
      %v8686 = vor.u32 1.1754944e-38, %v8685
      %v8687 = vsel %vm8684, %v8686, %v8682
      %v8688 = vmul.f32 1.0, %v8687
      %v8689 = vrcp.pop %v6349
      %v8690 = vmul.f32 %v6349, %v8689
      %v8691 = vsub.f32 1.0, %v8690
      %v8692 = vmul.f32 %v8689, %v8691
      %v8693 = vadd.f32 %v8689, %v8692
      %vm8694 = vweird.f32 %v6349
      %vm8695 = vweird.f32 %v8689
      %vm8696 = vmor %vm8694, %vm8695
      %v8697 = vsel %vm8696, %v8689, %v8693
      %v8698 = vand.u32 2147483647, %v6349
      %vm8699 = vcmp.eq.f32.partialorder %v8698, 8.507059e+37
      %v8700 = vand.u32 %v6349, 2147483648
      %v8701 = vor.u32 1.1754944e-38, %v8700
      %v8702 = vsel %vm8699, %v8701, %v8697
      %v8703 = vmul.f32 1.0, %v8702
      %v8704 = vrcp.pop %v6350
      %v8705 = vmul.f32 %v6350, %v8704
      %v8706 = vsub.f32 1.0, %v8705
      %v8707 = vmul.f32 %v8704, %v8706
      %v8708 = vadd.f32 %v8704, %v8707
      %vm8709 = vweird.f32 %v6350
      %vm8710 = vweird.f32 %v8704
      %vm8711 = vmor %vm8709, %vm8710
      %v8712 = vsel %vm8711, %v8704, %v8708
      %v8713 = vand.u32 2147483647, %v6350
      %vm8714 = vcmp.eq.f32.partialorder %v8713, 8.507059e+37
      %v8715 = vand.u32 %v6350, 2147483648
      %v8716 = vor.u32 1.1754944e-38, %v8715
      %v8717 = vsel %vm8714, %v8716, %v8712
      %v8718 = vmul.f32 1.0, %v8717
      %v8719 = vrcp.pop %v6351
      %v8720 = vmul.f32 %v6351, %v8719
      %v8721 = vsub.f32 1.0, %v8720
      %v8722 = vmul.f32 %v8719, %v8721
      %v8723 = vadd.f32 %v8719, %v8722
      %vm8724 = vweird.f32 %v6351
      %vm8725 = vweird.f32 %v8719
      %vm8726 = vmor %vm8724, %vm8725
      %v8727 = vsel %vm8726, %v8719, %v8723
      %v8728 = vand.u32 2147483647, %v6351
      %vm8729 = vcmp.eq.f32.partialorder %v8728, 8.507059e+37
      %v8730 = vand.u32 %v6351, 2147483648
      %v8731 = vor.u32 1.1754944e-38, %v8730
      %v8732 = vsel %vm8729, %v8731, %v8727
      %v8733 = vmul.f32 1.0, %v8732
      %v8734 = vrcp.pop %v6352
      %v8735 = vmul.f32 %v6352, %v8734
      %v8736 = vsub.f32 1.0, %v8735
      %v8737 = vmul.f32 %v8734, %v8736
      %v8738 = vadd.f32 %v8734, %v8737
      %vm8739 = vweird.f32 %v6352
      %vm8740 = vweird.f32 %v8734
      %vm8741 = vmor %vm8739, %vm8740
      %v8742 = vsel %vm8741, %v8734, %v8738
      %v8743 = vand.u32 2147483647, %v6352
      %vm8744 = vcmp.eq.f32.partialorder %v8743, 8.507059e+37
      %v8745 = vand.u32 %v6352, 2147483648
      %v8746 = vor.u32 1.1754944e-38, %v8745
      %v8747 = vsel %vm8744, %v8746, %v8742
      %v8748 = vmul.f32 1.0, %v8747
      %v8749 = vrcp.pop %v6353
      %v8750 = vmul.f32 %v6353, %v8749
      %v8751 = vsub.f32 1.0, %v8750
      %v8752 = vmul.f32 %v8749, %v8751
      %v8753 = vadd.f32 %v8749, %v8752
      %vm8754 = vweird.f32 %v6353
      %vm8755 = vweird.f32 %v8749
      %vm8756 = vmor %vm8754, %vm8755
      %v8757 = vsel %vm8756, %v8749, %v8753
      %v8758 = vand.u32 2147483647, %v6353
      %vm8759 = vcmp.eq.f32.partialorder %v8758, 8.507059e+37
      %v8760 = vand.u32 %v6353, 2147483648
      %v8761 = vor.u32 1.1754944e-38, %v8760
      %v8762 = vsel %vm8759, %v8761, %v8757
      %v8763 = vmul.f32 1.0, %v8762
      %v8764 = vrcp.pop %v6354
      %v8765 = vmul.f32 %v6354, %v8764
      %v8766 = vsub.f32 1.0, %v8765
      %v8767 = vmul.f32 %v8764, %v8766
      %v8768 = vadd.f32 %v8764, %v8767
      %vm8769 = vweird.f32 %v6354
      %vm8770 = vweird.f32 %v8764
      %vm8771 = vmor %vm8769, %vm8770
      %v8772 = vsel %vm8771, %v8764, %v8768
      %v8773 = vand.u32 2147483647, %v6354
      %vm8774 = vcmp.eq.f32.partialorder %v8773, 8.507059e+37
      %v8775 = vand.u32 %v6354, 2147483648
      %v8776 = vor.u32 1.1754944e-38, %v8775
      %v8777 = vsel %vm8774, %v8776, %v8772
      %v8778 = vmul.f32 1.0, %v8777
      %v8779 = vrcp.pop %v6355
      %v8780 = vmul.f32 %v6355, %v8779
      %v8781 = vsub.f32 1.0, %v8780
      %v8782 = vmul.f32 %v8779, %v8781
      %v8783 = vadd.f32 %v8779, %v8782
      %vm8784 = vweird.f32 %v6355
      %vm8785 = vweird.f32 %v8779
      %vm8786 = vmor %vm8784, %vm8785
      %v8787 = vsel %vm8786, %v8779, %v8783
      %v8788 = vand.u32 2147483647, %v6355
      %vm8789 = vcmp.eq.f32.partialorder %v8788, 8.507059e+37
      %v8790 = vand.u32 %v6355, 2147483648
      %v8791 = vor.u32 1.1754944e-38, %v8790
      %v8792 = vsel %vm8789, %v8791, %v8787
      %v8793 = vmul.f32 1.0, %v8792
      %v8794 = vrcp.pop %v6356
      %v8795 = vmul.f32 %v6356, %v8794
      %v8796 = vsub.f32 1.0, %v8795
      %v8797 = vmul.f32 %v8794, %v8796
      %v8798 = vadd.f32 %v8794, %v8797
      %vm8799 = vweird.f32 %v6356
      %vm8800 = vweird.f32 %v8794
      %vm8801 = vmor %vm8799, %vm8800
      %v8802 = vsel %vm8801, %v8794, %v8798
      %v8803 = vand.u32 2147483647, %v6356
      %vm8804 = vcmp.eq.f32.partialorder %v8803, 8.507059e+37
      %v8805 = vand.u32 %v6356, 2147483648
      %v8806 = vor.u32 1.1754944e-38, %v8805
      %v8807 = vsel %vm8804, %v8806, %v8802
      %v8808 = vmul.f32 1.0, %v8807
      %v8809 = vrcp.pop %v6357
      %v8810 = vmul.f32 %v6357, %v8809
      %v8811 = vsub.f32 1.0, %v8810
      %v8812 = vmul.f32 %v8809, %v8811
      %v8813 = vadd.f32 %v8809, %v8812
      %vm8814 = vweird.f32 %v6357
      %vm8815 = vweird.f32 %v8809
      %vm8816 = vmor %vm8814, %vm8815
      %v8817 = vsel %vm8816, %v8809, %v8813
      %v8818 = vand.u32 2147483647, %v6357
      %vm8819 = vcmp.eq.f32.partialorder %v8818, 8.507059e+37
      %v8820 = vand.u32 %v6357, 2147483648
      %v8821 = vor.u32 1.1754944e-38, %v8820
      %v8822 = vsel %vm8819, %v8821, %v8817
      %v8823 = vmul.f32 1.0, %v8822
      %v8824 = vrcp.pop %v6358
      %v8825 = vmul.f32 %v6358, %v8824
      %v8826 = vsub.f32 1.0, %v8825
      %v8827 = vmul.f32 %v8824, %v8826
      %v8828 = vadd.f32 %v8824, %v8827
      %vm8829 = vweird.f32 %v6358
      %vm8830 = vweird.f32 %v8824
      %vm8831 = vmor %vm8829, %vm8830
      %v8832 = vsel %vm8831, %v8824, %v8828
      %v8833 = vand.u32 2147483647, %v6358
      %vm8834 = vcmp.eq.f32.partialorder %v8833, 8.507059e+37
      %v8835 = vand.u32 %v6358, 2147483648
      %v8836 = vor.u32 1.1754944e-38, %v8835
      %v8837 = vsel %vm8834, %v8836, %v8832
      %v8838 = vmul.f32 1.0, %v8837
      %v8839 = vrcp.pop %v6359
      %v8840 = vmul.f32 %v6359, %v8839
      %v8841 = vsub.f32 1.0, %v8840
      %v8842 = vmul.f32 %v8839, %v8841
      %v8843 = vadd.f32 %v8839, %v8842
      %vm8844 = vweird.f32 %v6359
      %vm8845 = vweird.f32 %v8839
      %vm8846 = vmor %vm8844, %vm8845
      %v8847 = vsel %vm8846, %v8839, %v8843
      %v8848 = vand.u32 2147483647, %v6359
      %vm8849 = vcmp.eq.f32.partialorder %v8848, 8.507059e+37
      %v8850 = vand.u32 %v6359, 2147483648
      %v8851 = vor.u32 1.1754944e-38, %v8850
      %v8852 = vsel %vm8849, %v8851, %v8847
      %v8853 = vmul.f32 1.0, %v8852
      %v8854 = vrcp.pop %v6360
      %v8855 = vmul.f32 %v6360, %v8854
      %v8856 = vsub.f32 1.0, %v8855
      %v8857 = vmul.f32 %v8854, %v8856
      %v8858 = vadd.f32 %v8854, %v8857
      %vm8859 = vweird.f32 %v6360
      %vm8860 = vweird.f32 %v8854
      %vm8861 = vmor %vm8859, %vm8860
      %v8862 = vsel %vm8861, %v8854, %v8858
      %v8863 = vand.u32 2147483647, %v6360
      %vm8864 = vcmp.eq.f32.partialorder %v8863, 8.507059e+37
      %v8865 = vand.u32 %v6360, 2147483648
      %v8866 = vor.u32 1.1754944e-38, %v8865
      %v8867 = vsel %vm8864, %v8866, %v8862
      %v8868 = vmul.f32 1.0, %v8867
      %v8869 = vrcp.pop %v6361
      %v8870 = vmul.f32 %v6361, %v8869
      %v8871 = vsub.f32 1.0, %v8870
      %v8872 = vmul.f32 %v8869, %v8871
      %v8873 = vadd.f32 %v8869, %v8872
      %vm8874 = vweird.f32 %v6361
      %vm8875 = vweird.f32 %v8869
      %vm8876 = vmor %vm8874, %vm8875
      %v8877 = vsel %vm8876, %v8869, %v8873
      %v8878 = vand.u32 2147483647, %v6361
      %vm8879 = vcmp.eq.f32.partialorder %v8878, 8.507059e+37
      %v8880 = vand.u32 %v6361, 2147483648
      %v8881 = vor.u32 1.1754944e-38, %v8880
      %v8882 = vsel %vm8879, %v8881, %v8877
      %v8883 = vmul.f32 1.0, %v8882
      %v8884 = vrcp.pop %v6362
      %v8885 = vmul.f32 %v6362, %v8884
      %v8886 = vsub.f32 1.0, %v8885
      %v8887 = vmul.f32 %v8884, %v8886
      %v8888 = vadd.f32 %v8884, %v8887
      %vm8889 = vweird.f32 %v6362
      %vm8890 = vweird.f32 %v8884
      %vm8891 = vmor %vm8889, %vm8890
      %v8892 = vsel %vm8891, %v8884, %v8888
      %v8893 = vand.u32 2147483647, %v6362
      %vm8894 = vcmp.eq.f32.partialorder %v8893, 8.507059e+37
      %v8895 = vand.u32 %v6362, 2147483648
      %v8896 = vor.u32 1.1754944e-38, %v8895
      %v8897 = vsel %vm8894, %v8896, %v8892
      %v8898 = vmul.f32 1.0, %v8897
      %v8899 = vrcp.pop %v6363
      %v8900 = vmul.f32 %v6363, %v8899
      %v8901 = vsub.f32 1.0, %v8900
      %v8902 = vmul.f32 %v8899, %v8901
      %v8903 = vadd.f32 %v8899, %v8902
      %vm8904 = vweird.f32 %v6363
      %vm8905 = vweird.f32 %v8899
      %vm8906 = vmor %vm8904, %vm8905
      %v8907 = vsel %vm8906, %v8899, %v8903
      %v8908 = vand.u32 2147483647, %v6363
      %vm8909 = vcmp.eq.f32.partialorder %v8908, 8.507059e+37
      %v8910 = vand.u32 %v6363, 2147483648
      %v8911 = vor.u32 1.1754944e-38, %v8910
      %v8912 = vsel %vm8909, %v8911, %v8907
      %v8913 = vmul.f32 1.0, %v8912
      %v8914 = vrcp.pop %v6364
      %v8915 = vmul.f32 %v6364, %v8914
      %v8916 = vsub.f32 1.0, %v8915
      %v8917 = vmul.f32 %v8914, %v8916
      %v8918 = vadd.f32 %v8914, %v8917
      %vm8919 = vweird.f32 %v6364
      %vm8920 = vweird.f32 %v8914
      %vm8921 = vmor %vm8919, %vm8920
      %v8922 = vsel %vm8921, %v8914, %v8918
      %v8923 = vand.u32 2147483647, %v6364
      %vm8924 = vcmp.eq.f32.partialorder %v8923, 8.507059e+37
      %v8925 = vand.u32 %v6364, 2147483648
      %v8926 = vor.u32 1.1754944e-38, %v8925
      %v8927 = vsel %vm8924, %v8926, %v8922
      %v8928 = vmul.f32 1.0, %v8927
      %v8929 = vrcp.pop %v6365
      %v8930 = vmul.f32 %v6365, %v8929
      %v8931 = vsub.f32 1.0, %v8930
      %v8932 = vmul.f32 %v8929, %v8931
      %v8933 = vadd.f32 %v8929, %v8932
      %vm8934 = vweird.f32 %v6365
      %vm8935 = vweird.f32 %v8929
      %vm8936 = vmor %vm8934, %vm8935
      %v8937 = vsel %vm8936, %v8929, %v8933
      %v8938 = vand.u32 2147483647, %v6365
      %vm8939 = vcmp.eq.f32.partialorder %v8938, 8.507059e+37
      %v8940 = vand.u32 %v6365, 2147483648
      %v8941 = vor.u32 1.1754944e-38, %v8940
      %v8942 = vsel %vm8939, %v8941, %v8937
      %v8943 = vmul.f32 1.0, %v8942
      %v8944 = vrcp.pop %v6366
      %v8945 = vmul.f32 %v6366, %v8944
      %v8946 = vsub.f32 1.0, %v8945
      %v8947 = vmul.f32 %v8944, %v8946
      %v8948 = vadd.f32 %v8944, %v8947
      %vm8949 = vweird.f32 %v6366
      %vm8950 = vweird.f32 %v8944
      %vm8951 = vmor %vm8949, %vm8950
      %v8952 = vsel %vm8951, %v8944, %v8948
      %v8953 = vand.u32 2147483647, %v6366
      %vm8954 = vcmp.eq.f32.partialorder %v8953, 8.507059e+37
      %v8955 = vand.u32 %v6366, 2147483648
      %v8956 = vor.u32 1.1754944e-38, %v8955
      %v8957 = vsel %vm8954, %v8956, %v8952
      %v8958 = vmul.f32 1.0, %v8957
      %v8959 = vrcp.pop %v6367
      %v8960 = vmul.f32 %v6367, %v8959
      %v8961 = vsub.f32 1.0, %v8960
      %v8962 = vmul.f32 %v8959, %v8961
      %v8963 = vadd.f32 %v8959, %v8962
      %vm8964 = vweird.f32 %v6367
      %vm8965 = vweird.f32 %v8959
      %vm8966 = vmor %vm8964, %vm8965
      %v8967 = vsel %vm8966, %v8959, %v8963
      %v8968 = vand.u32 2147483647, %v6367
      %vm8969 = vcmp.eq.f32.partialorder %v8968, 8.507059e+37
      %v8970 = vand.u32 %v6367, 2147483648
      %v8971 = vor.u32 1.1754944e-38, %v8970
      %v8972 = vsel %vm8969, %v8971, %v8967
      %v8973 = vmul.f32 1.0, %v8972
      %v8974 = vrcp.pop %v6368
      %v8975 = vmul.f32 %v6368, %v8974
      %v8976 = vsub.f32 1.0, %v8975
      %v8977 = vmul.f32 %v8974, %v8976
      %v8978 = vadd.f32 %v8974, %v8977
      %vm8979 = vweird.f32 %v6368
      %vm8980 = vweird.f32 %v8974
      %vm8981 = vmor %vm8979, %vm8980
      %v8982 = vsel %vm8981, %v8974, %v8978
      %v8983 = vand.u32 2147483647, %v6368
      %vm8984 = vcmp.eq.f32.partialorder %v8983, 8.507059e+37
      %v8985 = vand.u32 %v6368, 2147483648
      %v8986 = vor.u32 1.1754944e-38, %v8985
      %v8987 = vsel %vm8984, %v8986, %v8982
      %v8988 = vmul.f32 1.0, %v8987
      %v8989 = vrcp.pop %v6369
      %v8990 = vmul.f32 %v6369, %v8989
      %v8991 = vsub.f32 1.0, %v8990
      %v8992 = vmul.f32 %v8989, %v8991
      %v8993 = vadd.f32 %v8989, %v8992
      %vm8994 = vweird.f32 %v6369
      %vm8995 = vweird.f32 %v8989
      %vm8996 = vmor %vm8994, %vm8995
      %v8997 = vsel %vm8996, %v8989, %v8993
      %v8998 = vand.u32 2147483647, %v6369
      %vm8999 = vcmp.eq.f32.partialorder %v8998, 8.507059e+37
      %v9000 = vand.u32 %v6369, 2147483648
      %v9001 = vor.u32 1.1754944e-38, %v9000
      %v9002 = vsel %vm8999, %v9001, %v8997
      %v9003 = vmul.f32 1.0, %v9002
      %v9004 = vrcp.pop %v6370
      %v9005 = vmul.f32 %v6370, %v9004
      %v9006 = vsub.f32 1.0, %v9005
      %v9007 = vmul.f32 %v9004, %v9006
      %v9008 = vadd.f32 %v9004, %v9007
      %vm9009 = vweird.f32 %v6370
      %vm9010 = vweird.f32 %v9004
      %vm9011 = vmor %vm9009, %vm9010
      %v9012 = vsel %vm9011, %v9004, %v9008
      %v9013 = vand.u32 2147483647, %v6370
      %vm9014 = vcmp.eq.f32.partialorder %v9013, 8.507059e+37
      %v9015 = vand.u32 %v6370, 2147483648
      %v9016 = vor.u32 1.1754944e-38, %v9015
      %v9017 = vsel %vm9014, %v9016, %v9012
      %v9018 = vmul.f32 1.0, %v9017
      %v9019 = vrcp.pop %v6371
      %v9020 = vmul.f32 %v6371, %v9019
      %v9021 = vsub.f32 1.0, %v9020
      %v9022 = vmul.f32 %v9019, %v9021
      %v9023 = vadd.f32 %v9019, %v9022
      %vm9024 = vweird.f32 %v6371
      %vm9025 = vweird.f32 %v9019
      %vm9026 = vmor %vm9024, %vm9025
      %v9027 = vsel %vm9026, %v9019, %v9023
      %v9028 = vand.u32 2147483647, %v6371
      %vm9029 = vcmp.eq.f32.partialorder %v9028, 8.507059e+37
      %v9030 = vand.u32 %v6371, 2147483648
      %v9031 = vor.u32 1.1754944e-38, %v9030
      %v9032 = vsel %vm9029, %v9031, %v9027
      %v9033 = vmul.f32 1.0, %v9032
      %v9034 = vrcp.pop %v6372
      %v9035 = vmul.f32 %v6372, %v9034
      %v9036 = vsub.f32 1.0, %v9035
      %v9037 = vmul.f32 %v9034, %v9036
      %v9038 = vadd.f32 %v9034, %v9037
      %vm9039 = vweird.f32 %v6372
      %vm9040 = vweird.f32 %v9034
      %vm9041 = vmor %vm9039, %vm9040
      %v9042 = vsel %vm9041, %v9034, %v9038
      %v9043 = vand.u32 2147483647, %v6372
      %vm9044 = vcmp.eq.f32.partialorder %v9043, 8.507059e+37
      %v9045 = vand.u32 %v6372, 2147483648
      %v9046 = vor.u32 1.1754944e-38, %v9045
      %v9047 = vsel %vm9044, %v9046, %v9042
      %v9048 = vmul.f32 1.0, %v9047
      %v9049 = vrcp.pop %v6373
      %v9050 = vmul.f32 %v6373, %v9049
      %v9051 = vsub.f32 1.0, %v9050
      %v9052 = vmul.f32 %v9049, %v9051
      %v9053 = vadd.f32 %v9049, %v9052
      %vm9054 = vweird.f32 %v6373
      %vm9055 = vweird.f32 %v9049
      %vm9056 = vmor %vm9054, %vm9055
      %v9057 = vsel %vm9056, %v9049, %v9053
      %v9058 = vand.u32 2147483647, %v6373
      %vm9059 = vcmp.eq.f32.partialorder %v9058, 8.507059e+37
      %v9060 = vand.u32 %v6373, 2147483648
      %v9061 = vor.u32 1.1754944e-38, %v9060
      %v9062 = vsel %vm9059, %v9061, %v9057
      %v9063 = vmul.f32 1.0, %v9062
      %v9064 = vrcp.pop %v6374
      %v9065 = vmul.f32 %v6374, %v9064
      %v9066 = vsub.f32 1.0, %v9065
      %v9067 = vmul.f32 %v9064, %v9066
      %v9068 = vadd.f32 %v9064, %v9067
      %vm9069 = vweird.f32 %v6374
      %vm9070 = vweird.f32 %v9064
      %vm9071 = vmor %vm9069, %vm9070
      %v9072 = vsel %vm9071, %v9064, %v9068
      %v9073 = vand.u32 2147483647, %v6374
      %vm9074 = vcmp.eq.f32.partialorder %v9073, 8.507059e+37
      %v9075 = vand.u32 %v6374, 2147483648
      %v9076 = vor.u32 1.1754944e-38, %v9075
      %v9077 = vsel %vm9074, %v9076, %v9072
      %v9078 = vmul.f32 1.0, %v9077
      %v9079 = vrcp.pop %v6375
      %v9080 = vmul.f32 %v6375, %v9079
      %v9081 = vsub.f32 1.0, %v9080
      %v9082 = vmul.f32 %v9079, %v9081
      %v9083 = vadd.f32 %v9079, %v9082
      %vm9084 = vweird.f32 %v6375
      %vm9085 = vweird.f32 %v9079
      %vm9086 = vmor %vm9084, %vm9085
      %v9087 = vsel %vm9086, %v9079, %v9083
      %v9088 = vand.u32 2147483647, %v6375
      %vm9089 = vcmp.eq.f32.partialorder %v9088, 8.507059e+37
      %v9090 = vand.u32 %v6375, 2147483648
      %v9091 = vor.u32 1.1754944e-38, %v9090
      %v9092 = vsel %vm9089, %v9091, %v9087
      %v9093 = vmul.f32 1.0, %v9092
      %v9094 = vrcp.pop %v6376
      %v9095 = vmul.f32 %v6376, %v9094
      %v9096 = vsub.f32 1.0, %v9095
      %v9097 = vmul.f32 %v9094, %v9096
      %v9098 = vadd.f32 %v9094, %v9097
      %vm9099 = vweird.f32 %v6376
      %vm9100 = vweird.f32 %v9094
      %vm9101 = vmor %vm9099, %vm9100
      %v9102 = vsel %vm9101, %v9094, %v9098
      %v9103 = vand.u32 2147483647, %v6376
      %vm9104 = vcmp.eq.f32.partialorder %v9103, 8.507059e+37
      %v9105 = vand.u32 %v6376, 2147483648
      %v9106 = vor.u32 1.1754944e-38, %v9105
      %v9107 = vsel %vm9104, %v9106, %v9102
      %v9108 = vmul.f32 1.0, %v9107
      %v9109 = vrcp.pop %v6377
      %v9110 = vmul.f32 %v6377, %v9109
      %v9111 = vsub.f32 1.0, %v9110
      %v9112 = vmul.f32 %v9109, %v9111
      %v9113 = vadd.f32 %v9109, %v9112
      %vm9114 = vweird.f32 %v6377
      %vm9115 = vweird.f32 %v9109
      %vm9116 = vmor %vm9114, %vm9115
      %v9117 = vsel %vm9116, %v9109, %v9113
      %v9118 = vand.u32 2147483647, %v6377
      %vm9119 = vcmp.eq.f32.partialorder %v9118, 8.507059e+37
      %v9120 = vand.u32 %v6377, 2147483648
      %v9121 = vor.u32 1.1754944e-38, %v9120
      %v9122 = vsel %vm9119, %v9121, %v9117
      %v9123 = vmul.f32 1.0, %v9122
      %v9124 = vrcp.pop %v6378
      %v9125 = vmul.f32 %v6378, %v9124
      %v9126 = vsub.f32 1.0, %v9125
      %v9127 = vmul.f32 %v9124, %v9126
      %v9128 = vadd.f32 %v9124, %v9127
      %vm9129 = vweird.f32 %v6378
      %vm9130 = vweird.f32 %v9124
      %vm9131 = vmor %vm9129, %vm9130
      %v9132 = vsel %vm9131, %v9124, %v9128
      %v9133 = vand.u32 2147483647, %v6378
      %vm9134 = vcmp.eq.f32.partialorder %v9133, 8.507059e+37
      %v9135 = vand.u32 %v6378, 2147483648
      %v9136 = vor.u32 1.1754944e-38, %v9135
      %v9137 = vsel %vm9134, %v9136, %v9132
      %v9138 = vmul.f32 1.0, %v9137
      %v9139 = vrcp.pop %v6379
      %v9140 = vmul.f32 %v6379, %v9139
      %v9141 = vsub.f32 1.0, %v9140
      %v9142 = vmul.f32 %v9139, %v9141
      %v9143 = vadd.f32 %v9139, %v9142
      %vm9144 = vweird.f32 %v6379
      %vm9145 = vweird.f32 %v9139
      %vm9146 = vmor %vm9144, %vm9145
      %v9147 = vsel %vm9146, %v9139, %v9143
      %v9148 = vand.u32 2147483647, %v6379
      %vm9149 = vcmp.eq.f32.partialorder %v9148, 8.507059e+37
      %v9150 = vand.u32 %v6379, 2147483648
      %v9151 = vor.u32 1.1754944e-38, %v9150
      %v9152 = vsel %vm9149, %v9151, %v9147
      %v9153 = vmul.f32 1.0, %v9152
      %v9154 = vrcp.pop %v6380
      %v9155 = vmul.f32 %v6380, %v9154
      %v9156 = vsub.f32 1.0, %v9155
      %v9157 = vmul.f32 %v9154, %v9156
      %v9158 = vadd.f32 %v9154, %v9157
      %vm9159 = vweird.f32 %v6380
      %vm9160 = vweird.f32 %v9154
      %vm9161 = vmor %vm9159, %vm9160
      %v9162 = vsel %vm9161, %v9154, %v9158
      %v9163 = vand.u32 2147483647, %v6380
      %vm9164 = vcmp.eq.f32.partialorder %v9163, 8.507059e+37
      %v9165 = vand.u32 %v6380, 2147483648
      %v9166 = vor.u32 1.1754944e-38, %v9165
      %v9167 = vsel %vm9164, %v9166, %v9162
      %v9168 = vmul.f32 1.0, %v9167
      %v9169 = vrcp.pop %v6381
      %v9170 = vmul.f32 %v6381, %v9169
      %v9171 = vsub.f32 1.0, %v9170
      %v9172 = vmul.f32 %v9169, %v9171
      %v9173 = vadd.f32 %v9169, %v9172
      %vm9174 = vweird.f32 %v6381
      %vm9175 = vweird.f32 %v9169
      %vm9176 = vmor %vm9174, %vm9175
      %v9177 = vsel %vm9176, %v9169, %v9173
      %v9178 = vand.u32 2147483647, %v6381
      %vm9179 = vcmp.eq.f32.partialorder %v9178, 8.507059e+37
      %v9180 = vand.u32 %v6381, 2147483648
      %v9181 = vor.u32 1.1754944e-38, %v9180
      %v9182 = vsel %vm9179, %v9181, %v9177
      %v9183 = vmul.f32 1.0, %v9182
      %v9184 = vrcp.pop %v6382
      %v9185 = vmul.f32 %v6382, %v9184
      %v9186 = vsub.f32 1.0, %v9185
      %v9187 = vmul.f32 %v9184, %v9186
      %v9188 = vadd.f32 %v9184, %v9187
      %vm9189 = vweird.f32 %v6382
      %vm9190 = vweird.f32 %v9184
      %vm9191 = vmor %vm9189, %vm9190
      %v9192 = vsel %vm9191, %v9184, %v9188
      %v9193 = vand.u32 2147483647, %v6382
      %vm9194 = vcmp.eq.f32.partialorder %v9193, 8.507059e+37
      %v9195 = vand.u32 %v6382, 2147483648
      %v9196 = vor.u32 1.1754944e-38, %v9195
      %v9197 = vsel %vm9194, %v9196, %v9192
      %v9198 = vmul.f32 1.0, %v9197
      %v9199 = vrcp.pop %v6383
      %v9200 = vmul.f32 %v6383, %v9199
      %v9201 = vsub.f32 1.0, %v9200
      %v9202 = vmul.f32 %v9199, %v9201
      %v9203 = vadd.f32 %v9199, %v9202
      %vm9204 = vweird.f32 %v6383
      %vm9205 = vweird.f32 %v9199
      %vm9206 = vmor %vm9204, %vm9205
      %v9207 = vsel %vm9206, %v9199, %v9203
      %v9208 = vand.u32 2147483647, %v6383
      %vm9209 = vcmp.eq.f32.partialorder %v9208, 8.507059e+37
      %v9210 = vand.u32 %v6383, 2147483648
      %v9211 = vor.u32 1.1754944e-38, %v9210
      %v9212 = vsel %vm9209, %v9211, %v9207
      %v9213 = vmul.f32 1.0, %v9212
      %v9214 = vrcp.pop %v6384
      %v9215 = vmul.f32 %v6384, %v9214
      %v9216 = vsub.f32 1.0, %v9215
      %v9217 = vmul.f32 %v9214, %v9216
      %v9218 = vadd.f32 %v9214, %v9217
      %vm9219 = vweird.f32 %v6384
      %vm9220 = vweird.f32 %v9214
      %vm9221 = vmor %vm9219, %vm9220
      %v9222 = vsel %vm9221, %v9214, %v9218
      %v9223 = vand.u32 2147483647, %v6384
      %vm9224 = vcmp.eq.f32.partialorder %v9223, 8.507059e+37
      %v9225 = vand.u32 %v6384, 2147483648
      %v9226 = vor.u32 1.1754944e-38, %v9225
      %v9227 = vsel %vm9224, %v9226, %v9222
      %v9228 = vmul.f32 1.0, %v9227
      %v9229 = vrcp.pop %v6385
      %v9230 = vmul.f32 %v6385, %v9229
      %v9231 = vsub.f32 1.0, %v9230
      %v9232 = vmul.f32 %v9229, %v9231
      %v9233 = vadd.f32 %v9229, %v9232
      %vm9234 = vweird.f32 %v6385
      %vm9235 = vweird.f32 %v9229
      %vm9236 = vmor %vm9234, %vm9235
      %v9237 = vsel %vm9236, %v9229, %v9233
      %v9238 = vand.u32 2147483647, %v6385
      %vm9239 = vcmp.eq.f32.partialorder %v9238, 8.507059e+37
      %v9240 = vand.u32 %v6385, 2147483648
      %v9241 = vor.u32 1.1754944e-38, %v9240
      %v9242 = vsel %vm9239, %v9241, %v9237
      %v9243 = vmul.f32 1.0, %v9242
      %v9244 = vrcp.pop %v6386
      %v9245 = vmul.f32 %v6386, %v9244
      %v9246 = vsub.f32 1.0, %v9245
      %v9247 = vmul.f32 %v9244, %v9246
      %v9248 = vadd.f32 %v9244, %v9247
      %vm9249 = vweird.f32 %v6386
      %vm9250 = vweird.f32 %v9244
      %vm9251 = vmor %vm9249, %vm9250
      %v9252 = vsel %vm9251, %v9244, %v9248
      %v9253 = vand.u32 2147483647, %v6386
      %vm9254 = vcmp.eq.f32.partialorder %v9253, 8.507059e+37
      %v9255 = vand.u32 %v6386, 2147483648
      %v9256 = vor.u32 1.1754944e-38, %v9255
      %v9257 = vsel %vm9254, %v9256, %v9252
      %v9258 = vmul.f32 1.0, %v9257
      %v9259 = vrcp.pop %v6387
      %v9260 = vmul.f32 %v6387, %v9259
      %v9261 = vsub.f32 1.0, %v9260
      %v9262 = vmul.f32 %v9259, %v9261
      %v9263 = vadd.f32 %v9259, %v9262
      %vm9264 = vweird.f32 %v6387
      %vm9265 = vweird.f32 %v9259
      %vm9266 = vmor %vm9264, %vm9265
      %v9267 = vsel %vm9266, %v9259, %v9263
      %v9268 = vand.u32 2147483647, %v6387
      %vm9269 = vcmp.eq.f32.partialorder %v9268, 8.507059e+37
      %v9270 = vand.u32 %v6387, 2147483648
      %v9271 = vor.u32 1.1754944e-38, %v9270
      %v9272 = vsel %vm9269, %v9271, %v9267
      %v9273 = vmul.f32 1.0, %v9272
      %v9274 = vrcp.pop %v6388
      %v9275 = vmul.f32 %v6388, %v9274
      %v9276 = vsub.f32 1.0, %v9275
      %v9277 = vmul.f32 %v9274, %v9276
      %v9278 = vadd.f32 %v9274, %v9277
      %vm9279 = vweird.f32 %v6388
      %vm9280 = vweird.f32 %v9274
      %vm9281 = vmor %vm9279, %vm9280
      %v9282 = vsel %vm9281, %v9274, %v9278
      %v9283 = vand.u32 2147483647, %v6388
      %vm9284 = vcmp.eq.f32.partialorder %v9283, 8.507059e+37
      %v9285 = vand.u32 %v6388, 2147483648
      %v9286 = vor.u32 1.1754944e-38, %v9285
      %v9287 = vsel %vm9284, %v9286, %v9282
      %v9288 = vmul.f32 1.0, %v9287
      %v9289 = vrcp.pop %v6389
      %v9290 = vmul.f32 %v6389, %v9289
      %v9291 = vsub.f32 1.0, %v9290
      %v9292 = vmul.f32 %v9289, %v9291
      %v9293 = vadd.f32 %v9289, %v9292
      %vm9294 = vweird.f32 %v6389
      %vm9295 = vweird.f32 %v9289
      %vm9296 = vmor %vm9294, %vm9295
      %v9297 = vsel %vm9296, %v9289, %v9293
      %v9298 = vand.u32 2147483647, %v6389
      %vm9299 = vcmp.eq.f32.partialorder %v9298, 8.507059e+37
      %v9300 = vand.u32 %v6389, 2147483648
      %v9301 = vor.u32 1.1754944e-38, %v9300
      %v9302 = vsel %vm9299, %v9301, %v9297
      %v9303 = vmul.f32 1.0, %v9302
      %v9304 = vrcp.pop %v6390
      %v9305 = vmul.f32 %v6390, %v9304
      %v9306 = vsub.f32 1.0, %v9305
      %v9307 = vmul.f32 %v9304, %v9306
      %v9308 = vadd.f32 %v9304, %v9307
      %vm9309 = vweird.f32 %v6390
      %vm9310 = vweird.f32 %v9304
      %vm9311 = vmor %vm9309, %vm9310
      %v9312 = vsel %vm9311, %v9304, %v9308
      %v9313 = vand.u32 2147483647, %v6390
      %vm9314 = vcmp.eq.f32.partialorder %v9313, 8.507059e+37
      %v9315 = vand.u32 %v6390, 2147483648
      %v9316 = vor.u32 1.1754944e-38, %v9315
      %v9317 = vsel %vm9314, %v9316, %v9312
      %v9318 = vmul.f32 1.0, %v9317
      %v9319 = vrcp.pop %v6391
      %v9320 = vmul.f32 %v6391, %v9319
      %v9321 = vsub.f32 1.0, %v9320
      %v9322 = vmul.f32 %v9319, %v9321
      %v9323 = vadd.f32 %v9319, %v9322
      %vm9324 = vweird.f32 %v6391
      %vm9325 = vweird.f32 %v9319
      %vm9326 = vmor %vm9324, %vm9325
      %v9327 = vsel %vm9326, %v9319, %v9323
      %v9328 = vand.u32 2147483647, %v6391
      %vm9329 = vcmp.eq.f32.partialorder %v9328, 8.507059e+37
      %v9330 = vand.u32 %v6391, 2147483648
      %v9331 = vor.u32 1.1754944e-38, %v9330
      %v9332 = vsel %vm9329, %v9331, %v9327
      %v9333 = vmul.f32 1.0, %v9332
      %v9334 = vrcp.pop %v6392
      %v9335 = vmul.f32 %v6392, %v9334
      %v9336 = vsub.f32 1.0, %v9335
      %v9337 = vmul.f32 %v9334, %v9336
      %v9338 = vadd.f32 %v9334, %v9337
      %vm9339 = vweird.f32 %v6392
      %vm9340 = vweird.f32 %v9334
      %vm9341 = vmor %vm9339, %vm9340
      %v9342 = vsel %vm9341, %v9334, %v9338
      %v9343 = vand.u32 2147483647, %v6392
      %vm9344 = vcmp.eq.f32.partialorder %v9343, 8.507059e+37
      %v9345 = vand.u32 %v6392, 2147483648
      %v9346 = vor.u32 1.1754944e-38, %v9345
      %v9347 = vsel %vm9344, %v9346, %v9342
      %v9348 = vmul.f32 1.0, %v9347
      %v9349 = vrcp.pop %v6393
      %v9350 = vmul.f32 %v6393, %v9349
      %v9351 = vsub.f32 1.0, %v9350
      %v9352 = vmul.f32 %v9349, %v9351
      %v9353 = vadd.f32 %v9349, %v9352
      %vm9354 = vweird.f32 %v6393
      %vm9355 = vweird.f32 %v9349
      %vm9356 = vmor %vm9354, %vm9355
      %v9357 = vsel %vm9356, %v9349, %v9353
      %v9358 = vand.u32 2147483647, %v6393
      %vm9359 = vcmp.eq.f32.partialorder %v9358, 8.507059e+37
      %v9360 = vand.u32 %v6393, 2147483648
      %v9361 = vor.u32 1.1754944e-38, %v9360
      %v9362 = vsel %vm9359, %v9361, %v9357
      %v9363 = vmul.f32 1.0, %v9362
      %v9364 = vrcp.pop %v6394
      %v9365 = vmul.f32 %v6394, %v9364
      %v9366 = vsub.f32 1.0, %v9365
      %v9367 = vmul.f32 %v9364, %v9366
      %v9368 = vadd.f32 %v9364, %v9367
      %vm9369 = vweird.f32 %v6394
      %vm9370 = vweird.f32 %v9364
      %vm9371 = vmor %vm9369, %vm9370
      %v9372 = vsel %vm9371, %v9364, %v9368
      %v9373 = vand.u32 2147483647, %v6394
      %vm9374 = vcmp.eq.f32.partialorder %v9373, 8.507059e+37
      %v9375 = vand.u32 %v6394, 2147483648
      %v9376 = vor.u32 1.1754944e-38, %v9375
      %v9377 = vsel %vm9374, %v9376, %v9372
      %v9378 = vmul.f32 1.0, %v9377
      %v9379 = vrcp.pop %v6395
      %v9380 = vmul.f32 %v6395, %v9379
      %v9381 = vsub.f32 1.0, %v9380
      %v9382 = vmul.f32 %v9379, %v9381
      %v9383 = vadd.f32 %v9379, %v9382
      %vm9384 = vweird.f32 %v6395
      %vm9385 = vweird.f32 %v9379
      %vm9386 = vmor %vm9384, %vm9385
      %v9387 = vsel %vm9386, %v9379, %v9383
      %v9388 = vand.u32 2147483647, %v6395
      %vm9389 = vcmp.eq.f32.partialorder %v9388, 8.507059e+37
      %v9390 = vand.u32 %v6395, 2147483648
      %v9391 = vor.u32 1.1754944e-38, %v9390
      %v9392 = vsel %vm9389, %v9391, %v9387
      %v9393 = vmul.f32 1.0, %v9392
      %v9394 = vrcp.pop %v6396
      %v9395 = vmul.f32 %v6396, %v9394
      %v9396 = vsub.f32 1.0, %v9395
      %v9397 = vmul.f32 %v9394, %v9396
      %v9398 = vadd.f32 %v9394, %v9397
      %vm9399 = vweird.f32 %v6396
      %vm9400 = vweird.f32 %v9394
      %vm9401 = vmor %vm9399, %vm9400
      %v9402 = vsel %vm9401, %v9394, %v9398
      %v9403 = vand.u32 2147483647, %v6396
      %vm9404 = vcmp.eq.f32.partialorder %v9403, 8.507059e+37
      %v9405 = vand.u32 %v6396, 2147483648
      %v9406 = vor.u32 1.1754944e-38, %v9405
      %v9407 = vsel %vm9404, %v9406, %v9402
      %v9408 = vmul.f32 1.0, %v9407
      %v9409 = vrcp.pop %v6397
      %v9410 = vmul.f32 %v6397, %v9409
      %v9411 = vsub.f32 1.0, %v9410
      %v9412 = vmul.f32 %v9409, %v9411
      %v9413 = vadd.f32 %v9409, %v9412
      %vm9414 = vweird.f32 %v6397
      %vm9415 = vweird.f32 %v9409
      %vm9416 = vmor %vm9414, %vm9415
      %v9417 = vsel %vm9416, %v9409, %v9413
      %v9418 = vand.u32 2147483647, %v6397
      %vm9419 = vcmp.eq.f32.partialorder %v9418, 8.507059e+37
      %v9420 = vand.u32 %v6397, 2147483648
      %v9421 = vor.u32 1.1754944e-38, %v9420
      %v9422 = vsel %vm9419, %v9421, %v9417
      %v9423 = vmul.f32 1.0, %v9422
      %v9424 = vrcp.pop %v6398
      %v9425 = vmul.f32 %v6398, %v9424
      %v9426 = vsub.f32 1.0, %v9425
      %v9427 = vmul.f32 %v9424, %v9426
      %v9428 = vadd.f32 %v9424, %v9427
      %vm9429 = vweird.f32 %v6398
      %vm9430 = vweird.f32 %v9424
      %vm9431 = vmor %vm9429, %vm9430
      %v9432 = vsel %vm9431, %v9424, %v9428
      %v9433 = vand.u32 2147483647, %v6398
      %vm9434 = vcmp.eq.f32.partialorder %v9433, 8.507059e+37
      %v9435 = vand.u32 %v6398, 2147483648
      %v9436 = vor.u32 1.1754944e-38, %v9435
      %v9437 = vsel %vm9434, %v9436, %v9432
      %v9438 = vmul.f32 1.0, %v9437
      %v9439 = vrcp.pop %v6399
      %v9440 = vmul.f32 %v6399, %v9439
      %v9441 = vsub.f32 1.0, %v9440
      %v9442 = vmul.f32 %v9439, %v9441
      %v9443 = vadd.f32 %v9439, %v9442
      %vm9444 = vweird.f32 %v6399
      %vm9445 = vweird.f32 %v9439
      %vm9446 = vmor %vm9444, %vm9445
      %v9447 = vsel %vm9446, %v9439, %v9443
      %v9448 = vand.u32 2147483647, %v6399
      %vm9449 = vcmp.eq.f32.partialorder %v9448, 8.507059e+37
      %v9450 = vand.u32 %v6399, 2147483648
      %v9451 = vor.u32 1.1754944e-38, %v9450
      %v9452 = vsel %vm9449, %v9451, %v9447
      %v9453 = vmul.f32 1.0, %v9452
      %v9454 = vrcp.pop %v6400
      %v9455 = vmul.f32 %v6400, %v9454
      %v9456 = vsub.f32 1.0, %v9455
      %v9457 = vmul.f32 %v9454, %v9456
      %v9458 = vadd.f32 %v9454, %v9457
      %vm9459 = vweird.f32 %v6400
      %vm9460 = vweird.f32 %v9454
      %vm9461 = vmor %vm9459, %vm9460
      %v9462 = vsel %vm9461, %v9454, %v9458
      %v9463 = vand.u32 2147483647, %v6400
      %vm9464 = vcmp.eq.f32.partialorder %v9463, 8.507059e+37
      %v9465 = vand.u32 %v6400, 2147483648
      %v9466 = vor.u32 1.1754944e-38, %v9465
      %v9467 = vsel %vm9464, %v9466, %v9462
      %v9468 = vmul.f32 1.0, %v9467
      %v9469 = vrcp.pop %v6401
      %v9470 = vmul.f32 %v6401, %v9469
      %v9471 = vsub.f32 1.0, %v9470
      %v9472 = vmul.f32 %v9469, %v9471
      %v9473 = vadd.f32 %v9469, %v9472
      %vm9474 = vweird.f32 %v6401
      %vm9475 = vweird.f32 %v9469
      %vm9476 = vmor %vm9474, %vm9475
      %v9477 = vsel %vm9476, %v9469, %v9473
      %v9478 = vand.u32 2147483647, %v6401
      %vm9479 = vcmp.eq.f32.partialorder %v9478, 8.507059e+37
      %v9480 = vand.u32 %v6401, 2147483648
      %v9481 = vor.u32 1.1754944e-38, %v9480
      %v9482 = vsel %vm9479, %v9481, %v9477
      %v9483 = vmul.f32 1.0, %v9482
      %v9484 = vrcp.pop %v6402
      %v9485 = vmul.f32 %v6402, %v9484
      %v9486 = vsub.f32 1.0, %v9485
      %v9487 = vmul.f32 %v9484, %v9486
      %v9488 = vadd.f32 %v9484, %v9487
      %vm9489 = vweird.f32 %v6402
      %vm9490 = vweird.f32 %v9484
      %vm9491 = vmor %vm9489, %vm9490
      %v9492 = vsel %vm9491, %v9484, %v9488
      %v9493 = vand.u32 2147483647, %v6402
      %vm9494 = vcmp.eq.f32.partialorder %v9493, 8.507059e+37
      %v9495 = vand.u32 %v6402, 2147483648
      %v9496 = vor.u32 1.1754944e-38, %v9495
      %v9497 = vsel %vm9494, %v9496, %v9492
      %v9498 = vmul.f32 1.0, %v9497
      %v9499 = vrcp.pop %v6403
      %v9500 = vmul.f32 %v6403, %v9499
      %v9501 = vsub.f32 1.0, %v9500
      %v9502 = vmul.f32 %v9499, %v9501
      %v9503 = vadd.f32 %v9499, %v9502
      %vm9504 = vweird.f32 %v6403
      %vm9505 = vweird.f32 %v9499
      %vm9506 = vmor %vm9504, %vm9505
      %v9507 = vsel %vm9506, %v9499, %v9503
      %v9508 = vand.u32 2147483647, %v6403
      %vm9509 = vcmp.eq.f32.partialorder %v9508, 8.507059e+37
      %v9510 = vand.u32 %v6403, 2147483648
      %v9511 = vor.u32 1.1754944e-38, %v9510
      %v9512 = vsel %vm9509, %v9511, %v9507
      %v9513 = vmul.f32 1.0, %v9512
      %v9514 = vrcp.pop %v6404
      %v9515 = vmul.f32 %v6404, %v9514
      %v9516 = vsub.f32 1.0, %v9515
      %v9517 = vmul.f32 %v9514, %v9516
      %v9518 = vadd.f32 %v9514, %v9517
      %vm9519 = vweird.f32 %v6404
      %vm9520 = vweird.f32 %v9514
      %vm9521 = vmor %vm9519, %vm9520
      %v9522 = vsel %vm9521, %v9514, %v9518
      %v9523 = vand.u32 2147483647, %v6404
      %vm9524 = vcmp.eq.f32.partialorder %v9523, 8.507059e+37
      %v9525 = vand.u32 %v6404, 2147483648
      %v9526 = vor.u32 1.1754944e-38, %v9525
      %v9527 = vsel %vm9524, %v9526, %v9522
      %v9528 = vmul.f32 1.0, %v9527
      %v9529 = vrcp.pop %v6405
      %v9530 = vmul.f32 %v6405, %v9529
      %v9531 = vsub.f32 1.0, %v9530
      %v9532 = vmul.f32 %v9529, %v9531
      %v9533 = vadd.f32 %v9529, %v9532
      %vm9534 = vweird.f32 %v6405
      %vm9535 = vweird.f32 %v9529
      %vm9536 = vmor %vm9534, %vm9535
      %v9537 = vsel %vm9536, %v9529, %v9533
      %v9538 = vand.u32 2147483647, %v6405
      %vm9539 = vcmp.eq.f32.partialorder %v9538, 8.507059e+37
      %v9540 = vand.u32 %v6405, 2147483648
      %v9541 = vor.u32 1.1754944e-38, %v9540
      %v9542 = vsel %vm9539, %v9541, %v9537
      %v9543 = vmul.f32 1.0, %v9542
      %v9544 = vrcp.pop %v6406
      %v9545 = vmul.f32 %v6406, %v9544
      %v9546 = vsub.f32 1.0, %v9545
      %v9547 = vmul.f32 %v9544, %v9546
      %v9548 = vadd.f32 %v9544, %v9547
      %vm9549 = vweird.f32 %v6406
      %vm9550 = vweird.f32 %v9544
      %vm9551 = vmor %vm9549, %vm9550
      %v9552 = vsel %vm9551, %v9544, %v9548
      %v9553 = vand.u32 2147483647, %v6406
      %vm9554 = vcmp.eq.f32.partialorder %v9553, 8.507059e+37
      %v9555 = vand.u32 %v6406, 2147483648
      %v9556 = vor.u32 1.1754944e-38, %v9555
      %v9557 = vsel %vm9554, %v9556, %v9552
      %v9558 = vmul.f32 1.0, %v9557
      %v9559 = vrcp.pop %v6407
      %v9560 = vmul.f32 %v6407, %v9559
      %v9561 = vsub.f32 1.0, %v9560
      %v9562 = vmul.f32 %v9559, %v9561
      %v9563 = vadd.f32 %v9559, %v9562
      %vm9564 = vweird.f32 %v6407
      %vm9565 = vweird.f32 %v9559
      %vm9566 = vmor %vm9564, %vm9565
      %v9567 = vsel %vm9566, %v9559, %v9563
      %v9568 = vand.u32 2147483647, %v6407
      %vm9569 = vcmp.eq.f32.partialorder %v9568, 8.507059e+37
      %v9570 = vand.u32 %v6407, 2147483648
      %v9571 = vor.u32 1.1754944e-38, %v9570
      %v9572 = vsel %vm9569, %v9571, %v9567
      %v9573 = vmul.f32 1.0, %v9572
      %v9574 = vrcp.pop %v6408
      %v9575 = vmul.f32 %v6408, %v9574
      %v9576 = vsub.f32 1.0, %v9575
      %v9577 = vmul.f32 %v9574, %v9576
      %v9578 = vadd.f32 %v9574, %v9577
      %vm9579 = vweird.f32 %v6408
      %vm9580 = vweird.f32 %v9574
      %vm9581 = vmor %vm9579, %vm9580
      %v9582 = vsel %vm9581, %v9574, %v9578
      %v9583 = vand.u32 2147483647, %v6408
      %vm9584 = vcmp.eq.f32.partialorder %v9583, 8.507059e+37
      %v9585 = vand.u32 %v6408, 2147483648
      %v9586 = vor.u32 1.1754944e-38, %v9585
      %v9587 = vsel %vm9584, %v9586, %v9582
      %v9588 = vmul.f32 1.0, %v9587
      %v9589 = vrcp.pop %v6409
      %v9590 = vmul.f32 %v6409, %v9589
      %v9591 = vsub.f32 1.0, %v9590
      %v9592 = vmul.f32 %v9589, %v9591
      %v9593 = vadd.f32 %v9589, %v9592
      %vm9594 = vweird.f32 %v6409
      %vm9595 = vweird.f32 %v9589
      %vm9596 = vmor %vm9594, %vm9595
      %v9597 = vsel %vm9596, %v9589, %v9593
      %v9598 = vand.u32 2147483647, %v6409
      %vm9599 = vcmp.eq.f32.partialorder %v9598, 8.507059e+37
      %v9600 = vand.u32 %v6409, 2147483648
      %v9601 = vor.u32 1.1754944e-38, %v9600
      %v9602 = vsel %vm9599, %v9601, %v9597
      %v9603 = vmul.f32 1.0, %v9602
      %v9604 = vrcp.pop %v6410
      %v9605 = vmul.f32 %v6410, %v9604
      %v9606 = vsub.f32 1.0, %v9605
      %v9607 = vmul.f32 %v9604, %v9606
      %v9608 = vadd.f32 %v9604, %v9607
      %vm9609 = vweird.f32 %v6410
      %vm9610 = vweird.f32 %v9604
      %vm9611 = vmor %vm9609, %vm9610
      %v9612 = vsel %vm9611, %v9604, %v9608
      %v9613 = vand.u32 2147483647, %v6410
      %vm9614 = vcmp.eq.f32.partialorder %v9613, 8.507059e+37
      %v9615 = vand.u32 %v6410, 2147483648
      %v9616 = vor.u32 1.1754944e-38, %v9615
      %v9617 = vsel %vm9614, %v9616, %v9612
      %v9618 = vmul.f32 1.0, %v9617
      %v9619 = vrcp.pop %v6411
      %v9620 = vmul.f32 %v6411, %v9619
      %v9621 = vsub.f32 1.0, %v9620
      %v9622 = vmul.f32 %v9619, %v9621
      %v9623 = vadd.f32 %v9619, %v9622
      %vm9624 = vweird.f32 %v6411
      %vm9625 = vweird.f32 %v9619
      %vm9626 = vmor %vm9624, %vm9625
      %v9627 = vsel %vm9626, %v9619, %v9623
      %v9628 = vand.u32 2147483647, %v6411
      %vm9629 = vcmp.eq.f32.partialorder %v9628, 8.507059e+37
      %v9630 = vand.u32 %v6411, 2147483648
      %v9631 = vor.u32 1.1754944e-38, %v9630
      %v9632 = vsel %vm9629, %v9631, %v9627
      %v9633 = vmul.f32 1.0, %v9632
      %v9634 = vrcp.pop %v6412
      %v9635 = vmul.f32 %v6412, %v9634
      %v9636 = vsub.f32 1.0, %v9635
      %v9637 = vmul.f32 %v9634, %v9636
      %v9638 = vadd.f32 %v9634, %v9637
      %vm9639 = vweird.f32 %v6412
      %vm9640 = vweird.f32 %v9634
      %vm9641 = vmor %vm9639, %vm9640
      %v9642 = vsel %vm9641, %v9634, %v9638
      %v9643 = vand.u32 2147483647, %v6412
      %vm9644 = vcmp.eq.f32.partialorder %v9643, 8.507059e+37
      %v9645 = vand.u32 %v6412, 2147483648
      %v9646 = vor.u32 1.1754944e-38, %v9645
      %v9647 = vsel %vm9644, %v9646, %v9642
      %v9648 = vmul.f32 1.0, %v9647
      %v9649 = vrcp.pop %v6413
      %v9650 = vmul.f32 %v6413, %v9649
      %v9651 = vsub.f32 1.0, %v9650
      %v9652 = vmul.f32 %v9649, %v9651
      %v9653 = vadd.f32 %v9649, %v9652
      %vm9654 = vweird.f32 %v6413
      %vm9655 = vweird.f32 %v9649
      %vm9656 = vmor %vm9654, %vm9655
      %v9657 = vsel %vm9656, %v9649, %v9653
      %v9658 = vand.u32 2147483647, %v6413
      %vm9659 = vcmp.eq.f32.partialorder %v9658, 8.507059e+37
      %v9660 = vand.u32 %v6413, 2147483648
      %v9661 = vor.u32 1.1754944e-38, %v9660
      %v9662 = vsel %vm9659, %v9661, %v9657
      %v9663 = vmul.f32 1.0, %v9662
      %v9664 = vrcp.pop %v6414
      %v9665 = vmul.f32 %v6414, %v9664
      %v9666 = vsub.f32 1.0, %v9665
      %v9667 = vmul.f32 %v9664, %v9666
      %v9668 = vadd.f32 %v9664, %v9667
      %vm9669 = vweird.f32 %v6414
      %vm9670 = vweird.f32 %v9664
      %vm9671 = vmor %vm9669, %vm9670
      %v9672 = vsel %vm9671, %v9664, %v9668
      %v9673 = vand.u32 2147483647, %v6414
      %vm9674 = vcmp.eq.f32.partialorder %v9673, 8.507059e+37
      %v9675 = vand.u32 %v6414, 2147483648
      %v9676 = vor.u32 1.1754944e-38, %v9675
      %v9677 = vsel %vm9674, %v9676, %v9672
      %v9678 = vmul.f32 1.0, %v9677
      %v9679 = vrcp.pop %v6415
      %v9680 = vmul.f32 %v6415, %v9679
      %v9681 = vsub.f32 1.0, %v9680
      %v9682 = vmul.f32 %v9679, %v9681
      %v9683 = vadd.f32 %v9679, %v9682
      %vm9684 = vweird.f32 %v6415
      %vm9685 = vweird.f32 %v9679
      %vm9686 = vmor %vm9684, %vm9685
      %v9687 = vsel %vm9686, %v9679, %v9683
      %v9688 = vand.u32 2147483647, %v6415
      %vm9689 = vcmp.eq.f32.partialorder %v9688, 8.507059e+37
      %v9690 = vand.u32 %v6415, 2147483648
      %v9691 = vor.u32 1.1754944e-38, %v9690
      %v9692 = vsel %vm9689, %v9691, %v9687
      %v9693 = vmul.f32 1.0, %v9692
      %v9694 = vrcp.pop %v6416
      %v9695 = vmul.f32 %v6416, %v9694
      %v9696 = vsub.f32 1.0, %v9695
      %v9697 = vmul.f32 %v9694, %v9696
      %v9698 = vadd.f32 %v9694, %v9697
      %vm9699 = vweird.f32 %v6416
      %vm9700 = vweird.f32 %v9694
      %vm9701 = vmor %vm9699, %vm9700
      %v9702 = vsel %vm9701, %v9694, %v9698
      %v9703 = vand.u32 2147483647, %v6416
      %vm9704 = vcmp.eq.f32.partialorder %v9703, 8.507059e+37
      %v9705 = vand.u32 %v6416, 2147483648
      %v9706 = vor.u32 1.1754944e-38, %v9705
      %v9707 = vsel %vm9704, %v9706, %v9702
      %v9708 = vmul.f32 1.0, %v9707
      %v9709 = vrcp.pop %v6417
      %v9710 = vmul.f32 %v6417, %v9709
      %v9711 = vsub.f32 1.0, %v9710
      %v9712 = vmul.f32 %v9709, %v9711
      %v9713 = vadd.f32 %v9709, %v9712
      %vm9714 = vweird.f32 %v6417
      %vm9715 = vweird.f32 %v9709
      %vm9716 = vmor %vm9714, %vm9715
      %v9717 = vsel %vm9716, %v9709, %v9713
      %v9718 = vand.u32 2147483647, %v6417
      %vm9719 = vcmp.eq.f32.partialorder %v9718, 8.507059e+37
      %v9720 = vand.u32 %v6417, 2147483648
      %v9721 = vor.u32 1.1754944e-38, %v9720
      %v9722 = vsel %vm9719, %v9721, %v9717
      %v9723 = vmul.f32 1.0, %v9722
      %v9724 = vrcp.pop %v6418
      %v9725 = vmul.f32 %v6418, %v9724
      %v9726 = vsub.f32 1.0, %v9725
      %v9727 = vmul.f32 %v9724, %v9726
      %v9728 = vadd.f32 %v9724, %v9727
      %vm9729 = vweird.f32 %v6418
      %vm9730 = vweird.f32 %v9724
      %vm9731 = vmor %vm9729, %vm9730
      %v9732 = vsel %vm9731, %v9724, %v9728
      %v9733 = vand.u32 2147483647, %v6418
      %vm9734 = vcmp.eq.f32.partialorder %v9733, 8.507059e+37
      %v9735 = vand.u32 %v6418, 2147483648
      %v9736 = vor.u32 1.1754944e-38, %v9735
      %v9737 = vsel %vm9734, %v9736, %v9732
      %v9738 = vmul.f32 1.0, %v9737
      %v9739 = vrcp.pop %v6419
      %v9740 = vmul.f32 %v6419, %v9739
      %v9741 = vsub.f32 1.0, %v9740
      %v9742 = vmul.f32 %v9739, %v9741
      %v9743 = vadd.f32 %v9739, %v9742
      %vm9744 = vweird.f32 %v6419
      %vm9745 = vweird.f32 %v9739
      %vm9746 = vmor %vm9744, %vm9745
      %v9747 = vsel %vm9746, %v9739, %v9743
      %v9748 = vand.u32 2147483647, %v6419
      %vm9749 = vcmp.eq.f32.partialorder %v9748, 8.507059e+37
      %v9750 = vand.u32 %v6419, 2147483648
      %v9751 = vor.u32 1.1754944e-38, %v9750
      %v9752 = vsel %vm9749, %v9751, %v9747
      %v9753 = vmul.f32 1.0, %v9752
      %v9754 = vrcp.pop %v6420
      %v9755 = vmul.f32 %v6420, %v9754
      %v9756 = vsub.f32 1.0, %v9755
      %v9757 = vmul.f32 %v9754, %v9756
      %v9758 = vadd.f32 %v9754, %v9757
      %vm9759 = vweird.f32 %v6420
      %vm9760 = vweird.f32 %v9754
      %vm9761 = vmor %vm9759, %vm9760
      %v9762 = vsel %vm9761, %v9754, %v9758
      %v9763 = vand.u32 2147483647, %v6420
      %vm9764 = vcmp.eq.f32.partialorder %v9763, 8.507059e+37
      %v9765 = vand.u32 %v6420, 2147483648
      %v9766 = vor.u32 1.1754944e-38, %v9765
      %v9767 = vsel %vm9764, %v9766, %v9762
      %v9768 = vmul.f32 1.0, %v9767
      %v9769 = vrcp.pop %v6421
      %v9770 = vmul.f32 %v6421, %v9769
      %v9771 = vsub.f32 1.0, %v9770
      %v9772 = vmul.f32 %v9769, %v9771
      %v9773 = vadd.f32 %v9769, %v9772
      %vm9774 = vweird.f32 %v6421
      %vm9775 = vweird.f32 %v9769
      %vm9776 = vmor %vm9774, %vm9775
      %v9777 = vsel %vm9776, %v9769, %v9773
      %v9778 = vand.u32 2147483647, %v6421
      %vm9779 = vcmp.eq.f32.partialorder %v9778, 8.507059e+37
      %v9780 = vand.u32 %v6421, 2147483648
      %v9781 = vor.u32 1.1754944e-38, %v9780
      %v9782 = vsel %vm9779, %v9781, %v9777
      %v9783 = vmul.f32 1.0, %v9782
      %v9784 = vrcp.pop %v6422
      %v9785 = vmul.f32 %v6422, %v9784
      %v9786 = vsub.f32 1.0, %v9785
      %v9787 = vmul.f32 %v9784, %v9786
      %v9788 = vadd.f32 %v9784, %v9787
      %vm9789 = vweird.f32 %v6422
      %vm9790 = vweird.f32 %v9784
      %vm9791 = vmor %vm9789, %vm9790
      %v9792 = vsel %vm9791, %v9784, %v9788
      %v9793 = vand.u32 2147483647, %v6422
      %vm9794 = vcmp.eq.f32.partialorder %v9793, 8.507059e+37
      %v9795 = vand.u32 %v6422, 2147483648
      %v9796 = vor.u32 1.1754944e-38, %v9795
      %v9797 = vsel %vm9794, %v9796, %v9792
      %v9798 = vmul.f32 1.0, %v9797
      %v9799 = vrcp.pop %v6423
      %v9800 = vmul.f32 %v6423, %v9799
      %v9801 = vsub.f32 1.0, %v9800
      %v9802 = vmul.f32 %v9799, %v9801
      %v9803 = vadd.f32 %v9799, %v9802
      %vm9804 = vweird.f32 %v6423
      %vm9805 = vweird.f32 %v9799
      %vm9806 = vmor %vm9804, %vm9805
      %v9807 = vsel %vm9806, %v9799, %v9803
      %v9808 = vand.u32 2147483647, %v6423
      %vm9809 = vcmp.eq.f32.partialorder %v9808, 8.507059e+37
      %v9810 = vand.u32 %v6423, 2147483648
      %v9811 = vor.u32 1.1754944e-38, %v9810
      %v9812 = vsel %vm9809, %v9811, %v9807
      %v9813 = vmul.f32 1.0, %v9812
      %v9814 = vrcp.pop %v6424
      %v9815 = vmul.f32 %v6424, %v9814
      %v9816 = vsub.f32 1.0, %v9815
      %v9817 = vmul.f32 %v9814, %v9816
      %v9818 = vadd.f32 %v9814, %v9817
      %vm9819 = vweird.f32 %v6424
      %vm9820 = vweird.f32 %v9814
      %vm9821 = vmor %vm9819, %vm9820
      %v9822 = vsel %vm9821, %v9814, %v9818
      %v9823 = vand.u32 2147483647, %v6424
      %vm9824 = vcmp.eq.f32.partialorder %v9823, 8.507059e+37
      %v9825 = vand.u32 %v6424, 2147483648
      %v9826 = vor.u32 1.1754944e-38, %v9825
      %v9827 = vsel %vm9824, %v9826, %v9822
      %v9828 = vmul.f32 1.0, %v9827
      %v9829 = vrcp.pop %v6425
      %v9830 = vmul.f32 %v6425, %v9829
      %v9831 = vsub.f32 1.0, %v9830
      %v9832 = vmul.f32 %v9829, %v9831
      %v9833 = vadd.f32 %v9829, %v9832
      %vm9834 = vweird.f32 %v6425
      %vm9835 = vweird.f32 %v9829
      %vm9836 = vmor %vm9834, %vm9835
      %v9837 = vsel %vm9836, %v9829, %v9833
      %v9838 = vand.u32 2147483647, %v6425
      %vm9839 = vcmp.eq.f32.partialorder %v9838, 8.507059e+37
      %v9840 = vand.u32 %v6425, 2147483648
      %v9841 = vor.u32 1.1754944e-38, %v9840
      %v9842 = vsel %vm9839, %v9841, %v9837
      %v9843 = vmul.f32 1.0, %v9842
      %v9844 = vrcp.pop %v6426
      %v9845 = vmul.f32 %v6426, %v9844
      %v9846 = vsub.f32 1.0, %v9845
      %v9847 = vmul.f32 %v9844, %v9846
      %v9848 = vadd.f32 %v9844, %v9847
      %vm9849 = vweird.f32 %v6426
      %vm9850 = vweird.f32 %v9844
      %vm9851 = vmor %vm9849, %vm9850
      %v9852 = vsel %vm9851, %v9844, %v9848
      %v9853 = vand.u32 2147483647, %v6426
      %vm9854 = vcmp.eq.f32.partialorder %v9853, 8.507059e+37
      %v9855 = vand.u32 %v6426, 2147483648
      %v9856 = vor.u32 1.1754944e-38, %v9855
      %v9857 = vsel %vm9854, %v9856, %v9852
      %v9858 = vmul.f32 1.0, %v9857
      %v9859 = vrcp.pop %v6427
      %v9860 = vmul.f32 %v6427, %v9859
      %v9861 = vsub.f32 1.0, %v9860
      %v9862 = vmul.f32 %v9859, %v9861
      %v9863 = vadd.f32 %v9859, %v9862
      %vm9864 = vweird.f32 %v6427
      %vm9865 = vweird.f32 %v9859
      %vm9866 = vmor %vm9864, %vm9865
      %v9867 = vsel %vm9866, %v9859, %v9863
      %v9868 = vand.u32 2147483647, %v6427
      %vm9869 = vcmp.eq.f32.partialorder %v9868, 8.507059e+37
      %v9870 = vand.u32 %v6427, 2147483648
      %v9871 = vor.u32 1.1754944e-38, %v9870
      %v9872 = vsel %vm9869, %v9871, %v9867
      %v9873 = vmul.f32 1.0, %v9872
      %v9874 = vrcp.pop %v6428
      %v9875 = vmul.f32 %v6428, %v9874
      %v9876 = vsub.f32 1.0, %v9875
      %v9877 = vmul.f32 %v9874, %v9876
      %v9878 = vadd.f32 %v9874, %v9877
      %vm9879 = vweird.f32 %v6428
      %vm9880 = vweird.f32 %v9874
      %vm9881 = vmor %vm9879, %vm9880
      %v9882 = vsel %vm9881, %v9874, %v9878
      %v9883 = vand.u32 2147483647, %v6428
      %vm9884 = vcmp.eq.f32.partialorder %v9883, 8.507059e+37
      %v9885 = vand.u32 %v6428, 2147483648
      %v9886 = vor.u32 1.1754944e-38, %v9885
      %v9887 = vsel %vm9884, %v9886, %v9882
      %v9888 = vmul.f32 1.0, %v9887
      %v9889 = vrcp.pop %v6429
      %v9890 = vmul.f32 %v6429, %v9889
      %v9891 = vsub.f32 1.0, %v9890
      %v9892 = vmul.f32 %v9889, %v9891
      %v9893 = vadd.f32 %v9889, %v9892
      %vm9894 = vweird.f32 %v6429
      %vm9895 = vweird.f32 %v9889
      %vm9896 = vmor %vm9894, %vm9895
      %v9897 = vsel %vm9896, %v9889, %v9893
      %v9898 = vand.u32 2147483647, %v6429
      %vm9899 = vcmp.eq.f32.partialorder %v9898, 8.507059e+37
      %v9900 = vand.u32 %v6429, 2147483648
      %v9901 = vor.u32 1.1754944e-38, %v9900
      %v9902 = vsel %vm9899, %v9901, %v9897
      %v9903 = vmul.f32 1.0, %v9902
      %v9904 = vrcp.pop %v6430
      %v9905 = vmul.f32 %v6430, %v9904
      %v9906 = vsub.f32 1.0, %v9905
      %v9907 = vmul.f32 %v9904, %v9906
      %v9908 = vadd.f32 %v9904, %v9907
      %vm9909 = vweird.f32 %v6430
      %vm9910 = vweird.f32 %v9904
      %vm9911 = vmor %vm9909, %vm9910
      %v9912 = vsel %vm9911, %v9904, %v9908
      %v9913 = vand.u32 2147483647, %v6430
      %vm9914 = vcmp.eq.f32.partialorder %v9913, 8.507059e+37
      %v9915 = vand.u32 %v6430, 2147483648
      %v9916 = vor.u32 1.1754944e-38, %v9915
      %v9917 = vsel %vm9914, %v9916, %v9912
      %v9918 = vmul.f32 1.0, %v9917
      %v9919 = vrcp.pop %v6431
      %v9920 = vmul.f32 %v6431, %v9919
      %v9921 = vsub.f32 1.0, %v9920
      %v9922 = vmul.f32 %v9919, %v9921
      %v9923 = vadd.f32 %v9919, %v9922
      %vm9924 = vweird.f32 %v6431
      %vm9925 = vweird.f32 %v9919
      %vm9926 = vmor %vm9924, %vm9925
      %v9927 = vsel %vm9926, %v9919, %v9923
      %v9928 = vand.u32 2147483647, %v6431
      %vm9929 = vcmp.eq.f32.partialorder %v9928, 8.507059e+37
      %v9930 = vand.u32 %v6431, 2147483648
      %v9931 = vor.u32 1.1754944e-38, %v9930
      %v9932 = vsel %vm9929, %v9931, %v9927
      %v9933 = vmul.f32 1.0, %v9932
      %v9934 = vrcp.pop %v6432
      %v9935 = vmul.f32 %v6432, %v9934
      %v9936 = vsub.f32 1.0, %v9935
      %v9937 = vmul.f32 %v9934, %v9936
      %v9938 = vadd.f32 %v9934, %v9937
      %vm9939 = vweird.f32 %v6432
      %vm9940 = vweird.f32 %v9934
      %vm9941 = vmor %vm9939, %vm9940
      %v9942 = vsel %vm9941, %v9934, %v9938
      %v9943 = vand.u32 2147483647, %v6432
      %vm9944 = vcmp.eq.f32.partialorder %v9943, 8.507059e+37
      %v9945 = vand.u32 %v6432, 2147483648
      %v9946 = vor.u32 1.1754944e-38, %v9945
      %v9947 = vsel %vm9944, %v9946, %v9942
      %v9948 = vmul.f32 1.0, %v9947
      %v9949 = vrcp.pop %v6433
      %v9950 = vmul.f32 %v6433, %v9949
      %v9951 = vsub.f32 1.0, %v9950
      %v9952 = vmul.f32 %v9949, %v9951
      %v9953 = vadd.f32 %v9949, %v9952
      %vm9954 = vweird.f32 %v6433
      %vm9955 = vweird.f32 %v9949
      %vm9956 = vmor %vm9954, %vm9955
      %v9957 = vsel %vm9956, %v9949, %v9953
      %v9958 = vand.u32 2147483647, %v6433
      %vm9959 = vcmp.eq.f32.partialorder %v9958, 8.507059e+37
      %v9960 = vand.u32 %v6433, 2147483648
      %v9961 = vor.u32 1.1754944e-38, %v9960
      %v9962 = vsel %vm9959, %v9961, %v9957
      %v9963 = vmul.f32 1.0, %v9962
      %v9964 = vrcp.pop %v6434
      %v9965 = vmul.f32 %v6434, %v9964
      %v9966 = vsub.f32 1.0, %v9965
      %v9967 = vmul.f32 %v9964, %v9966
      %v9968 = vadd.f32 %v9964, %v9967
      %vm9969 = vweird.f32 %v6434
      %vm9970 = vweird.f32 %v9964
      %vm9971 = vmor %vm9969, %vm9970
      %v9972 = vsel %vm9971, %v9964, %v9968
      %v9973 = vand.u32 2147483647, %v6434
      %vm9974 = vcmp.eq.f32.partialorder %v9973, 8.507059e+37
      %v9975 = vand.u32 %v6434, 2147483648
      %v9976 = vor.u32 1.1754944e-38, %v9975
      %v9977 = vsel %vm9974, %v9976, %v9972
      %v9978 = vmul.f32 1.0, %v9977
      %v9979 = vrcp.pop %v6435
      %v9980 = vmul.f32 %v6435, %v9979
      %v9981 = vsub.f32 1.0, %v9980
      %v9982 = vmul.f32 %v9979, %v9981
      %v9983 = vadd.f32 %v9979, %v9982
      %vm9984 = vweird.f32 %v6435
      %vm9985 = vweird.f32 %v9979
      %vm9986 = vmor %vm9984, %vm9985
      %v9987 = vsel %vm9986, %v9979, %v9983
      %v9988 = vand.u32 2147483647, %v6435
      %vm9989 = vcmp.eq.f32.partialorder %v9988, 8.507059e+37
      %v9990 = vand.u32 %v6435, 2147483648
      %v9991 = vor.u32 1.1754944e-38, %v9990
      %v9992 = vsel %vm9989, %v9991, %v9987
      %v9993 = vmul.f32 1.0, %v9992
      %v9994 = vrcp.pop %v6436
      %v9995 = vmul.f32 %v6436, %v9994
      %v9996 = vsub.f32 1.0, %v9995
      %v9997 = vmul.f32 %v9994, %v9996
      %v9998 = vadd.f32 %v9994, %v9997
      %vm9999 = vweird.f32 %v6436
      %vm10000 = vweird.f32 %v9994
      %vm10001 = vmor %vm9999, %vm10000
      %v10002 = vsel %vm10001, %v9994, %v9998
      %v10003 = vand.u32 2147483647, %v6436
      %vm10004 = vcmp.eq.f32.partialorder %v10003, 8.507059e+37
      %v10005 = vand.u32 %v6436, 2147483648
      %v10006 = vor.u32 1.1754944e-38, %v10005
      %v10007 = vsel %vm10004, %v10006, %v10002
      %v10008 = vmul.f32 1.0, %v10007
      %v10009 = vrcp.pop %v6437
      %v10010 = vmul.f32 %v6437, %v10009
      %v10011 = vsub.f32 1.0, %v10010
      %v10012 = vmul.f32 %v10009, %v10011
      %v10013 = vadd.f32 %v10009, %v10012
      %vm10014 = vweird.f32 %v6437
      %vm10015 = vweird.f32 %v10009
      %vm10016 = vmor %vm10014, %vm10015
      %v10017 = vsel %vm10016, %v10009, %v10013
      %v10018 = vand.u32 2147483647, %v6437
      %vm10019 = vcmp.eq.f32.partialorder %v10018, 8.507059e+37
      %v10020 = vand.u32 %v6437, 2147483648
      %v10021 = vor.u32 1.1754944e-38, %v10020
      %v10022 = vsel %vm10019, %v10021, %v10017
      %v10023 = vmul.f32 1.0, %v10022
      %v10024 = vrcp.pop %v6438
      %v10025 = vmul.f32 %v6438, %v10024
      %v10026 = vsub.f32 1.0, %v10025
      %v10027 = vmul.f32 %v10024, %v10026
      %v10028 = vadd.f32 %v10024, %v10027
      %vm10029 = vweird.f32 %v6438
      %vm10030 = vweird.f32 %v10024
      %vm10031 = vmor %vm10029, %vm10030
      %v10032 = vsel %vm10031, %v10024, %v10028
      %v10033 = vand.u32 2147483647, %v6438
      %vm10034 = vcmp.eq.f32.partialorder %v10033, 8.507059e+37
      %v10035 = vand.u32 %v6438, 2147483648
      %v10036 = vor.u32 1.1754944e-38, %v10035
      %v10037 = vsel %vm10034, %v10036, %v10032
      %v10038 = vmul.f32 1.0, %v10037
      %v10039 = vrcp.pop %v6439
      %v10040 = vmul.f32 %v6439, %v10039
      %v10041 = vsub.f32 1.0, %v10040
      %v10042 = vmul.f32 %v10039, %v10041
      %v10043 = vadd.f32 %v10039, %v10042
      %vm10044 = vweird.f32 %v6439
      %vm10045 = vweird.f32 %v10039
      %vm10046 = vmor %vm10044, %vm10045
      %v10047 = vsel %vm10046, %v10039, %v10043
      %v10048 = vand.u32 2147483647, %v6439
      %vm10049 = vcmp.eq.f32.partialorder %v10048, 8.507059e+37
      %v10050 = vand.u32 %v6439, 2147483648
      %v10051 = vor.u32 1.1754944e-38, %v10050
      %v10052 = vsel %vm10049, %v10051, %v10047
      %v10053 = vmul.f32 1.0, %v10052
      %v10054 = vrcp.pop %v6440
      %v10055 = vmul.f32 %v6440, %v10054
      %v10056 = vsub.f32 1.0, %v10055
      %v10057 = vmul.f32 %v10054, %v10056
      %v10058 = vadd.f32 %v10054, %v10057
      %vm10059 = vweird.f32 %v6440
      %vm10060 = vweird.f32 %v10054
      %vm10061 = vmor %vm10059, %vm10060
      %v10062 = vsel %vm10061, %v10054, %v10058
      %v10063 = vand.u32 2147483647, %v6440
      %vm10064 = vcmp.eq.f32.partialorder %v10063, 8.507059e+37
      %v10065 = vand.u32 %v6440, 2147483648
      %v10066 = vor.u32 1.1754944e-38, %v10065
      %v10067 = vsel %vm10064, %v10066, %v10062
      %v10068 = vmul.f32 1.0, %v10067
      %v10069 = vrcp.pop %v6441
      %v10070 = vmul.f32 %v6441, %v10069
      %v10071 = vsub.f32 1.0, %v10070
      %v10072 = vmul.f32 %v10069, %v10071
      %v10073 = vadd.f32 %v10069, %v10072
      %vm10074 = vweird.f32 %v6441
      %vm10075 = vweird.f32 %v10069
      %vm10076 = vmor %vm10074, %vm10075
      %v10077 = vsel %vm10076, %v10069, %v10073
      %v10078 = vand.u32 2147483647, %v6441
      %vm10079 = vcmp.eq.f32.partialorder %v10078, 8.507059e+37
      %v10080 = vand.u32 %v6441, 2147483648
      %v10081 = vor.u32 1.1754944e-38, %v10080
      %v10082 = vsel %vm10079, %v10081, %v10077
      %v10083 = vmul.f32 1.0, %v10082
      %v10084 = vrcp.pop %v6442
      %v10085 = vmul.f32 %v6442, %v10084
      %v10086 = vsub.f32 1.0, %v10085
      %v10087 = vmul.f32 %v10084, %v10086
      %v10088 = vadd.f32 %v10084, %v10087
      %vm10089 = vweird.f32 %v6442
      %vm10090 = vweird.f32 %v10084
      %vm10091 = vmor %vm10089, %vm10090
      %v10092 = vsel %vm10091, %v10084, %v10088
      %v10093 = vand.u32 2147483647, %v6442
      %vm10094 = vcmp.eq.f32.partialorder %v10093, 8.507059e+37
      %v10095 = vand.u32 %v6442, 2147483648
      %v10096 = vor.u32 1.1754944e-38, %v10095
      %v10097 = vsel %vm10094, %v10096, %v10092
      %v10098 = vmul.f32 1.0, %v10097
      %v10099 = vrcp.pop %v6443
      %v10100 = vmul.f32 %v6443, %v10099
      %v10101 = vsub.f32 1.0, %v10100
      %v10102 = vmul.f32 %v10099, %v10101
      %v10103 = vadd.f32 %v10099, %v10102
      %vm10104 = vweird.f32 %v6443
      %vm10105 = vweird.f32 %v10099
      %vm10106 = vmor %vm10104, %vm10105
      %v10107 = vsel %vm10106, %v10099, %v10103
      %v10108 = vand.u32 2147483647, %v6443
      %vm10109 = vcmp.eq.f32.partialorder %v10108, 8.507059e+37
      %v10110 = vand.u32 %v6443, 2147483648
      %v10111 = vor.u32 1.1754944e-38, %v10110
      %v10112 = vsel %vm10109, %v10111, %v10107
      %v10113 = vmul.f32 1.0, %v10112
      %v10114 = vrcp.pop %v6444
      %v10115 = vmul.f32 %v6444, %v10114
      %v10116 = vsub.f32 1.0, %v10115
      %v10117 = vmul.f32 %v10114, %v10116
      %v10118 = vadd.f32 %v10114, %v10117
      %vm10119 = vweird.f32 %v6444
      %vm10120 = vweird.f32 %v10114
      %vm10121 = vmor %vm10119, %vm10120
      %v10122 = vsel %vm10121, %v10114, %v10118
      %v10123 = vand.u32 2147483647, %v6444
      %vm10124 = vcmp.eq.f32.partialorder %v10123, 8.507059e+37
      %v10125 = vand.u32 %v6444, 2147483648
      %v10126 = vor.u32 1.1754944e-38, %v10125
      %v10127 = vsel %vm10124, %v10126, %v10122
      %v10128 = vmul.f32 1.0, %v10127
      %v10129 = vrcp.pop %v6445
      %v10130 = vmul.f32 %v6445, %v10129
      %v10131 = vsub.f32 1.0, %v10130
      %v10132 = vmul.f32 %v10129, %v10131
      %v10133 = vadd.f32 %v10129, %v10132
      %vm10134 = vweird.f32 %v6445
      %vm10135 = vweird.f32 %v10129
      %vm10136 = vmor %vm10134, %vm10135
      %v10137 = vsel %vm10136, %v10129, %v10133
      %v10138 = vand.u32 2147483647, %v6445
      %vm10139 = vcmp.eq.f32.partialorder %v10138, 8.507059e+37
      %v10140 = vand.u32 %v6445, 2147483648
      %v10141 = vor.u32 1.1754944e-38, %v10140
      %v10142 = vsel %vm10139, %v10141, %v10137
      %v10143 = vmul.f32 1.0, %v10142
      %v10144 = vrcp.pop %v6446
      %v10145 = vmul.f32 %v6446, %v10144
      %v10146 = vsub.f32 1.0, %v10145
      %v10147 = vmul.f32 %v10144, %v10146
      %v10148 = vadd.f32 %v10144, %v10147
      %vm10149 = vweird.f32 %v6446
      %vm10150 = vweird.f32 %v10144
      %vm10151 = vmor %vm10149, %vm10150
      %v10152 = vsel %vm10151, %v10144, %v10148
      %v10153 = vand.u32 2147483647, %v6446
      %vm10154 = vcmp.eq.f32.partialorder %v10153, 8.507059e+37
      %v10155 = vand.u32 %v6446, 2147483648
      %v10156 = vor.u32 1.1754944e-38, %v10155
      %v10157 = vsel %vm10154, %v10156, %v10152
      %v10158 = vmul.f32 1.0, %v10157
      %v10159 = vrcp.pop %v6447
      %v10160 = vmul.f32 %v6447, %v10159
      %v10161 = vsub.f32 1.0, %v10160
      %v10162 = vmul.f32 %v10159, %v10161
      %v10163 = vadd.f32 %v10159, %v10162
      %vm10164 = vweird.f32 %v6447
      %vm10165 = vweird.f32 %v10159
      %vm10166 = vmor %vm10164, %vm10165
      %v10167 = vsel %vm10166, %v10159, %v10163
      %v10168 = vand.u32 2147483647, %v6447
      %vm10169 = vcmp.eq.f32.partialorder %v10168, 8.507059e+37
      %v10170 = vand.u32 %v6447, 2147483648
      %v10171 = vor.u32 1.1754944e-38, %v10170
      %v10172 = vsel %vm10169, %v10171, %v10167
      %v10173 = vmul.f32 1.0, %v10172
      %v10174 = vrcp.pop %v6448
      %v10175 = vmul.f32 %v6448, %v10174
      %v10176 = vsub.f32 1.0, %v10175
      %v10177 = vmul.f32 %v10174, %v10176
      %v10178 = vadd.f32 %v10174, %v10177
      %vm10179 = vweird.f32 %v6448
      %vm10180 = vweird.f32 %v10174
      %vm10181 = vmor %vm10179, %vm10180
      %v10182 = vsel %vm10181, %v10174, %v10178
      %v10183 = vand.u32 2147483647, %v6448
      %vm10184 = vcmp.eq.f32.partialorder %v10183, 8.507059e+37
      %v10185 = vand.u32 %v6448, 2147483648
      %v10186 = vor.u32 1.1754944e-38, %v10185
      %v10187 = vsel %vm10184, %v10186, %v10182
      %v10188 = vmul.f32 1.0, %v10187
      %v10189 = vrcp.pop %v6449
      %v10190 = vmul.f32 %v6449, %v10189
      %v10191 = vsub.f32 1.0, %v10190
      %v10192 = vmul.f32 %v10189, %v10191
      %v10193 = vadd.f32 %v10189, %v10192
      %vm10194 = vweird.f32 %v6449
      %vm10195 = vweird.f32 %v10189
      %vm10196 = vmor %vm10194, %vm10195
      %v10197 = vsel %vm10196, %v10189, %v10193
      %v10198 = vand.u32 2147483647, %v6449
      %vm10199 = vcmp.eq.f32.partialorder %v10198, 8.507059e+37
      %v10200 = vand.u32 %v6449, 2147483648
      %v10201 = vor.u32 1.1754944e-38, %v10200
      %v10202 = vsel %vm10199, %v10201, %v10197
      %v10203 = vmul.f32 1.0, %v10202
      %v10204 = vrcp.pop %v6450
      %v10205 = vmul.f32 %v6450, %v10204
      %v10206 = vsub.f32 1.0, %v10205
      %v10207 = vmul.f32 %v10204, %v10206
      %v10208 = vadd.f32 %v10204, %v10207
      %vm10209 = vweird.f32 %v6450
      %vm10210 = vweird.f32 %v10204
      %vm10211 = vmor %vm10209, %vm10210
      %v10212 = vsel %vm10211, %v10204, %v10208
      %v10213 = vand.u32 2147483647, %v6450
      %vm10214 = vcmp.eq.f32.partialorder %v10213, 8.507059e+37
      %v10215 = vand.u32 %v6450, 2147483648
      %v10216 = vor.u32 1.1754944e-38, %v10215
      %v10217 = vsel %vm10214, %v10216, %v10212
      %v10218 = vmul.f32 1.0, %v10217
      %v10219 = vrcp.pop %v6451
      %v10220 = vmul.f32 %v6451, %v10219
      %v10221 = vsub.f32 1.0, %v10220
      %v10222 = vmul.f32 %v10219, %v10221
      %v10223 = vadd.f32 %v10219, %v10222
      %vm10224 = vweird.f32 %v6451
      %vm10225 = vweird.f32 %v10219
      %vm10226 = vmor %vm10224, %vm10225
      %v10227 = vsel %vm10226, %v10219, %v10223
      %v10228 = vand.u32 2147483647, %v6451
      %vm10229 = vcmp.eq.f32.partialorder %v10228, 8.507059e+37
      %v10230 = vand.u32 %v6451, 2147483648
      %v10231 = vor.u32 1.1754944e-38, %v10230
      %v10232 = vsel %vm10229, %v10231, %v10227
      %v10233 = vmul.f32 1.0, %v10232
      %v10234 = vrcp.pop %v6452
      %v10235 = vmul.f32 %v6452, %v10234
      %v10236 = vsub.f32 1.0, %v10235
      %v10237 = vmul.f32 %v10234, %v10236
      %v10238 = vadd.f32 %v10234, %v10237
      %vm10239 = vweird.f32 %v6452
      %vm10240 = vweird.f32 %v10234
      %vm10241 = vmor %vm10239, %vm10240
      %v10242 = vsel %vm10241, %v10234, %v10238
      %v10243 = vand.u32 2147483647, %v6452
      %vm10244 = vcmp.eq.f32.partialorder %v10243, 8.507059e+37
      %v10245 = vand.u32 %v6452, 2147483648
      %v10246 = vor.u32 1.1754944e-38, %v10245
      %v10247 = vsel %vm10244, %v10246, %v10242
      %v10248 = vmul.f32 1.0, %v10247
      %v10249 = vrcp.pop %v6453
      %v10250 = vmul.f32 %v6453, %v10249
      %v10251 = vsub.f32 1.0, %v10250
      %v10252 = vmul.f32 %v10249, %v10251
      %v10253 = vadd.f32 %v10249, %v10252
      %vm10254 = vweird.f32 %v6453
      %vm10255 = vweird.f32 %v10249
      %vm10256 = vmor %vm10254, %vm10255
      %v10257 = vsel %vm10256, %v10249, %v10253
      %v10258 = vand.u32 2147483647, %v6453
      %vm10259 = vcmp.eq.f32.partialorder %v10258, 8.507059e+37
      %v10260 = vand.u32 %v6453, 2147483648
      %v10261 = vor.u32 1.1754944e-38, %v10260
      %v10262 = vsel %vm10259, %v10261, %v10257
      %v10263 = vmul.f32 1.0, %v10262
      %v10264 = vrcp.pop %v6454
      %v10265 = vmul.f32 %v6454, %v10264
      %v10266 = vsub.f32 1.0, %v10265
      %v10267 = vmul.f32 %v10264, %v10266
      %v10268 = vadd.f32 %v10264, %v10267
      %vm10269 = vweird.f32 %v6454
      %vm10270 = vweird.f32 %v10264
      %vm10271 = vmor %vm10269, %vm10270
      %v10272 = vsel %vm10271, %v10264, %v10268
      %v10273 = vand.u32 2147483647, %v6454
      %vm10274 = vcmp.eq.f32.partialorder %v10273, 8.507059e+37
      %v10275 = vand.u32 %v6454, 2147483648
      %v10276 = vor.u32 1.1754944e-38, %v10275
      %v10277 = vsel %vm10274, %v10276, %v10272
      %v10278 = vmul.f32 1.0, %v10277
      %v10279 = vrcp.pop %v6455
      %v10280 = vmul.f32 %v6455, %v10279
      %v10281 = vsub.f32 1.0, %v10280
      %v10282 = vmul.f32 %v10279, %v10281
      %v10283 = vadd.f32 %v10279, %v10282
      %vm10284 = vweird.f32 %v6455
      %vm10285 = vweird.f32 %v10279
      %vm10286 = vmor %vm10284, %vm10285
      %v10287 = vsel %vm10286, %v10279, %v10283
      %v10288 = vand.u32 2147483647, %v6455
      %vm10289 = vcmp.eq.f32.partialorder %v10288, 8.507059e+37
      %v10290 = vand.u32 %v6455, 2147483648
      %v10291 = vor.u32 1.1754944e-38, %v10290
      %v10292 = vsel %vm10289, %v10291, %v10287
      %v10293 = vmul.f32 1.0, %v10292
      %v10294 = vrcp.pop %v6456
      %v10295 = vmul.f32 %v6456, %v10294
      %v10296 = vsub.f32 1.0, %v10295
      %v10297 = vmul.f32 %v10294, %v10296
      %v10298 = vadd.f32 %v10294, %v10297
      %vm10299 = vweird.f32 %v6456
      %vm10300 = vweird.f32 %v10294
      %vm10301 = vmor %vm10299, %vm10300
      %v10302 = vsel %vm10301, %v10294, %v10298
      %v10303 = vand.u32 2147483647, %v6456
      %vm10304 = vcmp.eq.f32.partialorder %v10303, 8.507059e+37
      %v10305 = vand.u32 %v6456, 2147483648
      %v10306 = vor.u32 1.1754944e-38, %v10305
      %v10307 = vsel %vm10304, %v10306, %v10302
      %v10308 = vmul.f32 1.0, %v10307
      %v10309 = vrcp.pop %v6457
      %v10310 = vmul.f32 %v6457, %v10309
      %v10311 = vsub.f32 1.0, %v10310
      %v10312 = vmul.f32 %v10309, %v10311
      %v10313 = vadd.f32 %v10309, %v10312
      %vm10314 = vweird.f32 %v6457
      %vm10315 = vweird.f32 %v10309
      %vm10316 = vmor %vm10314, %vm10315
      %v10317 = vsel %vm10316, %v10309, %v10313
      %v10318 = vand.u32 2147483647, %v6457
      %vm10319 = vcmp.eq.f32.partialorder %v10318, 8.507059e+37
      %v10320 = vand.u32 %v6457, 2147483648
      %v10321 = vor.u32 1.1754944e-38, %v10320
      %v10322 = vsel %vm10319, %v10321, %v10317
      %v10323 = vmul.f32 1.0, %v10322
      %v10324 = vrcp.pop %v6458
      %v10325 = vmul.f32 %v6458, %v10324
      %v10326 = vsub.f32 1.0, %v10325
      %v10327 = vmul.f32 %v10324, %v10326
      %v10328 = vadd.f32 %v10324, %v10327
      %vm10329 = vweird.f32 %v6458
      %vm10330 = vweird.f32 %v10324
      %vm10331 = vmor %vm10329, %vm10330
      %v10332 = vsel %vm10331, %v10324, %v10328
      %v10333 = vand.u32 2147483647, %v6458
      %vm10334 = vcmp.eq.f32.partialorder %v10333, 8.507059e+37
      %v10335 = vand.u32 %v6458, 2147483648
      %v10336 = vor.u32 1.1754944e-38, %v10335
      %v10337 = vsel %vm10334, %v10336, %v10332
      %v10338 = vmul.f32 1.0, %v10337
      %v10339 = vrcp.pop %v6459
      %v10340 = vmul.f32 %v6459, %v10339
      %v10341 = vsub.f32 1.0, %v10340
      %v10342 = vmul.f32 %v10339, %v10341
      %v10343 = vadd.f32 %v10339, %v10342
      %vm10344 = vweird.f32 %v6459
      %vm10345 = vweird.f32 %v10339
      %vm10346 = vmor %vm10344, %vm10345
      %v10347 = vsel %vm10346, %v10339, %v10343
      %v10348 = vand.u32 2147483647, %v6459
      %vm10349 = vcmp.eq.f32.partialorder %v10348, 8.507059e+37
      %v10350 = vand.u32 %v6459, 2147483648
      %v10351 = vor.u32 1.1754944e-38, %v10350
      %v10352 = vsel %vm10349, %v10351, %v10347
      %v10353 = vmul.f32 1.0, %v10352
      %v10354 = vrcp.pop %v6460
      %v10355 = vmul.f32 %v6460, %v10354
      %v10356 = vsub.f32 1.0, %v10355
      %v10357 = vmul.f32 %v10354, %v10356
      %v10358 = vadd.f32 %v10354, %v10357
      %vm10359 = vweird.f32 %v6460
      %vm10360 = vweird.f32 %v10354
      %vm10361 = vmor %vm10359, %vm10360
      %v10362 = vsel %vm10361, %v10354, %v10358
      %v10363 = vand.u32 2147483647, %v6460
      %vm10364 = vcmp.eq.f32.partialorder %v10363, 8.507059e+37
      %v10365 = vand.u32 %v6460, 2147483648
      %v10366 = vor.u32 1.1754944e-38, %v10365
      %v10367 = vsel %vm10364, %v10366, %v10362
      %v10368 = vmul.f32 1.0, %v10367
      %v10369 = vrcp.pop %v6461
      %v10370 = vmul.f32 %v6461, %v10369
      %v10371 = vsub.f32 1.0, %v10370
      %v10372 = vmul.f32 %v10369, %v10371
      %v10373 = vadd.f32 %v10369, %v10372
      %vm10374 = vweird.f32 %v6461
      %vm10375 = vweird.f32 %v10369
      %vm10376 = vmor %vm10374, %vm10375
      %v10377 = vsel %vm10376, %v10369, %v10373
      %v10378 = vand.u32 2147483647, %v6461
      %vm10379 = vcmp.eq.f32.partialorder %v10378, 8.507059e+37
      %v10380 = vand.u32 %v6461, 2147483648
      %v10381 = vor.u32 1.1754944e-38, %v10380
      %v10382 = vsel %vm10379, %v10381, %v10377
      %v10383 = vmul.f32 1.0, %v10382
      %v10384 = vrcp.pop %v6462
      %v10385 = vmul.f32 %v6462, %v10384
      %v10386 = vsub.f32 1.0, %v10385
      %v10387 = vmul.f32 %v10384, %v10386
      %v10388 = vadd.f32 %v10384, %v10387
      %vm10389 = vweird.f32 %v6462
      %vm10390 = vweird.f32 %v10384
      %vm10391 = vmor %vm10389, %vm10390
      %v10392 = vsel %vm10391, %v10384, %v10388
      %v10393 = vand.u32 2147483647, %v6462
      %vm10394 = vcmp.eq.f32.partialorder %v10393, 8.507059e+37
      %v10395 = vand.u32 %v6462, 2147483648
      %v10396 = vor.u32 1.1754944e-38, %v10395
      %v10397 = vsel %vm10394, %v10396, %v10392
      %v10398 = vmul.f32 1.0, %v10397
      %v10399 = vrcp.pop %v6463
      %v10400 = vmul.f32 %v6463, %v10399
      %v10401 = vsub.f32 1.0, %v10400
      %v10402 = vmul.f32 %v10399, %v10401
      %v10403 = vadd.f32 %v10399, %v10402
      %vm10404 = vweird.f32 %v6463
      %vm10405 = vweird.f32 %v10399
      %vm10406 = vmor %vm10404, %vm10405
      %v10407 = vsel %vm10406, %v10399, %v10403
      %v10408 = vand.u32 2147483647, %v6463
      %vm10409 = vcmp.eq.f32.partialorder %v10408, 8.507059e+37
      %v10410 = vand.u32 %v6463, 2147483648
      %v10411 = vor.u32 1.1754944e-38, %v10410
      %v10412 = vsel %vm10409, %v10411, %v10407
      %v10413 = vmul.f32 1.0, %v10412
      %v10414 = vrcp.pop %v6464
      %v10415 = vmul.f32 %v6464, %v10414
      %v10416 = vsub.f32 1.0, %v10415
      %v10417 = vmul.f32 %v10414, %v10416
      %v10418 = vadd.f32 %v10414, %v10417
      %vm10419 = vweird.f32 %v6464
      %vm10420 = vweird.f32 %v10414
      %vm10421 = vmor %vm10419, %vm10420
      %v10422 = vsel %vm10421, %v10414, %v10418
      %v10423 = vand.u32 2147483647, %v6464
      %vm10424 = vcmp.eq.f32.partialorder %v10423, 8.507059e+37
      %v10425 = vand.u32 %v6464, 2147483648
      %v10426 = vor.u32 1.1754944e-38, %v10425
      %v10427 = vsel %vm10424, %v10426, %v10422
      %v10428 = vmul.f32 1.0, %v10427
      %v10429 = vrcp.pop %v6465
      %v10430 = vmul.f32 %v6465, %v10429
      %v10431 = vsub.f32 1.0, %v10430
      %v10432 = vmul.f32 %v10429, %v10431
      %v10433 = vadd.f32 %v10429, %v10432
      %vm10434 = vweird.f32 %v6465
      %vm10435 = vweird.f32 %v10429
      %vm10436 = vmor %vm10434, %vm10435
      %v10437 = vsel %vm10436, %v10429, %v10433
      %v10438 = vand.u32 2147483647, %v6465
      %vm10439 = vcmp.eq.f32.partialorder %v10438, 8.507059e+37
      %v10440 = vand.u32 %v6465, 2147483648
      %v10441 = vor.u32 1.1754944e-38, %v10440
      %v10442 = vsel %vm10439, %v10441, %v10437
      %v10443 = vmul.f32 1.0, %v10442
      %v10444 = vrcp.pop %v6466
      %v10445 = vmul.f32 %v6466, %v10444
      %v10446 = vsub.f32 1.0, %v10445
      %v10447 = vmul.f32 %v10444, %v10446
      %v10448 = vadd.f32 %v10444, %v10447
      %vm10449 = vweird.f32 %v6466
      %vm10450 = vweird.f32 %v10444
      %vm10451 = vmor %vm10449, %vm10450
      %v10452 = vsel %vm10451, %v10444, %v10448
      %v10453 = vand.u32 2147483647, %v6466
      %vm10454 = vcmp.eq.f32.partialorder %v10453, 8.507059e+37
      %v10455 = vand.u32 %v6466, 2147483648
      %v10456 = vor.u32 1.1754944e-38, %v10455
      %v10457 = vsel %vm10454, %v10456, %v10452
      %v10458 = vmul.f32 1.0, %v10457
      %v10459 = vrcp.pop %v6467
      %v10460 = vmul.f32 %v6467, %v10459
      %v10461 = vsub.f32 1.0, %v10460
      %v10462 = vmul.f32 %v10459, %v10461
      %v10463 = vadd.f32 %v10459, %v10462
      %vm10464 = vweird.f32 %v6467
      %vm10465 = vweird.f32 %v10459
      %vm10466 = vmor %vm10464, %vm10465
      %v10467 = vsel %vm10466, %v10459, %v10463
      %v10468 = vand.u32 2147483647, %v6467
      %vm10469 = vcmp.eq.f32.partialorder %v10468, 8.507059e+37
      %v10470 = vand.u32 %v6467, 2147483648
      %v10471 = vor.u32 1.1754944e-38, %v10470
      %v10472 = vsel %vm10469, %v10471, %v10467
      %v10473 = vmul.f32 1.0, %v10472
      %v10474 = vrcp.pop %v6468
      %v10475 = vmul.f32 %v6468, %v10474
      %v10476 = vsub.f32 1.0, %v10475
      %v10477 = vmul.f32 %v10474, %v10476
      %v10478 = vadd.f32 %v10474, %v10477
      %vm10479 = vweird.f32 %v6468
      %vm10480 = vweird.f32 %v10474
      %vm10481 = vmor %vm10479, %vm10480
      %v10482 = vsel %vm10481, %v10474, %v10478
      %v10483 = vand.u32 2147483647, %v6468
      %vm10484 = vcmp.eq.f32.partialorder %v10483, 8.507059e+37
      %v10485 = vand.u32 %v6468, 2147483648
      %v10486 = vor.u32 1.1754944e-38, %v10485
      %v10487 = vsel %vm10484, %v10486, %v10482
      %v10488 = vmul.f32 1.0, %v10487
      %v10489 = vrcp.pop %v6469
      %v10490 = vmul.f32 %v6469, %v10489
      %v10491 = vsub.f32 1.0, %v10490
      %v10492 = vmul.f32 %v10489, %v10491
      %v10493 = vadd.f32 %v10489, %v10492
      %vm10494 = vweird.f32 %v6469
      %vm10495 = vweird.f32 %v10489
      %vm10496 = vmor %vm10494, %vm10495
      %v10497 = vsel %vm10496, %v10489, %v10493
      %v10498 = vand.u32 2147483647, %v6469
      %vm10499 = vcmp.eq.f32.partialorder %v10498, 8.507059e+37
      %v10500 = vand.u32 %v6469, 2147483648
      %v10501 = vor.u32 1.1754944e-38, %v10500
      %v10502 = vsel %vm10499, %v10501, %v10497
      %v10503 = vmul.f32 1.0, %v10502
      %v10504 = vrcp.pop %v6470
      %v10505 = vmul.f32 %v6470, %v10504
      %v10506 = vsub.f32 1.0, %v10505
      %v10507 = vmul.f32 %v10504, %v10506
      %v10508 = vadd.f32 %v10504, %v10507
      %vm10509 = vweird.f32 %v6470
      %vm10510 = vweird.f32 %v10504
      %vm10511 = vmor %vm10509, %vm10510
      %v10512 = vsel %vm10511, %v10504, %v10508
      %v10513 = vand.u32 2147483647, %v6470
      %vm10514 = vcmp.eq.f32.partialorder %v10513, 8.507059e+37
      %v10515 = vand.u32 %v6470, 2147483648
      %v10516 = vor.u32 1.1754944e-38, %v10515
      %v10517 = vsel %vm10514, %v10516, %v10512
      %v10518 = vmul.f32 1.0, %v10517
      %v10519 = vrcp.pop %v6471
      %v10520 = vmul.f32 %v6471, %v10519
      %v10521 = vsub.f32 1.0, %v10520
      %v10522 = vmul.f32 %v10519, %v10521
      %v10523 = vadd.f32 %v10519, %v10522
      %vm10524 = vweird.f32 %v6471
      %vm10525 = vweird.f32 %v10519
      %vm10526 = vmor %vm10524, %vm10525
      %v10527 = vsel %vm10526, %v10519, %v10523
      %v10528 = vand.u32 2147483647, %v6471
      %vm10529 = vcmp.eq.f32.partialorder %v10528, 8.507059e+37
      %v10530 = vand.u32 %v6471, 2147483648
      %v10531 = vor.u32 1.1754944e-38, %v10530
      %v10532 = vsel %vm10529, %v10531, %v10527
      %v10533 = vmul.f32 1.0, %v10532
      %v10534 = vrcp.pop %v6472
      %v10535 = vmul.f32 %v6472, %v10534
      %v10536 = vsub.f32 1.0, %v10535
      %v10537 = vmul.f32 %v10534, %v10536
      %v10538 = vadd.f32 %v10534, %v10537
      %vm10539 = vweird.f32 %v6472
      %vm10540 = vweird.f32 %v10534
      %vm10541 = vmor %vm10539, %vm10540
      %v10542 = vsel %vm10541, %v10534, %v10538
      %v10543 = vand.u32 2147483647, %v6472
      %vm10544 = vcmp.eq.f32.partialorder %v10543, 8.507059e+37
      %v10545 = vand.u32 %v6472, 2147483648
      %v10546 = vor.u32 1.1754944e-38, %v10545
      %v10547 = vsel %vm10544, %v10546, %v10542
      %v10548 = vmul.f32 1.0, %v10547
      %v10549 = vrcp.pop %v6473
      %v10550 = vmul.f32 %v6473, %v10549
      %v10551 = vsub.f32 1.0, %v10550
      %v10552 = vmul.f32 %v10549, %v10551
      %v10553 = vadd.f32 %v10549, %v10552
      %vm10554 = vweird.f32 %v6473
      %vm10555 = vweird.f32 %v10549
      %vm10556 = vmor %vm10554, %vm10555
      %v10557 = vsel %vm10556, %v10549, %v10553
      %v10558 = vand.u32 2147483647, %v6473
      %vm10559 = vcmp.eq.f32.partialorder %v10558, 8.507059e+37
      %v10560 = vand.u32 %v6473, 2147483648
      %v10561 = vor.u32 1.1754944e-38, %v10560
      %v10562 = vsel %vm10559, %v10561, %v10557
      %v10563 = vmul.f32 1.0, %v10562
      %v10564 = vrcp.pop %v6474
      %v10565 = vmul.f32 %v6474, %v10564
      %v10566 = vsub.f32 1.0, %v10565
      %v10567 = vmul.f32 %v10564, %v10566
      %v10568 = vadd.f32 %v10564, %v10567
      %vm10569 = vweird.f32 %v6474
      %vm10570 = vweird.f32 %v10564
      %vm10571 = vmor %vm10569, %vm10570
      %v10572 = vsel %vm10571, %v10564, %v10568
      %v10573 = vand.u32 2147483647, %v6474
      %vm10574 = vcmp.eq.f32.partialorder %v10573, 8.507059e+37
      %v10575 = vand.u32 %v6474, 2147483648
      %v10576 = vor.u32 1.1754944e-38, %v10575
      %v10577 = vsel %vm10574, %v10576, %v10572
      %v10578 = vmul.f32 1.0, %v10577
      %v10579 = vrcp.pop %v6475
      %v10580 = vmul.f32 %v6475, %v10579
      %v10581 = vsub.f32 1.0, %v10580
      %v10582 = vmul.f32 %v10579, %v10581
      %v10583 = vadd.f32 %v10579, %v10582
      %vm10584 = vweird.f32 %v6475
      %vm10585 = vweird.f32 %v10579
      %vm10586 = vmor %vm10584, %vm10585
      %v10587 = vsel %vm10586, %v10579, %v10583
      %v10588 = vand.u32 2147483647, %v6475
      %vm10589 = vcmp.eq.f32.partialorder %v10588, 8.507059e+37
      %v10590 = vand.u32 %v6475, 2147483648
      %v10591 = vor.u32 1.1754944e-38, %v10590
      %v10592 = vsel %vm10589, %v10591, %v10587
      %v10593 = vmul.f32 1.0, %v10592
      %v10594 = vrcp.pop %v6476
      %v10595 = vmul.f32 %v6476, %v10594
      %v10596 = vsub.f32 1.0, %v10595
      %v10597 = vmul.f32 %v10594, %v10596
      %v10598 = vadd.f32 %v10594, %v10597
      %vm10599 = vweird.f32 %v6476
      %vm10600 = vweird.f32 %v10594
      %vm10601 = vmor %vm10599, %vm10600
      %v10602 = vsel %vm10601, %v10594, %v10598
      %v10603 = vand.u32 2147483647, %v6476
      %vm10604 = vcmp.eq.f32.partialorder %v10603, 8.507059e+37
      %v10605 = vand.u32 %v6476, 2147483648
      %v10606 = vor.u32 1.1754944e-38, %v10605
      %v10607 = vsel %vm10604, %v10606, %v10602
      %v10608 = vmul.f32 1.0, %v10607
      %v10609 = vrcp.pop %v6477
      %v10610 = vmul.f32 %v6477, %v10609
      %v10611 = vsub.f32 1.0, %v10610
      %v10612 = vmul.f32 %v10609, %v10611
      %v10613 = vadd.f32 %v10609, %v10612
      %vm10614 = vweird.f32 %v6477
      %vm10615 = vweird.f32 %v10609
      %vm10616 = vmor %vm10614, %vm10615
      %v10617 = vsel %vm10616, %v10609, %v10613
      %v10618 = vand.u32 2147483647, %v6477
      %vm10619 = vcmp.eq.f32.partialorder %v10618, 8.507059e+37
      %v10620 = vand.u32 %v6477, 2147483648
      %v10621 = vor.u32 1.1754944e-38, %v10620
      %v10622 = vsel %vm10619, %v10621, %v10617
      %v10623 = vmul.f32 1.0, %v10622
      %v10624 = vrcp.pop %v6478
      %v10625 = vmul.f32 %v6478, %v10624
      %v10626 = vsub.f32 1.0, %v10625
      %v10627 = vmul.f32 %v10624, %v10626
      %v10628 = vadd.f32 %v10624, %v10627
      %vm10629 = vweird.f32 %v6478
      %vm10630 = vweird.f32 %v10624
      %vm10631 = vmor %vm10629, %vm10630
      %v10632 = vsel %vm10631, %v10624, %v10628
      %v10633 = vand.u32 2147483647, %v6478
      %vm10634 = vcmp.eq.f32.partialorder %v10633, 8.507059e+37
      %v10635 = vand.u32 %v6478, 2147483648
      %v10636 = vor.u32 1.1754944e-38, %v10635
      %v10637 = vsel %vm10634, %v10636, %v10632
      %v10638 = vmul.f32 1.0, %v10637
      %v10639 = vrcp.pop %v6479
      %v10640 = vmul.f32 %v6479, %v10639
      %v10641 = vsub.f32 1.0, %v10640
      %v10642 = vmul.f32 %v10639, %v10641
      %v10643 = vadd.f32 %v10639, %v10642
      %vm10644 = vweird.f32 %v6479
      %vm10645 = vweird.f32 %v10639
      %vm10646 = vmor %vm10644, %vm10645
      %v10647 = vsel %vm10646, %v10639, %v10643
      %v10648 = vand.u32 2147483647, %v6479
      %vm10649 = vcmp.eq.f32.partialorder %v10648, 8.507059e+37
      %v10650 = vand.u32 %v6479, 2147483648
      %v10651 = vor.u32 1.1754944e-38, %v10650
      %v10652 = vsel %vm10649, %v10651, %v10647
      %v10653 = vmul.f32 1.0, %v10652
      %v10654 = vrcp.pop %v6480
      %v10655 = vmul.f32 %v6480, %v10654
      %v10656 = vsub.f32 1.0, %v10655
      %v10657 = vmul.f32 %v10654, %v10656
      %v10658 = vadd.f32 %v10654, %v10657
      %vm10659 = vweird.f32 %v6480
      %vm10660 = vweird.f32 %v10654
      %vm10661 = vmor %vm10659, %vm10660
      %v10662 = vsel %vm10661, %v10654, %v10658
      %v10663 = vand.u32 2147483647, %v6480
      %vm10664 = vcmp.eq.f32.partialorder %v10663, 8.507059e+37
      %v10665 = vand.u32 %v6480, 2147483648
      %v10666 = vor.u32 1.1754944e-38, %v10665
      %v10667 = vsel %vm10664, %v10666, %v10662
      %v10668 = vmul.f32 1.0, %v10667
      %v10669 = vrcp.pop %v6481
      %v10670 = vmul.f32 %v6481, %v10669
      %v10671 = vsub.f32 1.0, %v10670
      %v10672 = vmul.f32 %v10669, %v10671
      %v10673 = vadd.f32 %v10669, %v10672
      %vm10674 = vweird.f32 %v6481
      %vm10675 = vweird.f32 %v10669
      %vm10676 = vmor %vm10674, %vm10675
      %v10677 = vsel %vm10676, %v10669, %v10673
      %v10678 = vand.u32 2147483647, %v6481
      %vm10679 = vcmp.eq.f32.partialorder %v10678, 8.507059e+37
      %v10680 = vand.u32 %v6481, 2147483648
      %v10681 = vor.u32 1.1754944e-38, %v10680
      %v10682 = vsel %vm10679, %v10681, %v10677
      %v10683 = vmul.f32 1.0, %v10682
      %v10684 = vrcp.pop %v6482
      %v10685 = vmul.f32 %v6482, %v10684
      %v10686 = vsub.f32 1.0, %v10685
      %v10687 = vmul.f32 %v10684, %v10686
      %v10688 = vadd.f32 %v10684, %v10687
      %vm10689 = vweird.f32 %v6482
      %vm10690 = vweird.f32 %v10684
      %vm10691 = vmor %vm10689, %vm10690
      %v10692 = vsel %vm10691, %v10684, %v10688
      %v10693 = vand.u32 2147483647, %v6482
      %vm10694 = vcmp.eq.f32.partialorder %v10693, 8.507059e+37
      %v10695 = vand.u32 %v6482, 2147483648
      %v10696 = vor.u32 1.1754944e-38, %v10695
      %v10697 = vsel %vm10694, %v10696, %v10692
      %v10698 = vmul.f32 1.0, %v10697
      %v10699 = vrcp.pop %v6483
      %v10700 = vmul.f32 %v6483, %v10699
      %v10701 = vsub.f32 1.0, %v10700
      %v10702 = vmul.f32 %v10699, %v10701
      %v10703 = vadd.f32 %v10699, %v10702
      %vm10704 = vweird.f32 %v6483
      %vm10705 = vweird.f32 %v10699
      %vm10706 = vmor %vm10704, %vm10705
      %v10707 = vsel %vm10706, %v10699, %v10703
      %v10708 = vand.u32 2147483647, %v6483
      %vm10709 = vcmp.eq.f32.partialorder %v10708, 8.507059e+37
      %v10710 = vand.u32 %v6483, 2147483648
      %v10711 = vor.u32 1.1754944e-38, %v10710
      %v10712 = vsel %vm10709, %v10711, %v10707
      %v10713 = vmul.f32 1.0, %v10712
      %v10714 = vrcp.pop %v6484
      %v10715 = vmul.f32 %v6484, %v10714
      %v10716 = vsub.f32 1.0, %v10715
      %v10717 = vmul.f32 %v10714, %v10716
      %v10718 = vadd.f32 %v10714, %v10717
      %vm10719 = vweird.f32 %v6484
      %vm10720 = vweird.f32 %v10714
      %vm10721 = vmor %vm10719, %vm10720
      %v10722 = vsel %vm10721, %v10714, %v10718
      %v10723 = vand.u32 2147483647, %v6484
      %vm10724 = vcmp.eq.f32.partialorder %v10723, 8.507059e+37
      %v10725 = vand.u32 %v6484, 2147483648
      %v10726 = vor.u32 1.1754944e-38, %v10725
      %v10727 = vsel %vm10724, %v10726, %v10722
      %v10728 = vmul.f32 1.0, %v10727
      %v10729 = vrcp.pop %v6485
      %v10730 = vmul.f32 %v6485, %v10729
      %v10731 = vsub.f32 1.0, %v10730
      %v10732 = vmul.f32 %v10729, %v10731
      %v10733 = vadd.f32 %v10729, %v10732
      %vm10734 = vweird.f32 %v6485
      %vm10735 = vweird.f32 %v10729
      %vm10736 = vmor %vm10734, %vm10735
      %v10737 = vsel %vm10736, %v10729, %v10733
      %v10738 = vand.u32 2147483647, %v6485
      %vm10739 = vcmp.eq.f32.partialorder %v10738, 8.507059e+37
      %v10740 = vand.u32 %v6485, 2147483648
      %v10741 = vor.u32 1.1754944e-38, %v10740
      %v10742 = vsel %vm10739, %v10741, %v10737
      %v10743 = vmul.f32 1.0, %v10742
      %v10744 = vrcp.pop %v6486
      %v10745 = vmul.f32 %v6486, %v10744
      %v10746 = vsub.f32 1.0, %v10745
      %v10747 = vmul.f32 %v10744, %v10746
      %v10748 = vadd.f32 %v10744, %v10747
      %vm10749 = vweird.f32 %v6486
      %vm10750 = vweird.f32 %v10744
      %vm10751 = vmor %vm10749, %vm10750
      %v10752 = vsel %vm10751, %v10744, %v10748
      %v10753 = vand.u32 2147483647, %v6486
      %vm10754 = vcmp.eq.f32.partialorder %v10753, 8.507059e+37
      %v10755 = vand.u32 %v6486, 2147483648
      %v10756 = vor.u32 1.1754944e-38, %v10755
      %v10757 = vsel %vm10754, %v10756, %v10752
      %v10758 = vmul.f32 1.0, %v10757
      %v10759 = vrcp.pop %v6487
      %v10760 = vmul.f32 %v6487, %v10759
      %v10761 = vsub.f32 1.0, %v10760
      %v10762 = vmul.f32 %v10759, %v10761
      %v10763 = vadd.f32 %v10759, %v10762
      %vm10764 = vweird.f32 %v6487
      %vm10765 = vweird.f32 %v10759
      %vm10766 = vmor %vm10764, %vm10765
      %v10767 = vsel %vm10766, %v10759, %v10763
      %v10768 = vand.u32 2147483647, %v6487
      %vm10769 = vcmp.eq.f32.partialorder %v10768, 8.507059e+37
      %v10770 = vand.u32 %v6487, 2147483648
      %v10771 = vor.u32 1.1754944e-38, %v10770
      %v10772 = vsel %vm10769, %v10771, %v10767
      %v10773 = vmul.f32 1.0, %v10772
      %v10774 = vrcp.pop %v6488
      %v10775 = vmul.f32 %v6488, %v10774
      %v10776 = vsub.f32 1.0, %v10775
      %v10777 = vmul.f32 %v10774, %v10776
      %v10778 = vadd.f32 %v10774, %v10777
      %vm10779 = vweird.f32 %v6488
      %vm10780 = vweird.f32 %v10774
      %vm10781 = vmor %vm10779, %vm10780
      %v10782 = vsel %vm10781, %v10774, %v10778
      %v10783 = vand.u32 2147483647, %v6488
      %vm10784 = vcmp.eq.f32.partialorder %v10783, 8.507059e+37
      %v10785 = vand.u32 %v6488, 2147483648
      %v10786 = vor.u32 1.1754944e-38, %v10785
      %v10787 = vsel %vm10784, %v10786, %v10782
      %v10788 = vmul.f32 1.0, %v10787
      %v10789 = vrcp.pop %v6489
      %v10790 = vmul.f32 %v6489, %v10789
      %v10791 = vsub.f32 1.0, %v10790
      %v10792 = vmul.f32 %v10789, %v10791
      %v10793 = vadd.f32 %v10789, %v10792
      %vm10794 = vweird.f32 %v6489
      %vm10795 = vweird.f32 %v10789
      %vm10796 = vmor %vm10794, %vm10795
      %v10797 = vsel %vm10796, %v10789, %v10793
      %v10798 = vand.u32 2147483647, %v6489
      %vm10799 = vcmp.eq.f32.partialorder %v10798, 8.507059e+37
      %v10800 = vand.u32 %v6489, 2147483648
      %v10801 = vor.u32 1.1754944e-38, %v10800
      %v10802 = vsel %vm10799, %v10801, %v10797
      %v10803 = vmul.f32 1.0, %v10802
      %v10804 = vrcp.pop %v6490
      %v10805 = vmul.f32 %v6490, %v10804
      %v10806 = vsub.f32 1.0, %v10805
      %v10807 = vmul.f32 %v10804, %v10806
      %v10808 = vadd.f32 %v10804, %v10807
      %vm10809 = vweird.f32 %v6490
      %vm10810 = vweird.f32 %v10804
      %vm10811 = vmor %vm10809, %vm10810
      %v10812 = vsel %vm10811, %v10804, %v10808
      %v10813 = vand.u32 2147483647, %v6490
      %vm10814 = vcmp.eq.f32.partialorder %v10813, 8.507059e+37
      %v10815 = vand.u32 %v6490, 2147483648
      %v10816 = vor.u32 1.1754944e-38, %v10815
      %v10817 = vsel %vm10814, %v10816, %v10812
      %v10818 = vmul.f32 1.0, %v10817
      %v10819 = vrcp.pop %v6491
      %v10820 = vmul.f32 %v6491, %v10819
      %v10821 = vsub.f32 1.0, %v10820
      %v10822 = vmul.f32 %v10819, %v10821
      %v10823 = vadd.f32 %v10819, %v10822
      %vm10824 = vweird.f32 %v6491
      %vm10825 = vweird.f32 %v10819
      %vm10826 = vmor %vm10824, %vm10825
      %v10827 = vsel %vm10826, %v10819, %v10823
      %v10828 = vand.u32 2147483647, %v6491
      %vm10829 = vcmp.eq.f32.partialorder %v10828, 8.507059e+37
      %v10830 = vand.u32 %v6491, 2147483648
      %v10831 = vor.u32 1.1754944e-38, %v10830
      %v10832 = vsel %vm10829, %v10831, %v10827
      %v10833 = vmul.f32 1.0, %v10832
      %v10834 = vrcp.pop %v6492
      %v10835 = vmul.f32 %v6492, %v10834
      %v10836 = vsub.f32 1.0, %v10835
      %v10837 = vmul.f32 %v10834, %v10836
      %v10838 = vadd.f32 %v10834, %v10837
      %vm10839 = vweird.f32 %v6492
      %vm10840 = vweird.f32 %v10834
      %vm10841 = vmor %vm10839, %vm10840
      %v10842 = vsel %vm10841, %v10834, %v10838
      %v10843 = vand.u32 2147483647, %v6492
      %vm10844 = vcmp.eq.f32.partialorder %v10843, 8.507059e+37
      %v10845 = vand.u32 %v6492, 2147483648
      %v10846 = vor.u32 1.1754944e-38, %v10845
      %v10847 = vsel %vm10844, %v10846, %v10842
      %v10848 = vmul.f32 1.0, %v10847
      %v10849 = vrcp.pop %v6493
      %v10850 = vmul.f32 %v6493, %v10849
      %v10851 = vsub.f32 1.0, %v10850
      %v10852 = vmul.f32 %v10849, %v10851
      %v10853 = vadd.f32 %v10849, %v10852
      %vm10854 = vweird.f32 %v6493
      %vm10855 = vweird.f32 %v10849
      %vm10856 = vmor %vm10854, %vm10855
      %v10857 = vsel %vm10856, %v10849, %v10853
      %v10858 = vand.u32 2147483647, %v6493
      %vm10859 = vcmp.eq.f32.partialorder %v10858, 8.507059e+37
      %v10860 = vand.u32 %v6493, 2147483648
      %v10861 = vor.u32 1.1754944e-38, %v10860
      %v10862 = vsel %vm10859, %v10861, %v10857
      %v10863 = vmul.f32 1.0, %v10862
      %v10864 = vrcp.pop %v6494
      %v10865 = vmul.f32 %v6494, %v10864
      %v10866 = vsub.f32 1.0, %v10865
      %v10867 = vmul.f32 %v10864, %v10866
      %v10868 = vadd.f32 %v10864, %v10867
      %vm10869 = vweird.f32 %v6494
      %vm10870 = vweird.f32 %v10864
      %vm10871 = vmor %vm10869, %vm10870
      %v10872 = vsel %vm10871, %v10864, %v10868
      %v10873 = vand.u32 2147483647, %v6494
      %vm10874 = vcmp.eq.f32.partialorder %v10873, 8.507059e+37
      %v10875 = vand.u32 %v6494, 2147483648
      %v10876 = vor.u32 1.1754944e-38, %v10875
      %v10877 = vsel %vm10874, %v10876, %v10872
      %v10878 = vmul.f32 1.0, %v10877
      %v10879 = vrcp.pop %v6495
      %v10880 = vmul.f32 %v6495, %v10879
      %v10881 = vsub.f32 1.0, %v10880
      %v10882 = vmul.f32 %v10879, %v10881
      %v10883 = vadd.f32 %v10879, %v10882
      %vm10884 = vweird.f32 %v6495
      %vm10885 = vweird.f32 %v10879
      %vm10886 = vmor %vm10884, %vm10885
      %v10887 = vsel %vm10886, %v10879, %v10883
      %v10888 = vand.u32 2147483647, %v6495
      %vm10889 = vcmp.eq.f32.partialorder %v10888, 8.507059e+37
      %v10890 = vand.u32 %v6495, 2147483648
      %v10891 = vor.u32 1.1754944e-38, %v10890
      %v10892 = vsel %vm10889, %v10891, %v10887
      %v10893 = vmul.f32 1.0, %v10892
      %v10894 = vrcp.pop %v6496
      %v10895 = vmul.f32 %v6496, %v10894
      %v10896 = vsub.f32 1.0, %v10895
      %v10897 = vmul.f32 %v10894, %v10896
      %v10898 = vadd.f32 %v10894, %v10897
      %vm10899 = vweird.f32 %v6496
      %vm10900 = vweird.f32 %v10894
      %vm10901 = vmor %vm10899, %vm10900
      %v10902 = vsel %vm10901, %v10894, %v10898
      %v10903 = vand.u32 2147483647, %v6496
      %vm10904 = vcmp.eq.f32.partialorder %v10903, 8.507059e+37
      %v10905 = vand.u32 %v6496, 2147483648
      %v10906 = vor.u32 1.1754944e-38, %v10905
      %v10907 = vsel %vm10904, %v10906, %v10902
      %v10908 = vmul.f32 1.0, %v10907
      %v10909 = vrcp.pop %v6497
      %v10910 = vmul.f32 %v6497, %v10909
      %v10911 = vsub.f32 1.0, %v10910
      %v10912 = vmul.f32 %v10909, %v10911
      %v10913 = vadd.f32 %v10909, %v10912
      %vm10914 = vweird.f32 %v6497
      %vm10915 = vweird.f32 %v10909
      %vm10916 = vmor %vm10914, %vm10915
      %v10917 = vsel %vm10916, %v10909, %v10913
      %v10918 = vand.u32 2147483647, %v6497
      %vm10919 = vcmp.eq.f32.partialorder %v10918, 8.507059e+37
      %v10920 = vand.u32 %v6497, 2147483648
      %v10921 = vor.u32 1.1754944e-38, %v10920
      %v10922 = vsel %vm10919, %v10921, %v10917
      %v10923 = vmul.f32 1.0, %v10922
      %v10924 = vrcp.pop %v6498
      %v10925 = vmul.f32 %v6498, %v10924
      %v10926 = vsub.f32 1.0, %v10925
      %v10927 = vmul.f32 %v10924, %v10926
      %v10928 = vadd.f32 %v10924, %v10927
      %vm10929 = vweird.f32 %v6498
      %vm10930 = vweird.f32 %v10924
      %vm10931 = vmor %vm10929, %vm10930
      %v10932 = vsel %vm10931, %v10924, %v10928
      %v10933 = vand.u32 2147483647, %v6498
      %vm10934 = vcmp.eq.f32.partialorder %v10933, 8.507059e+37
      %v10935 = vand.u32 %v6498, 2147483648
      %v10936 = vor.u32 1.1754944e-38, %v10935
      %v10937 = vsel %vm10934, %v10936, %v10932
      %v10938 = vmul.f32 1.0, %v10937
      %10939 = vst [vmem:[%s370] sm:$0xff] %v6513
      %10940 = vst [vmem:[%s370 + $0x8] sm:$0xff] %v6528
      %10941 = vst [vmem:[%s370 + $0x10] sm:$0xff] %v6543
      %10942 = vst [vmem:[%s370 + $0x18] sm:$0xff] %v6558
      %10943 = vst [vmem:[%s370 + $0x20] sm:$0xff] %v6573
      %10944 = vst [vmem:[%s370 + $0x28] sm:$0xff] %v6588
      %10945 = vst [vmem:[%s370 + $0x30] sm:$0xff] %v6603
      %10946 = vst [vmem:[%s370 + $0x38] sm:$0xff] %v6618
      %10947 = vst [vmem:[%s370 + $0x40] sm:$0xff] %v6633
      %10948 = vst [vmem:[%s370 + $0x48] sm:$0xff] %v6648
      %10949 = vst [vmem:[%s370 + $0x50] sm:$0xff] %v6663
      %10950 = vst [vmem:[%s370 + $0x58] sm:$0xff] %v6678
      %10951 = vst [vmem:[%s370 + $0x60] sm:$0xff] %v6693
      %10952 = vst [vmem:[%s370 + $0x68] sm:$0xff] %v6708
      %10953 = vst [vmem:[%s370 + $0x70] sm:$0xff] %v6723
      %10954 = vst [vmem:[%s370 + $0x78] sm:$0xff] %v6738
      %10955 = vst [vmem:[%s370 + $0x80] sm:$0xff] %v6753
      %10956 = vst [vmem:[%s370 + $0x88] sm:$0xff] %v6768
      %10957 = vst [vmem:[%s370 + $0x90] sm:$0xff] %v6783
      %10958 = vst [vmem:[%s370 + $0x98] sm:$0xff] %v6798
      %10959 = vst [vmem:[%s370 + $0xa0] sm:$0xff] %v6813
      %10960 = vst [vmem:[%s370 + $0xa8] sm:$0xff] %v6828
      %10961 = vst [vmem:[%s370 + $0xb0] sm:$0xff] %v6843
      %10962 = vst [vmem:[%s370 + $0xb8] sm:$0xff] %v6858
      %10963 = vst [vmem:[%s370 + $0xc0] sm:$0xff] %v6873
      %10964 = vst [vmem:[%s370 + $0xc8] sm:$0xff] %v6888
      %10965 = vst [vmem:[%s370 + $0xd0] sm:$0xff] %v6903
      %10966 = vst [vmem:[%s370 + $0xd8] sm:$0xff] %v6918
      %10967 = vst [vmem:[%s370 + $0xe0] sm:$0xff] %v6933
      %10968 = vst [vmem:[%s370 + $0xe8] sm:$0xff] %v6948
      %10969 = vst [vmem:[%s370 + $0xf0] sm:$0xff] %v6963
      %10970 = vst [vmem:[%s370 + $0xf8] sm:$0xff] %v6978
      %10971 = vst [vmem:[%s370 + $0x100] sm:$0xff] %v6993
      %10972 = vst [vmem:[%s370 + $0x108] sm:$0xff] %v7008
      %10973 = vst [vmem:[%s370 + $0x110] sm:$0xff] %v7023
      %10974 = vst [vmem:[%s370 + $0x118] sm:$0xff] %v7038
      %10975 = vst.msk [vmem:[%s370 + $0x120] sm:$0xff] %vm3333, %v7053
      %10976 = vst [vmem:[%s370 + $0x128] sm:$0xff] %v7068
      %10977 = vst [vmem:[%s370 + $0x130] sm:$0xff] %v7083
      %10978 = vst [vmem:[%s370 + $0x138] sm:$0xff] %v7098
      %10979 = vst [vmem:[%s370 + $0x140] sm:$0xff] %v7113
      %10980 = vst [vmem:[%s370 + $0x148] sm:$0xff] %v7128
      %10981 = vst [vmem:[%s370 + $0x150] sm:$0xff] %v7143
      %10982 = vst [vmem:[%s370 + $0x158] sm:$0xff] %v7158
      %10983 = vst [vmem:[%s370 + $0x160] sm:$0xff] %v7173
      %10984 = vst [vmem:[%s370 + $0x168] sm:$0xff] %v7188
      %10985 = vst [vmem:[%s370 + $0x170] sm:$0xff] %v7203
      %10986 = vst [vmem:[%s370 + $0x178] sm:$0xff] %v7218
      %10987 = vst [vmem:[%s370 + $0x180] sm:$0xff] %v7233
      %10988 = vst [vmem:[%s370 + $0x188] sm:$0xff] %v7248
      %10989 = vst [vmem:[%s370 + $0x190] sm:$0xff] %v7263
      %10990 = vst [vmem:[%s370 + $0x198] sm:$0xff] %v7278
      %10991 = vst [vmem:[%s370 + $0x1a0] sm:$0xff] %v7293
      %10992 = vst [vmem:[%s370 + $0x1a8] sm:$0xff] %v7308
      %10993 = vst [vmem:[%s370 + $0x1b0] sm:$0xff] %v7323
      %10994 = vst [vmem:[%s370 + $0x1b8] sm:$0xff] %v7338
      %10995 = vst [vmem:[%s370 + $0x1c0] sm:$0xff] %v7353
      %10996 = vst [vmem:[%s370 + $0x1c8] sm:$0xff] %v7368
      %10997 = vst [vmem:[%s370 + $0x1d0] sm:$0xff] %v7383
      %10998 = vst [vmem:[%s370 + $0x1d8] sm:$0xff] %v7398
      %10999 = vst [vmem:[%s370 + $0x1e0] sm:$0xff] %v7413
      %11000 = vst [vmem:[%s370 + $0x1e8] sm:$0xff] %v7428
      %11001 = vst [vmem:[%s370 + $0x1f0] sm:$0xff] %v7443
      %11002 = vst [vmem:[%s370 + $0x1f8] sm:$0xff] %v7458
      %11003 = vst [vmem:[%s370 + $0x200] sm:$0xff] %v7473
      %11004 = vst [vmem:[%s370 + $0x208] sm:$0xff] %v7488
      %11005 = vst [vmem:[%s370 + $0x210] sm:$0xff] %v7503
      %11006 = vst [vmem:[%s370 + $0x218] sm:$0xff] %v7518
      %11007 = vst [vmem:[%s370 + $0x220] sm:$0xff] %v7533
      %11008 = vst [vmem:[%s370 + $0x228] sm:$0xff] %v7548
      %11009 = vst [vmem:[%s370 + $0x230] sm:$0xff] %v7563
      %11010 = vst [vmem:[%s370 + $0x238] sm:$0xff] %v7578
      %11011 = vst [vmem:[%s370 + $0x240] sm:$0xff] %v7593
      %11012 = vst.msk [vmem:[%s370 + $0x248] sm:$0xff] %vm3333, %v7608
      %11013 = vst [vmem:[%s370 + $0x250] sm:$0xff] %v7623
      %11014 = vst [vmem:[%s370 + $0x258] sm:$0xff] %v7638
      %11015 = vst [vmem:[%s370 + $0x260] sm:$0xff] %v7653
      %11016 = vst [vmem:[%s370 + $0x268] sm:$0xff] %v7668
      %11017 = vst [vmem:[%s370 + $0x270] sm:$0xff] %v7683
      %11018 = vst [vmem:[%s370 + $0x278] sm:$0xff] %v7698
      %11019 = vst [vmem:[%s370 + $0x280] sm:$0xff] %v7713
      %11020 = vst [vmem:[%s370 + $0x288] sm:$0xff] %v7728
      %11021 = vst [vmem:[%s370 + $0x290] sm:$0xff] %v7743
      %11022 = vst [vmem:[%s370 + $0x298] sm:$0xff] %v7758
      %11023 = vst [vmem:[%s370 + $0x2a0] sm:$0xff] %v7773
      %11024 = vst [vmem:[%s370 + $0x2a8] sm:$0xff] %v7788
      %11025 = vst [vmem:[%s370 + $0x2b0] sm:$0xff] %v7803
      %11026 = vst [vmem:[%s370 + $0x2b8] sm:$0xff] %v7818
      %11027 = vst [vmem:[%s370 + $0x2c0] sm:$0xff] %v7833
      %11028 = vst [vmem:[%s370 + $0x2c8] sm:$0xff] %v7848
      %11029 = vst [vmem:[%s370 + $0x2d0] sm:$0xff] %v7863
      %11030 = vst [vmem:[%s370 + $0x2d8] sm:$0xff] %v7878
      %11031 = vst [vmem:[%s370 + $0x2e0] sm:$0xff] %v7893
      %11032 = vst [vmem:[%s370 + $0x2e8] sm:$0xff] %v7908
      %11033 = vst [vmem:[%s370 + $0x2f0] sm:$0xff] %v7923
      %11034 = vst [vmem:[%s370 + $0x2f8] sm:$0xff] %v7938
      %11035 = vst [vmem:[%s370 + $0x300] sm:$0xff] %v7953
      %11036 = vst [vmem:[%s370 + $0x308] sm:$0xff] %v7968
      %11037 = vst [vmem:[%s370 + $0x310] sm:$0xff] %v7983
      %11038 = vst [vmem:[%s370 + $0x318] sm:$0xff] %v7998
      %11039 = vst [vmem:[%s370 + $0x320] sm:$0xff] %v8013
      %11040 = vst [vmem:[%s370 + $0x328] sm:$0xff] %v8028
      %11041 = vst [vmem:[%s370 + $0x330] sm:$0xff] %v8043
      %11042 = vst [vmem:[%s370 + $0x338] sm:$0xff] %v8058
      %11043 = vst [vmem:[%s370 + $0x340] sm:$0xff] %v8073
      %11044 = vst [vmem:[%s370 + $0x348] sm:$0xff] %v8088
      %11045 = vst [vmem:[%s370 + $0x350] sm:$0xff] %v8103
      %11046 = vst [vmem:[%s370 + $0x358] sm:$0xff] %v8118
      %11047 = vst [vmem:[%s370 + $0x360] sm:$0xff] %v8133
      %11048 = vst [vmem:[%s370 + $0x368] sm:$0xff] %v8148
      %11049 = vst.msk [vmem:[%s370 + $0x370] sm:$0xff] %vm3333, %v8163
      %11050 = vst [vmem:[%s370 + $0x378] sm:$0xff] %v8178
      %11051 = vst [vmem:[%s370 + $0x380] sm:$0xff] %v8193
      %11052 = vst [vmem:[%s370 + $0x388] sm:$0xff] %v8208
      %11053 = vst [vmem:[%s370 + $0x390] sm:$0xff] %v8223
      %11054 = vst [vmem:[%s370 + $0x398] sm:$0xff] %v8238
      %11055 = vst [vmem:[%s370 + $0x3a0] sm:$0xff] %v8253
      %11056 = vst [vmem:[%s370 + $0x3a8] sm:$0xff] %v8268
      %11057 = vst [vmem:[%s370 + $0x3b0] sm:$0xff] %v8283
      %11058 = vst [vmem:[%s370 + $0x3b8] sm:$0xff] %v8298
      %11059 = vst [vmem:[%s370 + $0x3c0] sm:$0xff] %v8313
      %11060 = vst [vmem:[%s370 + $0x3c8] sm:$0xff] %v8328
      %11061 = vst [vmem:[%s370 + $0x3d0] sm:$0xff] %v8343
      %11062 = vst [vmem:[%s370 + $0x3d8] sm:$0xff] %v8358
      %11063 = vst [vmem:[%s370 + $0x3e0] sm:$0xff] %v8373
      %11064 = vst [vmem:[%s370 + $0x3e8] sm:$0xff] %v8388
      %11065 = vst [vmem:[%s370 + $0x3f0] sm:$0xff] %v8403
      %11066 = vst [vmem:[%s370 + $0x3f8] sm:$0xff] %v8418
      %11067 = vst [vmem:[%s370 + $0x400] sm:$0xff] %v8433
      %11068 = vst [vmem:[%s370 + $0x408] sm:$0xff] %v8448
      %11069 = vst [vmem:[%s370 + $0x410] sm:$0xff] %v8463
      %11070 = vst [vmem:[%s370 + $0x418] sm:$0xff] %v8478
      %11071 = vst [vmem:[%s370 + $0x420] sm:$0xff] %v8493
      %11072 = vst [vmem:[%s370 + $0x428] sm:$0xff] %v8508
      %11073 = vst [vmem:[%s370 + $0x430] sm:$0xff] %v8523
      %11074 = vst [vmem:[%s370 + $0x438] sm:$0xff] %v8538
      %11075 = vst [vmem:[%s370 + $0x440] sm:$0xff] %v8553
      %11076 = vst [vmem:[%s370 + $0x448] sm:$0xff] %v8568
      %11077 = vst [vmem:[%s370 + $0x450] sm:$0xff] %v8583
      %11078 = vst [vmem:[%s370 + $0x458] sm:$0xff] %v8598
      %11079 = vst [vmem:[%s370 + $0x460] sm:$0xff] %v8613
      %11080 = vst [vmem:[%s370 + $0x468] sm:$0xff] %v8628
      %11081 = vst [vmem:[%s370 + $0x470] sm:$0xff] %v8643
      %11082 = vst [vmem:[%s370 + $0x478] sm:$0xff] %v8658
      %11083 = vst [vmem:[%s370 + $0x480] sm:$0xff] %v8673
      %11084 = vst [vmem:[%s370 + $0x488] sm:$0xff] %v8688
      %11085 = vst [vmem:[%s370 + $0x490] sm:$0xff] %v8703
      %11086 = vst.msk [vmem:[%s370 + $0x498] sm:$0xff] %vm3333, %v8718
      %11087 = vst [vmem:[%s370 + $0x4a0] sm:$0xff] %v8733
      %11088 = vst [vmem:[%s370 + $0x4a8] sm:$0xff] %v8748
      %11089 = vst [vmem:[%s370 + $0x4b0] sm:$0xff] %v8763
      %11090 = vst [vmem:[%s370 + $0x4b8] sm:$0xff] %v8778
      %11091 = vst [vmem:[%s370 + $0x4c0] sm:$0xff] %v8793
      %11092 = vst [vmem:[%s370 + $0x4c8] sm:$0xff] %v8808
      %11093 = vst [vmem:[%s370 + $0x4d0] sm:$0xff] %v8823
      %11094 = vst [vmem:[%s370 + $0x4d8] sm:$0xff] %v8838
      %11095 = vst [vmem:[%s370 + $0x4e0] sm:$0xff] %v8853
      %11096 = vst [vmem:[%s370 + $0x4e8] sm:$0xff] %v8868
      %11097 = vst [vmem:[%s370 + $0x4f0] sm:$0xff] %v8883
      %11098 = vst [vmem:[%s370 + $0x4f8] sm:$0xff] %v8898
      %11099 = vst [vmem:[%s370 + $0x500] sm:$0xff] %v8913
      %11100 = vst [vmem:[%s370 + $0x508] sm:$0xff] %v8928
      %11101 = vst [vmem:[%s370 + $0x510] sm:$0xff] %v8943
      %11102 = vst [vmem:[%s370 + $0x518] sm:$0xff] %v8958
      %11103 = vst [vmem:[%s370 + $0x520] sm:$0xff] %v8973
      %11104 = vst [vmem:[%s370 + $0x528] sm:$0xff] %v8988
      %11105 = vst [vmem:[%s370 + $0x530] sm:$0xff] %v9003
      %11106 = vst [vmem:[%s370 + $0x538] sm:$0xff] %v9018
      %11107 = vst [vmem:[%s370 + $0x540] sm:$0xff] %v9033
      %11108 = vst [vmem:[%s370 + $0x548] sm:$0xff] %v9048
      %11109 = vst [vmem:[%s370 + $0x550] sm:$0xff] %v9063
      %11110 = vst [vmem:[%s370 + $0x558] sm:$0xff] %v9078
      %11111 = vst [vmem:[%s370 + $0x560] sm:$0xff] %v9093
      %11112 = vst [vmem:[%s370 + $0x568] sm:$0xff] %v9108
      %11113 = vst [vmem:[%s370 + $0x570] sm:$0xff] %v9123
      %11114 = vst [vmem:[%s370 + $0x578] sm:$0xff] %v9138
      %11115 = vst [vmem:[%s370 + $0x580] sm:$0xff] %v9153
      %11116 = vst [vmem:[%s370 + $0x588] sm:$0xff] %v9168
      %11117 = vst [vmem:[%s370 + $0x590] sm:$0xff] %v9183
      %11118 = vst [vmem:[%s370 + $0x598] sm:$0xff] %v9198
      %11119 = vst [vmem:[%s370 + $0x5a0] sm:$0xff] %v9213
      %11120 = vst [vmem:[%s370 + $0x5a8] sm:$0xff] %v9228
      %11121 = vst [vmem:[%s370 + $0x5b0] sm:$0xff] %v9243
      %11122 = vst [vmem:[%s370 + $0x5b8] sm:$0xff] %v9258
      %11123 = vst.msk [vmem:[%s370 + $0x5c0] sm:$0xff] %vm3333, %v9273
      %11124 = vst [vmem:[%s370 + $0x5c8] sm:$0xff] %v9288
      %11125 = vst [vmem:[%s370 + $0x5d0] sm:$0xff] %v9303
      %11126 = vst [vmem:[%s370 + $0x5d8] sm:$0xff] %v9318
      %11127 = vst [vmem:[%s370 + $0x5e0] sm:$0xff] %v9333
      %11128 = vst [vmem:[%s370 + $0x5e8] sm:$0xff] %v9348
      %11129 = vst [vmem:[%s370 + $0x5f0] sm:$0xff] %v9363
      %11130 = vst [vmem:[%s370 + $0x5f8] sm:$0xff] %v9378
      %11131 = vst [vmem:[%s370 + $0x600] sm:$0xff] %v9393
      %11132 = vst [vmem:[%s370 + $0x608] sm:$0xff] %v9408
      %11133 = vst [vmem:[%s370 + $0x610] sm:$0xff] %v9423
      %11134 = vst [vmem:[%s370 + $0x618] sm:$0xff] %v9438
      %11135 = vst [vmem:[%s370 + $0x620] sm:$0xff] %v9453
      %11136 = vst [vmem:[%s370 + $0x628] sm:$0xff] %v9468
      %11137 = vst [vmem:[%s370 + $0x630] sm:$0xff] %v9483
      %11138 = vst [vmem:[%s370 + $0x638] sm:$0xff] %v9498
      %11139 = vst [vmem:[%s370 + $0x640] sm:$0xff] %v9513
      %11140 = vst [vmem:[%s370 + $0x648] sm:$0xff] %v9528
      %11141 = vst [vmem:[%s370 + $0x650] sm:$0xff] %v9543
      %11142 = vst [vmem:[%s370 + $0x658] sm:$0xff] %v9558
      %11143 = vst [vmem:[%s370 + $0x660] sm:$0xff] %v9573
      %11144 = vst [vmem:[%s370 + $0x668] sm:$0xff] %v9588
      %11145 = vst [vmem:[%s370 + $0x670] sm:$0xff] %v9603
      %11146 = vst [vmem:[%s370 + $0x678] sm:$0xff] %v9618
      %11147 = vst [vmem:[%s370 + $0x680] sm:$0xff] %v9633
      %11148 = vst [vmem:[%s370 + $0x688] sm:$0xff] %v9648
      %11149 = vst [vmem:[%s370 + $0x690] sm:$0xff] %v9663
      %11150 = vst [vmem:[%s370 + $0x698] sm:$0xff] %v9678
      %11151 = vst [vmem:[%s370 + $0x6a0] sm:$0xff] %v9693
      %11152 = vst [vmem:[%s370 + $0x6a8] sm:$0xff] %v9708
      %11153 = vst [vmem:[%s370 + $0x6b0] sm:$0xff] %v9723
      %11154 = vst [vmem:[%s370 + $0x6b8] sm:$0xff] %v9738
      %11155 = vst [vmem:[%s370 + $0x6c0] sm:$0xff] %v9753
      %11156 = vst [vmem:[%s370 + $0x6c8] sm:$0xff] %v9768
      %11157 = vst [vmem:[%s370 + $0x6d0] sm:$0xff] %v9783
      %11158 = vst [vmem:[%s370 + $0x6d8] sm:$0xff] %v9798
      %11159 = vst [vmem:[%s370 + $0x6e0] sm:$0xff] %v9813
      %11160 = vst.msk [vmem:[%s370 + $0x6e8] sm:$0xff] %vm3333, %v9828
      %11161 = vst [vmem:[%s370 + $0x6f0] sm:$0xff] %v9843
      %11162 = vst [vmem:[%s370 + $0x6f8] sm:$0xff] %v9858
      %11163 = vst [vmem:[%s370 + $0x700] sm:$0xff] %v9873
      %11164 = vst [vmem:[%s370 + $0x708] sm:$0xff] %v9888
      %11165 = vst [vmem:[%s370 + $0x710] sm:$0xff] %v9903
      %11166 = vst [vmem:[%s370 + $0x718] sm:$0xff] %v9918
      %11167 = vst [vmem:[%s370 + $0x720] sm:$0xff] %v9933
      %11168 = vst [vmem:[%s370 + $0x728] sm:$0xff] %v9948
      %11169 = vst [vmem:[%s370 + $0x730] sm:$0xff] %v9963
      %11170 = vst [vmem:[%s370 + $0x738] sm:$0xff] %v9978
      %11171 = vst [vmem:[%s370 + $0x740] sm:$0xff] %v9993
      %11172 = vst [vmem:[%s370 + $0x748] sm:$0xff] %v10008
      %11173 = vst [vmem:[%s370 + $0x750] sm:$0xff] %v10023
      %11174 = vst [vmem:[%s370 + $0x758] sm:$0xff] %v10038
      %11175 = vst [vmem:[%s370 + $0x760] sm:$0xff] %v10053
      %11176 = vst [vmem:[%s370 + $0x768] sm:$0xff] %v10068
      %11177 = vst [vmem:[%s370 + $0x770] sm:$0xff] %v10083
      %11178 = vst [vmem:[%s370 + $0x778] sm:$0xff] %v10098
      %11179 = vst [vmem:[%s370 + $0x780] sm:$0xff] %v10113
      %11180 = vst [vmem:[%s370 + $0x788] sm:$0xff] %v10128
      %11181 = vst [vmem:[%s370 + $0x790] sm:$0xff] %v10143
      %11182 = vst [vmem:[%s370 + $0x798] sm:$0xff] %v10158
      %11183 = vst [vmem:[%s370 + $0x7a0] sm:$0xff] %v10173
      %11184 = vst [vmem:[%s370 + $0x7a8] sm:$0xff] %v10188
      %11185 = vst [vmem:[%s370 + $0x7b0] sm:$0xff] %v10203
      %11186 = vst [vmem:[%s370 + $0x7b8] sm:$0xff] %v10218
      %11187 = vst [vmem:[%s370 + $0x7c0] sm:$0xff] %v10233
      %11188 = vst [vmem:[%s370 + $0x7c8] sm:$0xff] %v10248
      %11189 = vst [vmem:[%s370 + $0x7d0] sm:$0xff] %v10263
      %11190 = vst [vmem:[%s370 + $0x7d8] sm:$0xff] %v10278
      %11191 = vst [vmem:[%s370 + $0x7e0] sm:$0xff] %v10293
      %11192 = vst [vmem:[%s370 + $0x7e8] sm:$0xff] %v10308
      %11193 = vst [vmem:[%s370 + $0x7f0] sm:$0xff] %v10323
      %11194 = vst [vmem:[%s370 + $0x7f8] sm:$0xff] %v10338
      %11195 = vst [vmem:[%s370 + $0x800] sm:$0xff] %v10353
      %11196 = vst [vmem:[%s370 + $0x808] sm:$0xff] %v10368
      %11197 = vst.msk [vmem:[%s370 + $0x810] sm:$0xff] %vm3333, %v10383
      %11198 = vst [vmem:[%s370 + $0x818] sm:$0xff] %v10398
      %11199 = vst [vmem:[%s370 + $0x820] sm:$0xff] %v10413
      %11200 = vst [vmem:[%s370 + $0x828] sm:$0xff] %v10428
      %11201 = vst [vmem:[%s370 + $0x830] sm:$0xff] %v10443
      %11202 = vst [vmem:[%s370 + $0x838] sm:$0xff] %v10458
      %11203 = vst [vmem:[%s370 + $0x840] sm:$0xff] %v10473
      %11204 = vst [vmem:[%s370 + $0x848] sm:$0xff] %v10488
      %11205 = vst [vmem:[%s370 + $0x850] sm:$0xff] %v10503
      %11206 = vst [vmem:[%s370 + $0x858] sm:$0xff] %v10518
      %11207 = vst [vmem:[%s370 + $0x860] sm:$0xff] %v10533
      %11208 = vst [vmem:[%s370 + $0x868] sm:$0xff] %v10548
      %11209 = vst [vmem:[%s370 + $0x870] sm:$0xff] %v10563
      %11210 = vst [vmem:[%s370 + $0x878] sm:$0xff] %v10578
      %11211 = vst [vmem:[%s370 + $0x880] sm:$0xff] %v10593
      %11212 = vst [vmem:[%s370 + $0x888] sm:$0xff] %v10608
      %11213 = vst [vmem:[%s370 + $0x890] sm:$0xff] %v10623
      %11214 = vst [vmem:[%s370 + $0x898] sm:$0xff] %v10638
      %11215 = vst [vmem:[%s370 + $0x8a0] sm:$0xff] %v10653
      %11216 = vst [vmem:[%s370 + $0x8a8] sm:$0xff] %v10668
      %11217 = vst [vmem:[%s370 + $0x8b0] sm:$0xff] %v10683
      %11218 = vst [vmem:[%s370 + $0x8b8] sm:$0xff] %v10698
      %11219 = vst [vmem:[%s370 + $0x8c0] sm:$0xff] %v10713
      %11220 = vst [vmem:[%s370 + $0x8c8] sm:$0xff] %v10728
      %11221 = vst [vmem:[%s370 + $0x8d0] sm:$0xff] %v10743
      %11222 = vst [vmem:[%s370 + $0x8d8] sm:$0xff] %v10758
      %11223 = vst [vmem:[%s370 + $0x8e0] sm:$0xff] %v10773
      %11224 = vst [vmem:[%s370 + $0x8e8] sm:$0xff] %v10788
      %11225 = vst [vmem:[%s370 + $0x8f0] sm:$0xff] %v10803
      %11226 = vst [vmem:[%s370 + $0x8f8] sm:$0xff] %v10818
      %11227 = vst [vmem:[%s370 + $0x900] sm:$0xff] %v10833
      %11228 = vst [vmem:[%s370 + $0x908] sm:$0xff] %v10848
      %11229 = vst [vmem:[%s370 + $0x910] sm:$0xff] %v10863
      %11230 = vst [vmem:[%s370 + $0x918] sm:$0xff] %v10878
      %11231 = vst [vmem:[%s370 + $0x920] sm:$0xff] %v10893
      %11232 = vst [vmem:[%s370 + $0x928] sm:$0xff] %v10908
      %11233 = vst [vmem:[%s370 + $0x930] sm:$0xff] %v10923
      %11234 = vst.msk [vmem:[%s370 + $0x938] sm:$0xff] %vm3333, %v10938
      %s11235 = smul.u32 8, %s18
      %p11236 = scmp.lt.s32.totalorder %s11235, 15
      %s11237 = scalar_select %p11236, %s11235, 15
      %s11238 = smul.addr %s11237, 37
      %s11239 = smul.addr %s11238, 8
      %s11240 = scalar_lea.vmem %s7, %s11239
      // Predicated region
      $region49: #{model_forward.1} parent=47 // pred_check
        %p11241 = pneg %p208
      $region50: #{model_forward.1} parent=47 // pred_check_branch
        %11243 = sbr.rel (%p11241) target = $region52
      $region51: #{model_forward.1} parent=47 // pred_region
        %s11244 = smul.u32 8, %s18
      $region52: #{model_forward.1} parent=47 // pred_fallthru
        _
    $region48: #{model_forward.1} parent=5 // pred_fallthru
      _
    %p11245 = scmp.le.s32.totalorder 2, %s13
    // Predicated region
    $region53: #{model_forward.1} parent=5 // pred_check
      %p11246 = pneg %p11245
    $region54: #{model_forward.1} parent=5 // pred_check_branch
      %11248 = sbr.rel (%p11246) target = $region56
    $region55: #{model_forward.1} parent=5 // pred_region
      %s11249 = ssub.s32 %s13, 2
      // Predicated region
      $region57: #{model_forward.1} parent=55 // pred_check
        %p11250 = pneg %p214
      $region58: #{model_forward.1} parent=55 // pred_check_branch
        %11252 = sbr.rel (%p11250) target = $region60
      $region59: #{model_forward.1} parent=55 // pred_region
        %s11253 = smul.u32 8, %s19
        %p11254 = scmp.lt.s32.totalorder %s11253, 15
        %s11255 = scalar_select %p11254, %s11253, 15
        %s11256 = smul.addr %s11255, 37
        %s11257 = smul.addr %s11256, 8
        %s11258 = scalar_lea.vmem %s7, %s11257
      $region60: #{model_forward.1} parent=55 // pred_fallthru
        _
    $region56: #{model_forward.1} parent=5 // pred_fallthru
      _
  $region6: #{model_forward.1} parent=0 // loop_footer
    %s17 = sadd.s32 1, %s13
  $region7: #{model_forward.1} parent=0 // loop_footer_branch
    %12 = sbr.rel target = $region3
  $region8: #{model_forward.1} parent=0 // loop_exit
    _

</llo_original>
